<compile_context>
chip_gen: v7x
topology: tpu7x:2x2x1
jax: 0.10.0
libtpu: 0.0.40
codegen_flags: <defaults>
</compile_context>

<pallas_src>
import functools

import jax
import jax.numpy as jnp
from jax.experimental import pallas as pl
from jax.experimental.pallas import tpu as pltpu

_VMEM_LIMIT = 48 * 1024 * 1024  # <= v7x's 64 MiB physical VMEM, with headroom


def _round_up(x, m):
    return (x + m - 1) // m * m


# ---------------------------------------------------------------------------
# Pallas kernels
# ---------------------------------------------------------------------------
def _matmul_bias_act_kernel(x_ref, w_ref, b_ref, o_ref, *, relu):
    # relu?(x @ w + t)   (bias already carries the folded BatchNorm)
    z = jnp.dot(x_ref[...], w_ref[...], preferred_element_type=jnp.float32)
    z = z + b_ref[...]
    if relu:
        z = jnp.maximum(z, 0.0)
    o_ref[...] = z.astype(o_ref.dtype)


def matmul_bias_act(x, w, b, *, relu, out_dtype):
    """relu?(x @ w + b), tiled over M.  K and N stay as full blocks (all layers
    here fit easily in VMEM).  x/w are bf16, accumulation + epilogue in f32."""
    M, K = x.shape
    N = w.shape[1]
    tm = min(512, _round_up(M, 8))
    if M >= 256 and _round_up(M, tm) // tm < 2:
        # keep at least 2 M-blocks so the parallel axis can use both v7x cores
        tm = _round_up(tm // 2, 8)
    Mp = _round_up(M, tm)
    if Mp != M:
        x = jnp.pad(x, ((0, Mp - M), (0, 0)))

    out = pl.pallas_call(
        functools.partial(_matmul_bias_act_kernel, relu=relu),
        out_shape=jax.ShapeDtypeStruct((Mp, N), out_dtype),
        grid=(Mp // tm,),
        in_specs=[
            pl.BlockSpec((tm, K), lambda i: (i, 0)),
            pl.BlockSpec((K, N), lambda i: (0, 0)),
            pl.BlockSpec((1, N), lambda i: (0, 0)),
        ],
        out_specs=pl.BlockSpec((tm, N), lambda i: (i, 0)),
        compiler_params=pltpu.CompilerParams(
            dimension_semantics=("parallel",),
            vmem_limit_bytes=_VMEM_LIMIT,
        ),
    )(x, w, b)
    return out[:M] if Mp != M else out


def _max4_kernel(a_ref, b_ref, c_ref, d_ref, o_ref):
    o_ref[...] = jnp.maximum(jnp.maximum(a_ref[...], b_ref[...]),
                             jnp.maximum(c_ref[...], d_ref[...]))


def maxpool2x2(x):
    """2x2 / stride-2 max pool on NHWC.  Window extraction is XLA strided
    slicing (glue); the reduction runs in Pallas on a lane-dense (rows, 128)
    view so stores are full-lane.
    # TODO(synk): fuse the pool into the preceding conv kernel's epilogue
    # (needs in-kernel strided / reshaped sublane access)."""
    B, H, W, C = x.shape
    parts = (x[:, 0::2, 0::2, :], x[:, 0::2, 1::2, :],
             x[:, 1::2, 0::2, :], x[:, 1::2, 1::2, :])
    n = B * (H // 2) * (W // 2) * C
    shp = (n // 128, 128) if n % 128 == 0 else (B * (H // 2) * (W // 2), C)
    parts = tuple(t.reshape(shp) for t in parts)
    spec = pl.BlockSpec(shp, lambda i: (0, 0))
    out = pl.pallas_call(
        _max4_kernel,
        out_shape=jax.ShapeDtypeStruct(shp, x.dtype),
        grid=(1,),
        in_specs=[spec] * 4,
        out_specs=spec,
    )(*parts)
    return out.reshape(B, H // 2, W // 2, C)


def conv3x3_bn_relu(x, wf, t):
    """3x3 conv (stride 1, pad 1) + folded BN + ReLU as an im2col matmul.

    x:  (B, H, W, Cin) NHWC bf16 activations.
    wf: (Kp, Cout) prepped bf16 weight, rows ordered (kh, kw, ci), BN scale
        folded in, optionally zero-padded along K.
    t:  (1, Cout) folded f32 bias.
    The im2col is a channel-contiguous concat of the 9 shifted views (no
    interleaving stack); matmul + bias + ReLU run in one Pallas kernel.
    # TODO(synk): move the im2col fully inside the kernel (9 accumulated
    # shifted matmuls) to remove the 9x activation expansion in HBM."""
    B, H, W, Cin = x.shape
    Kp, Cout = wf.shape
    xp = jnp.pad(x, ((0, 0), (1, 1), (1, 1), (0, 0)))
    cols = [xp[:, kh:kh + H, kw:kw + W, :] for kh in range(3) for kw in range(3)]
    p = jnp.concatenate(cols, axis=-1).reshape(B * H * W, 9 * Cin)
    if Kp != 9 * Cin:                       # conv1: K zero-padded 27 -> 32
        p = jnp.pad(p, ((0, 0), (0, Kp - 9 * Cin)))
    y = matmul_bias_act(p, wf, t, relu=True, out_dtype=jnp.bfloat16)
    return y.reshape(B, H, W, Cout)


def _head_kernel(feat_ref, pre_w_ref, pre_t_ref, disc_w_ref, disc_t_ref,
                 dfc_w_ref, dfc_b_ref, swi_w_ref, swi_b_ref,
                 cls1_w_ref, cls1_b_ref, cls2_w_ref, cls2_b_ref,
                 dom_ref, swi_ref, cls_ref):
    """Fused dense head: pre_classifier -> {discriminator -> (domain fc,
    switcher)} and {classifier L1 -> both partitioned L2 branches}."""
    f32 = jnp.float32
    bf16 = jnp.bfloat16

    feature = jnp.dot(feat_ref[...], pre_w_ref[...], preferred_element_type=f32)
    feature = jnp.maximum(feature + pre_t_ref[...], 0.0)
    feature_b = feature.astype(bf16)

    dp = jnp.dot(feature_b, disc_w_ref[...], preferred_element_type=f32)
    dp = jnp.maximum(dp + disc_t_ref[...], 0.0)
    dp_b = dp.astype(bf16)

    dom_ref[...] = (jnp.dot(dp_b, dfc_w_ref[...], preferred_element_type=f32)
                    + dfc_b_ref[...]).astype(dom_ref.dtype)
    swi_ref[...] = (jnp.dot(dp_b, swi_w_ref[...], preferred_element_type=f32)
                    + swi_b_ref[...]).astype(swi_ref.dtype)

    h1 = jnp.dot(feature_b, cls1_w_ref[...], preferred_element_type=f32)
    h1 = jnp.maximum(h1 + cls1_b_ref[...], 0.0).astype(bf16)
    for p in range(cls_ref.shape[0]):  # static unroll over partitions
        cls_ref[p] = (jnp.dot(h1, cls2_w_ref[p], preferred_element_type=f32)
                      + cls2_b_ref[...]).astype(cls_ref.dtype)


def head_forward(q, feat):
    B, Kf = feat.shape
    pre_n = q['pre_w'].shape[1]
    pl_n = q['cls1_w'].shape[1]
    nd = q['dfc_w'].shape[1]
    npart = q['cls2_w'].shape[0]
    nc = q['cls2_w'].shape[2]

    feat = feat.astype(jnp.bfloat16)
    full2 = lambda shape: pl.BlockSpec(shape, lambda i: (0, 0))
    full3 = lambda shape: pl.BlockSpec(shape, lambda i: (0, 0, 0))

    out_shape = (jax.ShapeDtypeStruct((B, nd), jnp.float32),
                 jax.ShapeDtypeStruct((B, npart), jnp.float32),
                 jax.ShapeDtypeStruct((npart, B, nc), jnp.float32))

    dom, swi, cls = pl.pallas_call(
        _head_kernel,
        out_shape=out_shape,
        grid=(1,),
        in_specs=[
            full2((B, Kf)), full2((Kf, pre_n)), full2((1, pre_n)),
            full2((pre_n, pl_n)), full2((1, pl_n)),
            full2((pl_n, nd)), full2((1, nd)),
            full2((pl_n, npart)), full2((1, npart)),
            full2((pre_n, pl_n)), full2((1, pl_n)),
            full3((npart, pl_n, nc)), full2((1, nc)),
        ],
        out_specs=(full2((B, nd)), full2((B, npart)), full3((npart, B, nc))),
        compiler_params=pltpu.CompilerParams(
            dimension_semantics=("arbitrary",),
            vmem_limit_bytes=_VMEM_LIMIT,
        ),
    )(feat, q['pre_w'], q['pre_t'],
      q['disc_w'], q['disc_t'],
      q['dfc_w'], q['dfc_b'],
      q['sw_w'], q['sw_b'],
      q['cls1_w'], q['cls1_b'],
      q['cls2_w'], q['cls2_b'])
    return dom, swi, cls


# ---------------------------------------------------------------------------
# Deterministic synthetic parameters (torch-like layouts), then a one-time
# prep step that folds BN, pre-transposes / permutes and casts to bf16.
# ---------------------------------------------------------------------------
def init_params(key, num_classes=10, pre_out=256, part_layer=128,
                n_partition=2, num_domains=2):
    ks = iter(jax.random.split(key, 64))

    def dense(o, i, s=0.05):
        return (jax.random.normal(next(ks), (o, i), jnp.float32) * s,
                jax.random.normal(next(ks), (o,), jnp.float32) * s)

    def conv(o, i):
        return (jax.random.normal(next(ks), (o, i, 3, 3), jnp.float32) * 0.1,
                jax.random.normal(next(ks), (o,), jnp.float32) * 0.1)

    def bn(c, eps=1e-5):
        # TODO(synk): BatchNorm is evaluated in inference mode (running stats
        # folded to an affine); training-mode batch statistics not implemented.
        gamma = 1.0 + 0.1 * jax.random.normal(next(ks), (c,), jnp.float32)
        beta = 0.1 * jax.random.normal(next(ks), (c,), jnp.float32)
        mean = 0.1 * jax.random.normal(next(ks), (c,), jnp.float32)
        var = jax.random.uniform(next(ks), (c,), jnp.float32, minval=0.5, maxval=1.5)
        s = gamma / jnp.sqrt(var + eps)
        t = beta - mean * s
        return s, t

    p = {}
    p['conv1_w'], p['conv1_b'] = conv(32, 3)
    p['bn1_s'], p['bn1_t'] = bn(32)
    p['conv2_w'], p['conv2_b'] = conv(64, 32)
    p['bn2_s'], p['bn2_t'] = bn(64)
    p['conv3_w'], p['conv3_b'] = conv(128, 64)
    p['bn3_s'], p['bn3_t'] = bn(128)
    p['pre_w'], p['pre_b'] = dense(pre_out, 128 * 8 * 8, 0.02)
    p['pre_bn_s'], p['pre_bn_t'] = bn(pre_out)
    p['cls_w1'], p['cls_b1'] = dense(part_layer, pre_out)
    p['cls_w2'], p['cls_b2'] = dense(num_classes, part_layer)
    p['disc_w1'], p['disc_b1'] = dense(part_layer, pre_out)
    p['disc_bn_s'], p['disc_bn_t'] = bn(part_layer)
    p['dfc_w'], p['dfc_b'] = dense(num_domains, part_layer)
    p['sw_w'], p['sw_b'] = dense(n_partition, part_layer)
    return p


def prepare_params(p, n_partition=2):
    """One-time weight prep: fold eval-mode BN + bias, pre-transpose/reshape,
    cast matmul operands to bf16 (biases stay f32)."""
    f32, bf16 = jnp.float32, jnp.bfloat16
    q = {}

    def conv_prep(w, b, s, t, pad_k_to=None):
        cout, cin = w.shape[0], w.shape[1]
        # wf[(kh*3+kw)*Cin + ci, co] = w[co, ci, kh, kw] * bn_scale[co]
        wf = jnp.transpose(w, (2, 3, 1, 0)).reshape(9 * cin, cout) * s[None, :]
        if pad_k_to is not None and pad_k_to > 9 * cin:
            wf = jnp.pad(wf, ((0, pad_k_to - 9 * cin), (0, 0)))
        bias = (b * s + t).reshape(1, cout).astype(f32)
        return wf.astype(bf16), bias

    q['conv1_w'], q['conv1_t'] = conv_prep(p['conv1_w'], p['conv1_b'],
                                           p['bn1_s'], p['bn1_t'], pad_k_to=32)
    q['conv2_w'], q['conv2_t'] = conv_prep(p['conv2_w'], p['conv2_b'],
                                           p['bn2_s'], p['bn2_t'])
    q['conv3_w'], q['conv3_t'] = conv_prep(p['conv3_w'], p['conv3_b'],
                                           p['bn3_s'], p['bn3_t'])

    # pre_classifier weight is (pre_out, 128*8*8) over an NCHW flatten;
    # permute its K axis to NHWC order so the forward can flatten the NHWC
    # conv output directly (no activation transpose), fold BN, pre-transpose.
    pre_out = p['pre_w'].shape[0]
    pw = p['pre_w'].reshape(pre_out, 128, 8, 8)
    pw = jnp.transpose(pw, (2, 3, 1, 0)).reshape(8 * 8 * 128, pre_out)
    q['pre_w'] = (pw * p['pre_bn_s'][None, :]).astype(bf16)
    q['pre_t'] = (p['pre_b'] * p['pre_bn_s'] + p['pre_bn_t']).reshape(1, -1).astype(f32)

    q['disc_w'] = (p['disc_w1'].T * p['disc_bn_s'][None, :]).astype(bf16)
    q['disc_t'] = (p['disc_b1'] * p['disc_bn_s'] + p['disc_bn_t']).reshape(1, -1).astype(f32)

    q['dfc_w'] = p['dfc_w'].T.astype(bf16)
    q['dfc_b'] = p['dfc_b'].reshape(1, -1).astype(f32)
    q['sw_w'] = p['sw_w'].T.astype(bf16)
    q['sw_b'] = p['sw_b'].reshape(1, -1).astype(f32)

    # Partitioned classifier (after sync_classifier_with_subnetworks):
    # partition p uses row slice p of cls_w1/cls_b1 and column slice p of
    # cls_w2 with the shared bias (no BatchNorm in the partitioned path).
    # The column slice is realised as a zero-masked full (part_layer, nc)
    # matrix per partition so the kernel needs no unaligned lane slicing.
    q['cls1_w'] = p['cls_w1'].T.astype(bf16)
    q['cls1_b'] = p['cls_b1'].reshape(1, -1).astype(f32)
    part_layer = p['cls_w1'].shape[0]
    psize = part_layer // n_partition
    w2t = p['cls_w2'].T                      # (part_layer, num_classes)
    per_part = []
    for pi in range(n_partition):
        mask = jnp.zeros((part_layer, 1), f32).at[pi * psize:(pi + 1) * psize].set(1.0)
        per_part.append(w2t * mask)
    q['cls2_w'] = jnp.stack(per_part, axis=0).astype(bf16)
    q['cls2_b'] = p['cls_b2'].reshape(1, -1).astype(f32)
    return q


# ---------------------------------------------------------------------------
# Prunus.forward
# ---------------------------------------------------------------------------
def prunus_forward(q, x_nchw, key, alpha=1.0, tau=0.1):
    # `alpha` only affects the gradient-reversal backward pass; forward is identity.
    B = x_nchw.shape[0]
    x = jnp.transpose(x_nchw.astype(jnp.bfloat16), (0, 2, 3, 1))  # NCHW -> NHWC

    h = conv3x3_bn_relu(x, q['conv1_w'], q['conv1_t'])
    h = maxpool2x2(h)
    h = conv3x3_bn_relu(h, q['conv2_w'], q['conv2_t'])
    h = maxpool2x2(h)
    h = conv3x3_bn_relu(h, q['conv3_w'], q['conv3_t'])

    # NHWC flatten (pre_w rows were pre-permuted to match PyTorch's NCHW view)
    feat = h.reshape(B, -1)

    domain_output, switcher, cls_stack = head_forward(q, feat)

    # gumbel_softmax(logits, tau, hard=False) = softmax((logits + Gumbel)/tau)
    k1, k2 = jax.random.split(key)
    gumbel_noise = -jnp.log(jax.random.exponential(k1, switcher.shape) + 1e-20)
    gumbel_out = jax.nn.softmax((switcher + gumbel_noise) / tau, axis=-1)
    # torch.multinomial(probs, 1).squeeze(1) ~ categorical over probs
    partition_idx = jax.random.categorical(k2, jnp.log(gumbel_out + 1e-20), axis=-1)

    sel = cls_stack[partition_idx, jnp.arange(B)]            # (B, num_classes)
    # PyTorch multiplies by sum_j gumbel[b, j] (== 1 after softmax); kept for parity.
    class_output_partitioned = jnp.sum(gumbel_out, axis=1, keepdims=True) * sel

    # NOTE: PyTorch's forward also computes `self.classifier(feature)` into a
    # local that is never returned; that dead compute is skipped here.
    return class_output_partitioned, domain_output, partition_idx


if __name__ == "__main__":
    key = jax.random.PRNGKey(0)
    pkey, xkey, fkey = jax.random.split(key, 3)

    params = init_params(pkey)
    prepped = prepare_params(params)   # one-time: fold BN/bias, transpose, bf16
    # Input 32x32 is implied by the hard-coded 128*8*8 flatten in pre_classifier.
    x = jax.random.normal(xkey, (2, 3, 32, 32), jnp.float32)

    fwd = jax.jit(prunus_forward)
    cls_out, dom_out, pidx = fwd(prepped, x, fkey)
    jax.block_until_ready((cls_out, dom_out, pidx))

    assert cls_out.shape == (2, 10) and cls_out.dtype == jnp.float32
    assert dom_out.shape == (2, 2) and dom_out.dtype == jnp.float32
    assert pidx.shape == (2,)
    print("KERNEL_OK")
</pallas_src>

<mosaic_0001>
module attributes {stable_mosaic.version = 11 : i64} {
  func.func @_matmul_bias_act_kernel(%arg0: i32, %arg1: memref<512x32xbf16, #tpu.memory_space<vmem>>, %arg2: memref<32x32xbf16, #tpu.memory_space<vmem>>, %arg3: memref<1x32xf32, #tpu.memory_space<vmem>>, %arg4: memref<512x32xbf16, #tpu.memory_space<vmem>>) attributes {dimension_semantics = [#tpu.dimension_semantics<parallel>], iteration_bounds = array<i64: 4>, scalar_prefetch = 0 : i64, scratch_operands = 0 : i64, tpu.core_type = #tpu.core_type<tc>, window_params = [{transform_indices = @transform_0, window_bounds = array<i64: 512, 32>}, {pipeline_mode = #tpu.pipeline_mode<synchronous>, transform_indices = @transform_1, window_bounds = array<i64: 32, 32>}, {pipeline_mode = #tpu.pipeline_mode<synchronous>, transform_indices = @transform_2, window_bounds = array<i64: 1, 32>}, {transform_indices = @transform_3, window_bounds = array<i64: 512, 32>}]} {
    %c0 = arith.constant 0 : index
    %c0_0 = arith.constant 0 : index
    %0 = vector.load %arg1[%c0, %c0_0] : memref<512x32xbf16, #tpu.memory_space<vmem>>, vector<512x32xbf16>
    %c0_1 = arith.constant 0 : index
    %c0_2 = arith.constant 0 : index
    %1 = vector.load %arg2[%c0_1, %c0_2] : memref<32x32xbf16, #tpu.memory_space<vmem>>, vector<32x32xbf16>
    %cst = arith.constant dense<0.000000e+00> : vector<512x32xf32>
    %2 = tpu.matmul %0, %1, %cst {dimension_numbers = #tpu.dot_dimension_numbers<[1], [0], [0], [1], [0, 0, 1, 1], [], []>} : vector<512x32xbf16>, vector<32x32xbf16>, vector<512x32xf32> -> vector<512x32xf32>
    %c0_3 = arith.constant 0 : index
    %c0_4 = arith.constant 0 : index
    %3 = vector.load %arg3[%c0_3, %c0_4] : memref<1x32xf32, #tpu.memory_space<vmem>>, vector<1x32xf32>
    %4 = vector.broadcast %3 : vector<1x32xf32> to vector<512x32xf32>
    %5 = arith.addf %2, %4 : vector<512x32xf32>
    %cst_5 = arith.constant 0.000000e+00 : f32
    %6 = vector.broadcast %cst_5 : f32 to vector<512x32xf32>
    %7 = arith.maximumf %5, %6 : vector<512x32xf32>
    %8 = arith.truncf %7 : vector<512x32xf32> to vector<512x32xbf16>
    %c0_6 = arith.constant 0 : index
    %c0_7 = arith.constant 0 : index
    %9 = vector.load %arg4[%c0_6, %c0_7] : memref<512x32xbf16, #tpu.memory_space<vmem>>, vector<512x32xbf16>
    tpu.vector_store %arg4[%c0_6, %c0_7], %8 {strides = array<i32>} : memref<512x32xbf16, #tpu.memory_space<vmem>>, vector<512x32xbf16>,
    return
  }
  func.func @transform_0(%arg0: i32) -> (i32, i32) {
    %c0_i32 = arith.constant 0 : i32
    %c0_i32_0 = arith.constant 0 : i32
    return %arg0, %c0_i32 : i32, i32
  }
  func.func @transform_1(%arg0: i32) -> (i32, i32) {
    %c0_i32 = arith.constant 0 : i32
    %c0_i32_0 = arith.constant 0 : i32
    %c0_i32_1 = arith.constant 0 : i32
    return %c0_i32, %c0_i32_0 : i32, i32
  }
  func.func @transform_2(%arg0: i32) -> (i32, i32) {
    %c0_i32 = arith.constant 0 : i32
    %c0_i32_0 = arith.constant 0 : i32
    %c0_i32_1 = arith.constant 0 : i32
    return %c0_i32, %c0_i32_0 : i32, i32
  }
  func.func @transform_3(%arg0: i32) -> (i32, i32) {
    %c0_i32 = arith.constant 0 : i32
    %c0_i32_0 = arith.constant 0 : i32
    return %arg0, %c0_i32 : i32, i32
  }
}

module attributes {stable_mosaic.version = 11 : i64} {
  func.func @_max4_kernel(%arg0: i32, %arg1: memref<128x128xbf16, #tpu.memory_space<vmem>>, %arg2: memref<128x128xbf16, #tpu.memory_space<vmem>>, %arg3: memref<128x128xbf16, #tpu.memory_space<vmem>>, %arg4: memref<128x128xbf16, #tpu.memory_space<vmem>>, %arg5: memref<128x128xbf16, #tpu.memory_space<vmem>>) attributes {dimension_semantics = [#tpu.dimension_semantics<arbitrary>], iteration_bounds = array<i64: 1>, scalar_prefetch = 0 : i64, scratch_operands = 0 : i64, tpu.core_type = #tpu.core_type<tc>, window_params = [{pipeline_mode = #tpu.pipeline_mode<synchronous>, transform_indices = @transform_0, window_bounds = array<i64: 128, 128>}, {pipeline_mode = #tpu.pipeline_mode<synchronous>, transform_indices = @transform_1, window_bounds = array<i64: 128, 128>}, {pipeline_mode = #tpu.pipeline_mode<synchronous>, transform_indices = @transform_2, window_bounds = array<i64: 128, 128>}, {pipeline_mode = #tpu.pipeline_mode<synchronous>, transform_indices = @transform_3, window_bounds = array<i64: 128, 128>}, {pipeline_mode = #tpu.pipeline_mode<synchronous>, transform_indices = @transform_4, window_bounds = array<i64: 128, 128>}]} {
    %c0 = arith.constant 0 : index
    %c0_0 = arith.constant 0 : index
    %0 = vector.load %arg1[%c0, %c0_0] : memref<128x128xbf16, #tpu.memory_space<vmem>>, vector<128x128xbf16>
    %c0_1 = arith.constant 0 : index
    %c0_2 = arith.constant 0 : index
    %1 = vector.load %arg2[%c0_1, %c0_2] : memref<128x128xbf16, #tpu.memory_space<vmem>>, vector<128x128xbf16>
    %2 = arith.maximumf %0, %1 : vector<128x128xbf16>
    %c0_3 = arith.constant 0 : index
    %c0_4 = arith.constant 0 : index
    %3 = vector.load %arg3[%c0_3, %c0_4] : memref<128x128xbf16, #tpu.memory_space<vmem>>, vector<128x128xbf16>
    %c0_5 = arith.constant 0 : index
    %c0_6 = arith.constant 0 : index
    %4 = vector.load %arg4[%c0_5, %c0_6] : memref<128x128xbf16, #tpu.memory_space<vmem>>, vector<128x128xbf16>
    %5 = arith.maximumf %3, %4 : vector<128x128xbf16>
    %6 = arith.maximumf %2, %5 : vector<128x128xbf16>
    %c0_7 = arith.constant 0 : index
    %c0_8 = arith.constant 0 : index
    %7 = vector.load %arg5[%c0_7, %c0_8] : memref<128x128xbf16, #tpu.memory_space<vmem>>, vector<128x128xbf16>
    tpu.vector_store %arg5[%c0_7, %c0_8], %6 {strides = array<i32>} : memref<128x128xbf16, #tpu.memory_space<vmem>>, vector<128x128xbf16>,
    return
  }
  func.func @transform_0(%arg0: i32) -> (i32, i32) {
    %c0_i32 = arith.constant 0 : i32
    %c0_i32_0 = arith.constant 0 : i32
    %c0_i32_1 = arith.constant 0 : i32
    return %c0_i32, %c0_i32_0 : i32, i32
  }
  func.func @transform_1(%arg0: i32) -> (i32, i32) {
    %c0_i32 = arith.constant 0 : i32
    %c0_i32_0 = arith.constant 0 : i32
    %c0_i32_1 = arith.constant 0 : i32
    return %c0_i32, %c0_i32_0 : i32, i32
  }
  func.func @transform_2(%arg0: i32) -> (i32, i32) {
    %c0_i32 = arith.constant 0 : i32
    %c0_i32_0 = arith.constant 0 : i32
    %c0_i32_1 = arith.constant 0 : i32
    return %c0_i32, %c0_i32_0 : i32, i32
  }
  func.func @transform_3(%arg0: i32) -> (i32, i32) {
    %c0_i32 = arith.constant 0 : i32
    %c0_i32_0 = arith.constant 0 : i32
    %c0_i32_1 = arith.constant 0 : i32
    return %c0_i32, %c0_i32_0 : i32, i32
  }
  func.func @transform_4(%arg0: i32) -> (i32, i32) {
    %c0_i32 = arith.constant 0 : i32
    %c0_i32_0 = arith.constant 0 : i32
    %c0_i32_1 = arith.constant 0 : i32
    return %c0_i32, %c0_i32_0 : i32, i32
  }
}

module attributes {stable_mosaic.version = 11 : i64} {
  func.func @_matmul_bias_act_kernel(%arg0: i32, %arg1: memref<256x288xbf16, #tpu.memory_space<vmem>>, %arg2: memref<288x64xbf16, #tpu.memory_space<vmem>>, %arg3: memref<1x64xf32, #tpu.memory_space<vmem>>, %arg4: memref<256x64xbf16, #tpu.memory_space<vmem>>) attributes {dimension_semantics = [#tpu.dimension_semantics<parallel>], iteration_bounds = array<i64: 2>, scalar_prefetch = 0 : i64, scratch_operands = 0 : i64, tpu.core_type = #tpu.core_type<tc>, window_params = [{transform_indices = @transform_0, window_bounds = array<i64: 256, 288>}, {pipeline_mode = #tpu.pipeline_mode<synchronous>, transform_indices = @transform_1, window_bounds = array<i64: 288, 64>}, {pipeline_mode = #tpu.pipeline_mode<synchronous>, transform_indices = @transform_2, window_bounds = array<i64: 1, 64>}, {transform_indices = @transform_3, window_bounds = array<i64: 256, 64>}]} {
    %c0 = arith.constant 0 : index
    %c0_0 = arith.constant 0 : index
    %0 = vector.load %arg1[%c0, %c0_0] : memref<256x288xbf16, #tpu.memory_space<vmem>>, vector<256x288xbf16>
    %c0_1 = arith.constant 0 : index
    %c0_2 = arith.constant 0 : index
    %1 = vector.load %arg2[%c0_1, %c0_2] : memref<288x64xbf16, #tpu.memory_space<vmem>>, vector<288x64xbf16>
    %cst = arith.constant dense<0.000000e+00> : vector<256x64xf32>
    %2 = tpu.matmul %0, %1, %cst {dimension_numbers = #tpu.dot_dimension_numbers<[1], [0], [0], [1], [0, 0, 1, 1], [], []>} : vector<256x288xbf16>, vector<288x64xbf16>, vector<256x64xf32> -> vector<256x64xf32>
    %c0_3 = arith.constant 0 : index
    %c0_4 = arith.constant 0 : index
    %3 = vector.load %arg3[%c0_3, %c0_4] : memref<1x64xf32, #tpu.memory_space<vmem>>, vector<1x64xf32>
    %4 = vector.broadcast %3 : vector<1x64xf32> to vector<256x64xf32>
    %5 = arith.addf %2, %4 : vector<256x64xf32>
    %cst_5 = arith.constant 0.000000e+00 : f32
    %6 = vector.broadcast %cst_5 : f32 to vector<256x64xf32>
    %7 = arith.maximumf %5, %6 : vector<256x64xf32>
    %8 = arith.truncf %7 : vector<256x64xf32> to vector<256x64xbf16>
    %c0_6 = arith.constant 0 : index
    %c0_7 = arith.constant 0 : index
    %9 = vector.load %arg4[%c0_6, %c0_7] : memref<256x64xbf16, #tpu.memory_space<vmem>>, vector<256x64xbf16>
    tpu.vector_store %arg4[%c0_6, %c0_7], %8 {strides = array<i32>} : memref<256x64xbf16, #tpu.memory_space<vmem>>, vector<256x64xbf16>,
    return
  }
  func.func @transform_0(%arg0: i32) -> (i32, i32) {
    %c0_i32 = arith.constant 0 : i32
    %c0_i32_0 = arith.constant 0 : i32
    return %arg0, %c0_i32 : i32, i32
  }
  func.func @transform_1(%arg0: i32) -> (i32, i32) {
    %c0_i32 = arith.constant 0 : i32
    %c0_i32_0 = arith.constant 0 : i32
    %c0_i32_1 = arith.constant 0 : i32
    return %c0_i32, %c0_i32_0 : i32, i32
  }
  func.func @transform_2(%arg0: i32) -> (i32, i32) {
    %c0_i32 = arith.constant 0 : i32
    %c0_i32_0 = arith.constant 0 : i32
    %c0_i32_1 = arith.constant 0 : i32
    return %c0_i32, %c0_i32_0 : i32, i32
  }
  func.func @transform_3(%arg0: i32) -> (i32, i32) {
    %c0_i32 = arith.constant 0 : i32
    %c0_i32_0 = arith.constant 0 : i32
    return %arg0, %c0_i32 : i32, i32
  }
}

module attributes {stable_mosaic.version = 11 : i64} {
  func.func @_max4_kernel(%arg0: i32, %arg1: memref<64x128xbf16, #tpu.memory_space<vmem>>, %arg2: memref<64x128xbf16, #tpu.memory_space<vmem>>, %arg3: memref<64x128xbf16, #tpu.memory_space<vmem>>, %arg4: memref<64x128xbf16, #tpu.memory_space<vmem>>, %arg5: memref<64x128xbf16, #tpu.memory_space<vmem>>) attributes {dimension_semantics = [#tpu.dimension_semantics<arbitrary>], iteration_bounds = array<i64: 1>, scalar_prefetch = 0 : i64, scratch_operands = 0 : i64, tpu.core_type = #tpu.core_type<tc>, window_params = [{pipeline_mode = #tpu.pipeline_mode<synchronous>, transform_indices = @transform_0, window_bounds = array<i64: 64, 128>}, {pipeline_mode = #tpu.pipeline_mode<synchronous>, transform_indices = @transform_1, window_bounds = array<i64: 64, 128>}, {pipeline_mode = #tpu.pipeline_mode<synchronous>, transform_indices = @transform_2, window_bounds = array<i64: 64, 128>}, {pipeline_mode = #tpu.pipeline_mode<synchronous>, transform_indices = @transform_3, window_bounds = array<i64: 64, 128>}, {pipeline_mode = #tpu.pipeline_mode<synchronous>, transform_indices = @transform_4, window_bounds = array<i64: 64, 128>}]} {
    %c0 = arith.constant 0 : index
    %c0_0 = arith.constant 0 : index
    %0 = vector.load %arg1[%c0, %c0_0] : memref<64x128xbf16, #tpu.memory_space<vmem>>, vector<64x128xbf16>
    %c0_1 = arith.constant 0 : index
    %c0_2 = arith.constant 0 : index
    %1 = vector.load %arg2[%c0_1, %c0_2] : memref<64x128xbf16, #tpu.memory_space<vmem>>, vector<64x128xbf16>
    %2 = arith.maximumf %0, %1 : vector<64x128xbf16>
    %c0_3 = arith.constant 0 : index
    %c0_4 = arith.constant 0 : index
    %3 = vector.load %arg3[%c0_3, %c0_4] : memref<64x128xbf16, #tpu.memory_space<vmem>>, vector<64x128xbf16>
    %c0_5 = arith.constant 0 : index
    %c0_6 = arith.constant 0 : index
    %4 = vector.load %arg4[%c0_5, %c0_6] : memref<64x128xbf16, #tpu.memory_space<vmem>>, vector<64x128xbf16>
    %5 = arith.maximumf %3, %4 : vector<64x128xbf16>
    %6 = arith.maximumf %2, %5 : vector<64x128xbf16>
    %c0_7 = arith.constant 0 : index
    %c0_8 = arith.constant 0 : index
    %7 = vector.load %arg5[%c0_7, %c0_8] : memref<64x128xbf16, #tpu.memory_space<vmem>>, vector<64x128xbf16>
    tpu.vector_store %arg5[%c0_7, %c0_8], %6 {strides = array<i32>} : memref<64x128xbf16, #tpu.memory_space<vmem>>, vector<64x128xbf16>,
    return
  }
  func.func @transform_0(%arg0: i32) -> (i32, i32) {
    %c0_i32 = arith.constant 0 : i32
    %c0_i32_0 = arith.constant 0 : i32
    %c0_i32_1 = arith.constant 0 : i32
    return %c0_i32, %c0_i32_0 : i32, i32
  }
  func.func @transform_1(%arg0: i32) -> (i32, i32) {
    %c0_i32 = arith.constant 0 : i32
    %c0_i32_0 = arith.constant 0 : i32
    %c0_i32_1 = arith.constant 0 : i32
    return %c0_i32, %c0_i32_0 : i32, i32
  }
  func.func @transform_2(%arg0: i32) -> (i32, i32) {
    %c0_i32 = arith.constant 0 : i32
    %c0_i32_0 = arith.constant 0 : i32
    %c0_i32_1 = arith.constant 0 : i32
    return %c0_i32, %c0_i32_0 : i32, i32
  }
  func.func @transform_3(%arg0: i32) -> (i32, i32) {
    %c0_i32 = arith.constant 0 : i32
    %c0_i32_0 = arith.constant 0 : i32
    %c0_i32_1 = arith.constant 0 : i32
    return %c0_i32, %c0_i32_0 : i32, i32
  }
  func.func @transform_4(%arg0: i32) -> (i32, i32) {
    %c0_i32 = arith.constant 0 : i32
    %c0_i32_0 = arith.constant 0 : i32
    %c0_i32_1 = arith.constant 0 : i32
    return %c0_i32, %c0_i32_0 : i32, i32
  }
}

module attributes {stable_mosaic.version = 11 : i64} {
  func.func @_matmul_bias_act_kernel(%arg0: i32, %arg1: memref<128x576xbf16, #tpu.memory_space<vmem>>, %arg2: memref<576x128xbf16, #tpu.memory_space<vmem>>, %arg3: memref<1x128xf32, #tpu.memory_space<vmem>>, %arg4: memref<128x128xbf16, #tpu.memory_space<vmem>>) attributes {dimension_semantics = [#tpu.dimension_semantics<parallel>], iteration_bounds = array<i64: 1>, scalar_prefetch = 0 : i64, scratch_operands = 0 : i64, tpu.core_type = #tpu.core_type<tc>, window_params = [{transform_indices = @transform_0, window_bounds = array<i64: 128, 576>}, {pipeline_mode = #tpu.pipeline_mode<synchronous>, transform_indices = @transform_1, window_bounds = array<i64: 576, 128>}, {pipeline_mode = #tpu.pipeline_mode<synchronous>, transform_indices = @transform_2, window_bounds = array<i64: 1, 128>}, {transform_indices = @transform_3, window_bounds = array<i64: 128, 128>}]} {
    %c0 = arith.constant 0 : index
    %c0_0 = arith.constant 0 : index
    %0 = vector.load %arg1[%c0, %c0_0] : memref<128x576xbf16, #tpu.memory_space<vmem>>, vector<128x576xbf16>
    %c0_1 = arith.constant 0 : index
    %c0_2 = arith.constant 0 : index
    %1 = vector.load %arg2[%c0_1, %c0_2] : memref<576x128xbf16, #tpu.memory_space<vmem>>, vector<576x128xbf16>
    %cst = arith.constant dense<0.000000e+00> : vector<128x128xf32>
    %2 = tpu.matmul %0, %1, %cst {dimension_numbers = #tpu.dot_dimension_numbers<[1], [0], [0], [1], [0, 0, 1, 1], [], []>} : vector<128x576xbf16>, vector<576x128xbf16>, vector<128x128xf32> -> vector<128x128xf32>
    %c0_3 = arith.constant 0 : index
    %c0_4 = arith.constant 0 : index
    %3 = vector.load %arg3[%c0_3, %c0_4] : memref<1x128xf32, #tpu.memory_space<vmem>>, vector<1x128xf32>
    %4 = vector.broadcast %3 : vector<1x128xf32> to vector<128x128xf32>
    %5 = arith.addf %2, %4 : vector<128x128xf32>
    %cst_5 = arith.constant 0.000000e+00 : f32
    %6 = vector.broadcast %cst_5 : f32 to vector<128x128xf32>
    %7 = arith.maximumf %5, %6 : vector<128x128xf32>
    %8 = arith.truncf %7 : vector<128x128xf32> to vector<128x128xbf16>
    %c0_6 = arith.constant 0 : index
    %c0_7 = arith.constant 0 : index
    %9 = vector.load %arg4[%c0_6, %c0_7] : memref<128x128xbf16, #tpu.memory_space<vmem>>, vector<128x128xbf16>
    tpu.vector_store %arg4[%c0_6, %c0_7], %8 {strides = array<i32>} : memref<128x128xbf16, #tpu.memory_space<vmem>>, vector<128x128xbf16>,
    return
  }
  func.func @transform_0(%arg0: i32) -> (i32, i32) {
    %c0_i32 = arith.constant 0 : i32
    %c0_i32_0 = arith.constant 0 : i32
    return %arg0, %c0_i32 : i32, i32
  }
  func.func @transform_1(%arg0: i32) -> (i32, i32) {
    %c0_i32 = arith.constant 0 : i32
    %c0_i32_0 = arith.constant 0 : i32
    %c0_i32_1 = arith.constant 0 : i32
    return %c0_i32, %c0_i32_0 : i32, i32
  }
  func.func @transform_2(%arg0: i32) -> (i32, i32) {
    %c0_i32 = arith.constant 0 : i32
    %c0_i32_0 = arith.constant 0 : i32
    %c0_i32_1 = arith.constant 0 : i32
    return %c0_i32, %c0_i32_0 : i32, i32
  }
  func.func @transform_3(%arg0: i32) -> (i32, i32) {
    %c0_i32 = arith.constant 0 : i32
    %c0_i32_0 = arith.constant 0 : i32
    return %arg0, %c0_i32 : i32, i32
  }
}

module attributes {stable_mosaic.version = 11 : i64} {
  func.func @_head_kernel(%arg0: i32, %arg1: memref<2x8192xbf16, #tpu.memory_space<vmem>>, %arg2: memref<8192x256xbf16, #tpu.memory_space<vmem>>, %arg3: memref<1x256xf32, #tpu.memory_space<vmem>>, %arg4: memref<256x128xbf16, #tpu.memory_space<vmem>>, %arg5: memref<1x128xf32, #tpu.memory_space<vmem>>, %arg6: memref<128x2xbf16, #tpu.memory_space<vmem>>, %arg7: memref<1x2xf32, #tpu.memory_space<vmem>>, %arg8: memref<128x2xbf16, #tpu.memory_space<vmem>>, %arg9: memref<1x2xf32, #tpu.memory_space<vmem>>, %arg10: memref<256x128xbf16, #tpu.memory_space<vmem>>, %arg11: memref<1x128xf32, #tpu.memory_space<vmem>>, %arg12: memref<2x128x10xbf16, #tpu.memory_space<vmem>>, %arg13: memref<1x10xf32, #tpu.memory_space<vmem>>, %arg14: memref<2x2xf32, #tpu.memory_space<vmem>>, %arg15: memref<2x2xf32, #tpu.memory_space<vmem>>, %arg16: memref<2x2x10xf32, #tpu.memory_space<vmem>>) attributes {dimension_semantics = [#tpu.dimension_semantics<arbitrary>], iteration_bounds = array<i64: 1>, scalar_prefetch = 0 : i64, scratch_operands = 0 : i64, tpu.core_type = #tpu.core_type<tc>, window_params = [{pipeline_mode = #tpu.pipeline_mode<synchronous>, transform_indices = @transform_0, window_bounds = array<i64: 2, 8192>}, {pipeline_mode = #tpu.pipeline_mode<synchronous>, transform_indices = @transform_1, window_bounds = array<i64: 8192, 256>}, {pipeline_mode = #tpu.pipeline_mode<synchronous>, transform_indices = @transform_2, window_bounds = array<i64: 1, 256>}, {pipeline_mode = #tpu.pipeline_mode<synchronous>, transform_indices = @transform_3, window_bounds = array<i64: 256, 128>}, {pipeline_mode = #tpu.pipeline_mode<synchronous>, transform_indices = @transform_4, window_bounds = array<i64: 1, 128>}, {pipeline_mode = #tpu.pipeline_mode<synchronous>, transform_indices = @transform_5, window_bounds = array<i64: 128, 2>}, {pipeline_mode = #tpu.pipeline_mode<synchronous>, transform_indices = @transform_6, window_bounds = array<i64: 1, 2>}, {pipeline_mode = #tpu.pipeline_mode<synchronous>, transform_indices = @transform_7, window_bounds = array<i64: 128, 2>}, {pipeline_mode = #tpu.pipeline_mode<synchronous>, transform_indices = @transform_8, window_bounds = array<i64: 1, 2>}, {pipeline_mode = #tpu.pipeline_mode<synchronous>, transform_indices = @transform_9, window_bounds = array<i64: 256, 128>}, {pipeline_mode = #tpu.pipeline_mode<synchronous>, transform_indices = @transform_10, window_bounds = array<i64: 1, 128>}, {pipeline_mode = #tpu.pipeline_mode<synchronous>, transform_indices = @transform_11, window_bounds = array<i64: 2, 128, 10>}, {pipeline_mode = #tpu.pipeline_mode<synchronous>, transform_indices = @transform_12, window_bounds = array<i64: 1, 10>}, {pipeline_mode = #tpu.pipeline_mode<synchronous>, transform_indices = @transform_13, window_bounds = array<i64: 2, 2>}, {pipeline_mode = #tpu.pipeline_mode<synchronous>, transform_indices = @transform_14, window_bounds = array<i64: 2, 2>}, {pipeline_mode = #tpu.pipeline_mode<synchronous>, transform_indices = @transform_15, window_bounds = array<i64: 2, 2, 10>}]} {
    %c0 = arith.constant 0 : index
    %c0_0 = arith.constant 0 : index
    %0 = vector.load %arg1[%c0, %c0_0] : memref<2x8192xbf16, #tpu.memory_space<vmem>>, vector<2x8192xbf16>
    %c0_1 = arith.constant 0 : index
    %c0_2 = arith.constant 0 : index
    %1 = vector.load %arg2[%c0_1, %c0_2] : memref<8192x256xbf16, #tpu.memory_space<vmem>>, vector<8192x256xbf16>
    %cst = arith.constant dense<0.000000e+00> : vector<2x256xf32>
    %2 = tpu.matmul %0, %1, %cst {dimension_numbers = #tpu.dot_dimension_numbers<[1], [0], [0], [1], [0, 0, 1, 1], [], []>} : vector<2x8192xbf16>, vector<8192x256xbf16>, vector<2x256xf32> -> vector<2x256xf32>
    %c0_3 = arith.constant 0 : index
    %c0_4 = arith.constant 0 : index
    %3 = vector.load %arg3[%c0_3, %c0_4] : memref<1x256xf32, #tpu.memory_space<vmem>>, vector<1x256xf32>
    %4 = vector.broadcast %3 : vector<1x256xf32> to vector<2x256xf32>
    %5 = arith.addf %2, %4 : vector<2x256xf32>
    %cst_5 = arith.constant 0.000000e+00 : f32
    %6 = vector.broadcast %cst_5 : f32 to vector<2x256xf32>
    %7 = arith.maximumf %5, %6 : vector<2x256xf32>
    %8 = arith.truncf %7 : vector<2x256xf32> to vector<2x256xbf16>
    %c0_6 = arith.constant 0 : index
    %c0_7 = arith.constant 0 : index
    %9 = vector.load %arg4[%c0_6, %c0_7] : memref<256x128xbf16, #tpu.memory_space<vmem>>, vector<256x128xbf16>
    %cst_8 = arith.constant dense<0.000000e+00> : vector<2x128xf32>
    %10 = tpu.matmul %8, %9, %cst_8 {dimension_numbers = #tpu.dot_dimension_numbers<[1], [0], [0], [1], [0, 0, 1, 1], [], []>} : vector<2x256xbf16>, vector<256x128xbf16>, vector<2x128xf32> -> vector<2x128xf32>
    %c0_9 = arith.constant 0 : index
    %c0_10 = arith.constant 0 : index
    %11 = vector.load %arg5[%c0_9, %c0_10] : memref<1x128xf32, #tpu.memory_space<vmem>>, vector<1x128xf32>
    %12 = vector.broadcast %11 : vector<1x128xf32> to vector<2x128xf32>
    %13 = arith.addf %10, %12 : vector<2x128xf32>
    %cst_11 = arith.constant 0.000000e+00 : f32
    %14 = vector.broadcast %cst_11 : f32 to vector<2x128xf32>
    %15 = arith.maximumf %13, %14 : vector<2x128xf32>
    %16 = arith.truncf %15 : vector<2x128xf32> to vector<2x128xbf16>
    %c0_12 = arith.constant 0 : index
    %c0_13 = arith.constant 0 : index
    %17 = vector.load %arg6[%c0_12, %c0_13] : memref<128x2xbf16, #tpu.memory_space<vmem>>, vector<128x2xbf16>
    %cst_14 = arith.constant dense<0.000000e+00> : vector<2x2xf32>
    %18 = tpu.matmul %16, %17, %cst_14 {dimension_numbers = #tpu.dot_dimension_numbers<[1], [0], [0], [1], [0, 0, 1, 1], [], []>} : vector<2x128xbf16>, vector<128x2xbf16>, vector<2x2xf32> -> vector<2x2xf32>
    %c0_15 = arith.constant 0 : index
    %c0_16 = arith.constant 0 : index
    %19 = vector.load %arg7[%c0_15, %c0_16] : memref<1x2xf32, #tpu.memory_space<vmem>>, vector<1x2xf32>
    %20 = vector.broadcast %19 : vector<1x2xf32> to vector<2x2xf32>
    %21 = arith.addf %18, %20 : vector<2x2xf32>
    %c0_17 = arith.constant 0 : index
    %c0_18 = arith.constant 0 : index
    %22 = vector.load %arg14[%c0_17, %c0_18] : memref<2x2xf32, #tpu.memory_space<vmem>>, vector<2x2xf32>
    tpu.vector_store %arg14[%c0_17, %c0_18], %21 {strides = array<i32>} : memref<2x2xf32, #tpu.memory_space<vmem>>, vector<2x2xf32>,
    %c0_19 = arith.constant 0 : index
    %c0_20 = arith.constant 0 : index
    %23 = vector.load %arg8[%c0_19, %c0_20] : memref<128x2xbf16, #tpu.memory_space<vmem>>, vector<128x2xbf16>
    %cst_21 = arith.constant dense<0.000000e+00> : vector<2x2xf32>
    %24 = tpu.matmul %16, %23, %cst_21 {dimension_numbers = #tpu.dot_dimension_numbers<[1], [0], [0], [1], [0, 0, 1, 1], [], []>} : vector<2x128xbf16>, vector<128x2xbf16>, vector<2x2xf32> -> vector<2x2xf32>
    %c0_22 = arith.constant 0 : index
    %c0_23 = arith.constant 0 : index
    %25 = vector.load %arg9[%c0_22, %c0_23] : memref<1x2xf32, #tpu.memory_space<vmem>>, vector<1x2xf32>
    %26 = vector.broadcast %25 : vector<1x2xf32> to vector<2x2xf32>
    %27 = arith.addf %24, %26 : vector<2x2xf32>
    %c0_24 = arith.constant 0 : index
    %c0_25 = arith.constant 0 : index
    %28 = vector.load %arg15[%c0_24, %c0_25] : memref<2x2xf32, #tpu.memory_space<vmem>>, vector<2x2xf32>
    tpu.vector_store %arg15[%c0_24, %c0_25], %27 {strides = array<i32>} : memref<2x2xf32, #tpu.memory_space<vmem>>, vector<2x2xf32>,
    %c0_26 = arith.constant 0 : index
    %c0_27 = arith.constant 0 : index
    %29 = vector.load %arg10[%c0_26, %c0_27] : memref<256x128xbf16, #tpu.memory_space<vmem>>, vector<256x128xbf16>
    %cst_28 = arith.constant dense<0.000000e+00> : vector<2x128xf32>
    %30 = tpu.matmul %8, %29, %cst_28 {dimension_numbers = #tpu.dot_dimension_numbers<[1], [0], [0], [1], [0, 0, 1, 1], [], []>} : vector<2x256xbf16>, vector<256x128xbf16>, vector<2x128xf32> -> vector<2x128xf32>
    %c0_29 = arith.constant 0 : index
    %c0_30 = arith.constant 0 : index
    %31 = vector.load %arg11[%c0_29, %c0_30] : memref<1x128xf32, #tpu.memory_space<vmem>>, vector<1x128xf32>
    %32 = vector.broadcast %31 : vector<1x128xf32> to vector<2x128xf32>
    %33 = arith.addf %30, %32 : vector<2x128xf32>
    %cst_31 = arith.constant 0.000000e+00 : f32
    %34 = vector.broadcast %cst_31 : f32 to vector<2x128xf32>
    %35 = arith.maximumf %33, %34 : vector<2x128xf32>
    %36 = arith.truncf %35 : vector<2x128xf32> to vector<2x128xbf16>
    %c0_32 = arith.constant 0 : index
    %c0_33 = arith.constant 0 : index
    %c0_34 = arith.constant 0 : index
    %37 = vector.load %arg12[%c0_32, %c0_33, %c0_34] : memref<2x128x10xbf16, #tpu.memory_space<vmem>>, vector<1x128x10xbf16>
    %38 = vector.shape_cast %37 : vector<1x128x10xbf16> to vector<128x10xbf16>
    %cst_35 = arith.constant dense<0.000000e+00> : vector<2x10xf32>
    %39 = tpu.matmul %36, %38, %cst_35 {dimension_numbers = #tpu.dot_dimension_numbers<[1], [0], [0], [1], [0, 0, 1, 1], [], []>} : vector<2x128xbf16>, vector<128x10xbf16>, vector<2x10xf32> -> vector<2x10xf32>
    %c0_36 = arith.constant 0 : index
    %c0_37 = arith.constant 0 : index
    %40 = vector.load %arg13[%c0_36, %c0_37] : memref<1x10xf32, #tpu.memory_space<vmem>>, vector<1x10xf32>
    %41 = vector.broadcast %40 : vector<1x10xf32> to vector<2x10xf32>
    %42 = arith.addf %39, %41 : vector<2x10xf32>
    %c0_38 = arith.constant 0 : index
    %c0_39 = arith.constant 0 : index
    %c0_40 = arith.constant 0 : index
    %43 = vector.load %arg16[%c0_38, %c0_39, %c0_40] : memref<2x2x10xf32, #tpu.memory_space<vmem>>, vector<1x2x10xf32>
    %44 = vector.shape_cast %43 : vector<1x2x10xf32> to vector<2x10xf32>
    %45 = vector.shape_cast %42 : vector<2x10xf32> to vector<1x2x10xf32>
    tpu.vector_store %arg16[%c0_38, %c0_39, %c0_40], %45 {strides = array<i32>} : memref<2x2x10xf32, #tpu.memory_space<vmem>>, vector<1x2x10xf32>,
    %c1 = arith.constant 1 : index
    %c0_41 = arith.constant 0 : index
    %c0_42 = arith.constant 0 : index
    %46 = vector.load %arg12[%c1, %c0_41, %c0_42] : memref<2x128x10xbf16, #tpu.memory_space<vmem>>, vector<1x128x10xbf16>
    %47 = vector.shape_cast %46 : vector<1x128x10xbf16> to vector<128x10xbf16>
    %cst_43 = arith.constant dense<0.000000e+00> : vector<2x10xf32>
    %48 = tpu.matmul %36, %47, %cst_43 {dimension_numbers = #tpu.dot_dimension_numbers<[1], [0], [0], [1], [0, 0, 1, 1], [], []>} : vector<2x128xbf16>, vector<128x10xbf16>, vector<2x10xf32> -> vector<2x10xf32>
    %c0_44 = arith.constant 0 : index
    %c0_45 = arith.constant 0 : index
    %49 = vector.load %arg13[%c0_44, %c0_45] : memref<1x10xf32, #tpu.memory_space<vmem>>, vector<1x10xf32>
    %50 = vector.broadcast %49 : vector<1x10xf32> to vector<2x10xf32>
    %51 = arith.addf %48, %50 : vector<2x10xf32>
    %c1_46 = arith.constant 1 : index
    %c0_47 = arith.constant 0 : index
    %c0_48 = arith.constant 0 : index
    %52 = vector.load %arg16[%c1_46, %c0_47, %c0_48] : memref<2x2x10xf32, #tpu.memory_space<vmem>>, vector<1x2x10xf32>
    %53 = vector.shape_cast %52 : vector<1x2x10xf32> to vector<2x10xf32>
    %54 = vector.shape_cast %51 : vector<2x10xf32> to vector<1x2x10xf32>
    tpu.vector_store %arg16[%c1_46, %c0_47, %c0_48], %54 {strides = array<i32>} : memref<2x2x10xf32, #tpu.memory_space<vmem>>, vector<1x2x10xf32>,
    return
  }
  func.func @transform_0(%arg0: i32) -> (i32, i32) {
    %c0_i32 = arith.constant 0 : i32
    %c0_i32_0 = arith.constant 0 : i32
    %c0_i32_1 = arith.constant 0 : i32
    return %c0_i32, %c0_i32_0 : i32, i32
  }
  func.func @transform_1(%arg0: i32) -> (i32, i32) {
    %c0_i32 = arith.constant 0 : i32
    %c0_i32_0 = arith.constant 0 : i32
    %c0_i32_1 = arith.constant 0 : i32
    return %c0_i32, %c0_i32_0 : i32, i32
  }
  func.func @transform_2(%arg0: i32) -> (i32, i32) {
    %c0_i32 = arith.constant 0 : i32
    %c0_i32_0 = arith.constant 0 : i32
    %c0_i32_1 = arith.constant 0 : i32
    return %c0_i32, %c0_i32_0 : i32, i32
  }
  func.func @transform_3(%arg0: i32) -> (i32, i32) {
    %c0_i32 = arith.constant 0 : i32
    %c0_i32_0 = arith.constant 0 : i32
    %c0_i32_1 = arith.constant 0 : i32
    return %c0_i32, %c0_i32_0 : i32, i32
  }
  func.func @transform_4(%arg0: i32) -> (i32, i32) {
    %c0_i32 = arith.constant 0 : i32
    %c0_i32_0 = arith.constant 0 : i32
    %c0_i32_1 = arith.constant 0 : i32
    return %c0_i32, %c0_i32_0 : i32, i32
  }
  func.func @transform_5(%arg0: i32) -> (i32, i32) {
    %c0_i32 = arith.constant 0 : i32
    %c0_i32_0 = arith.constant 0 : i32
    %c0_i32_1 = arith.constant 0 : i32
    return %c0_i32, %c0_i32_0 : i32, i32
  }
  func.func @transform_6(%arg0: i32) -> (i32, i32) {
    %c0_i32 = arith.constant 0 : i32
    %c0_i32_0 = arith.constant 0 : i32
    %c0_i32_1 = arith.constant 0 : i32
    return %c0_i32, %c0_i32_0 : i32, i32
  }
  func.func @transform_7(%arg0: i32) -> (i32, i32) {
    %c0_i32 = arith.constant 0 : i32
    %c0_i32_0 = arith.constant 0 : i32
    %c0_i32_1 = arith.constant 0 : i32
    return %c0_i32, %c0_i32_0 : i32, i32
  }
  func.func @transform_8(%arg0: i32) -> (i32, i32) {
    %c0_i32 = arith.constant 0 : i32
    %c0_i32_0 = arith.constant 0 : i32
    %c0_i32_1 = arith.constant 0 : i32
    return %c0_i32, %c0_i32_0 : i32, i32
  }
  func.func @transform_9(%arg0: i32) -> (i32, i32) {
    %c0_i32 = arith.constant 0 : i32
    %c0_i32_0 = arith.constant 0 : i32
    %c0_i32_1 = arith.constant 0 : i32
    return %c0_i32, %c0_i32_0 : i32, i32
  }
  func.func @transform_10(%arg0: i32) -> (i32, i32) {
    %c0_i32 = arith.constant 0 : i32
    %c0_i32_0 = arith.constant 0 : i32
    %c0_i32_1 = arith.constant 0 : i32
    return %c0_i32, %c0_i32_0 : i32, i32
  }
  func.func @transform_11(%arg0: i32) -> (i32, i32, i32) {
    %c0_i32 = arith.constant 0 : i32
    %c0_i32_0 = arith.constant 0 : i32
    %c0_i32_1 = arith.constant 0 : i32
    %c0_i32_2 = arith.constant 0 : i32
    return %c0_i32, %c0_i32_0, %c0_i32_1 : i32, i32, i32
  }
  func.func @transform_12(%arg0: i32) -> (i32, i32) {
    %c0_i32 = arith.constant 0 : i32
    %c0_i32_0 = arith.constant 0 : i32
    %c0_i32_1 = arith.constant 0 : i32
    return %c0_i32, %c0_i32_0 : i32, i32
  }
  func.func @transform_13(%arg0: i32) -> (i32, i32) {
    %c0_i32 = arith.constant 0 : i32
    %c0_i32_0 = arith.constant 0 : i32
    %c0_i32_1 = arith.constant 0 : i32
    return %c0_i32, %c0_i32_0 : i32, i32
  }
  func.func @transform_14(%arg0: i32) -> (i32, i32) {
    %c0_i32 = arith.constant 0 : i32
    %c0_i32_0 = arith.constant 0 : i32
    %c0_i32_1 = arith.constant 0 : i32
    return %c0_i32, %c0_i32_0 : i32, i32
  }
  func.func @transform_15(%arg0: i32) -> (i32, i32, i32) {
    %c0_i32 = arith.constant 0 : i32
    %c0_i32_0 = arith.constant 0 : i32
    %c0_i32_1 = arith.constant 0 : i32
    %c0_i32_2 = arith.constant 0 : i32
    return %c0_i32, %c0_i32_0, %c0_i32_1 : i32, i32, i32
  }
}

</mosaic_0001>

<llo_original>
// kernel: prunus_forward.9
$region0: #{prunus_forward.9}
  #allocation0 [shape = 'u32[]', space=smem, size = 0x4, offset = 0x4, fixed_abs, tag = 'smem constant byte address 0x4 - core index']
  #allocation1 [shape = 'u32[144,128]{1,0:T(1,128)}', space=vmem, size = 0x12000, scoped, tag = 'internal scratch']
  %s0 = inlined_call_operand.vmem [shape: bf16[128,128], index: 0, kind: input, shape index: {}]
  %s1 = inlined_call_operand.vmem [shape: bf16[128,128], index: 1, kind: input, shape index: {}]
  %s2 = inlined_call_operand.vmem [shape: bf16[128,128], index: 2, kind: input, shape index: {}]
  %s3 = inlined_call_operand.vmem [shape: bf16[128,128], index: 3, kind: input, shape index: {}]
  %s4 = inlined_call_operand.vmem [shape: bf16[128,128], index: 4, kind: output, shape index: {}]
  %s5 = sld [smem:[#allocation0]]
  $region26: #{prunus_forward.9} parent=0
    _
  %s7 = ssub.s32 1, %s5
  %s8 = scalar_select 0, %s7, %s5
  // Predicated region
  $region2: #{prunus_forward.9} parent=0 // pred_check
    _
  $region3: #{prunus_forward.9} parent=0 // pred_check_branch
    %10 = sbr.rel (0) target = $region5
  $region4: #{prunus_forward.9} parent=0 // pred_region
    _
  $region5: #{prunus_forward.9} parent=0 // pred_fallthru
    _
  // Predicated region
  $region6: #{prunus_forward.9} parent=0 // pred_check
    _
  $region7: #{prunus_forward.9} parent=0 // pred_check_branch
    %12 = sbr.rel (0) target = $region9
  $region8: #{prunus_forward.9} parent=0 // pred_region
    _
  $region9: #{prunus_forward.9} parent=0 // pred_fallthru
    _
  // Predicated region
  $region10: #{prunus_forward.9} parent=0 // pred_check
    _
  $region11: #{prunus_forward.9} parent=0 // pred_check_branch
    %14 = sbr.rel (0) target = $region13
  $region12: #{prunus_forward.9} parent=0 // pred_region
    _
  $region13: #{prunus_forward.9} parent=0 // pred_fallthru
    _
  // Predicated region
  $region14: #{prunus_forward.9} parent=0 // pred_check
    _
  $region15: #{prunus_forward.9} parent=0 // pred_check_branch
    %16 = sbr.rel (0) target = $region17
  $region16: #{prunus_forward.9} parent=0 // pred_region
    _
  $region17: #{prunus_forward.9} parent=0 // pred_fallthru
    _
  %v17 = vld [vmem:[%s0] sm:$0xf]
  %v18 = vld [vmem:[%s0 + $0x4] sm:$0xf]
  %v19 = vld [vmem:[%s0 + $0x8] sm:$0xf]
  %v20 = vld [vmem:[%s0 + $0xc] sm:$0xf]
  %v21 = vld [vmem:[%s0 + $0x10] sm:$0xf]
  %v22 = vld [vmem:[%s0 + $0x14] sm:$0xf]
  %v23 = vld [vmem:[%s0 + $0x18] sm:$0xf]
  %v24 = vld [vmem:[%s0 + $0x1c] sm:$0xf]
  %v25 = vld [vmem:[%s0 + $0x20] sm:$0xf]
  %v26 = vld [vmem:[%s0 + $0x24] sm:$0xf]
  %v27 = vld [vmem:[%s0 + $0x28] sm:$0xf]
  %v28 = vld [vmem:[%s0 + $0x2c] sm:$0xf]
  %v29 = vld [vmem:[%s0 + $0x30] sm:$0xf]
  %v30 = vld [vmem:[%s0 + $0x34] sm:$0xf]
  %v31 = vld [vmem:[%s0 + $0x38] sm:$0xf]
  %v32 = vld [vmem:[%s0 + $0x3c] sm:$0xf]
  %v33 = vld [vmem:[%s1] sm:$0xf]
  %v34 = vld [vmem:[%s1 + $0x4] sm:$0xf]
  %v35 = vld [vmem:[%s1 + $0x8] sm:$0xf]
  %v36 = vld [vmem:[%s1 + $0xc] sm:$0xf]
  %v37 = vld [vmem:[%s1 + $0x10] sm:$0xf]
  %v38 = vld [vmem:[%s1 + $0x14] sm:$0xf]
  %v39 = vld [vmem:[%s1 + $0x18] sm:$0xf]
  %v40 = vld [vmem:[%s1 + $0x1c] sm:$0xf]
  %v41 = vld [vmem:[%s1 + $0x20] sm:$0xf]
  %v42 = vld [vmem:[%s1 + $0x24] sm:$0xf]
  %v43 = vld [vmem:[%s1 + $0x28] sm:$0xf]
  %v44 = vld [vmem:[%s1 + $0x2c] sm:$0xf]
  %v45 = vld [vmem:[%s1 + $0x30] sm:$0xf]
  %v46 = vld [vmem:[%s1 + $0x34] sm:$0xf]
  %v47 = vld [vmem:[%s1 + $0x38] sm:$0xf]
  %v48 = vld [vmem:[%s1 + $0x3c] sm:$0xf]
  %v49 = vmax.bf16 %v17, %v33
  %v50 = vmax.bf16 %v18, %v34
  %v51 = vmax.bf16 %v19, %v35
  %v52 = vmax.bf16 %v20, %v36
  %v53 = vmax.bf16 %v21, %v37
  %v54 = vmax.bf16 %v22, %v38
  %v55 = vmax.bf16 %v23, %v39
  %v56 = vmax.bf16 %v24, %v40
  %v57 = vmax.bf16 %v25, %v41
  %v58 = vmax.bf16 %v26, %v42
  %v59 = vmax.bf16 %v27, %v43
  %v60 = vmax.bf16 %v28, %v44
  %v61 = vmax.bf16 %v29, %v45
  %v62 = vmax.bf16 %v30, %v46
  %v63 = vmax.bf16 %v31, %v47
  %v64 = vmax.bf16 %v32, %v48
  %v65 = vld [vmem:[%s2] sm:$0xf]
  %v66 = vld [vmem:[%s2 + $0x4] sm:$0xf]
  %v67 = vld [vmem:[%s2 + $0x8] sm:$0xf]
  %v68 = vld [vmem:[%s2 + $0xc] sm:$0xf]
  %v69 = vld [vmem:[%s2 + $0x10] sm:$0xf]
  %v70 = vld [vmem:[%s2 + $0x14] sm:$0xf]
  %v71 = vld [vmem:[%s2 + $0x18] sm:$0xf]
  %v72 = vld [vmem:[%s2 + $0x1c] sm:$0xf]
  %v73 = vld [vmem:[%s2 + $0x20] sm:$0xf]
  %v74 = vld [vmem:[%s2 + $0x24] sm:$0xf]
  %v75 = vld [vmem:[%s2 + $0x28] sm:$0xf]
  %v76 = vld [vmem:[%s2 + $0x2c] sm:$0xf]
  %v77 = vld [vmem:[%s2 + $0x30] sm:$0xf]
  %v78 = vld [vmem:[%s2 + $0x34] sm:$0xf]
  %v79 = vld [vmem:[%s2 + $0x38] sm:$0xf]
  %v80 = vld [vmem:[%s2 + $0x3c] sm:$0xf]
  %v81 = vld [vmem:[%s3] sm:$0xf]
  %v82 = vld [vmem:[%s3 + $0x4] sm:$0xf]
  %v83 = vld [vmem:[%s3 + $0x8] sm:$0xf]
  %v84 = vld [vmem:[%s3 + $0xc] sm:$0xf]
  %v85 = vld [vmem:[%s3 + $0x10] sm:$0xf]
  %v86 = vld [vmem:[%s3 + $0x14] sm:$0xf]
  %v87 = vld [vmem:[%s3 + $0x18] sm:$0xf]
  %v88 = vld [vmem:[%s3 + $0x1c] sm:$0xf]
  %v89 = vld [vmem:[%s3 + $0x20] sm:$0xf]
  %v90 = vld [vmem:[%s3 + $0x24] sm:$0xf]
  %v91 = vld [vmem:[%s3 + $0x28] sm:$0xf]
  %v92 = vld [vmem:[%s3 + $0x2c] sm:$0xf]
  %v93 = vld [vmem:[%s3 + $0x30] sm:$0xf]
  %v94 = vld [vmem:[%s3 + $0x34] sm:$0xf]
  %v95 = vld [vmem:[%s3 + $0x38] sm:$0xf]
  %v96 = vld [vmem:[%s3 + $0x3c] sm:$0xf]
  %v97 = vmax.bf16 %v65, %v81
  %v98 = vmax.bf16 %v66, %v82
  %v99 = vmax.bf16 %v67, %v83
  %v100 = vmax.bf16 %v68, %v84
  %v101 = vmax.bf16 %v69, %v85
  %v102 = vmax.bf16 %v70, %v86
  %v103 = vmax.bf16 %v71, %v87
  %v104 = vmax.bf16 %v72, %v88
  %v105 = vmax.bf16 %v73, %v89
  %v106 = vmax.bf16 %v74, %v90
  %v107 = vmax.bf16 %v75, %v91
  %v108 = vmax.bf16 %v76, %v92
  %v109 = vmax.bf16 %v77, %v93
  %v110 = vmax.bf16 %v78, %v94
  %v111 = vmax.bf16 %v79, %v95
  %v112 = vmax.bf16 %v80, %v96
  %v113 = vmax.bf16 %v49, %v97
  %v114 = vmax.bf16 %v50, %v98
  %v115 = vmax.bf16 %v51, %v99
  %v116 = vmax.bf16 %v52, %v100
  %v117 = vmax.bf16 %v53, %v101
  %v118 = vmax.bf16 %v54, %v102
  %v119 = vmax.bf16 %v55, %v103
  %v120 = vmax.bf16 %v56, %v104
  %v121 = vmax.bf16 %v57, %v105
  %v122 = vmax.bf16 %v58, %v106
  %v123 = vmax.bf16 %v59, %v107
  %v124 = vmax.bf16 %v60, %v108
  %v125 = vmax.bf16 %v61, %v109
  %v126 = vmax.bf16 %v62, %v110
  %v127 = vmax.bf16 %v63, %v111
  %v128 = vmax.bf16 %v64, %v112
  %129 = vst [vmem:[%s4] sm:$0xf] %v113
  %130 = vst [vmem:[%s4 + $0x4] sm:$0xf] %v114
  %131 = vst [vmem:[%s4 + $0x8] sm:$0xf] %v115
  %132 = vst [vmem:[%s4 + $0xc] sm:$0xf] %v116
  %133 = vst [vmem:[%s4 + $0x10] sm:$0xf] %v117
  %134 = vst [vmem:[%s4 + $0x14] sm:$0xf] %v118
  %135 = vst [vmem:[%s4 + $0x18] sm:$0xf] %v119
  %136 = vst [vmem:[%s4 + $0x1c] sm:$0xf] %v120
  %137 = vst [vmem:[%s4 + $0x20] sm:$0xf] %v121
  %138 = vst [vmem:[%s4 + $0x24] sm:$0xf] %v122
  %139 = vst [vmem:[%s4 + $0x28] sm:$0xf] %v123
  %140 = vst [vmem:[%s4 + $0x2c] sm:$0xf] %v124
  %141 = vst [vmem:[%s4 + $0x30] sm:$0xf] %v125
  %142 = vst [vmem:[%s4 + $0x34] sm:$0xf] %v126
  %143 = vst [vmem:[%s4 + $0x38] sm:$0xf] %v127
  %144 = vst [vmem:[%s4 + $0x3c] sm:$0xf] %v128
  // Predicated region
  $region18: #{prunus_forward.9} parent=0 // pred_check
    _
  $region19: #{prunus_forward.9} parent=0 // pred_check_branch
    %146 = sbr.rel (0) target = $region21
  $region20: #{prunus_forward.9} parent=0 // pred_region
    _
  $region21: #{prunus_forward.9} parent=0 // pred_fallthru
    _
  // Predicated region
  $region22: #{prunus_forward.9} parent=0 // pred_check
    _
  $region23: #{prunus_forward.9} parent=0 // pred_check_branch
    %148 = sbr.rel (0) target = $region25
  $region24: #{prunus_forward.9} parent=0 // pred_region
    _
  $region25: #{prunus_forward.9} parent=0 // pred_fallthru
    _

// kernel: prunus_forward.8
$region0: #{prunus_forward.8}
  #allocation0 [shape = 'u32[]', space=smem, size = 0x4, offset = 0x4, fixed_abs, tag = 'smem constant byte address 0x4 - core index']
  #allocation1 [shape = 'u32[144,128]{1,0:T(1,128)}', space=vmem, size = 0x12000, scoped, tag = 'internal scratch']
  %s0 = inlined_call_operand.vmem [shape: bf16[2048,32], index: 0, kind: input, shape index: {}]
  %s1 = inlined_call_operand.hbm [shape: bf16[32,32], index: 1, kind: input, shape index: {}]
  %s2 = inlined_call_operand.hbm [shape: f32[1,32], index: 2, kind: input, shape index: {}]
  %s3 = inlined_call_operand.vmem [shape: bf16[2048,32], index: 3, kind: output, shape index: {}]
  %s4 = sld [smem:[#allocation0]]
  $region53: #{prunus_forward.8} parent=0
    _
  %s6 = ssub.s32 1, %s4
  %s7 = scalar_select 0, %s6, %s4
  $region1: #{prunus_forward.8} parent=0
    #allocation2 [shape = 'u8[8192]{0}', space=vmem, size = 0x2000, scoped, tag = 'input window, operand 1, single buffered']
    #allocation3 [shape = 's32[2]{0}', space=sflag, size = 0x8, scoped, tag = 'scoped memory for prunus_forward.8']
    #allocation4 [shape = 'u8[512]{0}', space=vmem, size = 0x400, scoped, tag = 'input window, operand 2, single buffered']
    #allocation5 [shape = 's32[1]{0}', space=sflag, size = 0x4, scoped, tag = 'scoped memory for prunus_forward.8']
    %8 = vsyncpa [#allocation3], 0
    %9 = vsyncpa [#allocation5], 0
    loop: start=0, step=1, limit=6
    $region2: #{prunus_forward.8} parent=1 // loop_pre_header
      _
    $region3: #{prunus_forward.8} parent=1 // loop_header
      %s11 = sphi 0, %s15
      %p12 = scmp.ge.s32.totalorder %s11, 6
      %s21 = sphi 0, %s23
      %s24 = sphi 0, %s21
      %s25 = sphi 0, %s24
      %s41 = sphi 0, %s25
      %s45 = sphi 0, %s45
      %s47 = sphi 0, %s45
      %s48 = sphi 0, %s47
      %s62 = sphi 0, %s48
      %s66 = sphi 0, %s66
      %s68 = sphi 0, %s66
      %s69 = sphi 0, %s68
      %s83 = sphi 0, %s69
      %s89 = sphi 0, %s91
      %s92 = sphi 0, %s89
      %s93 = sphi 0, %s92
      %s109 = sphi 0, %s93
    $region4: #{prunus_forward.8} parent=1 // loop_header_branch
      %14 = sbr.rel (%p12) target = $region8
    $region5: #{prunus_forward.8} parent=1 // loop_body
      %s16 = ssub.s32 %s11, 1
      %s17 = ssub.s32 %s11, 2
      %s18 = sadd.s32 %s11, 1
      %s19 = ssub.s32 %s11, %s18
      %p20 = scmp.eq.s32.totalorder %s19, 0
      %s22 = sadd.s32 %s21, 1
      %s23 = scalar_select %p20, %s21, %s22
      %p26 = pneg %p20
      %p27 = scmp.eq.s32.totalorder %s11, 3
      %p28 = por %p26, %p27
      %p29 = scmp.ne.s32.totalorder %s21, %s24
      %p30 = scmp.eq.s32.totalorder %s11, 0
      %p31 = por %p29, %p30
      %p32 = scmp.ne.s32.totalorder %s21, %s24
      %p33 = scmp.eq.s32.totalorder %s16, 3
      %p34 = por %p32, %p33
      %p35 = scmp.ne.s32.totalorder %s24, %s25
      %p36 = scmp.eq.s32.totalorder %s16, 0
      %p37 = por %p35, %p36
      %p38 = scmp.ne.s32.totalorder %s24, %s25
      %p39 = scmp.eq.s32.totalorder %s17, 3
      %p40 = por %p38, %p39
      %p42 = scmp.ne.s32.totalorder %s25, %s41
      %p43 = scmp.eq.s32.totalorder %s17, 0
      %p44 = por %p42, %p43
      %s46 = sadd.s32 %s45, 1
      %p49 = scmp.eq.s32.totalorder %s11, 3
      %p50 = scmp.ne.s32.totalorder %s45, %s47
      %p51 = scmp.eq.s32.totalorder %s11, 0
      %p52 = por %p50, %p51
      %p53 = scmp.ne.s32.totalorder %s45, %s47
      %p54 = scmp.eq.s32.totalorder %s16, 3
      %p55 = por %p53, %p54
      %p56 = scmp.ne.s32.totalorder %s47, %s48
      %p57 = scmp.eq.s32.totalorder %s16, 0
      %p58 = por %p56, %p57
      %p59 = scmp.ne.s32.totalorder %s47, %s48
      %p60 = scmp.eq.s32.totalorder %s17, 3
      %p61 = por %p59, %p60
      %p63 = scmp.ne.s32.totalorder %s48, %s62
      %p64 = scmp.eq.s32.totalorder %s17, 0
      %p65 = por %p63, %p64
      %s67 = sadd.s32 %s66, 1
      %p70 = scmp.eq.s32.totalorder %s11, 3
      %p71 = scmp.ne.s32.totalorder %s66, %s68
      %p72 = scmp.eq.s32.totalorder %s11, 0
      %p73 = por %p71, %p72
      %p74 = scmp.ne.s32.totalorder %s66, %s68
      %p75 = scmp.eq.s32.totalorder %s16, 3
      %p76 = por %p74, %p75
      %p77 = scmp.ne.s32.totalorder %s68, %s69
      %p78 = scmp.eq.s32.totalorder %s16, 0
      %p79 = por %p77, %p78
      %p80 = scmp.ne.s32.totalorder %s68, %s69
      %p81 = scmp.eq.s32.totalorder %s17, 3
      %p82 = por %p80, %p81
      %p84 = scmp.ne.s32.totalorder %s69, %s83
      %p85 = scmp.eq.s32.totalorder %s17, 0
      %p86 = por %p84, %p85
      %s87 = ssub.s32 %s11, %s18
      %p88 = scmp.eq.s32.totalorder %s87, 0
      %s90 = sadd.s32 %s89, 1
      %s91 = scalar_select %p88, %s89, %s90
      %p94 = pneg %p88
      %p95 = scmp.eq.s32.totalorder %s11, 3
      %p96 = por %p94, %p95
      %p97 = scmp.ne.s32.totalorder %s89, %s92
      %p98 = scmp.eq.s32.totalorder %s11, 0
      %p99 = por %p97, %p98
      %p100 = scmp.ne.s32.totalorder %s89, %s92
      %p101 = scmp.eq.s32.totalorder %s16, 3
      %p102 = por %p100, %p101
      %p103 = scmp.ne.s32.totalorder %s92, %s93
      %p104 = scmp.eq.s32.totalorder %s16, 0
      %p105 = por %p103, %p104
      %p106 = scmp.ne.s32.totalorder %s92, %s93
      %p107 = scmp.eq.s32.totalorder %s17, 3
      %p108 = por %p106, %p107
      %p110 = scmp.ne.s32.totalorder %s93, %s109
      %p111 = scmp.eq.s32.totalorder %s17, 0
      %p112 = por %p110, %p111
      %p113 = scmp.le.s32.totalorder 1, %s11
      %p114 = scmp.lt.s32.totalorder %s11, 5
      %p115 = pnand %p113, %p114
      %p116 = pneg %p115
      // Predicated region
      $region9: #{prunus_forward.8} parent=5 // pred_check
        _
      $region10: #{prunus_forward.8} parent=5 // pred_check_branch
        %118 = sbr.rel (%p115) target = $region12
      $region11: #{prunus_forward.8} parent=5 // pred_region
        %s119 = ssub.s32 %s11, 1
        // Predicated region
        $region13: #{prunus_forward.8} parent=11 // pred_check
          %p120 = pneg %p58
        $region14: #{prunus_forward.8} parent=11 // pred_check_branch
          %122 = sbr.rel (%p120) target = $region16
        $region15: #{prunus_forward.8} parent=11 // pred_region
          %s124 = ssub.s32 256, 256
          %125 = vsyncadd [#allocation3], %s124
          %s126 = sshll.u32 [#allocation2], 4
          %s127 = int_to_ptr.vmem [resolvable:$true] %s126
          %132 = dma.hbm_to_vmem [thread:$0]  %s1, 256, %s127, [#allocation3], 64, 64, 4
        $region16: #{prunus_forward.8} parent=11 // pred_fallthru
          _
        // Predicated region
        $region17: #{prunus_forward.8} parent=11 // pred_check
          %p133 = pneg %p79
        $region18: #{prunus_forward.8} parent=11 // pred_check_branch
          %135 = sbr.rel (%p133) target = $region20
        $region19: #{prunus_forward.8} parent=11 // pred_region
          %s137 = ssub.s32 16, 16
          %138 = vsyncadd [#allocation5], %s137
          %s140 = sshll.u32 [#allocation4], 4
          %s141 = int_to_ptr.vmem [resolvable:$true] %s140
          %143 = dma.hbm_to_vmem [thread:$0]  %s2, 16, %s141, [#allocation5]
        $region20: #{prunus_forward.8} parent=11 // pred_fallthru
          _
      $region12: #{prunus_forward.8} parent=5 // pred_fallthru
        _
      %p144 = scmp.lt.s32.totalorder %s11, 4
      // Predicated region
      $region21: #{prunus_forward.8} parent=5 // pred_check
        %p145 = pneg %p144
      $region22: #{prunus_forward.8} parent=5 // pred_check_branch
        %147 = sbr.rel (%p145) target = $region24
      $region23: #{prunus_forward.8} parent=5 // pred_region
        // Predicated region
        $region25: #{prunus_forward.8} parent=23 // pred_check
          %p148 = pneg %p31
        $region26: #{prunus_forward.8} parent=23 // pred_check_branch
          %150 = sbr.rel (%p148) target = $region28
        $region27: #{prunus_forward.8} parent=23 // pred_region
          %s151 = smul.u32 64, %s11
          %p152 = scmp.lt.s32.totalorder %s151, 255
          %s153 = scalar_select %p152, %s151, 255
          %s154 = smul.addr %s153, 4
          %s155 = scalar_lea.vmem %s0, %s154
          %s156 = smul.u32 64, %s11
        $region28: #{prunus_forward.8} parent=23 // pred_fallthru
          _
      $region24: #{prunus_forward.8} parent=5 // pred_fallthru
        _
      %p157 = scmp.le.s32.totalorder 1, %s11
      %p158 = scmp.lt.s32.totalorder %s11, 5
      %p159 = pnand %p157, %p158
      %p160 = pneg %p159
      // Predicated region
      $region29: #{prunus_forward.8} parent=5 // pred_check
        _
      $region30: #{prunus_forward.8} parent=5 // pred_check_branch
        %162 = sbr.rel (%p159) target = $region32
      $region31: #{prunus_forward.8} parent=5 // pred_region
        %s163 = ssub.s32 %s11, 1
        // Predicated region
        $region33: #{prunus_forward.8} parent=31 // pred_check
          %p164 = pneg %p58
        $region34: #{prunus_forward.8} parent=31 // pred_check_branch
          %166 = sbr.rel (%p164) target = $region36
        $region35: #{prunus_forward.8} parent=31 // pred_region
          %167 = dma.done [#allocation3], 256
        $region36: #{prunus_forward.8} parent=31 // pred_fallthru
          _
        // Predicated region
        $region37: #{prunus_forward.8} parent=31 // pred_check
          %p168 = pneg %p79
        $region38: #{prunus_forward.8} parent=31 // pred_check_branch
          %170 = sbr.rel (%p168) target = $region40
        $region39: #{prunus_forward.8} parent=31 // pred_region
          %171 = dma.done [#allocation5], 16
        $region40: #{prunus_forward.8} parent=31 // pred_fallthru
          _
        %s172 = smul.u32 64, %s16
        %p173 = scmp.lt.s32.totalorder %s172, 255
        %s174 = scalar_select %p173, %s172, 255
        %s175 = smul.addr %s174, 4
        %s176 = scalar_lea.vmem %s0, %s175
        %p177 = pneg %p37
        %p178 = pneg %p34
        %p179 = pneg %p58
        %p180 = pneg %p55
        %p181 = pneg %p79
        %p182 = pneg %p76
        %p183 = pneg %p105
        %p184 = pneg %p102
        %s185 = smul.u32 64, %s16
        %p186 = scmp.lt.s32.totalorder %s185, 255
        %s187 = scalar_select %p186, %s185, 255
        %s188 = smul.addr %s187, 4
        %s189 = scalar_lea.vmem %s3, %s188
        %s190 = smul.u32 64, %s16
        %p191 = scmp.lt.s32.totalorder %s190, 255
        %s192 = scalar_select %p191, %s190, 255
        %s193 = smul.addr %s192, 4
        %s194 = scalar_lea.vmem %s0, %s193
        %s195 = smul.u32 64, %s16
        %s196 = smul.u32 64, %s16
        %p197 = scmp.lt.s32.totalorder %s196, 255
        %s198 = scalar_select %p197, %s196, 255
        %s199 = smul.addr %s198, 4
        %s200 = scalar_lea.vmem %s3, %s199
        %s201 = smul.u32 64, %s16
        %v203 = vld [vmem:[%s194] sm:$0xf]
        %v204 = vld [vmem:[%s194 + $0x4] sm:$0xf]
        %v205 = vld [vmem:[%s194 + $0x8] sm:$0xf]
        %v206 = vld [vmem:[%s194 + $0xc] sm:$0xf]
        %v207 = vld [vmem:[%s194 + $0x10] sm:$0xf]
        %v208 = vld [vmem:[%s194 + $0x14] sm:$0xf]
        %v209 = vld [vmem:[%s194 + $0x18] sm:$0xf]
        %v210 = vld [vmem:[%s194 + $0x1c] sm:$0xf]
        %v211 = vld [vmem:[%s194 + $0x20] sm:$0xf]
        %v212 = vld [vmem:[%s194 + $0x24] sm:$0xf]
        %v213 = vld [vmem:[%s194 + $0x28] sm:$0xf]
        %v214 = vld [vmem:[%s194 + $0x2c] sm:$0xf]
        %v215 = vld [vmem:[%s194 + $0x30] sm:$0xf]
        %v216 = vld [vmem:[%s194 + $0x34] sm:$0xf]
        %v217 = vld [vmem:[%s194 + $0x38] sm:$0xf]
        %v218 = vld [vmem:[%s194 + $0x3c] sm:$0xf]
        %v219 = vld [vmem:[%s194 + $0x40] sm:$0xf]
        %v220 = vld [vmem:[%s194 + $0x44] sm:$0xf]
        %v221 = vld [vmem:[%s194 + $0x48] sm:$0xf]
        %v222 = vld [vmem:[%s194 + $0x4c] sm:$0xf]
        %v223 = vld [vmem:[%s194 + $0x50] sm:$0xf]
        %v224 = vld [vmem:[%s194 + $0x54] sm:$0xf]
        %v225 = vld [vmem:[%s194 + $0x58] sm:$0xf]
        %v226 = vld [vmem:[%s194 + $0x5c] sm:$0xf]
        %v227 = vld [vmem:[%s194 + $0x60] sm:$0xf]
        %v228 = vld [vmem:[%s194 + $0x64] sm:$0xf]
        %v229 = vld [vmem:[%s194 + $0x68] sm:$0xf]
        %v230 = vld [vmem:[%s194 + $0x6c] sm:$0xf]
        %v231 = vld [vmem:[%s194 + $0x70] sm:$0xf]
        %v232 = vld [vmem:[%s194 + $0x74] sm:$0xf]
        %v233 = vld [vmem:[%s194 + $0x78] sm:$0xf]
        %v234 = vld [vmem:[%s194 + $0x7c] sm:$0xf]
        %v235 = vld [vmem:[%s194 + $0x80] sm:$0xf]
        %v236 = vld [vmem:[%s194 + $0x84] sm:$0xf]
        %v237 = vld [vmem:[%s194 + $0x88] sm:$0xf]
        %v238 = vld [vmem:[%s194 + $0x8c] sm:$0xf]
        %v239 = vld [vmem:[%s194 + $0x90] sm:$0xf]
        %v240 = vld [vmem:[%s194 + $0x94] sm:$0xf]
        %v241 = vld [vmem:[%s194 + $0x98] sm:$0xf]
        %v242 = vld [vmem:[%s194 + $0x9c] sm:$0xf]
        %v243 = vld [vmem:[%s194 + $0xa0] sm:$0xf]
        %v244 = vld [vmem:[%s194 + $0xa4] sm:$0xf]
        %v245 = vld [vmem:[%s194 + $0xa8] sm:$0xf]
        %v246 = vld [vmem:[%s194 + $0xac] sm:$0xf]
        %v247 = vld [vmem:[%s194 + $0xb0] sm:$0xf]
        %v248 = vld [vmem:[%s194 + $0xb4] sm:$0xf]
        %v249 = vld [vmem:[%s194 + $0xb8] sm:$0xf]
        %v250 = vld [vmem:[%s194 + $0xbc] sm:$0xf]
        %v251 = vld [vmem:[%s194 + $0xc0] sm:$0xf]
        %v252 = vld [vmem:[%s194 + $0xc4] sm:$0xf]
        %v253 = vld [vmem:[%s194 + $0xc8] sm:$0xf]
        %v254 = vld [vmem:[%s194 + $0xcc] sm:$0xf]
        %v255 = vld [vmem:[%s194 + $0xd0] sm:$0xf]
        %v256 = vld [vmem:[%s194 + $0xd4] sm:$0xf]
        %v257 = vld [vmem:[%s194 + $0xd8] sm:$0xf]
        %v258 = vld [vmem:[%s194 + $0xdc] sm:$0xf]
        %v259 = vld [vmem:[%s194 + $0xe0] sm:$0xf]
        %v260 = vld [vmem:[%s194 + $0xe4] sm:$0xf]
        %v261 = vld [vmem:[%s194 + $0xe8] sm:$0xf]
        %v262 = vld [vmem:[%s194 + $0xec] sm:$0xf]
        %v263 = vld [vmem:[%s194 + $0xf0] sm:$0xf]
        %v264 = vld [vmem:[%s194 + $0xf4] sm:$0xf]
        %v265 = vld [vmem:[%s194 + $0xf8] sm:$0xf]
        %v266 = vld [vmem:[%s194 + $0xfc] sm:$0xf]
        %v267 = vld [vmem:[#allocation2] sm:$0xf]
        %v268 = vld [vmem:[#allocation2 + $0x4] sm:$0xf]
        %v269 = vld [vmem:[#allocation2 + $0x8] sm:$0xf]
        %v270 = vld [vmem:[#allocation2 + $0xc] sm:$0xf]
        %v271 = vld [vmem:[#allocation4] sm:$0x1]
        %v273 = vlaneseq
        %v274 = vshrl.u32 %v273, 7
        %v275 = vsub.s32 0, %v274
        %v276 = vrot.slane %v271, %v275
        %v342 = vunpack.c.l.b16 %v203
        %v343 = vunpack.c.l.b16 %v204
        %v344 = vunpack.c.l.b16 %v205
        %v345 = vunpack.c.l.b16 %v206
        %v346 = vunpack.c.l.b16 %v207
        %v347 = vunpack.c.l.b16 %v208
        %v348 = vunpack.c.l.b16 %v209
        %v349 = vunpack.c.l.b16 %v210
        %v350 = vunpack.c.l.b16 %v211
        %v351 = vunpack.c.l.b16 %v212
        %v352 = vunpack.c.l.b16 %v213
        %v353 = vunpack.c.l.b16 %v214
        %v354 = vunpack.c.l.b16 %v215
        %v355 = vunpack.c.l.b16 %v216
        %v356 = vunpack.c.l.b16 %v217
        %v357 = vunpack.c.l.b16 %v218
        %v358 = vunpack.c.l.b16 %v219
        %v359 = vunpack.c.l.b16 %v220
        %v360 = vunpack.c.l.b16 %v221
        %v361 = vunpack.c.l.b16 %v222
        %v362 = vunpack.c.l.b16 %v223
        %v363 = vunpack.c.l.b16 %v224
        %v364 = vunpack.c.l.b16 %v225
        %v365 = vunpack.c.l.b16 %v226
        %v366 = vunpack.c.l.b16 %v227
        %v367 = vunpack.c.l.b16 %v228
        %v368 = vunpack.c.l.b16 %v229
        %v369 = vunpack.c.l.b16 %v230
        %v370 = vunpack.c.l.b16 %v231
        %v371 = vunpack.c.l.b16 %v232
        %v372 = vunpack.c.l.b16 %v233
        %v373 = vunpack.c.l.b16 %v234
        %v374 = vunpack.c.l.b16 %v235
        %v375 = vunpack.c.l.b16 %v236
        %v376 = vunpack.c.l.b16 %v237
        %v377 = vunpack.c.l.b16 %v238
        %v378 = vunpack.c.l.b16 %v239
        %v379 = vunpack.c.l.b16 %v240
        %v380 = vunpack.c.l.b16 %v241
        %v381 = vunpack.c.l.b16 %v242
        %v382 = vunpack.c.l.b16 %v243
        %v383 = vunpack.c.l.b16 %v244
        %v384 = vunpack.c.l.b16 %v245
        %v385 = vunpack.c.l.b16 %v246
        %v386 = vunpack.c.l.b16 %v247
        %v387 = vunpack.c.l.b16 %v248
        %v388 = vunpack.c.l.b16 %v249
        %v389 = vunpack.c.l.b16 %v250
        %v390 = vunpack.c.l.b16 %v251
        %v391 = vunpack.c.l.b16 %v252
        %v392 = vunpack.c.l.b16 %v253
        %v393 = vunpack.c.l.b16 %v254
        %v394 = vunpack.c.l.b16 %v255
        %v395 = vunpack.c.l.b16 %v256
        %v396 = vunpack.c.l.b16 %v257
        %v397 = vunpack.c.l.b16 %v258
        %v398 = vunpack.c.l.b16 %v259
        %v399 = vunpack.c.l.b16 %v260
        %v400 = vunpack.c.l.b16 %v261
        %v401 = vunpack.c.l.b16 %v262
        %v402 = vunpack.c.l.b16 %v263
        %v403 = vunpack.c.l.b16 %v264
        %v404 = vunpack.c.l.b16 %v265
        %v405 = vunpack.c.l.b16 %v266
        %v406 = vpack.c.b16 %v343, %v342
        %v407 = vpack.c.b16 %v345, %v344
        %v408 = vpack.c.b16 %v347, %v346
        %v409 = vpack.c.b16 %v349, %v348
        %v410 = vpack.c.b16 %v351, %v350
        %v411 = vpack.c.b16 %v353, %v352
        %v412 = vpack.c.b16 %v355, %v354
        %v413 = vpack.c.b16 %v357, %v356
        %v414 = vpack.c.b16 %v359, %v358
        %v415 = vpack.c.b16 %v361, %v360
        %v416 = vpack.c.b16 %v363, %v362
        %v417 = vpack.c.b16 %v365, %v364
        %v418 = vpack.c.b16 %v367, %v366
        %v419 = vpack.c.b16 %v369, %v368
        %v420 = vpack.c.b16 %v371, %v370
        %v421 = vpack.c.b16 %v373, %v372
        %v422 = vpack.c.b16 %v375, %v374
        %v423 = vpack.c.b16 %v377, %v376
        %v424 = vpack.c.b16 %v379, %v378
        %v425 = vpack.c.b16 %v381, %v380
        %v426 = vpack.c.b16 %v383, %v382
        %v427 = vpack.c.b16 %v385, %v384
        %v428 = vpack.c.b16 %v387, %v386
        %v429 = vpack.c.b16 %v389, %v388
        %v430 = vpack.c.b16 %v391, %v390
        %v431 = vpack.c.b16 %v393, %v392
        %v432 = vpack.c.b16 %v395, %v394
        %v433 = vpack.c.b16 %v397, %v396
        %v434 = vpack.c.b16 %v399, %v398
        %v435 = vpack.c.b16 %v401, %v400
        %v436 = vpack.c.b16 %v403, %v402
        %v437 = vpack.c.b16 %v405, %v404
        %v442 = vunpack.c.l.b16 %v267
        %v443 = vunpack.c.l.b16 %v268
        %v444 = vunpack.c.l.b16 %v269
        %v445 = vunpack.c.l.b16 %v270
        %v446 = vpack.c.b16 %v443, %v442
        %v447 = vpack.c.b16 %v445, %v444
        %vm450 = vcmask 261120
        %v452 = vsel %vm450, %v406, 0
        %v455 = vsel %vm450, %v407, 0
        %v458 = vsel %vm450, %v408, 0
        %v461 = vsel %vm450, %v409, 0
        %v464 = vsel %vm450, %v410, 0
        %v467 = vsel %vm450, %v411, 0
        %v470 = vsel %vm450, %v412, 0
        %v473 = vsel %vm450, %v413, 0
        %v476 = vsel %vm450, %v414, 0
        %v479 = vsel %vm450, %v415, 0
        %v482 = vsel %vm450, %v416, 0
        %v485 = vsel %vm450, %v417, 0
        %v488 = vsel %vm450, %v418, 0
        %v491 = vsel %vm450, %v419, 0
        %v494 = vsel %vm450, %v420, 0
        %v497 = vsel %vm450, %v421, 0
        %v500 = vsel %vm450, %v422, 0
        %v503 = vsel %vm450, %v423, 0
        %v506 = vsel %vm450, %v424, 0
        %v509 = vsel %vm450, %v425, 0
        %v512 = vsel %vm450, %v426, 0
        %v515 = vsel %vm450, %v427, 0
        %v518 = vsel %vm450, %v428, 0
        %v521 = vsel %vm450, %v429, 0
        %v524 = vsel %vm450, %v430, 0
        %v527 = vsel %vm450, %v431, 0
        %v530 = vsel %vm450, %v432, 0
        %v533 = vsel %vm450, %v433, 0
        %v536 = vsel %vm450, %v434, 0
        %v539 = vsel %vm450, %v435, 0
        %v542 = vsel %vm450, %v436, 0
        %v545 = vsel %vm450, %v437, 0
        %547 = vmatprep.subr.bf16.mxu0 0
        %548 = vmatpush1.bf16.msra.mxu0 %v446
        %549 = vmatprep.subr.bf16.mxu0 0
        %550 = vmatpush1.bf16.msra.mxu0 %v447
        %551 = vmatprep.subr.bf16.mxu0 0
        %552 = vmatpush1.bf16.msra.mxu0 0
        %553 = vmatprep.subr.bf16.mxu0 0
        %554 = vmatpush1.bf16.msra.mxu0 0
        %555 = vmatprep.subr.bf16.mxu0 0
        %556 = vmatpush1.bf16.msra.mxu0 0
        %557 = vmatprep.subr.bf16.mxu0 0
        %558 = vmatpush1.bf16.msra.mxu0 0
        %559 = vmatprep.subr.bf16.mxu0 0
        %560 = vmatpush1.bf16.msra.mxu0 0
        %561 = vmatprep.subr.bf16.mxu0 0
        %562 = vmatpush1.bf16.msra.mxu0 0
        %563 = vmatprep.subr.bf16.mxu0 0
        %564 = vmatpush1.bf16.msra.mxu0 0
        %565 = vmatprep.subr.bf16.mxu0 0
        %566 = vmatpush1.bf16.msra.mxu0 0
        %567 = vmatprep.subr.bf16.mxu0 0
        %568 = vmatpush1.bf16.msra.mxu0 0
        %569 = vmatprep.subr.bf16.mxu0 0
        %570 = vmatpush1.bf16.msra.mxu0 0
        %571 = vmatprep.subr.bf16.mxu0 0
        %572 = vmatpush1.bf16.msra.mxu0 0
        %573 = vmatprep.subr.bf16.mxu0 0
        %574 = vmatpush1.bf16.msra.mxu0 0
        %575 = vmatprep.subr.bf16.mxu0 0
        %576 = vmatpush1.bf16.msra.mxu0 0
        %577 = vmatprep.subr.bf16.mxu0 0
        %578 = vmatpush1.bf16.msra.mxu0 0
        %579 = vmatprep.mubr.bf16.mxu0 0
        %580 = vmatmul.mubr.bf16.gmra.mrb[0].mxu0 %v452
        %v581 = vpop.f32.mrb[0].mxu0
        %v582 = vadd.f32 %v276, %v581
        %v583 = vpop.f32.mrb[0].mxu0
        %v584 = vpop.f32.mrb[0].mxu0
        %v585 = vadd.f32 %v276, %v584
        %v586 = vpop.f32.mrb[0].mxu0
        %587 = vmatprep.mubr.bf16.mxu0 0
        %588 = vmatmul.mubr.bf16.gmra.mrb[0].mxu0 %v455
        %v589 = vpop.f32.mrb[0].mxu0
        %v590 = vadd.f32 %v276, %v589
        %v591 = vpop.f32.mrb[0].mxu0
        %v592 = vpop.f32.mrb[0].mxu0
        %v593 = vadd.f32 %v276, %v592
        %v594 = vpop.f32.mrb[0].mxu0
        %595 = vmatprep.mubr.bf16.mxu0 0
        %596 = vmatmul.mubr.bf16.gmra.mrb[0].mxu0 %v458
        %v597 = vpop.f32.mrb[0].mxu0
        %v598 = vadd.f32 %v276, %v597
        %v599 = vpop.f32.mrb[0].mxu0
        %v600 = vpop.f32.mrb[0].mxu0
        %v601 = vadd.f32 %v276, %v600
        %v602 = vpop.f32.mrb[0].mxu0
        %603 = vmatprep.mubr.bf16.mxu0 0
        %604 = vmatmul.mubr.bf16.gmra.mrb[0].mxu0 %v461
        %v605 = vpop.f32.mrb[0].mxu0
        %v606 = vadd.f32 %v276, %v605
        %v607 = vpop.f32.mrb[0].mxu0
        %v608 = vpop.f32.mrb[0].mxu0
        %v609 = vadd.f32 %v276, %v608
        %v610 = vpop.f32.mrb[0].mxu0
        %611 = vmatprep.mubr.bf16.mxu0 0
        %612 = vmatmul.mubr.bf16.gmra.mrb[0].mxu0 %v464
        %v613 = vpop.f32.mrb[0].mxu0
        %v614 = vadd.f32 %v276, %v613
        %v615 = vpop.f32.mrb[0].mxu0
        %v616 = vpop.f32.mrb[0].mxu0
        %v617 = vadd.f32 %v276, %v616
        %v618 = vpop.f32.mrb[0].mxu0
        %619 = vmatprep.mubr.bf16.mxu0 0
        %620 = vmatmul.mubr.bf16.gmra.mrb[0].mxu0 %v467
        %v621 = vpop.f32.mrb[0].mxu0
        %v622 = vadd.f32 %v276, %v621
        %v623 = vpop.f32.mrb[0].mxu0
        %v624 = vpop.f32.mrb[0].mxu0
        %v625 = vadd.f32 %v276, %v624
        %v626 = vpop.f32.mrb[0].mxu0
        %627 = vmatprep.mubr.bf16.mxu0 0
        %628 = vmatmul.mubr.bf16.gmra.mrb[0].mxu0 %v470
        %v629 = vpop.f32.mrb[0].mxu0
        %v630 = vadd.f32 %v276, %v629
        %v631 = vpop.f32.mrb[0].mxu0
        %v632 = vpop.f32.mrb[0].mxu0
        %v633 = vadd.f32 %v276, %v632
        %v634 = vpop.f32.mrb[0].mxu0
        %635 = vmatprep.mubr.bf16.mxu0 0
        %636 = vmatmul.mubr.bf16.gmra.mrb[0].mxu0 %v473
        %v637 = vpop.f32.mrb[0].mxu0
        %v638 = vadd.f32 %v276, %v637
        %v639 = vpop.f32.mrb[0].mxu0
        %v640 = vpop.f32.mrb[0].mxu0
        %v641 = vadd.f32 %v276, %v640
        %v642 = vpop.f32.mrb[0].mxu0
        %643 = vmatprep.mubr.bf16.mxu0 0
        %644 = vmatmul.mubr.bf16.gmra.mrb[0].mxu0 %v476
        %v645 = vpop.f32.mrb[0].mxu0
        %v646 = vadd.f32 %v276, %v645
        %v647 = vpop.f32.mrb[0].mxu0
        %v648 = vpop.f32.mrb[0].mxu0
        %v649 = vadd.f32 %v276, %v648
        %v650 = vpop.f32.mrb[0].mxu0
        %651 = vmatprep.mubr.bf16.mxu0 0
        %652 = vmatmul.mubr.bf16.gmra.mrb[0].mxu0 %v479
        %v653 = vpop.f32.mrb[0].mxu0
        %v654 = vadd.f32 %v276, %v653
        %v655 = vpop.f32.mrb[0].mxu0
        %v656 = vpop.f32.mrb[0].mxu0
        %v657 = vadd.f32 %v276, %v656
        %v658 = vpop.f32.mrb[0].mxu0
        %659 = vmatprep.mubr.bf16.mxu0 0
        %660 = vmatmul.mubr.bf16.gmra.mrb[0].mxu0 %v482
        %v661 = vpop.f32.mrb[0].mxu0
        %v662 = vadd.f32 %v276, %v661
        %v663 = vpop.f32.mrb[0].mxu0
        %v664 = vpop.f32.mrb[0].mxu0
        %v665 = vadd.f32 %v276, %v664
        %v666 = vpop.f32.mrb[0].mxu0
        %667 = vmatprep.mubr.bf16.mxu0 0
        %668 = vmatmul.mubr.bf16.gmra.mrb[0].mxu0 %v485
        %v669 = vpop.f32.mrb[0].mxu0
        %v670 = vadd.f32 %v276, %v669
        %v671 = vpop.f32.mrb[0].mxu0
        %v672 = vpop.f32.mrb[0].mxu0
        %v673 = vadd.f32 %v276, %v672
        %v674 = vpop.f32.mrb[0].mxu0
        %675 = vmatprep.mubr.bf16.mxu0 0
        %676 = vmatmul.mubr.bf16.gmra.mrb[0].mxu0 %v488
        %v677 = vpop.f32.mrb[0].mxu0
        %v678 = vadd.f32 %v276, %v677
        %v679 = vpop.f32.mrb[0].mxu0
        %v680 = vpop.f32.mrb[0].mxu0
        %v681 = vadd.f32 %v276, %v680
        %v682 = vpop.f32.mrb[0].mxu0
        %683 = vmatprep.mubr.bf16.mxu0 0
        %684 = vmatmul.mubr.bf16.gmra.mrb[0].mxu0 %v491
        %v685 = vpop.f32.mrb[0].mxu0
        %v686 = vadd.f32 %v276, %v685
        %v687 = vpop.f32.mrb[0].mxu0
        %v688 = vpop.f32.mrb[0].mxu0
        %v689 = vadd.f32 %v276, %v688
        %v690 = vpop.f32.mrb[0].mxu0
        %691 = vmatprep.mubr.bf16.mxu0 0
        %692 = vmatmul.mubr.bf16.gmra.mrb[0].mxu0 %v494
        %v693 = vpop.f32.mrb[0].mxu0
        %v694 = vadd.f32 %v276, %v693
        %v695 = vpop.f32.mrb[0].mxu0
        %v696 = vpop.f32.mrb[0].mxu0
        %v697 = vadd.f32 %v276, %v696
        %v698 = vpop.f32.mrb[0].mxu0
        %699 = vmatprep.mubr.bf16.mxu0 0
        %700 = vmatmul.mubr.bf16.gmra.mrb[0].mxu0 %v497
        %v701 = vpop.f32.mrb[0].mxu0
        %v702 = vadd.f32 %v276, %v701
        %v703 = vpop.f32.mrb[0].mxu0
        %v704 = vpop.f32.mrb[0].mxu0
        %v705 = vadd.f32 %v276, %v704
        %v706 = vpop.f32.mrb[0].mxu0
        %707 = vmatprep.mubr.bf16.mxu0 0
        %708 = vmatmul.mubr.bf16.gmra.mrb[0].mxu0 %v500
        %v709 = vpop.f32.mrb[0].mxu0
        %v710 = vadd.f32 %v276, %v709
        %v711 = vpop.f32.mrb[0].mxu0
        %v712 = vpop.f32.mrb[0].mxu0
        %v713 = vadd.f32 %v276, %v712
        %v714 = vpop.f32.mrb[0].mxu0
        %715 = vmatprep.mubr.bf16.mxu0 0
        %716 = vmatmul.mubr.bf16.gmra.mrb[0].mxu0 %v503
        %v717 = vpop.f32.mrb[0].mxu0
        %v718 = vadd.f32 %v276, %v717
        %v719 = vpop.f32.mrb[0].mxu0
        %v720 = vpop.f32.mrb[0].mxu0
        %v721 = vadd.f32 %v276, %v720
        %v722 = vpop.f32.mrb[0].mxu0
        %723 = vmatprep.mubr.bf16.mxu0 0
        %724 = vmatmul.mubr.bf16.gmra.mrb[0].mxu0 %v506
        %v725 = vpop.f32.mrb[0].mxu0
        %v726 = vadd.f32 %v276, %v725
        %v727 = vpop.f32.mrb[0].mxu0
        %v728 = vpop.f32.mrb[0].mxu0
        %v729 = vadd.f32 %v276, %v728
        %v730 = vpop.f32.mrb[0].mxu0
        %731 = vmatprep.mubr.bf16.mxu0 0
        %732 = vmatmul.mubr.bf16.gmra.mrb[0].mxu0 %v509
        %v733 = vpop.f32.mrb[0].mxu0
        %v734 = vadd.f32 %v276, %v733
        %v735 = vpop.f32.mrb[0].mxu0
        %v736 = vpop.f32.mrb[0].mxu0
        %v737 = vadd.f32 %v276, %v736
        %v738 = vpop.f32.mrb[0].mxu0
        %739 = vmatprep.mubr.bf16.mxu0 0
        %740 = vmatmul.mubr.bf16.gmra.mrb[0].mxu0 %v512
        %v741 = vpop.f32.mrb[0].mxu0
        %v742 = vadd.f32 %v276, %v741
        %v743 = vpop.f32.mrb[0].mxu0
        %v744 = vpop.f32.mrb[0].mxu0
        %v745 = vadd.f32 %v276, %v744
        %v746 = vpop.f32.mrb[0].mxu0
        %747 = vmatprep.mubr.bf16.mxu0 0
        %748 = vmatmul.mubr.bf16.gmra.mrb[0].mxu0 %v515
        %v749 = vpop.f32.mrb[0].mxu0
        %v750 = vadd.f32 %v276, %v749
        %v751 = vpop.f32.mrb[0].mxu0
        %v752 = vpop.f32.mrb[0].mxu0
        %v753 = vadd.f32 %v276, %v752
        %v754 = vpop.f32.mrb[0].mxu0
        %755 = vmatprep.mubr.bf16.mxu0 0
        %756 = vmatmul.mubr.bf16.gmra.mrb[0].mxu0 %v518
        %v757 = vpop.f32.mrb[0].mxu0
        %v758 = vadd.f32 %v276, %v757
        %v759 = vpop.f32.mrb[0].mxu0
        %v760 = vpop.f32.mrb[0].mxu0
        %v761 = vadd.f32 %v276, %v760
        %v762 = vpop.f32.mrb[0].mxu0
        %763 = vmatprep.mubr.bf16.mxu0 0
        %764 = vmatmul.mubr.bf16.gmra.mrb[0].mxu0 %v521
        %v765 = vpop.f32.mrb[0].mxu0
        %v766 = vadd.f32 %v276, %v765
        %v767 = vpop.f32.mrb[0].mxu0
        %v768 = vpop.f32.mrb[0].mxu0
        %v769 = vadd.f32 %v276, %v768
        %v770 = vpop.f32.mrb[0].mxu0
        %771 = vmatprep.mubr.bf16.mxu0 0
        %772 = vmatmul.mubr.bf16.gmra.mrb[0].mxu0 %v524
        %v773 = vpop.f32.mrb[0].mxu0
        %v774 = vadd.f32 %v276, %v773
        %v775 = vpop.f32.mrb[0].mxu0
        %v776 = vpop.f32.mrb[0].mxu0
        %v777 = vadd.f32 %v276, %v776
        %v778 = vpop.f32.mrb[0].mxu0
        %779 = vmatprep.mubr.bf16.mxu0 0
        %780 = vmatmul.mubr.bf16.gmra.mrb[0].mxu0 %v527
        %v781 = vpop.f32.mrb[0].mxu0
        %v782 = vadd.f32 %v276, %v781
        %v783 = vpop.f32.mrb[0].mxu0
        %v784 = vpop.f32.mrb[0].mxu0
        %v785 = vadd.f32 %v276, %v784
        %v786 = vpop.f32.mrb[0].mxu0
        %787 = vmatprep.mubr.bf16.mxu0 0
        %788 = vmatmul.mubr.bf16.gmra.mrb[0].mxu0 %v530
        %v789 = vpop.f32.mrb[0].mxu0
        %v790 = vadd.f32 %v276, %v789
        %v791 = vpop.f32.mrb[0].mxu0
        %v792 = vpop.f32.mrb[0].mxu0
        %v793 = vadd.f32 %v276, %v792
        %v794 = vpop.f32.mrb[0].mxu0
        %795 = vmatprep.mubr.bf16.mxu0 0
        %796 = vmatmul.mubr.bf16.gmra.mrb[0].mxu0 %v533
        %v797 = vpop.f32.mrb[0].mxu0
        %v798 = vadd.f32 %v276, %v797
        %v799 = vpop.f32.mrb[0].mxu0
        %v800 = vpop.f32.mrb[0].mxu0
        %v801 = vadd.f32 %v276, %v800
        %v802 = vpop.f32.mrb[0].mxu0
        %803 = vmatprep.mubr.bf16.mxu0 0
        %804 = vmatmul.mubr.bf16.gmra.mrb[0].mxu0 %v536
        %v805 = vpop.f32.mrb[0].mxu0
        %v806 = vadd.f32 %v276, %v805
        %v807 = vpop.f32.mrb[0].mxu0
        %v808 = vpop.f32.mrb[0].mxu0
        %v809 = vadd.f32 %v276, %v808
        %v810 = vpop.f32.mrb[0].mxu0
        %811 = vmatprep.mubr.bf16.mxu0 0
        %812 = vmatmul.mubr.bf16.gmra.mrb[0].mxu0 %v539
        %v813 = vpop.f32.mrb[0].mxu0
        %v814 = vadd.f32 %v276, %v813
        %v815 = vpop.f32.mrb[0].mxu0
        %v816 = vpop.f32.mrb[0].mxu0
        %v817 = vadd.f32 %v276, %v816
        %v818 = vpop.f32.mrb[0].mxu0
        %819 = vmatprep.mubr.bf16.mxu0 0
        %820 = vmatmul.mubr.bf16.gmra.mrb[0].mxu0 %v542
        %v821 = vpop.f32.mrb[0].mxu0
        %v822 = vadd.f32 %v276, %v821
        %v823 = vpop.f32.mrb[0].mxu0
        %v824 = vpop.f32.mrb[0].mxu0
        %v825 = vadd.f32 %v276, %v824
        %v826 = vpop.f32.mrb[0].mxu0
        %827 = vmatprep.mubr.bf16.mxu0 0
        %828 = vmatmul.mubr.bf16.gmra.mrb[0].mxu0 %v545
        %v829 = vpop.f32.mrb[0].mxu0
        %v830 = vadd.f32 %v276, %v829
        %v831 = vpop.f32.mrb[0].mxu0
        %v832 = vpop.f32.mrb[0].mxu0
        %v833 = vadd.f32 %v276, %v832
        %v834 = vpop.f32.mrb[0].mxu0
        %835 = vdwg.mxu0
        %v836 = vmax.f32 %v582, 0.0
        %v837 = vmax.f32 %v585, 0.0
        %v838 = vmax.f32 %v590, 0.0
        %v839 = vmax.f32 %v593, 0.0
        %v840 = vmax.f32 %v598, 0.0
        %v841 = vmax.f32 %v601, 0.0
        %v842 = vmax.f32 %v606, 0.0
        %v843 = vmax.f32 %v609, 0.0
        %v844 = vmax.f32 %v614, 0.0
        %v845 = vmax.f32 %v617, 0.0
        %v846 = vmax.f32 %v622, 0.0
        %v847 = vmax.f32 %v625, 0.0
        %v848 = vmax.f32 %v630, 0.0
        %v849 = vmax.f32 %v633, 0.0
        %v850 = vmax.f32 %v638, 0.0
        %v851 = vmax.f32 %v641, 0.0
        %v852 = vmax.f32 %v646, 0.0
        %v853 = vmax.f32 %v649, 0.0
        %v854 = vmax.f32 %v654, 0.0
        %v855 = vmax.f32 %v657, 0.0
        %v856 = vmax.f32 %v662, 0.0
        %v857 = vmax.f32 %v665, 0.0
        %v858 = vmax.f32 %v670, 0.0
        %v859 = vmax.f32 %v673, 0.0
        %v860 = vmax.f32 %v678, 0.0
        %v861 = vmax.f32 %v681, 0.0
        %v862 = vmax.f32 %v686, 0.0
        %v863 = vmax.f32 %v689, 0.0
        %v864 = vmax.f32 %v694, 0.0
        %v865 = vmax.f32 %v697, 0.0
        %v866 = vmax.f32 %v702, 0.0
        %v867 = vmax.f32 %v705, 0.0
        %v868 = vmax.f32 %v710, 0.0
        %v869 = vmax.f32 %v713, 0.0
        %v870 = vmax.f32 %v718, 0.0
        %v871 = vmax.f32 %v721, 0.0
        %v872 = vmax.f32 %v726, 0.0
        %v873 = vmax.f32 %v729, 0.0
        %v874 = vmax.f32 %v734, 0.0
        %v875 = vmax.f32 %v737, 0.0
        %v876 = vmax.f32 %v742, 0.0
        %v877 = vmax.f32 %v745, 0.0
        %v878 = vmax.f32 %v750, 0.0
        %v879 = vmax.f32 %v753, 0.0
        %v880 = vmax.f32 %v758, 0.0
        %v881 = vmax.f32 %v761, 0.0
        %v882 = vmax.f32 %v766, 0.0
        %v883 = vmax.f32 %v769, 0.0
        %v884 = vmax.f32 %v774, 0.0
        %v885 = vmax.f32 %v777, 0.0
        %v886 = vmax.f32 %v782, 0.0
        %v887 = vmax.f32 %v785, 0.0
        %v888 = vmax.f32 %v790, 0.0
        %v889 = vmax.f32 %v793, 0.0
        %v890 = vmax.f32 %v798, 0.0
        %v891 = vmax.f32 %v801, 0.0
        %v892 = vmax.f32 %v806, 0.0
        %v893 = vmax.f32 %v809, 0.0
        %v894 = vmax.f32 %v814, 0.0
        %v895 = vmax.f32 %v817, 0.0
        %v896 = vmax.f32 %v822, 0.0
        %v897 = vmax.f32 %v825, 0.0
        %v898 = vmax.f32 %v830, 0.0
        %v899 = vmax.f32 %v833, 0.0
        %v900 = vpack.c.bf16 %v837, %v836
        %v901 = vpack.c.bf16 %v839, %v838
        %v902 = vpack.c.bf16 %v841, %v840
        %v903 = vpack.c.bf16 %v843, %v842
        %v904 = vpack.c.bf16 %v845, %v844
        %v905 = vpack.c.bf16 %v847, %v846
        %v906 = vpack.c.bf16 %v849, %v848
        %v907 = vpack.c.bf16 %v851, %v850
        %v908 = vpack.c.bf16 %v853, %v852
        %v909 = vpack.c.bf16 %v855, %v854
        %v910 = vpack.c.bf16 %v857, %v856
        %v911 = vpack.c.bf16 %v859, %v858
        %v912 = vpack.c.bf16 %v861, %v860
        %v913 = vpack.c.bf16 %v863, %v862
        %v914 = vpack.c.bf16 %v865, %v864
        %v915 = vpack.c.bf16 %v867, %v866
        %v916 = vpack.c.bf16 %v869, %v868
        %v917 = vpack.c.bf16 %v871, %v870
        %v918 = vpack.c.bf16 %v873, %v872
        %v919 = vpack.c.bf16 %v875, %v874
        %v920 = vpack.c.bf16 %v877, %v876
        %v921 = vpack.c.bf16 %v879, %v878
        %v922 = vpack.c.bf16 %v881, %v880
        %v923 = vpack.c.bf16 %v883, %v882
        %v924 = vpack.c.bf16 %v885, %v884
        %v925 = vpack.c.bf16 %v887, %v886
        %v926 = vpack.c.bf16 %v889, %v888
        %v927 = vpack.c.bf16 %v891, %v890
        %v928 = vpack.c.bf16 %v893, %v892
        %v929 = vpack.c.bf16 %v895, %v894
        %v930 = vpack.c.bf16 %v897, %v896
        %v931 = vpack.c.bf16 %v899, %v898
        %v964 = vunpack.c.l.b16 %v900
        %v965 = vunpack.c.h.b16 %v900
        %v966 = vunpack.c.l.b16 %v901
        %v967 = vunpack.c.h.b16 %v901
        %v968 = vunpack.c.l.b16 %v902
        %v969 = vunpack.c.h.b16 %v902
        %v970 = vunpack.c.l.b16 %v903
        %v971 = vunpack.c.h.b16 %v903
        %v972 = vunpack.c.l.b16 %v904
        %v973 = vunpack.c.h.b16 %v904
        %v974 = vunpack.c.l.b16 %v905
        %v975 = vunpack.c.h.b16 %v905
        %v976 = vunpack.c.l.b16 %v906
        %v977 = vunpack.c.h.b16 %v906
        %v978 = vunpack.c.l.b16 %v907
        %v979 = vunpack.c.h.b16 %v907
        %v980 = vunpack.c.l.b16 %v908
        %v981 = vunpack.c.h.b16 %v908
        %v982 = vunpack.c.l.b16 %v909
        %v983 = vunpack.c.h.b16 %v909
        %v984 = vunpack.c.l.b16 %v910
        %v985 = vunpack.c.h.b16 %v910
        %v986 = vunpack.c.l.b16 %v911
        %v987 = vunpack.c.h.b16 %v911
        %v988 = vunpack.c.l.b16 %v912
        %v989 = vunpack.c.h.b16 %v912
        %v990 = vunpack.c.l.b16 %v913
        %v991 = vunpack.c.h.b16 %v913
        %v992 = vunpack.c.l.b16 %v914
        %v993 = vunpack.c.h.b16 %v914
        %v994 = vunpack.c.l.b16 %v915
        %v995 = vunpack.c.h.b16 %v915
        %v996 = vunpack.c.l.b16 %v916
        %v997 = vunpack.c.h.b16 %v916
        %v998 = vunpack.c.l.b16 %v917
        %v999 = vunpack.c.h.b16 %v917
        %v1000 = vunpack.c.l.b16 %v918
        %v1001 = vunpack.c.h.b16 %v918
        %v1002 = vunpack.c.l.b16 %v919
        %v1003 = vunpack.c.h.b16 %v919
        %v1004 = vunpack.c.l.b16 %v920
        %v1005 = vunpack.c.h.b16 %v920
        %v1006 = vunpack.c.l.b16 %v921
        %v1007 = vunpack.c.h.b16 %v921
        %v1008 = vunpack.c.l.b16 %v922
        %v1009 = vunpack.c.h.b16 %v922
        %v1010 = vunpack.c.l.b16 %v923
        %v1011 = vunpack.c.h.b16 %v923
        %v1012 = vunpack.c.l.b16 %v924
        %v1013 = vunpack.c.h.b16 %v924
        %v1014 = vunpack.c.l.b16 %v925
        %v1015 = vunpack.c.h.b16 %v925
        %v1016 = vunpack.c.l.b16 %v926
        %v1017 = vunpack.c.h.b16 %v926
        %v1018 = vunpack.c.l.b16 %v927
        %v1019 = vunpack.c.h.b16 %v927
        %v1020 = vunpack.c.l.b16 %v928
        %v1021 = vunpack.c.h.b16 %v928
        %v1022 = vunpack.c.l.b16 %v929
        %v1023 = vunpack.c.h.b16 %v929
        %v1024 = vunpack.c.l.b16 %v930
        %v1025 = vunpack.c.h.b16 %v930
        %v1026 = vunpack.c.l.b16 %v931
        %v1027 = vunpack.c.h.b16 %v931
        %v1028 = vpack.c.b16 %v964, %v964
        %v1029 = vpack.c.b16 %v965, %v965
        %v1030 = vpack.c.b16 %v966, %v966
        %v1031 = vpack.c.b16 %v967, %v967
        %v1032 = vpack.c.b16 %v968, %v968
        %v1033 = vpack.c.b16 %v969, %v969
        %v1034 = vpack.c.b16 %v970, %v970
        %v1035 = vpack.c.b16 %v971, %v971
        %v1036 = vpack.c.b16 %v972, %v972
        %v1037 = vpack.c.b16 %v973, %v973
        %v1038 = vpack.c.b16 %v974, %v974
        %v1039 = vpack.c.b16 %v975, %v975
        %v1040 = vpack.c.b16 %v976, %v976
        %v1041 = vpack.c.b16 %v977, %v977
        %v1042 = vpack.c.b16 %v978, %v978
        %v1043 = vpack.c.b16 %v979, %v979
        %v1044 = vpack.c.b16 %v980, %v980
        %v1045 = vpack.c.b16 %v981, %v981
        %v1046 = vpack.c.b16 %v982, %v982
        %v1047 = vpack.c.b16 %v983, %v983
        %v1048 = vpack.c.b16 %v984, %v984
        %v1049 = vpack.c.b16 %v985, %v985
        %v1050 = vpack.c.b16 %v986, %v986
        %v1051 = vpack.c.b16 %v987, %v987
        %v1052 = vpack.c.b16 %v988, %v988
        %v1053 = vpack.c.b16 %v989, %v989
        %v1054 = vpack.c.b16 %v990, %v990
        %v1055 = vpack.c.b16 %v991, %v991
        %v1056 = vpack.c.b16 %v992, %v992
        %v1057 = vpack.c.b16 %v993, %v993
        %v1058 = vpack.c.b16 %v994, %v994
        %v1059 = vpack.c.b16 %v995, %v995
        %v1060 = vpack.c.b16 %v996, %v996
        %v1061 = vpack.c.b16 %v997, %v997
        %v1062 = vpack.c.b16 %v998, %v998
        %v1063 = vpack.c.b16 %v999, %v999
        %v1064 = vpack.c.b16 %v1000, %v1000
        %v1065 = vpack.c.b16 %v1001, %v1001
        %v1066 = vpack.c.b16 %v1002, %v1002
        %v1067 = vpack.c.b16 %v1003, %v1003
        %v1068 = vpack.c.b16 %v1004, %v1004
        %v1069 = vpack.c.b16 %v1005, %v1005
        %v1070 = vpack.c.b16 %v1006, %v1006
        %v1071 = vpack.c.b16 %v1007, %v1007
        %v1072 = vpack.c.b16 %v1008, %v1008
        %v1073 = vpack.c.b16 %v1009, %v1009
        %v1074 = vpack.c.b16 %v1010, %v1010
        %v1075 = vpack.c.b16 %v1011, %v1011
        %v1076 = vpack.c.b16 %v1012, %v1012
        %v1077 = vpack.c.b16 %v1013, %v1013
        %v1078 = vpack.c.b16 %v1014, %v1014
        %v1079 = vpack.c.b16 %v1015, %v1015
        %v1080 = vpack.c.b16 %v1016, %v1016
        %v1081 = vpack.c.b16 %v1017, %v1017
        %v1082 = vpack.c.b16 %v1018, %v1018
        %v1083 = vpack.c.b16 %v1019, %v1019
        %v1084 = vpack.c.b16 %v1020, %v1020
        %v1085 = vpack.c.b16 %v1021, %v1021
        %v1086 = vpack.c.b16 %v1022, %v1022
        %v1087 = vpack.c.b16 %v1023, %v1023
        %v1088 = vpack.c.b16 %v1024, %v1024
        %v1089 = vpack.c.b16 %v1025, %v1025
        %v1090 = vpack.c.b16 %v1026, %v1026
        %v1091 = vpack.c.b16 %v1027, %v1027
        %vm1156 = vcmask 257024
        %1157 = vst.msk [vmem:[%s200] sm:$0xf] %vm1156, %v1028
        %1158 = vst.msk [vmem:[%s200 + $0x4] sm:$0xf] %vm1156, %v1029
        %1159 = vst.msk [vmem:[%s200 + $0x8] sm:$0xf] %vm1156, %v1030
        %1160 = vst.msk [vmem:[%s200 + $0xc] sm:$0xf] %vm1156, %v1031
        %1161 = vst.msk [vmem:[%s200 + $0x10] sm:$0xf] %vm1156, %v1032
        %1162 = vst.msk [vmem:[%s200 + $0x14] sm:$0xf] %vm1156, %v1033
        %1163 = vst.msk [vmem:[%s200 + $0x18] sm:$0xf] %vm1156, %v1034
        %1164 = vst.msk [vmem:[%s200 + $0x1c] sm:$0xf] %vm1156, %v1035
        %1165 = vst.msk [vmem:[%s200 + $0x20] sm:$0xf] %vm1156, %v1036
        %1166 = vst.msk [vmem:[%s200 + $0x24] sm:$0xf] %vm1156, %v1037
        %1167 = vst.msk [vmem:[%s200 + $0x28] sm:$0xf] %vm1156, %v1038
        %1168 = vst.msk [vmem:[%s200 + $0x2c] sm:$0xf] %vm1156, %v1039
        %1169 = vst.msk [vmem:[%s200 + $0x30] sm:$0xf] %vm1156, %v1040
        %1170 = vst.msk [vmem:[%s200 + $0x34] sm:$0xf] %vm1156, %v1041
        %1171 = vst.msk [vmem:[%s200 + $0x38] sm:$0xf] %vm1156, %v1042
        %1172 = vst.msk [vmem:[%s200 + $0x3c] sm:$0xf] %vm1156, %v1043
        %1173 = vst.msk [vmem:[%s200 + $0x40] sm:$0xf] %vm1156, %v1044
        %1174 = vst.msk [vmem:[%s200 + $0x44] sm:$0xf] %vm1156, %v1045
        %1175 = vst.msk [vmem:[%s200 + $0x48] sm:$0xf] %vm1156, %v1046
        %1176 = vst.msk [vmem:[%s200 + $0x4c] sm:$0xf] %vm1156, %v1047
        %1177 = vst.msk [vmem:[%s200 + $0x50] sm:$0xf] %vm1156, %v1048
        %1178 = vst.msk [vmem:[%s200 + $0x54] sm:$0xf] %vm1156, %v1049
        %1179 = vst.msk [vmem:[%s200 + $0x58] sm:$0xf] %vm1156, %v1050
        %1180 = vst.msk [vmem:[%s200 + $0x5c] sm:$0xf] %vm1156, %v1051
        %1181 = vst.msk [vmem:[%s200 + $0x60] sm:$0xf] %vm1156, %v1052
        %1182 = vst.msk [vmem:[%s200 + $0x64] sm:$0xf] %vm1156, %v1053
        %1183 = vst.msk [vmem:[%s200 + $0x68] sm:$0xf] %vm1156, %v1054
        %1184 = vst.msk [vmem:[%s200 + $0x6c] sm:$0xf] %vm1156, %v1055
        %1185 = vst.msk [vmem:[%s200 + $0x70] sm:$0xf] %vm1156, %v1056
        %1186 = vst.msk [vmem:[%s200 + $0x74] sm:$0xf] %vm1156, %v1057
        %1187 = vst.msk [vmem:[%s200 + $0x78] sm:$0xf] %vm1156, %v1058
        %1188 = vst.msk [vmem:[%s200 + $0x7c] sm:$0xf] %vm1156, %v1059
        %1189 = vst.msk [vmem:[%s200 + $0x80] sm:$0xf] %vm1156, %v1060
        %1190 = vst.msk [vmem:[%s200 + $0x84] sm:$0xf] %vm1156, %v1061
        %1191 = vst.msk [vmem:[%s200 + $0x88] sm:$0xf] %vm1156, %v1062
        %1192 = vst.msk [vmem:[%s200 + $0x8c] sm:$0xf] %vm1156, %v1063
        %1193 = vst.msk [vmem:[%s200 + $0x90] sm:$0xf] %vm1156, %v1064
        %1194 = vst.msk [vmem:[%s200 + $0x94] sm:$0xf] %vm1156, %v1065
        %1195 = vst.msk [vmem:[%s200 + $0x98] sm:$0xf] %vm1156, %v1066
        %1196 = vst.msk [vmem:[%s200 + $0x9c] sm:$0xf] %vm1156, %v1067
        %1197 = vst.msk [vmem:[%s200 + $0xa0] sm:$0xf] %vm1156, %v1068
        %1198 = vst.msk [vmem:[%s200 + $0xa4] sm:$0xf] %vm1156, %v1069
        %1199 = vst.msk [vmem:[%s200 + $0xa8] sm:$0xf] %vm1156, %v1070
        %1200 = vst.msk [vmem:[%s200 + $0xac] sm:$0xf] %vm1156, %v1071
        %1201 = vst.msk [vmem:[%s200 + $0xb0] sm:$0xf] %vm1156, %v1072
        %1202 = vst.msk [vmem:[%s200 + $0xb4] sm:$0xf] %vm1156, %v1073
        %1203 = vst.msk [vmem:[%s200 + $0xb8] sm:$0xf] %vm1156, %v1074
        %1204 = vst.msk [vmem:[%s200 + $0xbc] sm:$0xf] %vm1156, %v1075
        %1205 = vst.msk [vmem:[%s200 + $0xc0] sm:$0xf] %vm1156, %v1076
        %1206 = vst.msk [vmem:[%s200 + $0xc4] sm:$0xf] %vm1156, %v1077
        %1207 = vst.msk [vmem:[%s200 + $0xc8] sm:$0xf] %vm1156, %v1078
        %1208 = vst.msk [vmem:[%s200 + $0xcc] sm:$0xf] %vm1156, %v1079
        %1209 = vst.msk [vmem:[%s200 + $0xd0] sm:$0xf] %vm1156, %v1080
        %1210 = vst.msk [vmem:[%s200 + $0xd4] sm:$0xf] %vm1156, %v1081
        %1211 = vst.msk [vmem:[%s200 + $0xd8] sm:$0xf] %vm1156, %v1082
        %1212 = vst.msk [vmem:[%s200 + $0xdc] sm:$0xf] %vm1156, %v1083
        %1213 = vst.msk [vmem:[%s200 + $0xe0] sm:$0xf] %vm1156, %v1084
        %1214 = vst.msk [vmem:[%s200 + $0xe4] sm:$0xf] %vm1156, %v1085
        %1215 = vst.msk [vmem:[%s200 + $0xe8] sm:$0xf] %vm1156, %v1086
        %1216 = vst.msk [vmem:[%s200 + $0xec] sm:$0xf] %vm1156, %v1087
        %1217 = vst.msk [vmem:[%s200 + $0xf0] sm:$0xf] %vm1156, %v1088
        %1218 = vst.msk [vmem:[%s200 + $0xf4] sm:$0xf] %vm1156, %v1089
        %1219 = vst.msk [vmem:[%s200 + $0xf8] sm:$0xf] %vm1156, %v1090
        %1220 = vst.msk [vmem:[%s200 + $0xfc] sm:$0xf] %vm1156, %v1091
        %s1221 = smul.u32 64, %s16
        %p1222 = scmp.lt.s32.totalorder %s1221, 255
        %s1223 = scalar_select %p1222, %s1221, 255
        %s1224 = smul.addr %s1223, 4
        %s1225 = scalar_lea.vmem %s3, %s1224
        // Predicated region
        $region41: #{prunus_forward.8} parent=31 // pred_check
          %p1226 = pneg %p102
        $region42: #{prunus_forward.8} parent=31 // pred_check_branch
          %1228 = sbr.rel (%p1226) target = $region44
        $region43: #{prunus_forward.8} parent=31 // pred_region
          %s1229 = smul.u32 64, %s16
        $region44: #{prunus_forward.8} parent=31 // pred_fallthru
          _
      $region32: #{prunus_forward.8} parent=5 // pred_fallthru
        _
      %p1230 = scmp.le.s32.totalorder 2, %s11
      // Predicated region
      $region45: #{prunus_forward.8} parent=5 // pred_check
        %p1231 = pneg %p1230
      $region46: #{prunus_forward.8} parent=5 // pred_check_branch
        %1233 = sbr.rel (%p1231) target = $region48
      $region47: #{prunus_forward.8} parent=5 // pred_region
        %s1234 = ssub.s32 %s11, 2
        // Predicated region
        $region49: #{prunus_forward.8} parent=47 // pred_check
          %p1235 = pneg %p108
        $region50: #{prunus_forward.8} parent=47 // pred_check_branch
          %1237 = sbr.rel (%p1235) target = $region52
        $region51: #{prunus_forward.8} parent=47 // pred_region
          %s1238 = smul.u32 64, %s17
          %p1239 = scmp.lt.s32.totalorder %s1238, 255
          %s1240 = scalar_select %p1239, %s1238, 255
          %s1241 = smul.addr %s1240, 4
          %s1242 = scalar_lea.vmem %s3, %s1241
        $region52: #{prunus_forward.8} parent=47 // pred_fallthru
          _
      $region48: #{prunus_forward.8} parent=5 // pred_fallthru
        _
    $region6: #{prunus_forward.8} parent=1 // loop_footer
      %s15 = sadd.s32 1, %s11
    $region7: #{prunus_forward.8} parent=1 // loop_footer_branch
      %10 = sbr.rel target = $region3
    $region8: #{prunus_forward.8} parent=1 // loop_exit
      _
    %1243 = vsyncpa [#allocation3], 1
    %s1244 = scalar_lea.sflag [#allocation3], 1
    %1245 = vsyncpa %s1244, 1
    %1246 = vsyncpa [#allocation5], 1

// kernel: prunus_forward.10
$region0: #{prunus_forward.10}
  #allocation0 [shape = 'u32[]', space=smem, size = 0x4, offset = 0x4, fixed_abs, tag = 'smem constant byte address 0x4 - core index']
  #allocation1 [shape = 'u32[144,128]{1,0:T(1,128)}', space=vmem, size = 0x12000, scoped, tag = 'internal scratch']
  %s0 = inlined_call_operand.vmem [shape: bf16[512,288], index: 0, kind: input, shape index: {}]
  %s1 = inlined_call_operand.vmem [shape: bf16[288,64], index: 1, kind: input, shape index: {}]
  %s2 = inlined_call_operand.vmem [shape: f32[1,64], index: 2, kind: input, shape index: {}]
  %s3 = inlined_call_operand.vmem [shape: bf16[512,64], index: 3, kind: output, shape index: {}]
  %s4 = sld [smem:[#allocation0]]
  $region45: #{prunus_forward.10} parent=0
    _
  %s6 = ssub.s32 1, %s4
  %s7 = scalar_select 0, %s6, %s4
  loop: start=0, step=1, limit=4
  $region2: #{prunus_forward.10} parent=0 // loop_pre_header
    _
  $region3: #{prunus_forward.10} parent=0 // loop_header
    %s9 = sphi 0, %s13
    %p10 = scmp.ge.s32.totalorder %s9, 4
    %s19 = sphi 0, %s21
    %s22 = sphi 0, %s19
    %s23 = sphi 0, %s22
    %s39 = sphi 0, %s23
    %s43 = sphi 0, %s43
    %s45 = sphi 0, %s43
    %s46 = sphi 0, %s45
    %s60 = sphi 0, %s46
    %s64 = sphi 0, %s64
    %s66 = sphi 0, %s64
    %s67 = sphi 0, %s66
    %s81 = sphi 0, %s67
    %s87 = sphi 0, %s89
    %s90 = sphi 0, %s87
    %s91 = sphi 0, %s90
    %s107 = sphi 0, %s91
  $region4: #{prunus_forward.10} parent=0 // loop_header_branch
    %12 = sbr.rel (%p10) target = $region8
  $region5: #{prunus_forward.10} parent=0 // loop_body
    %s14 = ssub.s32 %s9, 1
    %s15 = ssub.s32 %s9, 2
    %s16 = sadd.s32 %s9, 1
    %s17 = ssub.s32 %s9, %s16
    %p18 = scmp.eq.s32.totalorder %s17, 0
    %s20 = sadd.s32 %s19, 1
    %s21 = scalar_select %p18, %s19, %s20
    %p24 = pneg %p18
    %p25 = scmp.eq.s32.totalorder %s9, 1
    %p26 = por %p24, %p25
    %p27 = scmp.ne.s32.totalorder %s19, %s22
    %p28 = scmp.eq.s32.totalorder %s9, 0
    %p29 = por %p27, %p28
    %p30 = scmp.ne.s32.totalorder %s19, %s22
    %p31 = scmp.eq.s32.totalorder %s14, 1
    %p32 = por %p30, %p31
    %p33 = scmp.ne.s32.totalorder %s22, %s23
    %p34 = scmp.eq.s32.totalorder %s14, 0
    %p35 = por %p33, %p34
    %p36 = scmp.ne.s32.totalorder %s22, %s23
    %p37 = scmp.eq.s32.totalorder %s15, 1
    %p38 = por %p36, %p37
    %p40 = scmp.ne.s32.totalorder %s23, %s39
    %p41 = scmp.eq.s32.totalorder %s15, 0
    %p42 = por %p40, %p41
    %s44 = sadd.s32 %s43, 1
    %p47 = scmp.eq.s32.totalorder %s9, 1
    %p48 = scmp.ne.s32.totalorder %s43, %s45
    %p49 = scmp.eq.s32.totalorder %s9, 0
    %p50 = por %p48, %p49
    %p51 = scmp.ne.s32.totalorder %s43, %s45
    %p52 = scmp.eq.s32.totalorder %s14, 1
    %p53 = por %p51, %p52
    %p54 = scmp.ne.s32.totalorder %s45, %s46
    %p55 = scmp.eq.s32.totalorder %s14, 0
    %p56 = por %p54, %p55
    %p57 = scmp.ne.s32.totalorder %s45, %s46
    %p58 = scmp.eq.s32.totalorder %s15, 1
    %p59 = por %p57, %p58
    %p61 = scmp.ne.s32.totalorder %s46, %s60
    %p62 = scmp.eq.s32.totalorder %s15, 0
    %p63 = por %p61, %p62
    %s65 = sadd.s32 %s64, 1
    %p68 = scmp.eq.s32.totalorder %s9, 1
    %p69 = scmp.ne.s32.totalorder %s64, %s66
    %p70 = scmp.eq.s32.totalorder %s9, 0
    %p71 = por %p69, %p70
    %p72 = scmp.ne.s32.totalorder %s64, %s66
    %p73 = scmp.eq.s32.totalorder %s14, 1
    %p74 = por %p72, %p73
    %p75 = scmp.ne.s32.totalorder %s66, %s67
    %p76 = scmp.eq.s32.totalorder %s14, 0
    %p77 = por %p75, %p76
    %p78 = scmp.ne.s32.totalorder %s66, %s67
    %p79 = scmp.eq.s32.totalorder %s15, 1
    %p80 = por %p78, %p79
    %p82 = scmp.ne.s32.totalorder %s67, %s81
    %p83 = scmp.eq.s32.totalorder %s15, 0
    %p84 = por %p82, %p83
    %s85 = ssub.s32 %s9, %s16
    %p86 = scmp.eq.s32.totalorder %s85, 0
    %s88 = sadd.s32 %s87, 1
    %s89 = scalar_select %p86, %s87, %s88
    %p92 = pneg %p86
    %p93 = scmp.eq.s32.totalorder %s9, 1
    %p94 = por %p92, %p93
    %p95 = scmp.ne.s32.totalorder %s87, %s90
    %p96 = scmp.eq.s32.totalorder %s9, 0
    %p97 = por %p95, %p96
    %p98 = scmp.ne.s32.totalorder %s87, %s90
    %p99 = scmp.eq.s32.totalorder %s14, 1
    %p100 = por %p98, %p99
    %p101 = scmp.ne.s32.totalorder %s90, %s91
    %p102 = scmp.eq.s32.totalorder %s14, 0
    %p103 = por %p101, %p102
    %p104 = scmp.ne.s32.totalorder %s90, %s91
    %p105 = scmp.eq.s32.totalorder %s15, 1
    %p106 = por %p104, %p105
    %p108 = scmp.ne.s32.totalorder %s91, %s107
    %p109 = scmp.eq.s32.totalorder %s15, 0
    %p110 = por %p108, %p109
    %p111 = scmp.le.s32.totalorder 1, %s9
    %p112 = scmp.lt.s32.totalorder %s9, 3
    %p113 = pnand %p111, %p112
    %p114 = pneg %p113
    // Predicated region
    $region9: #{prunus_forward.10} parent=5 // pred_check
      _
    $region10: #{prunus_forward.10} parent=5 // pred_check_branch
      %116 = sbr.rel (%p113) target = $region12
    $region11: #{prunus_forward.10} parent=5 // pred_region
      %s117 = ssub.s32 %s9, 1
      // Predicated region
      $region13: #{prunus_forward.10} parent=11 // pred_check
        %p118 = pneg %p56
      $region14: #{prunus_forward.10} parent=11 // pred_check_branch
        %120 = sbr.rel (%p118) target = $region16
      $region15: #{prunus_forward.10} parent=11 // pred_region
        _
      $region16: #{prunus_forward.10} parent=11 // pred_fallthru
        _
      // Predicated region
      $region17: #{prunus_forward.10} parent=11 // pred_check
        %p121 = pneg %p77
      $region18: #{prunus_forward.10} parent=11 // pred_check_branch
        %123 = sbr.rel (%p121) target = $region20
      $region19: #{prunus_forward.10} parent=11 // pred_region
        _
      $region20: #{prunus_forward.10} parent=11 // pred_fallthru
        _
    $region12: #{prunus_forward.10} parent=5 // pred_fallthru
      _
    %p124 = scmp.lt.s32.totalorder %s9, 2
    // Predicated region
    $region21: #{prunus_forward.10} parent=5 // pred_check
      %p125 = pneg %p124
    $region22: #{prunus_forward.10} parent=5 // pred_check_branch
      %127 = sbr.rel (%p125) target = $region24
    $region23: #{prunus_forward.10} parent=5 // pred_region
      // Predicated region
      $region25: #{prunus_forward.10} parent=23 // pred_check
        %p128 = pneg %p29
      $region26: #{prunus_forward.10} parent=23 // pred_check_branch
        %130 = sbr.rel (%p128) target = $region28
      $region27: #{prunus_forward.10} parent=23 // pred_region
        %s131 = smul.u32 32, %s9
        %p132 = scmp.lt.s32.totalorder %s131, 63
        %s133 = scalar_select %p132, %s131, 63
        %s134 = smul.addr %s133, 3
        %s135 = smul.addr %s134, 4
        %s136 = scalar_lea.vmem %s0, %s135
        %s137 = smul.u32 32, %s9
      $region28: #{prunus_forward.10} parent=23 // pred_fallthru
        _
    $region24: #{prunus_forward.10} parent=5 // pred_fallthru
      _
    %p138 = scmp.le.s32.totalorder 1, %s9
    %p139 = scmp.lt.s32.totalorder %s9, 3
    %p140 = pnand %p138, %p139
    %p141 = pneg %p140
    // Predicated region
    $region29: #{prunus_forward.10} parent=5 // pred_check
      _
    $region30: #{prunus_forward.10} parent=5 // pred_check_branch
      %143 = sbr.rel (%p140) target = $region32
    $region31: #{prunus_forward.10} parent=5 // pred_region
      %s144 = ssub.s32 %s9, 1
      %s145 = smul.u32 32, %s14
      %p146 = scmp.lt.s32.totalorder %s145, 63
      %s147 = scalar_select %p146, %s145, 63
      %s148 = smul.addr %s147, 3
      %s149 = smul.addr %s148, 4
      %s150 = scalar_lea.vmem %s0, %s149
      %p151 = pneg %p35
      %p152 = pneg %p32
      %p153 = pneg %p56
      %p154 = pneg %p53
      %p155 = pneg %p77
      %p156 = pneg %p74
      %p157 = pneg %p103
      %p158 = pneg %p100
      %s159 = smul.u32 32, %s14
      %p160 = scmp.lt.s32.totalorder %s159, 63
      %s161 = scalar_select %p160, %s159, 63
      %s162 = smul.addr %s161, 4
      %s163 = scalar_lea.vmem %s3, %s162
      %s164 = smul.u32 32, %s14
      %p165 = scmp.lt.s32.totalorder %s164, 63
      %s166 = scalar_select %p165, %s164, 63
      %s167 = smul.addr %s166, 3
      %s168 = smul.addr %s167, 4
      %s169 = scalar_lea.vmem %s0, %s168
      %s170 = smul.u32 32, %s14
      %s171 = smul.u32 32, %s14
      %p172 = scmp.lt.s32.totalorder %s171, 63
      %s173 = scalar_select %p172, %s171, 63
      %s174 = smul.addr %s173, 4
      %s175 = scalar_lea.vmem %s3, %s174
      %s176 = smul.u32 32, %s14
      %v178 = vld [vmem:[%s169] sm:$0xff]
      %v179 = vld [vmem:[%s169 + $0x8] sm:$0xf]
      %v180 = vld [vmem:[%s169 + $0xc] sm:$0xff]
      %v181 = vld [vmem:[%s169 + $0x14] sm:$0xf]
      %v182 = vld [vmem:[%s169 + $0x18] sm:$0xff]
      %v183 = vld [vmem:[%s169 + $0x20] sm:$0xf]
      %v184 = vld [vmem:[%s169 + $0x24] sm:$0xff]
      %v185 = vld [vmem:[%s169 + $0x2c] sm:$0xf]
      %v186 = vld [vmem:[%s169 + $0x30] sm:$0xff]
      %v187 = vld [vmem:[%s169 + $0x38] sm:$0xf]
      %v188 = vld [vmem:[%s169 + $0x3c] sm:$0xff]
      %v189 = vld [vmem:[%s169 + $0x44] sm:$0xf]
      %v190 = vld [vmem:[%s169 + $0x48] sm:$0xff]
      %v191 = vld [vmem:[%s169 + $0x50] sm:$0xf]
      %v192 = vld [vmem:[%s169 + $0x54] sm:$0xff]
      %v193 = vld [vmem:[%s169 + $0x5c] sm:$0xf]
      %v194 = vld [vmem:[%s169 + $0x60] sm:$0xff]
      %v195 = vld [vmem:[%s169 + $0x68] sm:$0xf]
      %v196 = vld [vmem:[%s169 + $0x6c] sm:$0xff]
      %v197 = vld [vmem:[%s169 + $0x74] sm:$0xf]
      %v198 = vld [vmem:[%s169 + $0x78] sm:$0xff]
      %v199 = vld [vmem:[%s169 + $0x80] sm:$0xf]
      %v200 = vld [vmem:[%s169 + $0x84] sm:$0xff]
      %v201 = vld [vmem:[%s169 + $0x8c] sm:$0xf]
      %v202 = vld [vmem:[%s169 + $0x90] sm:$0xff]
      %v203 = vld [vmem:[%s169 + $0x98] sm:$0xf]
      %v204 = vld [vmem:[%s169 + $0x9c] sm:$0xff]
      %v205 = vld [vmem:[%s169 + $0xa4] sm:$0xf]
      %v206 = vld [vmem:[%s169 + $0xa8] sm:$0xff]
      %v207 = vld [vmem:[%s169 + $0xb0] sm:$0xf]
      %v208 = vld [vmem:[%s169 + $0xb4] sm:$0xff]
      %v209 = vld [vmem:[%s169 + $0xbc] sm:$0xf]
      %v210 = vld [vmem:[%s169 + $0xc0] sm:$0xff]
      %v211 = vld [vmem:[%s169 + $0xc8] sm:$0xf]
      %v212 = vld [vmem:[%s169 + $0xcc] sm:$0xff]
      %v213 = vld [vmem:[%s169 + $0xd4] sm:$0xf]
      %v214 = vld [vmem:[%s169 + $0xd8] sm:$0xff]
      %v215 = vld [vmem:[%s169 + $0xe0] sm:$0xf]
      %v216 = vld [vmem:[%s169 + $0xe4] sm:$0xff]
      %v217 = vld [vmem:[%s169 + $0xec] sm:$0xf]
      %v218 = vld [vmem:[%s169 + $0xf0] sm:$0xff]
      %v219 = vld [vmem:[%s169 + $0xf8] sm:$0xf]
      %v220 = vld [vmem:[%s169 + $0xfc] sm:$0xff]
      %v221 = vld [vmem:[%s169 + $0x104] sm:$0xf]
      %v222 = vld [vmem:[%s169 + $0x108] sm:$0xff]
      %v223 = vld [vmem:[%s169 + $0x110] sm:$0xf]
      %v224 = vld [vmem:[%s169 + $0x114] sm:$0xff]
      %v225 = vld [vmem:[%s169 + $0x11c] sm:$0xf]
      %v226 = vld [vmem:[%s169 + $0x120] sm:$0xff]
      %v227 = vld [vmem:[%s169 + $0x128] sm:$0xf]
      %v228 = vld [vmem:[%s169 + $0x12c] sm:$0xff]
      %v229 = vld [vmem:[%s169 + $0x134] sm:$0xf]
      %v230 = vld [vmem:[%s169 + $0x138] sm:$0xff]
      %v231 = vld [vmem:[%s169 + $0x140] sm:$0xf]
      %v232 = vld [vmem:[%s169 + $0x144] sm:$0xff]
      %v233 = vld [vmem:[%s169 + $0x14c] sm:$0xf]
      %v234 = vld [vmem:[%s169 + $0x150] sm:$0xff]
      %v235 = vld [vmem:[%s169 + $0x158] sm:$0xf]
      %v236 = vld [vmem:[%s169 + $0x15c] sm:$0xff]
      %v237 = vld [vmem:[%s169 + $0x164] sm:$0xf]
      %v238 = vld [vmem:[%s169 + $0x168] sm:$0xff]
      %v239 = vld [vmem:[%s169 + $0x170] sm:$0xf]
      %v240 = vld [vmem:[%s169 + $0x174] sm:$0xff]
      %v241 = vld [vmem:[%s169 + $0x17c] sm:$0xf]
      %v242 = vld [vmem:[%s1] sm:$0xf]
      %v243 = vld [vmem:[%s1 + $0x4] sm:$0xf]
      %v244 = vld [vmem:[%s1 + $0x8] sm:$0xf]
      %v245 = vld [vmem:[%s1 + $0xc] sm:$0xf]
      %v246 = vld [vmem:[%s1 + $0x10] sm:$0xf]
      %v247 = vld [vmem:[%s1 + $0x14] sm:$0xf]
      %v248 = vld [vmem:[%s1 + $0x18] sm:$0xf]
      %v249 = vld [vmem:[%s1 + $0x1c] sm:$0xf]
      %v250 = vld [vmem:[%s1 + $0x20] sm:$0xf]
      %v251 = vld [vmem:[%s1 + $0x24] sm:$0xf]
      %v252 = vld [vmem:[%s1 + $0x28] sm:$0xf]
      %v253 = vld [vmem:[%s1 + $0x2c] sm:$0xf]
      %v254 = vld [vmem:[%s1 + $0x30] sm:$0xf]
      %v255 = vld [vmem:[%s1 + $0x34] sm:$0xf]
      %v256 = vld [vmem:[%s1 + $0x38] sm:$0xf]
      %v257 = vld [vmem:[%s1 + $0x3c] sm:$0xf]
      %v258 = vld [vmem:[%s1 + $0x40] sm:$0xf]
      %v259 = vld [vmem:[%s1 + $0x44] sm:$0xf]
      %v260 = vld [vmem:[%s1 + $0x48] sm:$0xf]
      %v261 = vld [vmem:[%s1 + $0x4c] sm:$0xf]
      %v262 = vld [vmem:[%s1 + $0x50] sm:$0xf]
      %v263 = vld [vmem:[%s1 + $0x54] sm:$0xf]
      %v264 = vld [vmem:[%s1 + $0x58] sm:$0xf]
      %v265 = vld [vmem:[%s1 + $0x5c] sm:$0xf]
      %v266 = vld [vmem:[%s1 + $0x60] sm:$0xf]
      %v267 = vld [vmem:[%s1 + $0x64] sm:$0xf]
      %v268 = vld [vmem:[%s1 + $0x68] sm:$0xf]
      %v269 = vld [vmem:[%s1 + $0x6c] sm:$0xf]
      %v270 = vld [vmem:[%s1 + $0x70] sm:$0xf]
      %v271 = vld [vmem:[%s1 + $0x74] sm:$0xf]
      %v272 = vld [vmem:[%s1 + $0x78] sm:$0xf]
      %v273 = vld [vmem:[%s1 + $0x7c] sm:$0xf]
      %v274 = vld [vmem:[%s1 + $0x80] sm:$0xf]
      %v275 = vld [vmem:[%s1 + $0x84] sm:$0xf]
      %v276 = vld [vmem:[%s1 + $0x88] sm:$0xf]
      %v277 = vld [vmem:[%s1 + $0x8c] sm:$0xf]
      %v278 = vld [vmem:[%s2] sm:$0x1]
      %v280 = vlaneseq
      %v281 = vshrl.u32 %v280, 7
      %v282 = vsub.s32 0, %v281
      %v283 = vrot.slane %v278, %v282
      %v349 = vunpack.c.l.b16 %v178
      %v350 = vunpack.c.h.b16 %v178
      %v351 = vunpack.c.l.b16 %v179
      %v352 = vunpack.c.l.b16 %v180
      %v353 = vunpack.c.h.b16 %v180
      %v354 = vunpack.c.l.b16 %v181
      %v355 = vunpack.c.l.b16 %v182
      %v356 = vunpack.c.h.b16 %v182
      %v357 = vunpack.c.l.b16 %v183
      %v358 = vunpack.c.l.b16 %v184
      %v359 = vunpack.c.h.b16 %v184
      %v360 = vunpack.c.l.b16 %v185
      %v361 = vunpack.c.l.b16 %v186
      %v362 = vunpack.c.h.b16 %v186
      %v363 = vunpack.c.l.b16 %v187
      %v364 = vunpack.c.l.b16 %v188
      %v365 = vunpack.c.h.b16 %v188
      %v366 = vunpack.c.l.b16 %v189
      %v367 = vunpack.c.l.b16 %v190
      %v368 = vunpack.c.h.b16 %v190
      %v369 = vunpack.c.l.b16 %v191
      %v370 = vunpack.c.l.b16 %v192
      %v371 = vunpack.c.h.b16 %v192
      %v372 = vunpack.c.l.b16 %v193
      %v373 = vunpack.c.l.b16 %v194
      %v374 = vunpack.c.h.b16 %v194
      %v375 = vunpack.c.l.b16 %v195
      %v376 = vunpack.c.l.b16 %v196
      %v377 = vunpack.c.h.b16 %v196
      %v378 = vunpack.c.l.b16 %v197
      %v379 = vunpack.c.l.b16 %v198
      %v380 = vunpack.c.h.b16 %v198
      %v381 = vunpack.c.l.b16 %v199
      %v382 = vunpack.c.l.b16 %v200
      %v383 = vunpack.c.h.b16 %v200
      %v384 = vunpack.c.l.b16 %v201
      %v385 = vunpack.c.l.b16 %v202
      %v386 = vunpack.c.h.b16 %v202
      %v387 = vunpack.c.l.b16 %v203
      %v388 = vunpack.c.l.b16 %v204
      %v389 = vunpack.c.h.b16 %v204
      %v390 = vunpack.c.l.b16 %v205
      %v391 = vunpack.c.l.b16 %v206
      %v392 = vunpack.c.h.b16 %v206
      %v393 = vunpack.c.l.b16 %v207
      %v394 = vunpack.c.l.b16 %v208
      %v395 = vunpack.c.h.b16 %v208
      %v396 = vunpack.c.l.b16 %v209
      %v397 = vunpack.c.l.b16 %v210
      %v398 = vunpack.c.h.b16 %v210
      %v399 = vunpack.c.l.b16 %v211
      %v400 = vunpack.c.l.b16 %v212
      %v401 = vunpack.c.h.b16 %v212
      %v402 = vunpack.c.l.b16 %v213
      %v403 = vunpack.c.l.b16 %v214
      %v404 = vunpack.c.h.b16 %v214
      %v405 = vunpack.c.l.b16 %v215
      %v406 = vunpack.c.l.b16 %v216
      %v407 = vunpack.c.h.b16 %v216
      %v408 = vunpack.c.l.b16 %v217
      %v409 = vunpack.c.l.b16 %v218
      %v410 = vunpack.c.h.b16 %v218
      %v411 = vunpack.c.l.b16 %v219
      %v412 = vunpack.c.l.b16 %v220
      %v413 = vunpack.c.h.b16 %v220
      %v414 = vunpack.c.l.b16 %v221
      %v415 = vunpack.c.l.b16 %v222
      %v416 = vunpack.c.h.b16 %v222
      %v417 = vunpack.c.l.b16 %v223
      %v418 = vunpack.c.l.b16 %v224
      %v419 = vunpack.c.h.b16 %v224
      %v420 = vunpack.c.l.b16 %v225
      %v421 = vunpack.c.l.b16 %v226
      %v422 = vunpack.c.h.b16 %v226
      %v423 = vunpack.c.l.b16 %v227
      %v424 = vunpack.c.l.b16 %v228
      %v425 = vunpack.c.h.b16 %v228
      %v426 = vunpack.c.l.b16 %v229
      %v427 = vunpack.c.l.b16 %v230
      %v428 = vunpack.c.h.b16 %v230
      %v429 = vunpack.c.l.b16 %v231
      %v430 = vunpack.c.l.b16 %v232
      %v431 = vunpack.c.h.b16 %v232
      %v432 = vunpack.c.l.b16 %v233
      %v433 = vunpack.c.l.b16 %v234
      %v434 = vunpack.c.h.b16 %v234
      %v435 = vunpack.c.l.b16 %v235
      %v436 = vunpack.c.l.b16 %v236
      %v437 = vunpack.c.h.b16 %v236
      %v438 = vunpack.c.l.b16 %v237
      %v439 = vunpack.c.l.b16 %v238
      %v440 = vunpack.c.h.b16 %v238
      %v441 = vunpack.c.l.b16 %v239
      %v442 = vunpack.c.l.b16 %v240
      %v443 = vunpack.c.h.b16 %v240
      %v444 = vunpack.c.l.b16 %v241
      %v445 = vpack.c.b16 %v352, %v349
      %v446 = vpack.c.b16 %v353, %v350
      %v447 = vpack.c.b16 %v354, %v351
      %v448 = vpack.c.b16 %v358, %v355
      %v449 = vpack.c.b16 %v359, %v356
      %v450 = vpack.c.b16 %v360, %v357
      %v451 = vpack.c.b16 %v364, %v361
      %v452 = vpack.c.b16 %v365, %v362
      %v453 = vpack.c.b16 %v366, %v363
      %v454 = vpack.c.b16 %v370, %v367
      %v455 = vpack.c.b16 %v371, %v368
      %v456 = vpack.c.b16 %v372, %v369
      %v457 = vpack.c.b16 %v376, %v373
      %v458 = vpack.c.b16 %v377, %v374
      %v459 = vpack.c.b16 %v378, %v375
      %v460 = vpack.c.b16 %v382, %v379
      %v461 = vpack.c.b16 %v383, %v380
      %v462 = vpack.c.b16 %v384, %v381
      %v463 = vpack.c.b16 %v388, %v385
      %v464 = vpack.c.b16 %v389, %v386
      %v465 = vpack.c.b16 %v390, %v387
      %v466 = vpack.c.b16 %v394, %v391
      %v467 = vpack.c.b16 %v395, %v392
      %v468 = vpack.c.b16 %v396, %v393
      %v469 = vpack.c.b16 %v400, %v397
      %v470 = vpack.c.b16 %v401, %v398
      %v471 = vpack.c.b16 %v402, %v399
      %v472 = vpack.c.b16 %v406, %v403
      %v473 = vpack.c.b16 %v407, %v404
      %v474 = vpack.c.b16 %v408, %v405
      %v475 = vpack.c.b16 %v412, %v409
      %v476 = vpack.c.b16 %v413, %v410
      %v477 = vpack.c.b16 %v414, %v411
      %v478 = vpack.c.b16 %v418, %v415
      %v479 = vpack.c.b16 %v419, %v416
      %v480 = vpack.c.b16 %v420, %v417
      %v481 = vpack.c.b16 %v424, %v421
      %v482 = vpack.c.b16 %v425, %v422
      %v483 = vpack.c.b16 %v426, %v423
      %v484 = vpack.c.b16 %v430, %v427
      %v485 = vpack.c.b16 %v431, %v428
      %v486 = vpack.c.b16 %v432, %v429
      %v487 = vpack.c.b16 %v436, %v433
      %v488 = vpack.c.b16 %v437, %v434
      %v489 = vpack.c.b16 %v438, %v435
      %v490 = vpack.c.b16 %v442, %v439
      %v491 = vpack.c.b16 %v443, %v440
      %v492 = vpack.c.b16 %v444, %v441
      %v561 = vunpack.c.l.b16 %v242
      %v562 = vunpack.c.l.b16 %v243
      %v563 = vunpack.c.l.b16 %v244
      %v564 = vunpack.c.l.b16 %v245
      %v565 = vunpack.c.l.b16 %v246
      %v566 = vunpack.c.l.b16 %v247
      %v567 = vunpack.c.l.b16 %v248
      %v568 = vunpack.c.l.b16 %v249
      %v569 = vunpack.c.l.b16 %v250
      %v570 = vunpack.c.l.b16 %v251
      %v571 = vunpack.c.l.b16 %v252
      %v572 = vunpack.c.l.b16 %v253
      %v573 = vunpack.c.l.b16 %v254
      %v574 = vunpack.c.l.b16 %v255
      %v575 = vunpack.c.l.b16 %v256
      %v576 = vunpack.c.l.b16 %v257
      %v577 = vunpack.c.l.b16 %v258
      %v578 = vunpack.c.l.b16 %v259
      %v579 = vunpack.c.l.b16 %v260
      %v580 = vunpack.c.l.b16 %v261
      %v581 = vunpack.c.l.b16 %v262
      %v582 = vunpack.c.l.b16 %v263
      %v583 = vunpack.c.l.b16 %v264
      %v584 = vunpack.c.l.b16 %v265
      %v585 = vunpack.c.l.b16 %v266
      %v586 = vunpack.c.l.b16 %v267
      %v587 = vunpack.c.l.b16 %v268
      %v588 = vunpack.c.l.b16 %v269
      %v589 = vunpack.c.l.b16 %v270
      %v590 = vunpack.c.l.b16 %v271
      %v591 = vunpack.c.l.b16 %v272
      %v592 = vunpack.c.l.b16 %v273
      %v593 = vunpack.c.l.b16 %v274
      %v594 = vunpack.c.l.b16 %v275
      %v595 = vunpack.c.l.b16 %v276
      %v596 = vunpack.c.l.b16 %v277
      %v597 = vpack.c.b16 %v562, %v561
      %v598 = vpack.c.b16 %v564, %v563
      %v599 = vpack.c.b16 %v566, %v565
      %v600 = vpack.c.b16 %v568, %v567
      %v601 = vpack.c.b16 %v570, %v569
      %v602 = vpack.c.b16 %v572, %v571
      %v603 = vpack.c.b16 %v574, %v573
      %v604 = vpack.c.b16 %v576, %v575
      %v605 = vpack.c.b16 %v578, %v577
      %v606 = vpack.c.b16 %v580, %v579
      %v607 = vpack.c.b16 %v582, %v581
      %v608 = vpack.c.b16 %v584, %v583
      %v609 = vpack.c.b16 %v586, %v585
      %v610 = vpack.c.b16 %v588, %v587
      %v611 = vpack.c.b16 %v590, %v589
      %v612 = vpack.c.b16 %v592, %v591
      %v613 = vpack.c.b16 %v594, %v593
      %v614 = vpack.c.b16 %v596, %v595
      %vm633 = vcmask 261120
      %v635 = vsel %vm633, %v447, 0
      %v638 = vsel %vm633, %v450, 0
      %v641 = vsel %vm633, %v453, 0
      %v644 = vsel %vm633, %v456, 0
      %v647 = vsel %vm633, %v459, 0
      %v650 = vsel %vm633, %v462, 0
      %v653 = vsel %vm633, %v465, 0
      %v656 = vsel %vm633, %v468, 0
      %v659 = vsel %vm633, %v471, 0
      %v662 = vsel %vm633, %v474, 0
      %v665 = vsel %vm633, %v477, 0
      %v668 = vsel %vm633, %v480, 0
      %v671 = vsel %vm633, %v483, 0
      %v674 = vsel %vm633, %v486, 0
      %v677 = vsel %vm633, %v489, 0
      %v680 = vsel %vm633, %v492, 0
      %682 = vmatprep.subr.bf16.mxu0 0
      %683 = vmatpush1.bf16.msra.mxu0 %v597
      %684 = vmatprep.subr.bf16.mxu0 0
      %685 = vmatpush1.bf16.msra.mxu0 %v598
      %686 = vmatprep.subr.bf16.mxu0 0
      %687 = vmatpush1.bf16.msra.mxu0 %v599
      %688 = vmatprep.subr.bf16.mxu0 0
      %689 = vmatpush1.bf16.msra.mxu0 %v600
      %690 = vmatprep.subr.bf16.mxu0 0
      %691 = vmatpush1.bf16.msra.mxu0 %v601
      %692 = vmatprep.subr.bf16.mxu0 0
      %693 = vmatpush1.bf16.msra.mxu0 %v602
      %694 = vmatprep.subr.bf16.mxu0 0
      %695 = vmatpush1.bf16.msra.mxu0 %v603
      %696 = vmatprep.subr.bf16.mxu0 0
      %697 = vmatpush1.bf16.msra.mxu0 %v604
      %698 = vmatprep.subr.bf16.mxu0 0
      %699 = vmatpush1.bf16.msra.mxu0 %v605
      %700 = vmatprep.subr.bf16.mxu0 0
      %701 = vmatpush1.bf16.msra.mxu0 %v606
      %702 = vmatprep.subr.bf16.mxu0 0
      %703 = vmatpush1.bf16.msra.mxu0 %v607
      %704 = vmatprep.subr.bf16.mxu0 0
      %705 = vmatpush1.bf16.msra.mxu0 %v608
      %706 = vmatprep.subr.bf16.mxu0 0
      %707 = vmatpush1.bf16.msra.mxu0 %v609
      %708 = vmatprep.subr.bf16.mxu0 0
      %709 = vmatpush1.bf16.msra.mxu0 %v610
      %710 = vmatprep.subr.bf16.mxu0 0
      %711 = vmatpush1.bf16.msra.mxu0 %v611
      %712 = vmatprep.subr.bf16.mxu0 0
      %713 = vmatpush1.bf16.msra.mxu0 %v612
      %714 = vmatprep.mubr.bf16.mxu0 %v446
      %715 = vmatmul.mubr.bf16.gmra.mrb[0].mxu0 %v445
      %v716 = vpop.f32.mrb[0].mxu0
      %v717 = vadd.f32 %v283, %v716
      %v718 = vpop.f32.mrb[0].mxu0
      %v719 = vpop.f32.mrb[0].mxu0
      %v720 = vadd.f32 %v283, %v719
      %v721 = vpop.f32.mrb[0].mxu0
      %722 = vmatprep.mubr.bf16.mxu0 %v449
      %723 = vmatmul.mubr.bf16.gmra.mrb[0].mxu0 %v448
      %v724 = vpop.f32.mrb[0].mxu0
      %v725 = vadd.f32 %v283, %v724
      %v726 = vpop.f32.mrb[0].mxu0
      %v727 = vpop.f32.mrb[0].mxu0
      %v728 = vadd.f32 %v283, %v727
      %v729 = vpop.f32.mrb[0].mxu0
      %730 = vmatprep.mubr.bf16.mxu0 %v452
      %731 = vmatmul.mubr.bf16.gmra.mrb[0].mxu0 %v451
      %v732 = vpop.f32.mrb[0].mxu0
      %v733 = vadd.f32 %v283, %v732
      %v734 = vpop.f32.mrb[0].mxu0
      %v735 = vpop.f32.mrb[0].mxu0
      %v736 = vadd.f32 %v283, %v735
      %v737 = vpop.f32.mrb[0].mxu0
      %738 = vmatprep.mubr.bf16.mxu0 %v455
      %739 = vmatmul.mubr.bf16.gmra.mrb[0].mxu0 %v454
      %v740 = vpop.f32.mrb[0].mxu0
      %v741 = vadd.f32 %v283, %v740
      %v742 = vpop.f32.mrb[0].mxu0
      %v743 = vpop.f32.mrb[0].mxu0
      %v744 = vadd.f32 %v283, %v743
      %v745 = vpop.f32.mrb[0].mxu0
      %746 = vmatprep.mubr.bf16.mxu0 %v458
      %747 = vmatmul.mubr.bf16.gmra.mrb[0].mxu0 %v457
      %v748 = vpop.f32.mrb[0].mxu0
      %v749 = vadd.f32 %v283, %v748
      %v750 = vpop.f32.mrb[0].mxu0
      %v751 = vpop.f32.mrb[0].mxu0
      %v752 = vadd.f32 %v283, %v751
      %v753 = vpop.f32.mrb[0].mxu0
      %754 = vmatprep.mubr.bf16.mxu0 %v461
      %755 = vmatmul.mubr.bf16.gmra.mrb[0].mxu0 %v460
      %v756 = vpop.f32.mrb[0].mxu0
      %v757 = vadd.f32 %v283, %v756
      %v758 = vpop.f32.mrb[0].mxu0
      %v759 = vpop.f32.mrb[0].mxu0
      %v760 = vadd.f32 %v283, %v759
      %v761 = vpop.f32.mrb[0].mxu0
      %762 = vmatprep.mubr.bf16.mxu0 %v464
      %763 = vmatmul.mubr.bf16.gmra.mrb[0].mxu0 %v463
      %v764 = vpop.f32.mrb[0].mxu0
      %v765 = vadd.f32 %v283, %v764
      %v766 = vpop.f32.mrb[0].mxu0
      %v767 = vpop.f32.mrb[0].mxu0
      %v768 = vadd.f32 %v283, %v767
      %v769 = vpop.f32.mrb[0].mxu0
      %770 = vmatprep.mubr.bf16.mxu0 %v467
      %771 = vmatmul.mubr.bf16.gmra.mrb[0].mxu0 %v466
      %v772 = vpop.f32.mrb[0].mxu0
      %v773 = vadd.f32 %v283, %v772
      %v774 = vpop.f32.mrb[0].mxu0
      %v775 = vpop.f32.mrb[0].mxu0
      %v776 = vadd.f32 %v283, %v775
      %v777 = vpop.f32.mrb[0].mxu0
      %778 = vmatprep.mubr.bf16.mxu0 %v470
      %779 = vmatmul.mubr.bf16.gmra.mrb[0].mxu0 %v469
      %v780 = vpop.f32.mrb[0].mxu0
      %v781 = vadd.f32 %v283, %v780
      %v782 = vpop.f32.mrb[0].mxu0
      %v783 = vpop.f32.mrb[0].mxu0
      %v784 = vadd.f32 %v283, %v783
      %v785 = vpop.f32.mrb[0].mxu0
      %786 = vmatprep.mubr.bf16.mxu0 %v473
      %787 = vmatmul.mubr.bf16.gmra.mrb[0].mxu0 %v472
      %v788 = vpop.f32.mrb[0].mxu0
      %v789 = vadd.f32 %v283, %v788
      %v790 = vpop.f32.mrb[0].mxu0
      %v791 = vpop.f32.mrb[0].mxu0
      %v792 = vadd.f32 %v283, %v791
      %v793 = vpop.f32.mrb[0].mxu0
      %794 = vmatprep.mubr.bf16.mxu0 %v476
      %795 = vmatmul.mubr.bf16.gmra.mrb[0].mxu0 %v475
      %v796 = vpop.f32.mrb[0].mxu0
      %v797 = vadd.f32 %v283, %v796
      %v798 = vpop.f32.mrb[0].mxu0
      %v799 = vpop.f32.mrb[0].mxu0
      %v800 = vadd.f32 %v283, %v799
      %v801 = vpop.f32.mrb[0].mxu0
      %802 = vmatprep.mubr.bf16.mxu0 %v479
      %803 = vmatmul.mubr.bf16.gmra.mrb[0].mxu0 %v478
      %v804 = vpop.f32.mrb[0].mxu0
      %v805 = vadd.f32 %v283, %v804
      %v806 = vpop.f32.mrb[0].mxu0
      %v807 = vpop.f32.mrb[0].mxu0
      %v808 = vadd.f32 %v283, %v807
      %v809 = vpop.f32.mrb[0].mxu0
      %810 = vmatprep.mubr.bf16.mxu0 %v482
      %811 = vmatmul.mubr.bf16.gmra.mrb[0].mxu0 %v481
      %v812 = vpop.f32.mrb[0].mxu0
      %v813 = vadd.f32 %v283, %v812
      %v814 = vpop.f32.mrb[0].mxu0
      %v815 = vpop.f32.mrb[0].mxu0
      %v816 = vadd.f32 %v283, %v815
      %v817 = vpop.f32.mrb[0].mxu0
      %818 = vmatprep.mubr.bf16.mxu0 %v485
      %819 = vmatmul.mubr.bf16.gmra.mrb[0].mxu0 %v484
      %v820 = vpop.f32.mrb[0].mxu0
      %v821 = vadd.f32 %v283, %v820
      %v822 = vpop.f32.mrb[0].mxu0
      %v823 = vpop.f32.mrb[0].mxu0
      %v824 = vadd.f32 %v283, %v823
      %v825 = vpop.f32.mrb[0].mxu0
      %826 = vmatprep.mubr.bf16.mxu0 %v488
      %827 = vmatmul.mubr.bf16.gmra.mrb[0].mxu0 %v487
      %v828 = vpop.f32.mrb[0].mxu0
      %v829 = vadd.f32 %v283, %v828
      %v830 = vpop.f32.mrb[0].mxu0
      %v831 = vpop.f32.mrb[0].mxu0
      %v832 = vadd.f32 %v283, %v831
      %v833 = vpop.f32.mrb[0].mxu0
      %834 = vmatprep.mubr.bf16.mxu0 %v491
      %835 = vmatmul.mubr.bf16.gmra.mrb[0].mxu0 %v490
      %v836 = vpop.f32.mrb[0].mxu0
      %v837 = vadd.f32 %v283, %v836
      %v838 = vpop.f32.mrb[0].mxu0
      %v839 = vpop.f32.mrb[0].mxu0
      %v840 = vadd.f32 %v283, %v839
      %v841 = vpop.f32.mrb[0].mxu0
      %842 = vdwg.mxu0
      %843 = vmatprep.subr.bf16.mxu0 0
      %844 = vmatpush1.bf16.msra.mxu0 %v613
      %845 = vmatprep.subr.bf16.mxu0 0
      %846 = vmatpush1.bf16.msra.mxu0 %v614
      %847 = vmatprep.subr.bf16.mxu0 0
      %848 = vmatpush1.bf16.msra.mxu0 0
      %849 = vmatprep.subr.bf16.mxu0 0
      %850 = vmatpush1.bf16.msra.mxu0 0
      %851 = vmatprep.subr.bf16.mxu0 0
      %852 = vmatpush1.bf16.msra.mxu0 0
      %853 = vmatprep.subr.bf16.mxu0 0
      %854 = vmatpush1.bf16.msra.mxu0 0
      %855 = vmatprep.subr.bf16.mxu0 0
      %856 = vmatpush1.bf16.msra.mxu0 0
      %857 = vmatprep.subr.bf16.mxu0 0
      %858 = vmatpush1.bf16.msra.mxu0 0
      %859 = vmatprep.subr.bf16.mxu0 0
      %860 = vmatpush1.bf16.msra.mxu0 0
      %861 = vmatprep.subr.bf16.mxu0 0
      %862 = vmatpush1.bf16.msra.mxu0 0
      %863 = vmatprep.subr.bf16.mxu0 0
      %864 = vmatpush1.bf16.msra.mxu0 0
      %865 = vmatprep.subr.bf16.mxu0 0
      %866 = vmatpush1.bf16.msra.mxu0 0
      %867 = vmatprep.subr.bf16.mxu0 0
      %868 = vmatpush1.bf16.msra.mxu0 0
      %869 = vmatprep.subr.bf16.mxu0 0
      %870 = vmatpush1.bf16.msra.mxu0 0
      %871 = vmatprep.subr.bf16.mxu0 0
      %872 = vmatpush1.bf16.msra.mxu0 0
      %873 = vmatprep.subr.bf16.mxu0 0
      %874 = vmatpush1.bf16.msra.mxu0 0
      %875 = vmatprep.mubr.bf16.mxu0 0
      %876 = vmatmul.mubr.bf16.gmra.mrb[0].mxu0 %v635
      %v877 = vpop.f32.mrb[0].mxu0
      %v878 = vadd.f32 %v717, %v877
      %v879 = vpop.f32.mrb[0].mxu0
      %v880 = vpop.f32.mrb[0].mxu0
      %v881 = vadd.f32 %v720, %v880
      %v882 = vpop.f32.mrb[0].mxu0
      %883 = vmatprep.mubr.bf16.mxu0 0
      %884 = vmatmul.mubr.bf16.gmra.mrb[0].mxu0 %v638
      %v885 = vpop.f32.mrb[0].mxu0
      %v886 = vadd.f32 %v725, %v885
      %v887 = vpop.f32.mrb[0].mxu0
      %v888 = vpop.f32.mrb[0].mxu0
      %v889 = vadd.f32 %v728, %v888
      %v890 = vpop.f32.mrb[0].mxu0
      %891 = vmatprep.mubr.bf16.mxu0 0
      %892 = vmatmul.mubr.bf16.gmra.mrb[0].mxu0 %v641
      %v893 = vpop.f32.mrb[0].mxu0
      %v894 = vadd.f32 %v733, %v893
      %v895 = vpop.f32.mrb[0].mxu0
      %v896 = vpop.f32.mrb[0].mxu0
      %v897 = vadd.f32 %v736, %v896
      %v898 = vpop.f32.mrb[0].mxu0
      %899 = vmatprep.mubr.bf16.mxu0 0
      %900 = vmatmul.mubr.bf16.gmra.mrb[0].mxu0 %v644
      %v901 = vpop.f32.mrb[0].mxu0
      %v902 = vadd.f32 %v741, %v901
      %v903 = vpop.f32.mrb[0].mxu0
      %v904 = vpop.f32.mrb[0].mxu0
      %v905 = vadd.f32 %v744, %v904
      %v906 = vpop.f32.mrb[0].mxu0
      %907 = vmatprep.mubr.bf16.mxu0 0
      %908 = vmatmul.mubr.bf16.gmra.mrb[0].mxu0 %v647
      %v909 = vpop.f32.mrb[0].mxu0
      %v910 = vadd.f32 %v749, %v909
      %v911 = vpop.f32.mrb[0].mxu0
      %v912 = vpop.f32.mrb[0].mxu0
      %v913 = vadd.f32 %v752, %v912
      %v914 = vpop.f32.mrb[0].mxu0
      %915 = vmatprep.mubr.bf16.mxu0 0
      %916 = vmatmul.mubr.bf16.gmra.mrb[0].mxu0 %v650
      %v917 = vpop.f32.mrb[0].mxu0
      %v918 = vadd.f32 %v757, %v917
      %v919 = vpop.f32.mrb[0].mxu0
      %v920 = vpop.f32.mrb[0].mxu0
      %v921 = vadd.f32 %v760, %v920
      %v922 = vpop.f32.mrb[0].mxu0
      %923 = vmatprep.mubr.bf16.mxu0 0
      %924 = vmatmul.mubr.bf16.gmra.mrb[0].mxu0 %v653
      %v925 = vpop.f32.mrb[0].mxu0
      %v926 = vadd.f32 %v765, %v925
      %v927 = vpop.f32.mrb[0].mxu0
      %v928 = vpop.f32.mrb[0].mxu0
      %v929 = vadd.f32 %v768, %v928
      %v930 = vpop.f32.mrb[0].mxu0
      %931 = vmatprep.mubr.bf16.mxu0 0
      %932 = vmatmul.mubr.bf16.gmra.mrb[0].mxu0 %v656
      %v933 = vpop.f32.mrb[0].mxu0
      %v934 = vadd.f32 %v773, %v933
      %v935 = vpop.f32.mrb[0].mxu0
      %v936 = vpop.f32.mrb[0].mxu0
      %v937 = vadd.f32 %v776, %v936
      %v938 = vpop.f32.mrb[0].mxu0
      %939 = vmatprep.mubr.bf16.mxu0 0
      %940 = vmatmul.mubr.bf16.gmra.mrb[0].mxu0 %v659
      %v941 = vpop.f32.mrb[0].mxu0
      %v942 = vadd.f32 %v781, %v941
      %v943 = vpop.f32.mrb[0].mxu0
      %v944 = vpop.f32.mrb[0].mxu0
      %v945 = vadd.f32 %v784, %v944
      %v946 = vpop.f32.mrb[0].mxu0
      %947 = vmatprep.mubr.bf16.mxu0 0
      %948 = vmatmul.mubr.bf16.gmra.mrb[0].mxu0 %v662
      %v949 = vpop.f32.mrb[0].mxu0
      %v950 = vadd.f32 %v789, %v949
      %v951 = vpop.f32.mrb[0].mxu0
      %v952 = vpop.f32.mrb[0].mxu0
      %v953 = vadd.f32 %v792, %v952
      %v954 = vpop.f32.mrb[0].mxu0
      %955 = vmatprep.mubr.bf16.mxu0 0
      %956 = vmatmul.mubr.bf16.gmra.mrb[0].mxu0 %v665
      %v957 = vpop.f32.mrb[0].mxu0
      %v958 = vadd.f32 %v797, %v957
      %v959 = vpop.f32.mrb[0].mxu0
      %v960 = vpop.f32.mrb[0].mxu0
      %v961 = vadd.f32 %v800, %v960
      %v962 = vpop.f32.mrb[0].mxu0
      %963 = vmatprep.mubr.bf16.mxu0 0
      %964 = vmatmul.mubr.bf16.gmra.mrb[0].mxu0 %v668
      %v965 = vpop.f32.mrb[0].mxu0
      %v966 = vadd.f32 %v805, %v965
      %v967 = vpop.f32.mrb[0].mxu0
      %v968 = vpop.f32.mrb[0].mxu0
      %v969 = vadd.f32 %v808, %v968
      %v970 = vpop.f32.mrb[0].mxu0
      %971 = vmatprep.mubr.bf16.mxu0 0
      %972 = vmatmul.mubr.bf16.gmra.mrb[0].mxu0 %v671
      %v973 = vpop.f32.mrb[0].mxu0
      %v974 = vadd.f32 %v813, %v973
      %v975 = vpop.f32.mrb[0].mxu0
      %v976 = vpop.f32.mrb[0].mxu0
      %v977 = vadd.f32 %v816, %v976
      %v978 = vpop.f32.mrb[0].mxu0
      %979 = vmatprep.mubr.bf16.mxu0 0
      %980 = vmatmul.mubr.bf16.gmra.mrb[0].mxu0 %v674
      %v981 = vpop.f32.mrb[0].mxu0
      %v982 = vadd.f32 %v821, %v981
      %v983 = vpop.f32.mrb[0].mxu0
      %v984 = vpop.f32.mrb[0].mxu0
      %v985 = vadd.f32 %v824, %v984
      %v986 = vpop.f32.mrb[0].mxu0
      %987 = vmatprep.mubr.bf16.mxu0 0
      %988 = vmatmul.mubr.bf16.gmra.mrb[0].mxu0 %v677
      %v989 = vpop.f32.mrb[0].mxu0
      %v990 = vadd.f32 %v829, %v989
      %v991 = vpop.f32.mrb[0].mxu0
      %v992 = vpop.f32.mrb[0].mxu0
      %v993 = vadd.f32 %v832, %v992
      %v994 = vpop.f32.mrb[0].mxu0
      %995 = vmatprep.mubr.bf16.mxu0 0
      %996 = vmatmul.mubr.bf16.gmra.mrb[0].mxu0 %v680
      %v997 = vpop.f32.mrb[0].mxu0
      %v998 = vadd.f32 %v837, %v997
      %v999 = vpop.f32.mrb[0].mxu0
      %v1000 = vpop.f32.mrb[0].mxu0
      %v1001 = vadd.f32 %v840, %v1000
      %v1002 = vpop.f32.mrb[0].mxu0
      %1003 = vdwg.mxu0
      %v1004 = vmax.f32 %v878, 0.0
      %v1005 = vmax.f32 %v881, 0.0
      %v1006 = vmax.f32 %v886, 0.0
      %v1007 = vmax.f32 %v889, 0.0
      %v1008 = vmax.f32 %v894, 0.0
      %v1009 = vmax.f32 %v897, 0.0
      %v1010 = vmax.f32 %v902, 0.0
      %v1011 = vmax.f32 %v905, 0.0
      %v1012 = vmax.f32 %v910, 0.0
      %v1013 = vmax.f32 %v913, 0.0
      %v1014 = vmax.f32 %v918, 0.0
      %v1015 = vmax.f32 %v921, 0.0
      %v1016 = vmax.f32 %v926, 0.0
      %v1017 = vmax.f32 %v929, 0.0
      %v1018 = vmax.f32 %v934, 0.0
      %v1019 = vmax.f32 %v937, 0.0
      %v1020 = vmax.f32 %v942, 0.0
      %v1021 = vmax.f32 %v945, 0.0
      %v1022 = vmax.f32 %v950, 0.0
      %v1023 = vmax.f32 %v953, 0.0
      %v1024 = vmax.f32 %v958, 0.0
      %v1025 = vmax.f32 %v961, 0.0
      %v1026 = vmax.f32 %v966, 0.0
      %v1027 = vmax.f32 %v969, 0.0
      %v1028 = vmax.f32 %v974, 0.0
      %v1029 = vmax.f32 %v977, 0.0
      %v1030 = vmax.f32 %v982, 0.0
      %v1031 = vmax.f32 %v985, 0.0
      %v1032 = vmax.f32 %v990, 0.0
      %v1033 = vmax.f32 %v993, 0.0
      %v1034 = vmax.f32 %v998, 0.0
      %v1035 = vmax.f32 %v1001, 0.0
      %v1036 = vpack.c.bf16 %v1005, %v1004
      %v1037 = vpack.c.bf16 %v1007, %v1006
      %v1038 = vpack.c.bf16 %v1009, %v1008
      %v1039 = vpack.c.bf16 %v1011, %v1010
      %v1040 = vpack.c.bf16 %v1013, %v1012
      %v1041 = vpack.c.bf16 %v1015, %v1014
      %v1042 = vpack.c.bf16 %v1017, %v1016
      %v1043 = vpack.c.bf16 %v1019, %v1018
      %v1044 = vpack.c.bf16 %v1021, %v1020
      %v1045 = vpack.c.bf16 %v1023, %v1022
      %v1046 = vpack.c.bf16 %v1025, %v1024
      %v1047 = vpack.c.bf16 %v1027, %v1026
      %v1048 = vpack.c.bf16 %v1029, %v1028
      %v1049 = vpack.c.bf16 %v1031, %v1030
      %v1050 = vpack.c.bf16 %v1033, %v1032
      %v1051 = vpack.c.bf16 %v1035, %v1034
      %v1068 = vunpack.c.l.b16 %v1036
      %v1069 = vunpack.c.h.b16 %v1036
      %v1070 = vunpack.c.l.b16 %v1037
      %v1071 = vunpack.c.h.b16 %v1037
      %v1072 = vunpack.c.l.b16 %v1038
      %v1073 = vunpack.c.h.b16 %v1038
      %v1074 = vunpack.c.l.b16 %v1039
      %v1075 = vunpack.c.h.b16 %v1039
      %v1076 = vunpack.c.l.b16 %v1040
      %v1077 = vunpack.c.h.b16 %v1040
      %v1078 = vunpack.c.l.b16 %v1041
      %v1079 = vunpack.c.h.b16 %v1041
      %v1080 = vunpack.c.l.b16 %v1042
      %v1081 = vunpack.c.h.b16 %v1042
      %v1082 = vunpack.c.l.b16 %v1043
      %v1083 = vunpack.c.h.b16 %v1043
      %v1084 = vunpack.c.l.b16 %v1044
      %v1085 = vunpack.c.h.b16 %v1044
      %v1086 = vunpack.c.l.b16 %v1045
      %v1087 = vunpack.c.h.b16 %v1045
      %v1088 = vunpack.c.l.b16 %v1046
      %v1089 = vunpack.c.h.b16 %v1046
      %v1090 = vunpack.c.l.b16 %v1047
      %v1091 = vunpack.c.h.b16 %v1047
      %v1092 = vunpack.c.l.b16 %v1048
      %v1093 = vunpack.c.h.b16 %v1048
      %v1094 = vunpack.c.l.b16 %v1049
      %v1095 = vunpack.c.h.b16 %v1049
      %v1096 = vunpack.c.l.b16 %v1050
      %v1097 = vunpack.c.h.b16 %v1050
      %v1098 = vunpack.c.l.b16 %v1051
      %v1099 = vunpack.c.h.b16 %v1051
      %v1100 = vpack.c.b16 %v1068, %v1068
      %v1101 = vpack.c.b16 %v1069, %v1069
      %v1102 = vpack.c.b16 %v1070, %v1070
      %v1103 = vpack.c.b16 %v1071, %v1071
      %v1104 = vpack.c.b16 %v1072, %v1072
      %v1105 = vpack.c.b16 %v1073, %v1073
      %v1106 = vpack.c.b16 %v1074, %v1074
      %v1107 = vpack.c.b16 %v1075, %v1075
      %v1108 = vpack.c.b16 %v1076, %v1076
      %v1109 = vpack.c.b16 %v1077, %v1077
      %v1110 = vpack.c.b16 %v1078, %v1078
      %v1111 = vpack.c.b16 %v1079, %v1079
      %v1112 = vpack.c.b16 %v1080, %v1080
      %v1113 = vpack.c.b16 %v1081, %v1081
      %v1114 = vpack.c.b16 %v1082, %v1082
      %v1115 = vpack.c.b16 %v1083, %v1083
      %v1116 = vpack.c.b16 %v1084, %v1084
      %v1117 = vpack.c.b16 %v1085, %v1085
      %v1118 = vpack.c.b16 %v1086, %v1086
      %v1119 = vpack.c.b16 %v1087, %v1087
      %v1120 = vpack.c.b16 %v1088, %v1088
      %v1121 = vpack.c.b16 %v1089, %v1089
      %v1122 = vpack.c.b16 %v1090, %v1090
      %v1123 = vpack.c.b16 %v1091, %v1091
      %v1124 = vpack.c.b16 %v1092, %v1092
      %v1125 = vpack.c.b16 %v1093, %v1093
      %v1126 = vpack.c.b16 %v1094, %v1094
      %v1127 = vpack.c.b16 %v1095, %v1095
      %v1128 = vpack.c.b16 %v1096, %v1096
      %v1129 = vpack.c.b16 %v1097, %v1097
      %v1130 = vpack.c.b16 %v1098, %v1098
      %v1131 = vpack.c.b16 %v1099, %v1099
      %vm1164 = vcmask 519168
      %1165 = vst.msk [vmem:[%s175] sm:$0xf] %vm1164, %v1100
      %1166 = vst.msk [vmem:[%s175 + $0x4] sm:$0xf] %vm1164, %v1101
      %1167 = vst.msk [vmem:[%s175 + $0x8] sm:$0xf] %vm1164, %v1102
      %1168 = vst.msk [vmem:[%s175 + $0xc] sm:$0xf] %vm1164, %v1103
      %1169 = vst.msk [vmem:[%s175 + $0x10] sm:$0xf] %vm1164, %v1104
      %1170 = vst.msk [vmem:[%s175 + $0x14] sm:$0xf] %vm1164, %v1105
      %1171 = vst.msk [vmem:[%s175 + $0x18] sm:$0xf] %vm1164, %v1106
      %1172 = vst.msk [vmem:[%s175 + $0x1c] sm:$0xf] %vm1164, %v1107
      %1173 = vst.msk [vmem:[%s175 + $0x20] sm:$0xf] %vm1164, %v1108
      %1174 = vst.msk [vmem:[%s175 + $0x24] sm:$0xf] %vm1164, %v1109
      %1175 = vst.msk [vmem:[%s175 + $0x28] sm:$0xf] %vm1164, %v1110
      %1176 = vst.msk [vmem:[%s175 + $0x2c] sm:$0xf] %vm1164, %v1111
      %1177 = vst.msk [vmem:[%s175 + $0x30] sm:$0xf] %vm1164, %v1112
      %1178 = vst.msk [vmem:[%s175 + $0x34] sm:$0xf] %vm1164, %v1113
      %1179 = vst.msk [vmem:[%s175 + $0x38] sm:$0xf] %vm1164, %v1114
      %1180 = vst.msk [vmem:[%s175 + $0x3c] sm:$0xf] %vm1164, %v1115
      %1181 = vst.msk [vmem:[%s175 + $0x40] sm:$0xf] %vm1164, %v1116
      %1182 = vst.msk [vmem:[%s175 + $0x44] sm:$0xf] %vm1164, %v1117
      %1183 = vst.msk [vmem:[%s175 + $0x48] sm:$0xf] %vm1164, %v1118
      %1184 = vst.msk [vmem:[%s175 + $0x4c] sm:$0xf] %vm1164, %v1119
      %1185 = vst.msk [vmem:[%s175 + $0x50] sm:$0xf] %vm1164, %v1120
      %1186 = vst.msk [vmem:[%s175 + $0x54] sm:$0xf] %vm1164, %v1121
      %1187 = vst.msk [vmem:[%s175 + $0x58] sm:$0xf] %vm1164, %v1122
      %1188 = vst.msk [vmem:[%s175 + $0x5c] sm:$0xf] %vm1164, %v1123
      %1189 = vst.msk [vmem:[%s175 + $0x60] sm:$0xf] %vm1164, %v1124
      %1190 = vst.msk [vmem:[%s175 + $0x64] sm:$0xf] %vm1164, %v1125
      %1191 = vst.msk [vmem:[%s175 + $0x68] sm:$0xf] %vm1164, %v1126
      %1192 = vst.msk [vmem:[%s175 + $0x6c] sm:$0xf] %vm1164, %v1127
      %1193 = vst.msk [vmem:[%s175 + $0x70] sm:$0xf] %vm1164, %v1128
      %1194 = vst.msk [vmem:[%s175 + $0x74] sm:$0xf] %vm1164, %v1129
      %1195 = vst.msk [vmem:[%s175 + $0x78] sm:$0xf] %vm1164, %v1130
      %1196 = vst.msk [vmem:[%s175 + $0x7c] sm:$0xf] %vm1164, %v1131
      %s1197 = smul.u32 32, %s14
      %p1198 = scmp.lt.s32.totalorder %s1197, 63
      %s1199 = scalar_select %p1198, %s1197, 63
      %s1200 = smul.addr %s1199, 4
      %s1201 = scalar_lea.vmem %s3, %s1200
      // Predicated region
      $region33: #{prunus_forward.10} parent=31 // pred_check
        %p1202 = pneg %p100
      $region34: #{prunus_forward.10} parent=31 // pred_check_branch
        %1204 = sbr.rel (%p1202) target = $region36
      $region35: #{prunus_forward.10} parent=31 // pred_region
        %s1205 = smul.u32 32, %s14
      $region36: #{prunus_forward.10} parent=31 // pred_fallthru
        _
    $region32: #{prunus_forward.10} parent=5 // pred_fallthru
      _
    %p1206 = scmp.le.s32.totalorder 2, %s9
    // Predicated region
    $region37: #{prunus_forward.10} parent=5 // pred_check
      %p1207 = pneg %p1206
    $region38: #{prunus_forward.10} parent=5 // pred_check_branch
      %1209 = sbr.rel (%p1207) target = $region40
    $region39: #{prunus_forward.10} parent=5 // pred_region
      %s1210 = ssub.s32 %s9, 2
      // Predicated region
      $region41: #{prunus_forward.10} parent=39 // pred_check
        %p1211 = pneg %p106
      $region42: #{prunus_forward.10} parent=39 // pred_check_branch
        %1213 = sbr.rel (%p1211) target = $region44
      $region43: #{prunus_forward.10} parent=39 // pred_region
        %s1214 = smul.u32 32, %s15
        %p1215 = scmp.lt.s32.totalorder %s1214, 63
        %s1216 = scalar_select %p1215, %s1214, 63
        %s1217 = smul.addr %s1216, 4
        %s1218 = scalar_lea.vmem %s3, %s1217
      $region44: #{prunus_forward.10} parent=39 // pred_fallthru
        _
    $region40: #{prunus_forward.10} parent=5 // pred_fallthru
      _
  $region6: #{prunus_forward.10} parent=0 // loop_footer
    %s13 = sadd.s32 1, %s9
  $region7: #{prunus_forward.10} parent=0 // loop_footer_branch
    %8 = sbr.rel target = $region3
  $region8: #{prunus_forward.10} parent=0 // loop_exit
    _

// kernel: prunus_forward.11
$region0: #{prunus_forward.11}
  #allocation0 [shape = 'u32[]', space=smem, size = 0x4, offset = 0x4, fixed_abs, tag = 'smem constant byte address 0x4 - core index']
  #allocation1 [shape = 'u32[144,128]{1,0:T(1,128)}', space=vmem, size = 0x12000, scoped, tag = 'internal scratch']
  %s0 = inlined_call_operand.vmem [shape: bf16[64,128], index: 0, kind: input, shape index: {}]
  %s1 = inlined_call_operand.vmem [shape: bf16[64,128], index: 1, kind: input, shape index: {}]
  %s2 = inlined_call_operand.vmem [shape: bf16[64,128], index: 2, kind: input, shape index: {}]
  %s3 = inlined_call_operand.vmem [shape: bf16[64,128], index: 3, kind: input, shape index: {}]
  %s4 = inlined_call_operand.vmem [shape: bf16[64,128], index: 4, kind: output, shape index: {}]
  %s5 = sld [smem:[#allocation0]]
  $region26: #{prunus_forward.11} parent=0
    _
  %s7 = ssub.s32 1, %s5
  %s8 = scalar_select 0, %s7, %s5
  // Predicated region
  $region2: #{prunus_forward.11} parent=0 // pred_check
    _
  $region3: #{prunus_forward.11} parent=0 // pred_check_branch
    %10 = sbr.rel (0) target = $region5
  $region4: #{prunus_forward.11} parent=0 // pred_region
    _
  $region5: #{prunus_forward.11} parent=0 // pred_fallthru
    _
  // Predicated region
  $region6: #{prunus_forward.11} parent=0 // pred_check
    _
  $region7: #{prunus_forward.11} parent=0 // pred_check_branch
    %12 = sbr.rel (0) target = $region9
  $region8: #{prunus_forward.11} parent=0 // pred_region
    _
  $region9: #{prunus_forward.11} parent=0 // pred_fallthru
    _
  // Predicated region
  $region10: #{prunus_forward.11} parent=0 // pred_check
    _
  $region11: #{prunus_forward.11} parent=0 // pred_check_branch
    %14 = sbr.rel (0) target = $region13
  $region12: #{prunus_forward.11} parent=0 // pred_region
    _
  $region13: #{prunus_forward.11} parent=0 // pred_fallthru
    _
  // Predicated region
  $region14: #{prunus_forward.11} parent=0 // pred_check
    _
  $region15: #{prunus_forward.11} parent=0 // pred_check_branch
    %16 = sbr.rel (0) target = $region17
  $region16: #{prunus_forward.11} parent=0 // pred_region
    _
  $region17: #{prunus_forward.11} parent=0 // pred_fallthru
    _
  %v17 = vld [vmem:[%s0] sm:$0xf]
  %v18 = vld [vmem:[%s0 + $0x4] sm:$0xf]
  %v19 = vld [vmem:[%s0 + $0x8] sm:$0xf]
  %v20 = vld [vmem:[%s0 + $0xc] sm:$0xf]
  %v21 = vld [vmem:[%s0 + $0x10] sm:$0xf]
  %v22 = vld [vmem:[%s0 + $0x14] sm:$0xf]
  %v23 = vld [vmem:[%s0 + $0x18] sm:$0xf]
  %v24 = vld [vmem:[%s0 + $0x1c] sm:$0xf]
  %v25 = vld [vmem:[%s1] sm:$0xf]
  %v26 = vld [vmem:[%s1 + $0x4] sm:$0xf]
  %v27 = vld [vmem:[%s1 + $0x8] sm:$0xf]
  %v28 = vld [vmem:[%s1 + $0xc] sm:$0xf]
  %v29 = vld [vmem:[%s1 + $0x10] sm:$0xf]
  %v30 = vld [vmem:[%s1 + $0x14] sm:$0xf]
  %v31 = vld [vmem:[%s1 + $0x18] sm:$0xf]
  %v32 = vld [vmem:[%s1 + $0x1c] sm:$0xf]
  %v33 = vmax.bf16 %v17, %v25
  %v34 = vmax.bf16 %v18, %v26
  %v35 = vmax.bf16 %v19, %v27
  %v36 = vmax.bf16 %v20, %v28
  %v37 = vmax.bf16 %v21, %v29
  %v38 = vmax.bf16 %v22, %v30
  %v39 = vmax.bf16 %v23, %v31
  %v40 = vmax.bf16 %v24, %v32
  %v41 = vld [vmem:[%s2] sm:$0xf]
  %v42 = vld [vmem:[%s2 + $0x4] sm:$0xf]
  %v43 = vld [vmem:[%s2 + $0x8] sm:$0xf]
  %v44 = vld [vmem:[%s2 + $0xc] sm:$0xf]
  %v45 = vld [vmem:[%s2 + $0x10] sm:$0xf]
  %v46 = vld [vmem:[%s2 + $0x14] sm:$0xf]
  %v47 = vld [vmem:[%s2 + $0x18] sm:$0xf]
  %v48 = vld [vmem:[%s2 + $0x1c] sm:$0xf]
  %v49 = vld [vmem:[%s3] sm:$0xf]
  %v50 = vld [vmem:[%s3 + $0x4] sm:$0xf]
  %v51 = vld [vmem:[%s3 + $0x8] sm:$0xf]
  %v52 = vld [vmem:[%s3 + $0xc] sm:$0xf]
  %v53 = vld [vmem:[%s3 + $0x10] sm:$0xf]
  %v54 = vld [vmem:[%s3 + $0x14] sm:$0xf]
  %v55 = vld [vmem:[%s3 + $0x18] sm:$0xf]
  %v56 = vld [vmem:[%s3 + $0x1c] sm:$0xf]
  %v57 = vmax.bf16 %v41, %v49
  %v58 = vmax.bf16 %v42, %v50
  %v59 = vmax.bf16 %v43, %v51
  %v60 = vmax.bf16 %v44, %v52
  %v61 = vmax.bf16 %v45, %v53
  %v62 = vmax.bf16 %v46, %v54
  %v63 = vmax.bf16 %v47, %v55
  %v64 = vmax.bf16 %v48, %v56
  %v65 = vmax.bf16 %v33, %v57
  %v66 = vmax.bf16 %v34, %v58
  %v67 = vmax.bf16 %v35, %v59
  %v68 = vmax.bf16 %v36, %v60
  %v69 = vmax.bf16 %v37, %v61
  %v70 = vmax.bf16 %v38, %v62
  %v71 = vmax.bf16 %v39, %v63
  %v72 = vmax.bf16 %v40, %v64
  %73 = vst [vmem:[%s4] sm:$0xf] %v65
  %74 = vst [vmem:[%s4 + $0x4] sm:$0xf] %v66
  %75 = vst [vmem:[%s4 + $0x8] sm:$0xf] %v67
  %76 = vst [vmem:[%s4 + $0xc] sm:$0xf] %v68
  %77 = vst [vmem:[%s4 + $0x10] sm:$0xf] %v69
  %78 = vst [vmem:[%s4 + $0x14] sm:$0xf] %v70
  %79 = vst [vmem:[%s4 + $0x18] sm:$0xf] %v71
  %80 = vst [vmem:[%s4 + $0x1c] sm:$0xf] %v72
  // Predicated region
  $region18: #{prunus_forward.11} parent=0 // pred_check
    _
  $region19: #{prunus_forward.11} parent=0 // pred_check_branch
    %82 = sbr.rel (0) target = $region21
  $region20: #{prunus_forward.11} parent=0 // pred_region
    _
  $region21: #{prunus_forward.11} parent=0 // pred_fallthru
    _
  // Predicated region
  $region22: #{prunus_forward.11} parent=0 // pred_check
    _
  $region23: #{prunus_forward.11} parent=0 // pred_check_branch
    %84 = sbr.rel (0) target = $region25
  $region24: #{prunus_forward.11} parent=0 // pred_region
    _
  $region25: #{prunus_forward.11} parent=0 // pred_fallthru
    _

// kernel: prunus_forward.12
$region0: #{prunus_forward.12}
  #allocation0 [shape = 'u32[]', space=smem, size = 0x4, offset = 0x4, fixed_abs, tag = 'smem constant byte address 0x4 - core index']
  #allocation1 [shape = 'u32[144,128]{1,0:T(1,128)}', space=vmem, size = 0x12000, scoped, tag = 'internal scratch']
  %s0 = inlined_call_operand.vmem [shape: bf16[128,576], index: 0, kind: input, shape index: {}]
  %s1 = inlined_call_operand.vmem [shape: bf16[576,128], index: 1, kind: input, shape index: {}]
  %s2 = inlined_call_operand.vmem [shape: f32[1,128], index: 2, kind: input, shape index: {}]
  %s3 = inlined_call_operand.vmem [shape: bf16[128,128], index: 3, kind: output, shape index: {}]
  %s4 = sld [smem:[#allocation0]]
  $region22: #{prunus_forward.12} parent=0
    _
  %s6 = ssub.s32 1, %s4
  %s7 = scalar_select 0, %s6, %s4
  // Predicated region
  $region2: #{prunus_forward.12} parent=0 // pred_check
    _
  $region3: #{prunus_forward.12} parent=0 // pred_check_branch
    %9 = sbr.rel (0) target = $region5
  $region4: #{prunus_forward.12} parent=0 // pred_region
    _
  $region5: #{prunus_forward.12} parent=0 // pred_fallthru
    _
  // Predicated region
  $region6: #{prunus_forward.12} parent=0 // pred_check
    _
  $region7: #{prunus_forward.12} parent=0 // pred_check_branch
    %11 = sbr.rel (0) target = $region9
  $region8: #{prunus_forward.12} parent=0 // pred_region
    _
  $region9: #{prunus_forward.12} parent=0 // pred_fallthru
    _
  // Predicated region
  $region10: #{prunus_forward.12} parent=0 // pred_check
    _
  $region11: #{prunus_forward.12} parent=0 // pred_check_branch
    %13 = sbr.rel (0) target = $region13
  $region12: #{prunus_forward.12} parent=0 // pred_region
    _
  $region13: #{prunus_forward.12} parent=0 // pred_fallthru
    _
  %v15 = vld [vmem:[%s0] sm:$0xff]
  %v16 = vld [vmem:[%s0 + $0x8] sm:$0xff]
  %v17 = vld [vmem:[%s0 + $0x10] sm:$0xf]
  %v18 = vld [vmem:[%s0 + $0x14] sm:$0xff]
  %v19 = vld [vmem:[%s0 + $0x1c] sm:$0xff]
  %v20 = vld [vmem:[%s0 + $0x24] sm:$0xf]
  %v21 = vld [vmem:[%s0 + $0x28] sm:$0xff]
  %v22 = vld [vmem:[%s0 + $0x30] sm:$0xff]
  %v23 = vld [vmem:[%s0 + $0x38] sm:$0xf]
  %v24 = vld [vmem:[%s0 + $0x3c] sm:$0xff]
  %v25 = vld [vmem:[%s0 + $0x44] sm:$0xff]
  %v26 = vld [vmem:[%s0 + $0x4c] sm:$0xf]
  %v27 = vld [vmem:[%s0 + $0x50] sm:$0xff]
  %v28 = vld [vmem:[%s0 + $0x58] sm:$0xff]
  %v29 = vld [vmem:[%s0 + $0x60] sm:$0xf]
  %v30 = vld [vmem:[%s0 + $0x64] sm:$0xff]
  %v31 = vld [vmem:[%s0 + $0x6c] sm:$0xff]
  %v32 = vld [vmem:[%s0 + $0x74] sm:$0xf]
  %v33 = vld [vmem:[%s0 + $0x78] sm:$0xff]
  %v34 = vld [vmem:[%s0 + $0x80] sm:$0xff]
  %v35 = vld [vmem:[%s0 + $0x88] sm:$0xf]
  %v36 = vld [vmem:[%s0 + $0x8c] sm:$0xff]
  %v37 = vld [vmem:[%s0 + $0x94] sm:$0xff]
  %v38 = vld [vmem:[%s0 + $0x9c] sm:$0xf]
  %v39 = vld [vmem:[%s0 + $0xa0] sm:$0xff]
  %v40 = vld [vmem:[%s0 + $0xa8] sm:$0xff]
  %v41 = vld [vmem:[%s0 + $0xb0] sm:$0xf]
  %v42 = vld [vmem:[%s0 + $0xb4] sm:$0xff]
  %v43 = vld [vmem:[%s0 + $0xbc] sm:$0xff]
  %v44 = vld [vmem:[%s0 + $0xc4] sm:$0xf]
  %v45 = vld [vmem:[%s0 + $0xc8] sm:$0xff]
  %v46 = vld [vmem:[%s0 + $0xd0] sm:$0xff]
  %v47 = vld [vmem:[%s0 + $0xd8] sm:$0xf]
  %v48 = vld [vmem:[%s0 + $0xdc] sm:$0xff]
  %v49 = vld [vmem:[%s0 + $0xe4] sm:$0xff]
  %v50 = vld [vmem:[%s0 + $0xec] sm:$0xf]
  %v51 = vld [vmem:[%s0 + $0xf0] sm:$0xff]
  %v52 = vld [vmem:[%s0 + $0xf8] sm:$0xff]
  %v53 = vld [vmem:[%s0 + $0x100] sm:$0xf]
  %v54 = vld [vmem:[%s0 + $0x104] sm:$0xff]
  %v55 = vld [vmem:[%s0 + $0x10c] sm:$0xff]
  %v56 = vld [vmem:[%s0 + $0x114] sm:$0xf]
  %v57 = vld [vmem:[%s0 + $0x118] sm:$0xff]
  %v58 = vld [vmem:[%s0 + $0x120] sm:$0xff]
  %v59 = vld [vmem:[%s0 + $0x128] sm:$0xf]
  %v60 = vld [vmem:[%s0 + $0x12c] sm:$0xff]
  %v61 = vld [vmem:[%s0 + $0x134] sm:$0xff]
  %v62 = vld [vmem:[%s0 + $0x13c] sm:$0xf]
  %v63 = vld [vmem:[%s1] sm:$0xf]
  %v64 = vld [vmem:[%s1 + $0x4] sm:$0xf]
  %v65 = vld [vmem:[%s1 + $0x8] sm:$0xf]
  %v66 = vld [vmem:[%s1 + $0xc] sm:$0xf]
  %v67 = vld [vmem:[%s1 + $0x10] sm:$0xf]
  %v68 = vld [vmem:[%s1 + $0x14] sm:$0xf]
  %v69 = vld [vmem:[%s1 + $0x18] sm:$0xf]
  %v70 = vld [vmem:[%s1 + $0x1c] sm:$0xf]
  %v71 = vld [vmem:[%s1 + $0x20] sm:$0xf]
  %v72 = vld [vmem:[%s1 + $0x24] sm:$0xf]
  %v73 = vld [vmem:[%s1 + $0x28] sm:$0xf]
  %v74 = vld [vmem:[%s1 + $0x2c] sm:$0xf]
  %v75 = vld [vmem:[%s1 + $0x30] sm:$0xf]
  %v76 = vld [vmem:[%s1 + $0x34] sm:$0xf]
  %v77 = vld [vmem:[%s1 + $0x38] sm:$0xf]
  %v78 = vld [vmem:[%s1 + $0x3c] sm:$0xf]
  %v79 = vld [vmem:[%s1 + $0x40] sm:$0xf]
  %v80 = vld [vmem:[%s1 + $0x44] sm:$0xf]
  %v81 = vld [vmem:[%s1 + $0x48] sm:$0xf]
  %v82 = vld [vmem:[%s1 + $0x4c] sm:$0xf]
  %v83 = vld [vmem:[%s1 + $0x50] sm:$0xf]
  %v84 = vld [vmem:[%s1 + $0x54] sm:$0xf]
  %v85 = vld [vmem:[%s1 + $0x58] sm:$0xf]
  %v86 = vld [vmem:[%s1 + $0x5c] sm:$0xf]
  %v87 = vld [vmem:[%s1 + $0x60] sm:$0xf]
  %v88 = vld [vmem:[%s1 + $0x64] sm:$0xf]
  %v89 = vld [vmem:[%s1 + $0x68] sm:$0xf]
  %v90 = vld [vmem:[%s1 + $0x6c] sm:$0xf]
  %v91 = vld [vmem:[%s1 + $0x70] sm:$0xf]
  %v92 = vld [vmem:[%s1 + $0x74] sm:$0xf]
  %v93 = vld [vmem:[%s1 + $0x78] sm:$0xf]
  %v94 = vld [vmem:[%s1 + $0x7c] sm:$0xf]
  %v95 = vld [vmem:[%s1 + $0x80] sm:$0xf]
  %v96 = vld [vmem:[%s1 + $0x84] sm:$0xf]
  %v97 = vld [vmem:[%s1 + $0x88] sm:$0xf]
  %v98 = vld [vmem:[%s1 + $0x8c] sm:$0xf]
  %v99 = vld [vmem:[%s1 + $0x90] sm:$0xf]
  %v100 = vld [vmem:[%s1 + $0x94] sm:$0xf]
  %v101 = vld [vmem:[%s1 + $0x98] sm:$0xf]
  %v102 = vld [vmem:[%s1 + $0x9c] sm:$0xf]
  %v103 = vld [vmem:[%s1 + $0xa0] sm:$0xf]
  %v104 = vld [vmem:[%s1 + $0xa4] sm:$0xf]
  %v105 = vld [vmem:[%s1 + $0xa8] sm:$0xf]
  %v106 = vld [vmem:[%s1 + $0xac] sm:$0xf]
  %v107 = vld [vmem:[%s1 + $0xb0] sm:$0xf]
  %v108 = vld [vmem:[%s1 + $0xb4] sm:$0xf]
  %v109 = vld [vmem:[%s1 + $0xb8] sm:$0xf]
  %v110 = vld [vmem:[%s1 + $0xbc] sm:$0xf]
  %v111 = vld [vmem:[%s1 + $0xc0] sm:$0xf]
  %v112 = vld [vmem:[%s1 + $0xc4] sm:$0xf]
  %v113 = vld [vmem:[%s1 + $0xc8] sm:$0xf]
  %v114 = vld [vmem:[%s1 + $0xcc] sm:$0xf]
  %v115 = vld [vmem:[%s1 + $0xd0] sm:$0xf]
  %v116 = vld [vmem:[%s1 + $0xd4] sm:$0xf]
  %v117 = vld [vmem:[%s1 + $0xd8] sm:$0xf]
  %v118 = vld [vmem:[%s1 + $0xdc] sm:$0xf]
  %v119 = vld [vmem:[%s1 + $0xe0] sm:$0xf]
  %v120 = vld [vmem:[%s1 + $0xe4] sm:$0xf]
  %v121 = vld [vmem:[%s1 + $0xe8] sm:$0xf]
  %v122 = vld [vmem:[%s1 + $0xec] sm:$0xf]
  %v123 = vld [vmem:[%s1 + $0xf0] sm:$0xf]
  %v124 = vld [vmem:[%s1 + $0xf4] sm:$0xf]
  %v125 = vld [vmem:[%s1 + $0xf8] sm:$0xf]
  %v126 = vld [vmem:[%s1 + $0xfc] sm:$0xf]
  %v127 = vld [vmem:[%s1 + $0x100] sm:$0xf]
  %v128 = vld [vmem:[%s1 + $0x104] sm:$0xf]
  %v129 = vld [vmem:[%s1 + $0x108] sm:$0xf]
  %v130 = vld [vmem:[%s1 + $0x10c] sm:$0xf]
  %v131 = vld [vmem:[%s1 + $0x110] sm:$0xf]
  %v132 = vld [vmem:[%s1 + $0x114] sm:$0xf]
  %v133 = vld [vmem:[%s1 + $0x118] sm:$0xf]
  %v134 = vld [vmem:[%s1 + $0x11c] sm:$0xf]
  %v135 = vld [vmem:[%s2] sm:$0x1]
  %v137 = vlaneseq
  %v138 = vshrl.u32 %v137, 7
  %v139 = vsub.s32 0, %v138
  %v140 = vrot.slane %v135, %v139
  %v190 = vunpack.c.l.b16 %v15
  %v191 = vunpack.c.h.b16 %v15
  %v192 = vunpack.c.l.b16 %v16
  %v193 = vunpack.c.h.b16 %v16
  %v194 = vunpack.c.l.b16 %v17
  %v195 = vunpack.c.l.b16 %v18
  %v196 = vunpack.c.h.b16 %v18
  %v197 = vunpack.c.l.b16 %v19
  %v198 = vunpack.c.h.b16 %v19
  %v199 = vunpack.c.l.b16 %v20
  %v200 = vunpack.c.l.b16 %v21
  %v201 = vunpack.c.h.b16 %v21
  %v202 = vunpack.c.l.b16 %v22
  %v203 = vunpack.c.h.b16 %v22
  %v204 = vunpack.c.l.b16 %v23
  %v205 = vunpack.c.l.b16 %v24
  %v206 = vunpack.c.h.b16 %v24
  %v207 = vunpack.c.l.b16 %v25
  %v208 = vunpack.c.h.b16 %v25
  %v209 = vunpack.c.l.b16 %v26
  %v210 = vunpack.c.l.b16 %v27
  %v211 = vunpack.c.h.b16 %v27
  %v212 = vunpack.c.l.b16 %v28
  %v213 = vunpack.c.h.b16 %v28
  %v214 = vunpack.c.l.b16 %v29
  %v215 = vunpack.c.l.b16 %v30
  %v216 = vunpack.c.h.b16 %v30
  %v217 = vunpack.c.l.b16 %v31
  %v218 = vunpack.c.h.b16 %v31
  %v219 = vunpack.c.l.b16 %v32
  %v220 = vunpack.c.l.b16 %v33
  %v221 = vunpack.c.h.b16 %v33
  %v222 = vunpack.c.l.b16 %v34
  %v223 = vunpack.c.h.b16 %v34
  %v224 = vunpack.c.l.b16 %v35
  %v225 = vunpack.c.l.b16 %v36
  %v226 = vunpack.c.h.b16 %v36
  %v227 = vunpack.c.l.b16 %v37
  %v228 = vunpack.c.h.b16 %v37
  %v229 = vunpack.c.l.b16 %v38
  %v230 = vunpack.c.l.b16 %v39
  %v231 = vunpack.c.h.b16 %v39
  %v232 = vunpack.c.l.b16 %v40
  %v233 = vunpack.c.h.b16 %v40
  %v234 = vunpack.c.l.b16 %v41
  %v235 = vunpack.c.l.b16 %v42
  %v236 = vunpack.c.h.b16 %v42
  %v237 = vunpack.c.l.b16 %v43
  %v238 = vunpack.c.h.b16 %v43
  %v239 = vunpack.c.l.b16 %v44
  %v240 = vunpack.c.l.b16 %v45
  %v241 = vunpack.c.h.b16 %v45
  %v242 = vunpack.c.l.b16 %v46
  %v243 = vunpack.c.h.b16 %v46
  %v244 = vunpack.c.l.b16 %v47
  %v245 = vunpack.c.l.b16 %v48
  %v246 = vunpack.c.h.b16 %v48
  %v247 = vunpack.c.l.b16 %v49
  %v248 = vunpack.c.h.b16 %v49
  %v249 = vunpack.c.l.b16 %v50
  %v250 = vunpack.c.l.b16 %v51
  %v251 = vunpack.c.h.b16 %v51
  %v252 = vunpack.c.l.b16 %v52
  %v253 = vunpack.c.h.b16 %v52
  %v254 = vunpack.c.l.b16 %v53
  %v255 = vunpack.c.l.b16 %v54
  %v256 = vunpack.c.h.b16 %v54
  %v257 = vunpack.c.l.b16 %v55
  %v258 = vunpack.c.h.b16 %v55
  %v259 = vunpack.c.l.b16 %v56
  %v260 = vunpack.c.l.b16 %v57
  %v261 = vunpack.c.h.b16 %v57
  %v262 = vunpack.c.l.b16 %v58
  %v263 = vunpack.c.h.b16 %v58
  %v264 = vunpack.c.l.b16 %v59
  %v265 = vunpack.c.l.b16 %v60
  %v266 = vunpack.c.h.b16 %v60
  %v267 = vunpack.c.l.b16 %v61
  %v268 = vunpack.c.h.b16 %v61
  %v269 = vunpack.c.l.b16 %v62
  %v270 = vpack.c.b16 %v195, %v190
  %v271 = vpack.c.b16 %v196, %v191
  %v272 = vpack.c.b16 %v197, %v192
  %v273 = vpack.c.b16 %v198, %v193
  %v274 = vpack.c.b16 %v199, %v194
  %v275 = vpack.c.b16 %v205, %v200
  %v276 = vpack.c.b16 %v206, %v201
  %v277 = vpack.c.b16 %v207, %v202
  %v278 = vpack.c.b16 %v208, %v203
  %v279 = vpack.c.b16 %v209, %v204
  %v280 = vpack.c.b16 %v215, %v210
  %v281 = vpack.c.b16 %v216, %v211
  %v282 = vpack.c.b16 %v217, %v212
  %v283 = vpack.c.b16 %v218, %v213
  %v284 = vpack.c.b16 %v219, %v214
  %v285 = vpack.c.b16 %v225, %v220
  %v286 = vpack.c.b16 %v226, %v221
  %v287 = vpack.c.b16 %v227, %v222
  %v288 = vpack.c.b16 %v228, %v223
  %v289 = vpack.c.b16 %v229, %v224
  %v290 = vpack.c.b16 %v235, %v230
  %v291 = vpack.c.b16 %v236, %v231
  %v292 = vpack.c.b16 %v237, %v232
  %v293 = vpack.c.b16 %v238, %v233
  %v294 = vpack.c.b16 %v239, %v234
  %v295 = vpack.c.b16 %v245, %v240
  %v296 = vpack.c.b16 %v246, %v241
  %v297 = vpack.c.b16 %v247, %v242
  %v298 = vpack.c.b16 %v248, %v243
  %v299 = vpack.c.b16 %v249, %v244
  %v300 = vpack.c.b16 %v255, %v250
  %v301 = vpack.c.b16 %v256, %v251
  %v302 = vpack.c.b16 %v257, %v252
  %v303 = vpack.c.b16 %v258, %v253
  %v304 = vpack.c.b16 %v259, %v254
  %v305 = vpack.c.b16 %v265, %v260
  %v306 = vpack.c.b16 %v266, %v261
  %v307 = vpack.c.b16 %v267, %v262
  %v308 = vpack.c.b16 %v268, %v263
  %v309 = vpack.c.b16 %v269, %v264
  %v414 = vunpack.c.l.b16 %v63
  %v415 = vunpack.c.l.b16 %v64
  %v416 = vunpack.c.l.b16 %v65
  %v417 = vunpack.c.l.b16 %v66
  %v418 = vunpack.c.l.b16 %v67
  %v419 = vunpack.c.l.b16 %v68
  %v420 = vunpack.c.l.b16 %v69
  %v421 = vunpack.c.l.b16 %v70
  %v422 = vunpack.c.l.b16 %v71
  %v423 = vunpack.c.l.b16 %v72
  %v424 = vunpack.c.l.b16 %v73
  %v425 = vunpack.c.l.b16 %v74
  %v426 = vunpack.c.l.b16 %v75
  %v427 = vunpack.c.l.b16 %v76
  %v428 = vunpack.c.l.b16 %v77
  %v429 = vunpack.c.l.b16 %v78
  %v430 = vunpack.c.l.b16 %v79
  %v431 = vunpack.c.l.b16 %v80
  %v432 = vunpack.c.l.b16 %v81
  %v433 = vunpack.c.l.b16 %v82
  %v434 = vunpack.c.l.b16 %v83
  %v435 = vunpack.c.l.b16 %v84
  %v436 = vunpack.c.l.b16 %v85
  %v437 = vunpack.c.l.b16 %v86
  %v438 = vunpack.c.l.b16 %v87
  %v439 = vunpack.c.l.b16 %v88
  %v440 = vunpack.c.l.b16 %v89
  %v441 = vunpack.c.l.b16 %v90
  %v442 = vunpack.c.l.b16 %v91
  %v443 = vunpack.c.l.b16 %v92
  %v444 = vunpack.c.l.b16 %v93
  %v445 = vunpack.c.l.b16 %v94
  %v446 = vunpack.c.l.b16 %v95
  %v447 = vunpack.c.l.b16 %v96
  %v448 = vunpack.c.l.b16 %v97
  %v449 = vunpack.c.l.b16 %v98
  %v450 = vunpack.c.l.b16 %v99
  %v451 = vunpack.c.l.b16 %v100
  %v452 = vunpack.c.l.b16 %v101
  %v453 = vunpack.c.l.b16 %v102
  %v454 = vunpack.c.l.b16 %v103
  %v455 = vunpack.c.l.b16 %v104
  %v456 = vunpack.c.l.b16 %v105
  %v457 = vunpack.c.l.b16 %v106
  %v458 = vunpack.c.l.b16 %v107
  %v459 = vunpack.c.l.b16 %v108
  %v460 = vunpack.c.l.b16 %v109
  %v461 = vunpack.c.l.b16 %v110
  %v462 = vunpack.c.l.b16 %v111
  %v463 = vunpack.c.l.b16 %v112
  %v464 = vunpack.c.l.b16 %v113
  %v465 = vunpack.c.l.b16 %v114
  %v466 = vunpack.c.l.b16 %v115
  %v467 = vunpack.c.l.b16 %v116
  %v468 = vunpack.c.l.b16 %v117
  %v469 = vunpack.c.l.b16 %v118
  %v470 = vunpack.c.l.b16 %v119
  %v471 = vunpack.c.l.b16 %v120
  %v472 = vunpack.c.l.b16 %v121
  %v473 = vunpack.c.l.b16 %v122
  %v474 = vunpack.c.l.b16 %v123
  %v475 = vunpack.c.l.b16 %v124
  %v476 = vunpack.c.l.b16 %v125
  %v477 = vunpack.c.l.b16 %v126
  %v478 = vunpack.c.l.b16 %v127
  %v479 = vunpack.c.l.b16 %v128
  %v480 = vunpack.c.l.b16 %v129
  %v481 = vunpack.c.l.b16 %v130
  %v482 = vunpack.c.l.b16 %v131
  %v483 = vunpack.c.l.b16 %v132
  %v484 = vunpack.c.l.b16 %v133
  %v485 = vunpack.c.l.b16 %v134
  %v486 = vpack.c.b16 %v415, %v414
  %v487 = vpack.c.b16 %v417, %v416
  %v488 = vpack.c.b16 %v419, %v418
  %v489 = vpack.c.b16 %v421, %v420
  %v490 = vpack.c.b16 %v423, %v422
  %v491 = vpack.c.b16 %v425, %v424
  %v492 = vpack.c.b16 %v427, %v426
  %v493 = vpack.c.b16 %v429, %v428
  %v494 = vpack.c.b16 %v431, %v430
  %v495 = vpack.c.b16 %v433, %v432
  %v496 = vpack.c.b16 %v435, %v434
  %v497 = vpack.c.b16 %v437, %v436
  %v498 = vpack.c.b16 %v439, %v438
  %v499 = vpack.c.b16 %v441, %v440
  %v500 = vpack.c.b16 %v443, %v442
  %v501 = vpack.c.b16 %v445, %v444
  %v502 = vpack.c.b16 %v447, %v446
  %v503 = vpack.c.b16 %v449, %v448
  %v504 = vpack.c.b16 %v451, %v450
  %v505 = vpack.c.b16 %v453, %v452
  %v506 = vpack.c.b16 %v455, %v454
  %v507 = vpack.c.b16 %v457, %v456
  %v508 = vpack.c.b16 %v459, %v458
  %v509 = vpack.c.b16 %v461, %v460
  %v510 = vpack.c.b16 %v463, %v462
  %v511 = vpack.c.b16 %v465, %v464
  %v512 = vpack.c.b16 %v467, %v466
  %v513 = vpack.c.b16 %v469, %v468
  %v514 = vpack.c.b16 %v471, %v470
  %v515 = vpack.c.b16 %v473, %v472
  %v516 = vpack.c.b16 %v475, %v474
  %v517 = vpack.c.b16 %v477, %v476
  %v518 = vpack.c.b16 %v479, %v478
  %v519 = vpack.c.b16 %v481, %v480
  %v520 = vpack.c.b16 %v483, %v482
  %v521 = vpack.c.b16 %v485, %v484
  %vm558 = vcmask 523264
  %v560 = vsel %vm558, %v274, 0
  %v563 = vsel %vm558, %v279, 0
  %v566 = vsel %vm558, %v284, 0
  %v569 = vsel %vm558, %v289, 0
  %v572 = vsel %vm558, %v294, 0
  %v575 = vsel %vm558, %v299, 0
  %v578 = vsel %vm558, %v304, 0
  %v581 = vsel %vm558, %v309, 0
  %583 = vmatprep.subr.bf16.mxu0 0
  %584 = vmatpush1.bf16.msra.mxu0 %v486
  %585 = vmatprep.subr.bf16.mxu0 0
  %586 = vmatpush1.bf16.msra.mxu0 %v487
  %587 = vmatprep.subr.bf16.mxu0 0
  %588 = vmatpush1.bf16.msra.mxu0 %v488
  %589 = vmatprep.subr.bf16.mxu0 0
  %590 = vmatpush1.bf16.msra.mxu0 %v489
  %591 = vmatprep.subr.bf16.mxu0 0
  %592 = vmatpush1.bf16.msra.mxu0 %v490
  %593 = vmatprep.subr.bf16.mxu0 0
  %594 = vmatpush1.bf16.msra.mxu0 %v491
  %595 = vmatprep.subr.bf16.mxu0 0
  %596 = vmatpush1.bf16.msra.mxu0 %v492
  %597 = vmatprep.subr.bf16.mxu0 0
  %598 = vmatpush1.bf16.msra.mxu0 %v493
  %599 = vmatprep.subr.bf16.mxu0 0
  %600 = vmatpush1.bf16.msra.mxu0 %v494
  %601 = vmatprep.subr.bf16.mxu0 0
  %602 = vmatpush1.bf16.msra.mxu0 %v495
  %603 = vmatprep.subr.bf16.mxu0 0
  %604 = vmatpush1.bf16.msra.mxu0 %v496
  %605 = vmatprep.subr.bf16.mxu0 0
  %606 = vmatpush1.bf16.msra.mxu0 %v497
  %607 = vmatprep.subr.bf16.mxu0 0
  %608 = vmatpush1.bf16.msra.mxu0 %v498
  %609 = vmatprep.subr.bf16.mxu0 0
  %610 = vmatpush1.bf16.msra.mxu0 %v499
  %611 = vmatprep.subr.bf16.mxu0 0
  %612 = vmatpush1.bf16.msra.mxu0 %v500
  %613 = vmatprep.subr.bf16.mxu0 0
  %614 = vmatpush1.bf16.msra.mxu0 %v501
  %615 = vmatprep.mubr.bf16.mxu0 %v271
  %616 = vmatmul.mubr.bf16.gmra.mrb[0].mxu0 %v270
  %v617 = vpop.f32.mrb[0].mxu0
  %v618 = vadd.f32 %v140, %v617
  %v619 = vpop.f32.mrb[0].mxu0
  %v620 = vpop.f32.mrb[0].mxu0
  %v621 = vadd.f32 %v140, %v620
  %v622 = vpop.f32.mrb[0].mxu0
  %623 = vmatprep.mubr.bf16.mxu0 %v276
  %624 = vmatmul.mubr.bf16.gmra.mrb[0].mxu0 %v275
  %v625 = vpop.f32.mrb[0].mxu0
  %v626 = vadd.f32 %v140, %v625
  %v627 = vpop.f32.mrb[0].mxu0
  %v628 = vpop.f32.mrb[0].mxu0
  %v629 = vadd.f32 %v140, %v628
  %v630 = vpop.f32.mrb[0].mxu0
  %631 = vmatprep.mubr.bf16.mxu0 %v281
  %632 = vmatmul.mubr.bf16.gmra.mrb[0].mxu0 %v280
  %v633 = vpop.f32.mrb[0].mxu0
  %v634 = vadd.f32 %v140, %v633
  %v635 = vpop.f32.mrb[0].mxu0
  %v636 = vpop.f32.mrb[0].mxu0
  %v637 = vadd.f32 %v140, %v636
  %v638 = vpop.f32.mrb[0].mxu0
  %639 = vmatprep.mubr.bf16.mxu0 %v286
  %640 = vmatmul.mubr.bf16.gmra.mrb[0].mxu0 %v285
  %v641 = vpop.f32.mrb[0].mxu0
  %v642 = vadd.f32 %v140, %v641
  %v643 = vpop.f32.mrb[0].mxu0
  %v644 = vpop.f32.mrb[0].mxu0
  %v645 = vadd.f32 %v140, %v644
  %v646 = vpop.f32.mrb[0].mxu0
  %647 = vmatprep.mubr.bf16.mxu0 %v291
  %648 = vmatmul.mubr.bf16.gmra.mrb[0].mxu0 %v290
  %v649 = vpop.f32.mrb[0].mxu0
  %v650 = vadd.f32 %v140, %v649
  %v651 = vpop.f32.mrb[0].mxu0
  %v652 = vpop.f32.mrb[0].mxu0
  %v653 = vadd.f32 %v140, %v652
  %v654 = vpop.f32.mrb[0].mxu0
  %655 = vmatprep.mubr.bf16.mxu0 %v296
  %656 = vmatmul.mubr.bf16.gmra.mrb[0].mxu0 %v295
  %v657 = vpop.f32.mrb[0].mxu0
  %v658 = vadd.f32 %v140, %v657
  %v659 = vpop.f32.mrb[0].mxu0
  %v660 = vpop.f32.mrb[0].mxu0
  %v661 = vadd.f32 %v140, %v660
  %v662 = vpop.f32.mrb[0].mxu0
  %663 = vmatprep.mubr.bf16.mxu0 %v301
  %664 = vmatmul.mubr.bf16.gmra.mrb[0].mxu0 %v300
  %v665 = vpop.f32.mrb[0].mxu0
  %v666 = vadd.f32 %v140, %v665
  %v667 = vpop.f32.mrb[0].mxu0
  %v668 = vpop.f32.mrb[0].mxu0
  %v669 = vadd.f32 %v140, %v668
  %v670 = vpop.f32.mrb[0].mxu0
  %671 = vmatprep.mubr.bf16.mxu0 %v306
  %672 = vmatmul.mubr.bf16.gmra.mrb[0].mxu0 %v305
  %v673 = vpop.f32.mrb[0].mxu0
  %v674 = vadd.f32 %v140, %v673
  %v675 = vpop.f32.mrb[0].mxu0
  %v676 = vpop.f32.mrb[0].mxu0
  %v677 = vadd.f32 %v140, %v676
  %v678 = vpop.f32.mrb[0].mxu0
  %679 = vdwg.mxu0
  %680 = vmatprep.subr.bf16.mxu0 0
  %681 = vmatpush1.bf16.msra.mxu0 %v502
  %682 = vmatprep.subr.bf16.mxu0 0
  %683 = vmatpush1.bf16.msra.mxu0 %v503
  %684 = vmatprep.subr.bf16.mxu0 0
  %685 = vmatpush1.bf16.msra.mxu0 %v504
  %686 = vmatprep.subr.bf16.mxu0 0
  %687 = vmatpush1.bf16.msra.mxu0 %v505
  %688 = vmatprep.subr.bf16.mxu0 0
  %689 = vmatpush1.bf16.msra.mxu0 %v506
  %690 = vmatprep.subr.bf16.mxu0 0
  %691 = vmatpush1.bf16.msra.mxu0 %v507
  %692 = vmatprep.subr.bf16.mxu0 0
  %693 = vmatpush1.bf16.msra.mxu0 %v508
  %694 = vmatprep.subr.bf16.mxu0 0
  %695 = vmatpush1.bf16.msra.mxu0 %v509
  %696 = vmatprep.subr.bf16.mxu0 0
  %697 = vmatpush1.bf16.msra.mxu0 %v510
  %698 = vmatprep.subr.bf16.mxu0 0
  %699 = vmatpush1.bf16.msra.mxu0 %v511
  %700 = vmatprep.subr.bf16.mxu0 0
  %701 = vmatpush1.bf16.msra.mxu0 %v512
  %702 = vmatprep.subr.bf16.mxu0 0
  %703 = vmatpush1.bf16.msra.mxu0 %v513
  %704 = vmatprep.subr.bf16.mxu0 0
  %705 = vmatpush1.bf16.msra.mxu0 %v514
  %706 = vmatprep.subr.bf16.mxu0 0
  %707 = vmatpush1.bf16.msra.mxu0 %v515
  %708 = vmatprep.subr.bf16.mxu0 0
  %709 = vmatpush1.bf16.msra.mxu0 %v516
  %710 = vmatprep.subr.bf16.mxu0 0
  %711 = vmatpush1.bf16.msra.mxu0 %v517
  %712 = vmatprep.mubr.bf16.mxu0 %v273
  %713 = vmatmul.mubr.bf16.gmra.mrb[0].mxu0 %v272
  %v714 = vpop.f32.mrb[0].mxu0
  %v715 = vadd.f32 %v618, %v714
  %v716 = vpop.f32.mrb[0].mxu0
  %v717 = vpop.f32.mrb[0].mxu0
  %v718 = vadd.f32 %v621, %v717
  %v719 = vpop.f32.mrb[0].mxu0
  %720 = vmatprep.mubr.bf16.mxu0 %v278
  %721 = vmatmul.mubr.bf16.gmra.mrb[0].mxu0 %v277
  %v722 = vpop.f32.mrb[0].mxu0
  %v723 = vadd.f32 %v626, %v722
  %v724 = vpop.f32.mrb[0].mxu0
  %v725 = vpop.f32.mrb[0].mxu0
  %v726 = vadd.f32 %v629, %v725
  %v727 = vpop.f32.mrb[0].mxu0
  %728 = vmatprep.mubr.bf16.mxu0 %v283
  %729 = vmatmul.mubr.bf16.gmra.mrb[0].mxu0 %v282
  %v730 = vpop.f32.mrb[0].mxu0
  %v731 = vadd.f32 %v634, %v730
  %v732 = vpop.f32.mrb[0].mxu0
  %v733 = vpop.f32.mrb[0].mxu0
  %v734 = vadd.f32 %v637, %v733
  %v735 = vpop.f32.mrb[0].mxu0
  %736 = vmatprep.mubr.bf16.mxu0 %v288
  %737 = vmatmul.mubr.bf16.gmra.mrb[0].mxu0 %v287
  %v738 = vpop.f32.mrb[0].mxu0
  %v739 = vadd.f32 %v642, %v738
  %v740 = vpop.f32.mrb[0].mxu0
  %v741 = vpop.f32.mrb[0].mxu0
  %v742 = vadd.f32 %v645, %v741
  %v743 = vpop.f32.mrb[0].mxu0
  %744 = vmatprep.mubr.bf16.mxu0 %v293
  %745 = vmatmul.mubr.bf16.gmra.mrb[0].mxu0 %v292
  %v746 = vpop.f32.mrb[0].mxu0
  %v747 = vadd.f32 %v650, %v746
  %v748 = vpop.f32.mrb[0].mxu0
  %v749 = vpop.f32.mrb[0].mxu0
  %v750 = vadd.f32 %v653, %v749
  %v751 = vpop.f32.mrb[0].mxu0
  %752 = vmatprep.mubr.bf16.mxu0 %v298
  %753 = vmatmul.mubr.bf16.gmra.mrb[0].mxu0 %v297
  %v754 = vpop.f32.mrb[0].mxu0
  %v755 = vadd.f32 %v658, %v754
  %v756 = vpop.f32.mrb[0].mxu0
  %v757 = vpop.f32.mrb[0].mxu0
  %v758 = vadd.f32 %v661, %v757
  %v759 = vpop.f32.mrb[0].mxu0
  %760 = vmatprep.mubr.bf16.mxu0 %v303
  %761 = vmatmul.mubr.bf16.gmra.mrb[0].mxu0 %v302
  %v762 = vpop.f32.mrb[0].mxu0
  %v763 = vadd.f32 %v666, %v762
  %v764 = vpop.f32.mrb[0].mxu0
  %v765 = vpop.f32.mrb[0].mxu0
  %v766 = vadd.f32 %v669, %v765
  %v767 = vpop.f32.mrb[0].mxu0
  %768 = vmatprep.mubr.bf16.mxu0 %v308
  %769 = vmatmul.mubr.bf16.gmra.mrb[0].mxu0 %v307
  %v770 = vpop.f32.mrb[0].mxu0
  %v771 = vadd.f32 %v674, %v770
  %v772 = vpop.f32.mrb[0].mxu0
  %v773 = vpop.f32.mrb[0].mxu0
  %v774 = vadd.f32 %v677, %v773
  %v775 = vpop.f32.mrb[0].mxu0
  %776 = vdwg.mxu0
  %777 = vmatprep.subr.bf16.mxu0 0
  %778 = vmatpush1.bf16.msra.mxu0 %v518
  %779 = vmatprep.subr.bf16.mxu0 0
  %780 = vmatpush1.bf16.msra.mxu0 %v519
  %781 = vmatprep.subr.bf16.mxu0 0
  %782 = vmatpush1.bf16.msra.mxu0 %v520
  %783 = vmatprep.subr.bf16.mxu0 0
  %784 = vmatpush1.bf16.msra.mxu0 %v521
  %785 = vmatprep.subr.bf16.mxu0 0
  %786 = vmatpush1.bf16.msra.mxu0 0
  %787 = vmatprep.subr.bf16.mxu0 0
  %788 = vmatpush1.bf16.msra.mxu0 0
  %789 = vmatprep.subr.bf16.mxu0 0
  %790 = vmatpush1.bf16.msra.mxu0 0
  %791 = vmatprep.subr.bf16.mxu0 0
  %792 = vmatpush1.bf16.msra.mxu0 0
  %793 = vmatprep.subr.bf16.mxu0 0
  %794 = vmatpush1.bf16.msra.mxu0 0
  %795 = vmatprep.subr.bf16.mxu0 0
  %796 = vmatpush1.bf16.msra.mxu0 0
  %797 = vmatprep.subr.bf16.mxu0 0
  %798 = vmatpush1.bf16.msra.mxu0 0
  %799 = vmatprep.subr.bf16.mxu0 0
  %800 = vmatpush1.bf16.msra.mxu0 0
  %801 = vmatprep.subr.bf16.mxu0 0
  %802 = vmatpush1.bf16.msra.mxu0 0
  %803 = vmatprep.subr.bf16.mxu0 0
  %804 = vmatpush1.bf16.msra.mxu0 0
  %805 = vmatprep.subr.bf16.mxu0 0
  %806 = vmatpush1.bf16.msra.mxu0 0
  %807 = vmatprep.subr.bf16.mxu0 0
  %808 = vmatpush1.bf16.msra.mxu0 0
  %809 = vmatprep.mubr.bf16.mxu0 0
  %810 = vmatmul.mubr.bf16.gmra.mrb[0].mxu0 %v560
  %v811 = vpop.f32.mrb[0].mxu0
  %v812 = vadd.f32 %v715, %v811
  %v813 = vpop.f32.mrb[0].mxu0
  %v814 = vpop.f32.mrb[0].mxu0
  %v815 = vadd.f32 %v718, %v814
  %v816 = vpop.f32.mrb[0].mxu0
  %817 = vmatprep.mubr.bf16.mxu0 0
  %818 = vmatmul.mubr.bf16.gmra.mrb[0].mxu0 %v563
  %v819 = vpop.f32.mrb[0].mxu0
  %v820 = vadd.f32 %v723, %v819
  %v821 = vpop.f32.mrb[0].mxu0
  %v822 = vpop.f32.mrb[0].mxu0
  %v823 = vadd.f32 %v726, %v822
  %v824 = vpop.f32.mrb[0].mxu0
  %825 = vmatprep.mubr.bf16.mxu0 0
  %826 = vmatmul.mubr.bf16.gmra.mrb[0].mxu0 %v566
  %v827 = vpop.f32.mrb[0].mxu0
  %v828 = vadd.f32 %v731, %v827
  %v829 = vpop.f32.mrb[0].mxu0
  %v830 = vpop.f32.mrb[0].mxu0
  %v831 = vadd.f32 %v734, %v830
  %v832 = vpop.f32.mrb[0].mxu0
  %833 = vmatprep.mubr.bf16.mxu0 0
  %834 = vmatmul.mubr.bf16.gmra.mrb[0].mxu0 %v569
  %v835 = vpop.f32.mrb[0].mxu0
  %v836 = vadd.f32 %v739, %v835
  %v837 = vpop.f32.mrb[0].mxu0
  %v838 = vpop.f32.mrb[0].mxu0
  %v839 = vadd.f32 %v742, %v838
  %v840 = vpop.f32.mrb[0].mxu0
  %841 = vmatprep.mubr.bf16.mxu0 0
  %842 = vmatmul.mubr.bf16.gmra.mrb[0].mxu0 %v572
  %v843 = vpop.f32.mrb[0].mxu0
  %v844 = vadd.f32 %v747, %v843
  %v845 = vpop.f32.mrb[0].mxu0
  %v846 = vpop.f32.mrb[0].mxu0
  %v847 = vadd.f32 %v750, %v846
  %v848 = vpop.f32.mrb[0].mxu0
  %849 = vmatprep.mubr.bf16.mxu0 0
  %850 = vmatmul.mubr.bf16.gmra.mrb[0].mxu0 %v575
  %v851 = vpop.f32.mrb[0].mxu0
  %v852 = vadd.f32 %v755, %v851
  %v853 = vpop.f32.mrb[0].mxu0
  %v854 = vpop.f32.mrb[0].mxu0
  %v855 = vadd.f32 %v758, %v854
  %v856 = vpop.f32.mrb[0].mxu0
  %857 = vmatprep.mubr.bf16.mxu0 0
  %858 = vmatmul.mubr.bf16.gmra.mrb[0].mxu0 %v578
  %v859 = vpop.f32.mrb[0].mxu0
  %v860 = vadd.f32 %v763, %v859
  %v861 = vpop.f32.mrb[0].mxu0
  %v862 = vpop.f32.mrb[0].mxu0
  %v863 = vadd.f32 %v766, %v862
  %v864 = vpop.f32.mrb[0].mxu0
  %865 = vmatprep.mubr.bf16.mxu0 0
  %866 = vmatmul.mubr.bf16.gmra.mrb[0].mxu0 %v581
  %v867 = vpop.f32.mrb[0].mxu0
  %v868 = vadd.f32 %v771, %v867
  %v869 = vpop.f32.mrb[0].mxu0
  %v870 = vpop.f32.mrb[0].mxu0
  %v871 = vadd.f32 %v774, %v870
  %v872 = vpop.f32.mrb[0].mxu0
  %873 = vdwg.mxu0
  %v874 = vmax.f32 %v812, 0.0
  %v875 = vmax.f32 %v815, 0.0
  %v876 = vmax.f32 %v820, 0.0
  %v877 = vmax.f32 %v823, 0.0
  %v878 = vmax.f32 %v828, 0.0
  %v879 = vmax.f32 %v831, 0.0
  %v880 = vmax.f32 %v836, 0.0
  %v881 = vmax.f32 %v839, 0.0
  %v882 = vmax.f32 %v844, 0.0
  %v883 = vmax.f32 %v847, 0.0
  %v884 = vmax.f32 %v852, 0.0
  %v885 = vmax.f32 %v855, 0.0
  %v886 = vmax.f32 %v860, 0.0
  %v887 = vmax.f32 %v863, 0.0
  %v888 = vmax.f32 %v868, 0.0
  %v889 = vmax.f32 %v871, 0.0
  %v890 = vpack.c.bf16 %v875, %v874
  %v891 = vpack.c.bf16 %v877, %v876
  %v892 = vpack.c.bf16 %v879, %v878
  %v893 = vpack.c.bf16 %v881, %v880
  %v894 = vpack.c.bf16 %v883, %v882
  %v895 = vpack.c.bf16 %v885, %v884
  %v896 = vpack.c.bf16 %v887, %v886
  %v897 = vpack.c.bf16 %v889, %v888
  %v906 = vunpack.c.l.b16 %v890
  %v907 = vunpack.c.h.b16 %v890
  %v908 = vunpack.c.l.b16 %v891
  %v909 = vunpack.c.h.b16 %v891
  %v910 = vunpack.c.l.b16 %v892
  %v911 = vunpack.c.h.b16 %v892
  %v912 = vunpack.c.l.b16 %v893
  %v913 = vunpack.c.h.b16 %v893
  %v914 = vunpack.c.l.b16 %v894
  %v915 = vunpack.c.h.b16 %v894
  %v916 = vunpack.c.l.b16 %v895
  %v917 = vunpack.c.h.b16 %v895
  %v918 = vunpack.c.l.b16 %v896
  %v919 = vunpack.c.h.b16 %v896
  %v920 = vunpack.c.l.b16 %v897
  %v921 = vunpack.c.h.b16 %v897
  %v922 = vpack.c.b16 %v906, %v906
  %v923 = vpack.c.b16 %v907, %v907
  %v924 = vpack.c.b16 %v908, %v908
  %v925 = vpack.c.b16 %v909, %v909
  %v926 = vpack.c.b16 %v910, %v910
  %v927 = vpack.c.b16 %v911, %v911
  %v928 = vpack.c.b16 %v912, %v912
  %v929 = vpack.c.b16 %v913, %v913
  %v930 = vpack.c.b16 %v914, %v914
  %v931 = vpack.c.b16 %v915, %v915
  %v932 = vpack.c.b16 %v916, %v916
  %v933 = vpack.c.b16 %v917, %v917
  %v934 = vpack.c.b16 %v918, %v918
  %v935 = vpack.c.b16 %v919, %v919
  %v936 = vpack.c.b16 %v920, %v920
  %v937 = vpack.c.b16 %v921, %v921
  %954 = vst [vmem:[%s3] sm:$0xf] %v922
  %955 = vst [vmem:[%s3 + $0x4] sm:$0xf] %v923
  %956 = vst [vmem:[%s3 + $0x8] sm:$0xf] %v924
  %957 = vst [vmem:[%s3 + $0xc] sm:$0xf] %v925
  %958 = vst [vmem:[%s3 + $0x10] sm:$0xf] %v926
  %959 = vst [vmem:[%s3 + $0x14] sm:$0xf] %v927
  %960 = vst [vmem:[%s3 + $0x18] sm:$0xf] %v928
  %961 = vst [vmem:[%s3 + $0x1c] sm:$0xf] %v929
  %962 = vst [vmem:[%s3 + $0x20] sm:$0xf] %v930
  %963 = vst [vmem:[%s3 + $0x24] sm:$0xf] %v931
  %964 = vst [vmem:[%s3 + $0x28] sm:$0xf] %v932
  %965 = vst [vmem:[%s3 + $0x2c] sm:$0xf] %v933
  %966 = vst [vmem:[%s3 + $0x30] sm:$0xf] %v934
  %967 = vst [vmem:[%s3 + $0x34] sm:$0xf] %v935
  %968 = vst [vmem:[%s3 + $0x38] sm:$0xf] %v936
  %969 = vst [vmem:[%s3 + $0x3c] sm:$0xf] %v937
  // Predicated region
  $region14: #{prunus_forward.12} parent=0 // pred_check
    _
  $region15: #{prunus_forward.12} parent=0 // pred_check_branch
    %971 = sbr.rel (0) target = $region17
  $region16: #{prunus_forward.12} parent=0 // pred_region
    _
  $region17: #{prunus_forward.12} parent=0 // pred_fallthru
    _
  // Predicated region
  $region18: #{prunus_forward.12} parent=0 // pred_check
    _
  $region19: #{prunus_forward.12} parent=0 // pred_check_branch
    %973 = sbr.rel (0) target = $region21
  $region20: #{prunus_forward.12} parent=0 // pred_region
    _
  $region21: #{prunus_forward.12} parent=0 // pred_fallthru
    _

// kernel: prunus_forward.13
$region0: #{prunus_forward.13}
  #allocation0 [shape = 'u32[]', space=smem, size = 0x4, offset = 0x4, fixed_abs, tag = 'smem constant byte address 0x4 - core index']
  #allocation1 [shape = 'u32[144,128]{1,0:T(1,128)}', space=vmem, size = 0x12000, scoped, tag = 'internal scratch']
  %s0 = inlined_call_operand.vmem [shape: bf16[2,8192], index: 0, kind: input, shape index: {}]
  %s1 = inlined_call_operand.vmem [shape: bf16[8192,256], index: 1, kind: input, shape index: {}]
  %s2 = inlined_call_operand.vmem [shape: f32[1,256], index: 2, kind: input, shape index: {}]
  %s3 = inlined_call_operand.vmem [shape: bf16[256,128], index: 3, kind: input, shape index: {}]
  %s4 = inlined_call_operand.vmem [shape: f32[1,128], index: 4, kind: input, shape index: {}]
  %s5 = inlined_call_operand.vmem [shape: bf16[128,2], index: 5, kind: input, shape index: {}]
  %s6 = inlined_call_operand.vmem [shape: f32[1,2], index: 6, kind: input, shape index: {}]
  %s7 = inlined_call_operand.vmem [shape: bf16[128,2], index: 7, kind: input, shape index: {}]
  %s8 = inlined_call_operand.vmem [shape: f32[1,2], index: 8, kind: input, shape index: {}]
  %s9 = inlined_call_operand.vmem [shape: bf16[256,128], index: 9, kind: input, shape index: {}]
  %s10 = inlined_call_operand.vmem [shape: f32[1,128], index: 10, kind: input, shape index: {}]
  %s11 = inlined_call_operand.vmem [shape: bf16[2,128,10], index: 11, kind: input, shape index: {}]
  %s12 = inlined_call_operand.vmem [shape: f32[1,10], index: 12, kind: input, shape index: {}]
  %s13 = inlined_call_operand.hbm [shape: f32[2,2], index: 13, kind: output, shape index: {0}]
  %s14 = inlined_call_operand.vmem [shape: f32[2,2], index: 14, kind: output, shape index: {1}]
  %s15 = inlined_call_operand.vmem [shape: f32[2,2,10], index: 15, kind: output, shape index: {2}]
  %16 = xla_tuple %s13, %s14, %s15
  %s17 = sld [smem:[#allocation0]]
  $region78: #{prunus_forward.13} parent=0
    _
  %s19 = ssub.s32 1, %s17
  %s20 = scalar_select 0, %s19, %s17
  $region1: #{prunus_forward.13} parent=0
    #allocation2 [shape = 'u8[1024]{0}', space=vmem, size = 0x400, scoped, tag = 'output window, operand 0, single buffered']
    #allocation3 [shape = 's32[1]{0}', space=sflag, size = 0x4, scoped, tag = 'scoped memory for prunus_forward.13']
    %21 = vsyncpa [#allocation3], 0
    // Predicated region
    $region2: #{prunus_forward.13} parent=1 // pred_check
      _
    $region3: #{prunus_forward.13} parent=1 // pred_check_branch
      %23 = sbr.rel (0) target = $region5
    $region4: #{prunus_forward.13} parent=1 // pred_region
      _
    $region5: #{prunus_forward.13} parent=1 // pred_fallthru
      _
    // Predicated region
    $region6: #{prunus_forward.13} parent=1 // pred_check
      _
    $region7: #{prunus_forward.13} parent=1 // pred_check_branch
      %25 = sbr.rel (0) target = $region9
    $region8: #{prunus_forward.13} parent=1 // pred_region
      _
    $region9: #{prunus_forward.13} parent=1 // pred_fallthru
      _
    // Predicated region
    $region10: #{prunus_forward.13} parent=1 // pred_check
      _
    $region11: #{prunus_forward.13} parent=1 // pred_check_branch
      %27 = sbr.rel (0) target = $region13
    $region12: #{prunus_forward.13} parent=1 // pred_region
      _
    $region13: #{prunus_forward.13} parent=1 // pred_fallthru
      _
    // Predicated region
    $region14: #{prunus_forward.13} parent=1 // pred_check
      _
    $region15: #{prunus_forward.13} parent=1 // pred_check_branch
      %29 = sbr.rel (0) target = $region17
    $region16: #{prunus_forward.13} parent=1 // pred_region
      _
    $region17: #{prunus_forward.13} parent=1 // pred_fallthru
      _
    // Predicated region
    $region18: #{prunus_forward.13} parent=1 // pred_check
      _
    $region19: #{prunus_forward.13} parent=1 // pred_check_branch
      %31 = sbr.rel (0) target = $region21
    $region20: #{prunus_forward.13} parent=1 // pred_region
      _
    $region21: #{prunus_forward.13} parent=1 // pred_fallthru
      _
    // Predicated region
    $region22: #{prunus_forward.13} parent=1 // pred_check
      _
    $region23: #{prunus_forward.13} parent=1 // pred_check_branch
      %33 = sbr.rel (0) target = $region25
    $region24: #{prunus_forward.13} parent=1 // pred_region
      _
    $region25: #{prunus_forward.13} parent=1 // pred_fallthru
      _
    // Predicated region
    $region26: #{prunus_forward.13} parent=1 // pred_check
      _
    $region27: #{prunus_forward.13} parent=1 // pred_check_branch
      %35 = sbr.rel (0) target = $region29
    $region28: #{prunus_forward.13} parent=1 // pred_region
      _
    $region29: #{prunus_forward.13} parent=1 // pred_fallthru
      _
    // Predicated region
    $region30: #{prunus_forward.13} parent=1 // pred_check
      _
    $region31: #{prunus_forward.13} parent=1 // pred_check_branch
      %37 = sbr.rel (0) target = $region33
    $region32: #{prunus_forward.13} parent=1 // pred_region
      _
    $region33: #{prunus_forward.13} parent=1 // pred_fallthru
      _
    // Predicated region
    $region34: #{prunus_forward.13} parent=1 // pred_check
      _
    $region35: #{prunus_forward.13} parent=1 // pred_check_branch
      %39 = sbr.rel (0) target = $region37
    $region36: #{prunus_forward.13} parent=1 // pred_region
      _
    $region37: #{prunus_forward.13} parent=1 // pred_fallthru
      _
    // Predicated region
    $region38: #{prunus_forward.13} parent=1 // pred_check
      _
    $region39: #{prunus_forward.13} parent=1 // pred_check_branch
      %41 = sbr.rel (0) target = $region41
    $region40: #{prunus_forward.13} parent=1 // pred_region
      _
    $region41: #{prunus_forward.13} parent=1 // pred_fallthru
      _
    // Predicated region
    $region42: #{prunus_forward.13} parent=1 // pred_check
      _
    $region43: #{prunus_forward.13} parent=1 // pred_check_branch
      %43 = sbr.rel (0) target = $region45
    $region44: #{prunus_forward.13} parent=1 // pred_region
      _
    $region45: #{prunus_forward.13} parent=1 // pred_fallthru
      _
    // Predicated region
    $region46: #{prunus_forward.13} parent=1 // pred_check
      _
    $region47: #{prunus_forward.13} parent=1 // pred_check_branch
      %45 = sbr.rel (0) target = $region49
    $region48: #{prunus_forward.13} parent=1 // pred_region
      _
    $region49: #{prunus_forward.13} parent=1 // pred_fallthru
      _
    // Predicated region
    $region50: #{prunus_forward.13} parent=1 // pred_check
      _
    $region51: #{prunus_forward.13} parent=1 // pred_check_branch
      %47 = sbr.rel (0) target = $region53
    $region52: #{prunus_forward.13} parent=1 // pred_region
      _
    $region53: #{prunus_forward.13} parent=1 // pred_fallthru
      _
    %v49 = vld [vmem:[%s0] sm:$0xff]
    %v50 = vld [vmem:[%s0 + $0x8] sm:$0xff]
    %v51 = vld [vmem:[%s0 + $0x10] sm:$0xff]
    %v52 = vld [vmem:[%s0 + $0x18] sm:$0xff]
    %v53 = vld [vmem:[%s0 + $0x20] sm:$0xff]
    %v54 = vld [vmem:[%s0 + $0x28] sm:$0xff]
    %v55 = vld [vmem:[%s0 + $0x30] sm:$0xff]
    %v56 = vld [vmem:[%s0 + $0x38] sm:$0xff]
    %v57 = vld [vmem:[%s1] sm:$0xff]
    %v58 = vld [vmem:[%s1 + $0x8] sm:$0xff]
    %v59 = vld [vmem:[%s1 + $0x10] sm:$0xff]
    %v60 = vld [vmem:[%s1 + $0x18] sm:$0xff]
    %v61 = vld [vmem:[%s1 + $0x20] sm:$0xff]
    %v62 = vld [vmem:[%s1 + $0x28] sm:$0xff]
    %v63 = vld [vmem:[%s1 + $0x30] sm:$0xff]
    %v64 = vld [vmem:[%s1 + $0x38] sm:$0xff]
    %v65 = vld [vmem:[%s1 + $0x40] sm:$0xff]
    %v66 = vld [vmem:[%s1 + $0x48] sm:$0xff]
    %v67 = vld [vmem:[%s1 + $0x50] sm:$0xff]
    %v68 = vld [vmem:[%s1 + $0x58] sm:$0xff]
    %v69 = vld [vmem:[%s1 + $0x60] sm:$0xff]
    %v70 = vld [vmem:[%s1 + $0x68] sm:$0xff]
    %v71 = vld [vmem:[%s1 + $0x70] sm:$0xff]
    %v72 = vld [vmem:[%s1 + $0x78] sm:$0xff]
    %v73 = vld [vmem:[%s1 + $0x80] sm:$0xff]
    %v74 = vld [vmem:[%s1 + $0x88] sm:$0xff]
    %v75 = vld [vmem:[%s1 + $0x90] sm:$0xff]
    %v76 = vld [vmem:[%s1 + $0x98] sm:$0xff]
    %v77 = vld [vmem:[%s1 + $0xa0] sm:$0xff]
    %v78 = vld [vmem:[%s1 + $0xa8] sm:$0xff]
    %v79 = vld [vmem:[%s1 + $0xb0] sm:$0xff]
    %v80 = vld [vmem:[%s1 + $0xb8] sm:$0xff]
    %v81 = vld [vmem:[%s1 + $0xc0] sm:$0xff]
    %v82 = vld [vmem:[%s1 + $0xc8] sm:$0xff]
    %v83 = vld [vmem:[%s1 + $0xd0] sm:$0xff]
    %v84 = vld [vmem:[%s1 + $0xd8] sm:$0xff]
    %v85 = vld [vmem:[%s1 + $0xe0] sm:$0xff]
    %v86 = vld [vmem:[%s1 + $0xe8] sm:$0xff]
    %v87 = vld [vmem:[%s1 + $0xf0] sm:$0xff]
    %v88 = vld [vmem:[%s1 + $0xf8] sm:$0xff]
    %v89 = vld [vmem:[%s1 + $0x100] sm:$0xff]
    %v90 = vld [vmem:[%s1 + $0x108] sm:$0xff]
    %v91 = vld [vmem:[%s1 + $0x110] sm:$0xff]
    %v92 = vld [vmem:[%s1 + $0x118] sm:$0xff]
    %v93 = vld [vmem:[%s1 + $0x120] sm:$0xff]
    %v94 = vld [vmem:[%s1 + $0x128] sm:$0xff]
    %v95 = vld [vmem:[%s1 + $0x130] sm:$0xff]
    %v96 = vld [vmem:[%s1 + $0x138] sm:$0xff]
    %v97 = vld [vmem:[%s1 + $0x140] sm:$0xff]
    %v98 = vld [vmem:[%s1 + $0x148] sm:$0xff]
    %v99 = vld [vmem:[%s1 + $0x150] sm:$0xff]
    %v100 = vld [vmem:[%s1 + $0x158] sm:$0xff]
    %v101 = vld [vmem:[%s1 + $0x160] sm:$0xff]
    %v102 = vld [vmem:[%s1 + $0x168] sm:$0xff]
    %v103 = vld [vmem:[%s1 + $0x170] sm:$0xff]
    %v104 = vld [vmem:[%s1 + $0x178] sm:$0xff]
    %v105 = vld [vmem:[%s1 + $0x180] sm:$0xff]
    %v106 = vld [vmem:[%s1 + $0x188] sm:$0xff]
    %v107 = vld [vmem:[%s1 + $0x190] sm:$0xff]
    %v108 = vld [vmem:[%s1 + $0x198] sm:$0xff]
    %v109 = vld [vmem:[%s1 + $0x1a0] sm:$0xff]
    %v110 = vld [vmem:[%s1 + $0x1a8] sm:$0xff]
    %v111 = vld [vmem:[%s1 + $0x1b0] sm:$0xff]
    %v112 = vld [vmem:[%s1 + $0x1b8] sm:$0xff]
    %v113 = vld [vmem:[%s1 + $0x1c0] sm:$0xff]
    %v114 = vld [vmem:[%s1 + $0x1c8] sm:$0xff]
    %v115 = vld [vmem:[%s1 + $0x1d0] sm:$0xff]
    %v116 = vld [vmem:[%s1 + $0x1d8] sm:$0xff]
    %v117 = vld [vmem:[%s1 + $0x1e0] sm:$0xff]
    %v118 = vld [vmem:[%s1 + $0x1e8] sm:$0xff]
    %v119 = vld [vmem:[%s1 + $0x1f0] sm:$0xff]
    %v120 = vld [vmem:[%s1 + $0x1f8] sm:$0xff]
    %v121 = vld [vmem:[%s1 + $0x200] sm:$0xff]
    %v122 = vld [vmem:[%s1 + $0x208] sm:$0xff]
    %v123 = vld [vmem:[%s1 + $0x210] sm:$0xff]
    %v124 = vld [vmem:[%s1 + $0x218] sm:$0xff]
    %v125 = vld [vmem:[%s1 + $0x220] sm:$0xff]
    %v126 = vld [vmem:[%s1 + $0x228] sm:$0xff]
    %v127 = vld [vmem:[%s1 + $0x230] sm:$0xff]
    %v128 = vld [vmem:[%s1 + $0x238] sm:$0xff]
    %v129 = vld [vmem:[%s1 + $0x240] sm:$0xff]
    %v130 = vld [vmem:[%s1 + $0x248] sm:$0xff]
    %v131 = vld [vmem:[%s1 + $0x250] sm:$0xff]
    %v132 = vld [vmem:[%s1 + $0x258] sm:$0xff]
    %v133 = vld [vmem:[%s1 + $0x260] sm:$0xff]
    %v134 = vld [vmem:[%s1 + $0x268] sm:$0xff]
    %v135 = vld [vmem:[%s1 + $0x270] sm:$0xff]
    %v136 = vld [vmem:[%s1 + $0x278] sm:$0xff]
    %v137 = vld [vmem:[%s1 + $0x280] sm:$0xff]
    %v138 = vld [vmem:[%s1 + $0x288] sm:$0xff]
    %v139 = vld [vmem:[%s1 + $0x290] sm:$0xff]
    %v140 = vld [vmem:[%s1 + $0x298] sm:$0xff]
    %v141 = vld [vmem:[%s1 + $0x2a0] sm:$0xff]
    %v142 = vld [vmem:[%s1 + $0x2a8] sm:$0xff]
    %v143 = vld [vmem:[%s1 + $0x2b0] sm:$0xff]
    %v144 = vld [vmem:[%s1 + $0x2b8] sm:$0xff]
    %v145 = vld [vmem:[%s1 + $0x2c0] sm:$0xff]
    %v146 = vld [vmem:[%s1 + $0x2c8] sm:$0xff]
    %v147 = vld [vmem:[%s1 + $0x2d0] sm:$0xff]
    %v148 = vld [vmem:[%s1 + $0x2d8] sm:$0xff]
    %v149 = vld [vmem:[%s1 + $0x2e0] sm:$0xff]
    %v150 = vld [vmem:[%s1 + $0x2e8] sm:$0xff]
    %v151 = vld [vmem:[%s1 + $0x2f0] sm:$0xff]
    %v152 = vld [vmem:[%s1 + $0x2f8] sm:$0xff]
    %v153 = vld [vmem:[%s1 + $0x300] sm:$0xff]
    %v154 = vld [vmem:[%s1 + $0x308] sm:$0xff]
    %v155 = vld [vmem:[%s1 + $0x310] sm:$0xff]
    %v156 = vld [vmem:[%s1 + $0x318] sm:$0xff]
    %v157 = vld [vmem:[%s1 + $0x320] sm:$0xff]
    %v158 = vld [vmem:[%s1 + $0x328] sm:$0xff]
    %v159 = vld [vmem:[%s1 + $0x330] sm:$0xff]
    %v160 = vld [vmem:[%s1 + $0x338] sm:$0xff]
    %v161 = vld [vmem:[%s1 + $0x340] sm:$0xff]
    %v162 = vld [vmem:[%s1 + $0x348] sm:$0xff]
    %v163 = vld [vmem:[%s1 + $0x350] sm:$0xff]
    %v164 = vld [vmem:[%s1 + $0x358] sm:$0xff]
    %v165 = vld [vmem:[%s1 + $0x360] sm:$0xff]
    %v166 = vld [vmem:[%s1 + $0x368] sm:$0xff]
    %v167 = vld [vmem:[%s1 + $0x370] sm:$0xff]
    %v168 = vld [vmem:[%s1 + $0x378] sm:$0xff]
    %v169 = vld [vmem:[%s1 + $0x380] sm:$0xff]
    %v170 = vld [vmem:[%s1 + $0x388] sm:$0xff]
    %v171 = vld [vmem:[%s1 + $0x390] sm:$0xff]
    %v172 = vld [vmem:[%s1 + $0x398] sm:$0xff]
    %v173 = vld [vmem:[%s1 + $0x3a0] sm:$0xff]
    %v174 = vld [vmem:[%s1 + $0x3a8] sm:$0xff]
    %v175 = vld [vmem:[%s1 + $0x3b0] sm:$0xff]
    %v176 = vld [vmem:[%s1 + $0x3b8] sm:$0xff]
    %v177 = vld [vmem:[%s1 + $0x3c0] sm:$0xff]
    %v178 = vld [vmem:[%s1 + $0x3c8] sm:$0xff]
    %v179 = vld [vmem:[%s1 + $0x3d0] sm:$0xff]
    %v180 = vld [vmem:[%s1 + $0x3d8] sm:$0xff]
    %v181 = vld [vmem:[%s1 + $0x3e0] sm:$0xff]
    %v182 = vld [vmem:[%s1 + $0x3e8] sm:$0xff]
    %v183 = vld [vmem:[%s1 + $0x3f0] sm:$0xff]
    %v184 = vld [vmem:[%s1 + $0x3f8] sm:$0xff]
    %v185 = vld [vmem:[%s1 + $0x400] sm:$0xff]
    %v186 = vld [vmem:[%s1 + $0x408] sm:$0xff]
    %v187 = vld [vmem:[%s1 + $0x410] sm:$0xff]
    %v188 = vld [vmem:[%s1 + $0x418] sm:$0xff]
    %v189 = vld [vmem:[%s1 + $0x420] sm:$0xff]
    %v190 = vld [vmem:[%s1 + $0x428] sm:$0xff]
    %v191 = vld [vmem:[%s1 + $0x430] sm:$0xff]
    %v192 = vld [vmem:[%s1 + $0x438] sm:$0xff]
    %v193 = vld [vmem:[%s1 + $0x440] sm:$0xff]
    %v194 = vld [vmem:[%s1 + $0x448] sm:$0xff]
    %v195 = vld [vmem:[%s1 + $0x450] sm:$0xff]
    %v196 = vld [vmem:[%s1 + $0x458] sm:$0xff]
    %v197 = vld [vmem:[%s1 + $0x460] sm:$0xff]
    %v198 = vld [vmem:[%s1 + $0x468] sm:$0xff]
    %v199 = vld [vmem:[%s1 + $0x470] sm:$0xff]
    %v200 = vld [vmem:[%s1 + $0x478] sm:$0xff]
    %v201 = vld [vmem:[%s1 + $0x480] sm:$0xff]
    %v202 = vld [vmem:[%s1 + $0x488] sm:$0xff]
    %v203 = vld [vmem:[%s1 + $0x490] sm:$0xff]
    %v204 = vld [vmem:[%s1 + $0x498] sm:$0xff]
    %v205 = vld [vmem:[%s1 + $0x4a0] sm:$0xff]
    %v206 = vld [vmem:[%s1 + $0x4a8] sm:$0xff]
    %v207 = vld [vmem:[%s1 + $0x4b0] sm:$0xff]
    %v208 = vld [vmem:[%s1 + $0x4b8] sm:$0xff]
    %v209 = vld [vmem:[%s1 + $0x4c0] sm:$0xff]
    %v210 = vld [vmem:[%s1 + $0x4c8] sm:$0xff]
    %v211 = vld [vmem:[%s1 + $0x4d0] sm:$0xff]
    %v212 = vld [vmem:[%s1 + $0x4d8] sm:$0xff]
    %v213 = vld [vmem:[%s1 + $0x4e0] sm:$0xff]
    %v214 = vld [vmem:[%s1 + $0x4e8] sm:$0xff]
    %v215 = vld [vmem:[%s1 + $0x4f0] sm:$0xff]
    %v216 = vld [vmem:[%s1 + $0x4f8] sm:$0xff]
    %v217 = vld [vmem:[%s1 + $0x500] sm:$0xff]
    %v218 = vld [vmem:[%s1 + $0x508] sm:$0xff]
    %v219 = vld [vmem:[%s1 + $0x510] sm:$0xff]
    %v220 = vld [vmem:[%s1 + $0x518] sm:$0xff]
    %v221 = vld [vmem:[%s1 + $0x520] sm:$0xff]
    %v222 = vld [vmem:[%s1 + $0x528] sm:$0xff]
    %v223 = vld [vmem:[%s1 + $0x530] sm:$0xff]
    %v224 = vld [vmem:[%s1 + $0x538] sm:$0xff]
    %v225 = vld [vmem:[%s1 + $0x540] sm:$0xff]
    %v226 = vld [vmem:[%s1 + $0x548] sm:$0xff]
    %v227 = vld [vmem:[%s1 + $0x550] sm:$0xff]
    %v228 = vld [vmem:[%s1 + $0x558] sm:$0xff]
    %v229 = vld [vmem:[%s1 + $0x560] sm:$0xff]
    %v230 = vld [vmem:[%s1 + $0x568] sm:$0xff]
    %v231 = vld [vmem:[%s1 + $0x570] sm:$0xff]
    %v232 = vld [vmem:[%s1 + $0x578] sm:$0xff]
    %v233 = vld [vmem:[%s1 + $0x580] sm:$0xff]
    %v234 = vld [vmem:[%s1 + $0x588] sm:$0xff]
    %v235 = vld [vmem:[%s1 + $0x590] sm:$0xff]
    %v236 = vld [vmem:[%s1 + $0x598] sm:$0xff]
    %v237 = vld [vmem:[%s1 + $0x5a0] sm:$0xff]
    %v238 = vld [vmem:[%s1 + $0x5a8] sm:$0xff]
    %v239 = vld [vmem:[%s1 + $0x5b0] sm:$0xff]
    %v240 = vld [vmem:[%s1 + $0x5b8] sm:$0xff]
    %v241 = vld [vmem:[%s1 + $0x5c0] sm:$0xff]
    %v242 = vld [vmem:[%s1 + $0x5c8] sm:$0xff]
    %v243 = vld [vmem:[%s1 + $0x5d0] sm:$0xff]
    %v244 = vld [vmem:[%s1 + $0x5d8] sm:$0xff]
    %v245 = vld [vmem:[%s1 + $0x5e0] sm:$0xff]
    %v246 = vld [vmem:[%s1 + $0x5e8] sm:$0xff]
    %v247 = vld [vmem:[%s1 + $0x5f0] sm:$0xff]
    %v248 = vld [vmem:[%s1 + $0x5f8] sm:$0xff]
    %v249 = vld [vmem:[%s1 + $0x600] sm:$0xff]
    %v250 = vld [vmem:[%s1 + $0x608] sm:$0xff]
    %v251 = vld [vmem:[%s1 + $0x610] sm:$0xff]
    %v252 = vld [vmem:[%s1 + $0x618] sm:$0xff]
    %v253 = vld [vmem:[%s1 + $0x620] sm:$0xff]
    %v254 = vld [vmem:[%s1 + $0x628] sm:$0xff]
    %v255 = vld [vmem:[%s1 + $0x630] sm:$0xff]
    %v256 = vld [vmem:[%s1 + $0x638] sm:$0xff]
    %v257 = vld [vmem:[%s1 + $0x640] sm:$0xff]
    %v258 = vld [vmem:[%s1 + $0x648] sm:$0xff]
    %v259 = vld [vmem:[%s1 + $0x650] sm:$0xff]
    %v260 = vld [vmem:[%s1 + $0x658] sm:$0xff]
    %v261 = vld [vmem:[%s1 + $0x660] sm:$0xff]
    %v262 = vld [vmem:[%s1 + $0x668] sm:$0xff]
    %v263 = vld [vmem:[%s1 + $0x670] sm:$0xff]
    %v264 = vld [vmem:[%s1 + $0x678] sm:$0xff]
    %v265 = vld [vmem:[%s1 + $0x680] sm:$0xff]
    %v266 = vld [vmem:[%s1 + $0x688] sm:$0xff]
    %v267 = vld [vmem:[%s1 + $0x690] sm:$0xff]
    %v268 = vld [vmem:[%s1 + $0x698] sm:$0xff]
    %v269 = vld [vmem:[%s1 + $0x6a0] sm:$0xff]
    %v270 = vld [vmem:[%s1 + $0x6a8] sm:$0xff]
    %v271 = vld [vmem:[%s1 + $0x6b0] sm:$0xff]
    %v272 = vld [vmem:[%s1 + $0x6b8] sm:$0xff]
    %v273 = vld [vmem:[%s1 + $0x6c0] sm:$0xff]
    %v274 = vld [vmem:[%s1 + $0x6c8] sm:$0xff]
    %v275 = vld [vmem:[%s1 + $0x6d0] sm:$0xff]
    %v276 = vld [vmem:[%s1 + $0x6d8] sm:$0xff]
    %v277 = vld [vmem:[%s1 + $0x6e0] sm:$0xff]
    %v278 = vld [vmem:[%s1 + $0x6e8] sm:$0xff]
    %v279 = vld [vmem:[%s1 + $0x6f0] sm:$0xff]
    %v280 = vld [vmem:[%s1 + $0x6f8] sm:$0xff]
    %v281 = vld [vmem:[%s1 + $0x700] sm:$0xff]
    %v282 = vld [vmem:[%s1 + $0x708] sm:$0xff]
    %v283 = vld [vmem:[%s1 + $0x710] sm:$0xff]
    %v284 = vld [vmem:[%s1 + $0x718] sm:$0xff]
    %v285 = vld [vmem:[%s1 + $0x720] sm:$0xff]
    %v286 = vld [vmem:[%s1 + $0x728] sm:$0xff]
    %v287 = vld [vmem:[%s1 + $0x730] sm:$0xff]
    %v288 = vld [vmem:[%s1 + $0x738] sm:$0xff]
    %v289 = vld [vmem:[%s1 + $0x740] sm:$0xff]
    %v290 = vld [vmem:[%s1 + $0x748] sm:$0xff]
    %v291 = vld [vmem:[%s1 + $0x750] sm:$0xff]
    %v292 = vld [vmem:[%s1 + $0x758] sm:$0xff]
    %v293 = vld [vmem:[%s1 + $0x760] sm:$0xff]
    %v294 = vld [vmem:[%s1 + $0x768] sm:$0xff]
    %v295 = vld [vmem:[%s1 + $0x770] sm:$0xff]
    %v296 = vld [vmem:[%s1 + $0x778] sm:$0xff]
    %v297 = vld [vmem:[%s1 + $0x780] sm:$0xff]
    %v298 = vld [vmem:[%s1 + $0x788] sm:$0xff]
    %v299 = vld [vmem:[%s1 + $0x790] sm:$0xff]
    %v300 = vld [vmem:[%s1 + $0x798] sm:$0xff]
    %v301 = vld [vmem:[%s1 + $0x7a0] sm:$0xff]
    %v302 = vld [vmem:[%s1 + $0x7a8] sm:$0xff]
    %v303 = vld [vmem:[%s1 + $0x7b0] sm:$0xff]
    %v304 = vld [vmem:[%s1 + $0x7b8] sm:$0xff]
    %v305 = vld [vmem:[%s1 + $0x7c0] sm:$0xff]
    %v306 = vld [vmem:[%s1 + $0x7c8] sm:$0xff]
    %v307 = vld [vmem:[%s1 + $0x7d0] sm:$0xff]
    %v308 = vld [vmem:[%s1 + $0x7d8] sm:$0xff]
    %v309 = vld [vmem:[%s1 + $0x7e0] sm:$0xff]
    %v310 = vld [vmem:[%s1 + $0x7e8] sm:$0xff]
    %v311 = vld [vmem:[%s1 + $0x7f0] sm:$0xff]
    %v312 = vld [vmem:[%s1 + $0x7f8] sm:$0xff]
    %v313 = vld [vmem:[%s1 + $0x800] sm:$0xff]
    %v314 = vld [vmem:[%s1 + $0x808] sm:$0xff]
    %v315 = vld [vmem:[%s1 + $0x810] sm:$0xff]
    %v316 = vld [vmem:[%s1 + $0x818] sm:$0xff]
    %v317 = vld [vmem:[%s1 + $0x820] sm:$0xff]
    %v318 = vld [vmem:[%s1 + $0x828] sm:$0xff]
    %v319 = vld [vmem:[%s1 + $0x830] sm:$0xff]
    %v320 = vld [vmem:[%s1 + $0x838] sm:$0xff]
    %v321 = vld [vmem:[%s1 + $0x840] sm:$0xff]
    %v322 = vld [vmem:[%s1 + $0x848] sm:$0xff]
    %v323 = vld [vmem:[%s1 + $0x850] sm:$0xff]
    %v324 = vld [vmem:[%s1 + $0x858] sm:$0xff]
    %v325 = vld [vmem:[%s1 + $0x860] sm:$0xff]
    %v326 = vld [vmem:[%s1 + $0x868] sm:$0xff]
    %v327 = vld [vmem:[%s1 + $0x870] sm:$0xff]
    %v328 = vld [vmem:[%s1 + $0x878] sm:$0xff]
    %v329 = vld [vmem:[%s1 + $0x880] sm:$0xff]
    %v330 = vld [vmem:[%s1 + $0x888] sm:$0xff]
    %v331 = vld [vmem:[%s1 + $0x890] sm:$0xff]
    %v332 = vld [vmem:[%s1 + $0x898] sm:$0xff]
    %v333 = vld [vmem:[%s1 + $0x8a0] sm:$0xff]
    %v334 = vld [vmem:[%s1 + $0x8a8] sm:$0xff]
    %v335 = vld [vmem:[%s1 + $0x8b0] sm:$0xff]
    %v336 = vld [vmem:[%s1 + $0x8b8] sm:$0xff]
    %v337 = vld [vmem:[%s1 + $0x8c0] sm:$0xff]
    %v338 = vld [vmem:[%s1 + $0x8c8] sm:$0xff]
    %v339 = vld [vmem:[%s1 + $0x8d0] sm:$0xff]
    %v340 = vld [vmem:[%s1 + $0x8d8] sm:$0xff]
    %v341 = vld [vmem:[%s1 + $0x8e0] sm:$0xff]
    %v342 = vld [vmem:[%s1 + $0x8e8] sm:$0xff]
    %v343 = vld [vmem:[%s1 + $0x8f0] sm:$0xff]
    %v344 = vld [vmem:[%s1 + $0x8f8] sm:$0xff]
    %v345 = vld [vmem:[%s1 + $0x900] sm:$0xff]
    %v346 = vld [vmem:[%s1 + $0x908] sm:$0xff]
    %v347 = vld [vmem:[%s1 + $0x910] sm:$0xff]
    %v348 = vld [vmem:[%s1 + $0x918] sm:$0xff]
    %v349 = vld [vmem:[%s1 + $0x920] sm:$0xff]
    %v350 = vld [vmem:[%s1 + $0x928] sm:$0xff]
    %v351 = vld [vmem:[%s1 + $0x930] sm:$0xff]
    %v352 = vld [vmem:[%s1 + $0x938] sm:$0xff]
    %v353 = vld [vmem:[%s1 + $0x940] sm:$0xff]
    %v354 = vld [vmem:[%s1 + $0x948] sm:$0xff]
    %v355 = vld [vmem:[%s1 + $0x950] sm:$0xff]
    %v356 = vld [vmem:[%s1 + $0x958] sm:$0xff]
    %v357 = vld [vmem:[%s1 + $0x960] sm:$0xff]
    %v358 = vld [vmem:[%s1 + $0x968] sm:$0xff]
    %v359 = vld [vmem:[%s1 + $0x970] sm:$0xff]
    %v360 = vld [vmem:[%s1 + $0x978] sm:$0xff]
    %v361 = vld [vmem:[%s1 + $0x980] sm:$0xff]
    %v362 = vld [vmem:[%s1 + $0x988] sm:$0xff]
    %v363 = vld [vmem:[%s1 + $0x990] sm:$0xff]
    %v364 = vld [vmem:[%s1 + $0x998] sm:$0xff]
    %v365 = vld [vmem:[%s1 + $0x9a0] sm:$0xff]
    %v366 = vld [vmem:[%s1 + $0x9a8] sm:$0xff]
    %v367 = vld [vmem:[%s1 + $0x9b0] sm:$0xff]
    %v368 = vld [vmem:[%s1 + $0x9b8] sm:$0xff]
    %v369 = vld [vmem:[%s1 + $0x9c0] sm:$0xff]
    %v370 = vld [vmem:[%s1 + $0x9c8] sm:$0xff]
    %v371 = vld [vmem:[%s1 + $0x9d0] sm:$0xff]
    %v372 = vld [vmem:[%s1 + $0x9d8] sm:$0xff]
    %v373 = vld [vmem:[%s1 + $0x9e0] sm:$0xff]
    %v374 = vld [vmem:[%s1 + $0x9e8] sm:$0xff]
    %v375 = vld [vmem:[%s1 + $0x9f0] sm:$0xff]
    %v376 = vld [vmem:[%s1 + $0x9f8] sm:$0xff]
    %v377 = vld [vmem:[%s1 + $0xa00] sm:$0xff]
    %v378 = vld [vmem:[%s1 + $0xa08] sm:$0xff]
    %v379 = vld [vmem:[%s1 + $0xa10] sm:$0xff]
    %v380 = vld [vmem:[%s1 + $0xa18] sm:$0xff]
    %v381 = vld [vmem:[%s1 + $0xa20] sm:$0xff]
    %v382 = vld [vmem:[%s1 + $0xa28] sm:$0xff]
    %v383 = vld [vmem:[%s1 + $0xa30] sm:$0xff]
    %v384 = vld [vmem:[%s1 + $0xa38] sm:$0xff]
    %v385 = vld [vmem:[%s1 + $0xa40] sm:$0xff]
    %v386 = vld [vmem:[%s1 + $0xa48] sm:$0xff]
    %v387 = vld [vmem:[%s1 + $0xa50] sm:$0xff]
    %v388 = vld [vmem:[%s1 + $0xa58] sm:$0xff]
    %v389 = vld [vmem:[%s1 + $0xa60] sm:$0xff]
    %v390 = vld [vmem:[%s1 + $0xa68] sm:$0xff]
    %v391 = vld [vmem:[%s1 + $0xa70] sm:$0xff]
    %v392 = vld [vmem:[%s1 + $0xa78] sm:$0xff]
    %v393 = vld [vmem:[%s1 + $0xa80] sm:$0xff]
    %v394 = vld [vmem:[%s1 + $0xa88] sm:$0xff]
    %v395 = vld [vmem:[%s1 + $0xa90] sm:$0xff]
    %v396 = vld [vmem:[%s1 + $0xa98] sm:$0xff]
    %v397 = vld [vmem:[%s1 + $0xaa0] sm:$0xff]
    %v398 = vld [vmem:[%s1 + $0xaa8] sm:$0xff]
    %v399 = vld [vmem:[%s1 + $0xab0] sm:$0xff]
    %v400 = vld [vmem:[%s1 + $0xab8] sm:$0xff]
    %v401 = vld [vmem:[%s1 + $0xac0] sm:$0xff]
    %v402 = vld [vmem:[%s1 + $0xac8] sm:$0xff]
    %v403 = vld [vmem:[%s1 + $0xad0] sm:$0xff]
    %v404 = vld [vmem:[%s1 + $0xad8] sm:$0xff]
    %v405 = vld [vmem:[%s1 + $0xae0] sm:$0xff]
    %v406 = vld [vmem:[%s1 + $0xae8] sm:$0xff]
    %v407 = vld [vmem:[%s1 + $0xaf0] sm:$0xff]
    %v408 = vld [vmem:[%s1 + $0xaf8] sm:$0xff]
    %v409 = vld [vmem:[%s1 + $0xb00] sm:$0xff]
    %v410 = vld [vmem:[%s1 + $0xb08] sm:$0xff]
    %v411 = vld [vmem:[%s1 + $0xb10] sm:$0xff]
    %v412 = vld [vmem:[%s1 + $0xb18] sm:$0xff]
    %v413 = vld [vmem:[%s1 + $0xb20] sm:$0xff]
    %v414 = vld [vmem:[%s1 + $0xb28] sm:$0xff]
    %v415 = vld [vmem:[%s1 + $0xb30] sm:$0xff]
    %v416 = vld [vmem:[%s1 + $0xb38] sm:$0xff]
    %v417 = vld [vmem:[%s1 + $0xb40] sm:$0xff]
    %v418 = vld [vmem:[%s1 + $0xb48] sm:$0xff]
    %v419 = vld [vmem:[%s1 + $0xb50] sm:$0xff]
    %v420 = vld [vmem:[%s1 + $0xb58] sm:$0xff]
    %v421 = vld [vmem:[%s1 + $0xb60] sm:$0xff]
    %v422 = vld [vmem:[%s1 + $0xb68] sm:$0xff]
    %v423 = vld [vmem:[%s1 + $0xb70] sm:$0xff]
    %v424 = vld [vmem:[%s1 + $0xb78] sm:$0xff]
    %v425 = vld [vmem:[%s1 + $0xb80] sm:$0xff]
    %v426 = vld [vmem:[%s1 + $0xb88] sm:$0xff]
    %v427 = vld [vmem:[%s1 + $0xb90] sm:$0xff]
    %v428 = vld [vmem:[%s1 + $0xb98] sm:$0xff]
    %v429 = vld [vmem:[%s1 + $0xba0] sm:$0xff]
    %v430 = vld [vmem:[%s1 + $0xba8] sm:$0xff]
    %v431 = vld [vmem:[%s1 + $0xbb0] sm:$0xff]
    %v432 = vld [vmem:[%s1 + $0xbb8] sm:$0xff]
    %v433 = vld [vmem:[%s1 + $0xbc0] sm:$0xff]
    %v434 = vld [vmem:[%s1 + $0xbc8] sm:$0xff]
    %v435 = vld [vmem:[%s1 + $0xbd0] sm:$0xff]
    %v436 = vld [vmem:[%s1 + $0xbd8] sm:$0xff]
    %v437 = vld [vmem:[%s1 + $0xbe0] sm:$0xff]
    %v438 = vld [vmem:[%s1 + $0xbe8] sm:$0xff]
    %v439 = vld [vmem:[%s1 + $0xbf0] sm:$0xff]
    %v440 = vld [vmem:[%s1 + $0xbf8] sm:$0xff]
    %v441 = vld [vmem:[%s1 + $0xc00] sm:$0xff]
    %v442 = vld [vmem:[%s1 + $0xc08] sm:$0xff]
    %v443 = vld [vmem:[%s1 + $0xc10] sm:$0xff]
    %v444 = vld [vmem:[%s1 + $0xc18] sm:$0xff]
    %v445 = vld [vmem:[%s1 + $0xc20] sm:$0xff]
    %v446 = vld [vmem:[%s1 + $0xc28] sm:$0xff]
    %v447 = vld [vmem:[%s1 + $0xc30] sm:$0xff]
    %v448 = vld [vmem:[%s1 + $0xc38] sm:$0xff]
    %v449 = vld [vmem:[%s1 + $0xc40] sm:$0xff]
    %v450 = vld [vmem:[%s1 + $0xc48] sm:$0xff]
    %v451 = vld [vmem:[%s1 + $0xc50] sm:$0xff]
    %v452 = vld [vmem:[%s1 + $0xc58] sm:$0xff]
    %v453 = vld [vmem:[%s1 + $0xc60] sm:$0xff]
    %v454 = vld [vmem:[%s1 + $0xc68] sm:$0xff]
    %v455 = vld [vmem:[%s1 + $0xc70] sm:$0xff]
    %v456 = vld [vmem:[%s1 + $0xc78] sm:$0xff]
    %v457 = vld [vmem:[%s1 + $0xc80] sm:$0xff]
    %v458 = vld [vmem:[%s1 + $0xc88] sm:$0xff]
    %v459 = vld [vmem:[%s1 + $0xc90] sm:$0xff]
    %v460 = vld [vmem:[%s1 + $0xc98] sm:$0xff]
    %v461 = vld [vmem:[%s1 + $0xca0] sm:$0xff]
    %v462 = vld [vmem:[%s1 + $0xca8] sm:$0xff]
    %v463 = vld [vmem:[%s1 + $0xcb0] sm:$0xff]
    %v464 = vld [vmem:[%s1 + $0xcb8] sm:$0xff]
    %v465 = vld [vmem:[%s1 + $0xcc0] sm:$0xff]
    %v466 = vld [vmem:[%s1 + $0xcc8] sm:$0xff]
    %v467 = vld [vmem:[%s1 + $0xcd0] sm:$0xff]
    %v468 = vld [vmem:[%s1 + $0xcd8] sm:$0xff]
    %v469 = vld [vmem:[%s1 + $0xce0] sm:$0xff]
    %v470 = vld [vmem:[%s1 + $0xce8] sm:$0xff]
    %v471 = vld [vmem:[%s1 + $0xcf0] sm:$0xff]
    %v472 = vld [vmem:[%s1 + $0xcf8] sm:$0xff]
    %v473 = vld [vmem:[%s1 + $0xd00] sm:$0xff]
    %v474 = vld [vmem:[%s1 + $0xd08] sm:$0xff]
    %v475 = vld [vmem:[%s1 + $0xd10] sm:$0xff]
    %v476 = vld [vmem:[%s1 + $0xd18] sm:$0xff]
    %v477 = vld [vmem:[%s1 + $0xd20] sm:$0xff]
    %v478 = vld [vmem:[%s1 + $0xd28] sm:$0xff]
    %v479 = vld [vmem:[%s1 + $0xd30] sm:$0xff]
    %v480 = vld [vmem:[%s1 + $0xd38] sm:$0xff]
    %v481 = vld [vmem:[%s1 + $0xd40] sm:$0xff]
    %v482 = vld [vmem:[%s1 + $0xd48] sm:$0xff]
    %v483 = vld [vmem:[%s1 + $0xd50] sm:$0xff]
    %v484 = vld [vmem:[%s1 + $0xd58] sm:$0xff]
    %v485 = vld [vmem:[%s1 + $0xd60] sm:$0xff]
    %v486 = vld [vmem:[%s1 + $0xd68] sm:$0xff]
    %v487 = vld [vmem:[%s1 + $0xd70] sm:$0xff]
    %v488 = vld [vmem:[%s1 + $0xd78] sm:$0xff]
    %v489 = vld [vmem:[%s1 + $0xd80] sm:$0xff]
    %v490 = vld [vmem:[%s1 + $0xd88] sm:$0xff]
    %v491 = vld [vmem:[%s1 + $0xd90] sm:$0xff]
    %v492 = vld [vmem:[%s1 + $0xd98] sm:$0xff]
    %v493 = vld [vmem:[%s1 + $0xda0] sm:$0xff]
    %v494 = vld [vmem:[%s1 + $0xda8] sm:$0xff]
    %v495 = vld [vmem:[%s1 + $0xdb0] sm:$0xff]
    %v496 = vld [vmem:[%s1 + $0xdb8] sm:$0xff]
    %v497 = vld [vmem:[%s1 + $0xdc0] sm:$0xff]
    %v498 = vld [vmem:[%s1 + $0xdc8] sm:$0xff]
    %v499 = vld [vmem:[%s1 + $0xdd0] sm:$0xff]
    %v500 = vld [vmem:[%s1 + $0xdd8] sm:$0xff]
    %v501 = vld [vmem:[%s1 + $0xde0] sm:$0xff]
    %v502 = vld [vmem:[%s1 + $0xde8] sm:$0xff]
    %v503 = vld [vmem:[%s1 + $0xdf0] sm:$0xff]
    %v504 = vld [vmem:[%s1 + $0xdf8] sm:$0xff]
    %v505 = vld [vmem:[%s1 + $0xe00] sm:$0xff]
    %v506 = vld [vmem:[%s1 + $0xe08] sm:$0xff]
    %v507 = vld [vmem:[%s1 + $0xe10] sm:$0xff]
    %v508 = vld [vmem:[%s1 + $0xe18] sm:$0xff]
    %v509 = vld [vmem:[%s1 + $0xe20] sm:$0xff]
    %v510 = vld [vmem:[%s1 + $0xe28] sm:$0xff]
    %v511 = vld [vmem:[%s1 + $0xe30] sm:$0xff]
    %v512 = vld [vmem:[%s1 + $0xe38] sm:$0xff]
    %v513 = vld [vmem:[%s1 + $0xe40] sm:$0xff]
    %v514 = vld [vmem:[%s1 + $0xe48] sm:$0xff]
    %v515 = vld [vmem:[%s1 + $0xe50] sm:$0xff]
    %v516 = vld [vmem:[%s1 + $0xe58] sm:$0xff]
    %v517 = vld [vmem:[%s1 + $0xe60] sm:$0xff]
    %v518 = vld [vmem:[%s1 + $0xe68] sm:$0xff]
    %v519 = vld [vmem:[%s1 + $0xe70] sm:$0xff]
    %v520 = vld [vmem:[%s1 + $0xe78] sm:$0xff]
    %v521 = vld [vmem:[%s1 + $0xe80] sm:$0xff]
    %v522 = vld [vmem:[%s1 + $0xe88] sm:$0xff]
    %v523 = vld [vmem:[%s1 + $0xe90] sm:$0xff]
    %v524 = vld [vmem:[%s1 + $0xe98] sm:$0xff]
    %v525 = vld [vmem:[%s1 + $0xea0] sm:$0xff]
    %v526 = vld [vmem:[%s1 + $0xea8] sm:$0xff]
    %v527 = vld [vmem:[%s1 + $0xeb0] sm:$0xff]
    %v528 = vld [vmem:[%s1 + $0xeb8] sm:$0xff]
    %v529 = vld [vmem:[%s1 + $0xec0] sm:$0xff]
    %v530 = vld [vmem:[%s1 + $0xec8] sm:$0xff]
    %v531 = vld [vmem:[%s1 + $0xed0] sm:$0xff]
    %v532 = vld [vmem:[%s1 + $0xed8] sm:$0xff]
    %v533 = vld [vmem:[%s1 + $0xee0] sm:$0xff]
    %v534 = vld [vmem:[%s1 + $0xee8] sm:$0xff]
    %v535 = vld [vmem:[%s1 + $0xef0] sm:$0xff]
    %v536 = vld [vmem:[%s1 + $0xef8] sm:$0xff]
    %v537 = vld [vmem:[%s1 + $0xf00] sm:$0xff]
    %v538 = vld [vmem:[%s1 + $0xf08] sm:$0xff]
    %v539 = vld [vmem:[%s1 + $0xf10] sm:$0xff]
    %v540 = vld [vmem:[%s1 + $0xf18] sm:$0xff]
    %v541 = vld [vmem:[%s1 + $0xf20] sm:$0xff]
    %v542 = vld [vmem:[%s1 + $0xf28] sm:$0xff]
    %v543 = vld [vmem:[%s1 + $0xf30] sm:$0xff]
    %v544 = vld [vmem:[%s1 + $0xf38] sm:$0xff]
    %v545 = vld [vmem:[%s1 + $0xf40] sm:$0xff]
    %v546 = vld [vmem:[%s1 + $0xf48] sm:$0xff]
    %v547 = vld [vmem:[%s1 + $0xf50] sm:$0xff]
    %v548 = vld [vmem:[%s1 + $0xf58] sm:$0xff]
    %v549 = vld [vmem:[%s1 + $0xf60] sm:$0xff]
    %v550 = vld [vmem:[%s1 + $0xf68] sm:$0xff]
    %v551 = vld [vmem:[%s1 + $0xf70] sm:$0xff]
    %v552 = vld [vmem:[%s1 + $0xf78] sm:$0xff]
    %v553 = vld [vmem:[%s1 + $0xf80] sm:$0xff]
    %v554 = vld [vmem:[%s1 + $0xf88] sm:$0xff]
    %v555 = vld [vmem:[%s1 + $0xf90] sm:$0xff]
    %v556 = vld [vmem:[%s1 + $0xf98] sm:$0xff]
    %v557 = vld [vmem:[%s1 + $0xfa0] sm:$0xff]
    %v558 = vld [vmem:[%s1 + $0xfa8] sm:$0xff]
    %v559 = vld [vmem:[%s1 + $0xfb0] sm:$0xff]
    %v560 = vld [vmem:[%s1 + $0xfb8] sm:$0xff]
    %v561 = vld [vmem:[%s1 + $0xfc0] sm:$0xff]
    %v562 = vld [vmem:[%s1 + $0xfc8] sm:$0xff]
    %v563 = vld [vmem:[%s1 + $0xfd0] sm:$0xff]
    %v564 = vld [vmem:[%s1 + $0xfd8] sm:$0xff]
    %v565 = vld [vmem:[%s1 + $0xfe0] sm:$0xff]
    %v566 = vld [vmem:[%s1 + $0xfe8] sm:$0xff]
    %v567 = vld [vmem:[%s1 + $0xff0] sm:$0xff]
    %v568 = vld [vmem:[%s1 + $0xff8] sm:$0xff]
    %v569 = vld [vmem:[%s1 + $0x1000] sm:$0xff]
    %v570 = vld [vmem:[%s1 + $0x1008] sm:$0xff]
    %v571 = vld [vmem:[%s1 + $0x1010] sm:$0xff]
    %v572 = vld [vmem:[%s1 + $0x1018] sm:$0xff]
    %v573 = vld [vmem:[%s1 + $0x1020] sm:$0xff]
    %v574 = vld [vmem:[%s1 + $0x1028] sm:$0xff]
    %v575 = vld [vmem:[%s1 + $0x1030] sm:$0xff]
    %v576 = vld [vmem:[%s1 + $0x1038] sm:$0xff]
    %v577 = vld [vmem:[%s1 + $0x1040] sm:$0xff]
    %v578 = vld [vmem:[%s1 + $0x1048] sm:$0xff]
    %v579 = vld [vmem:[%s1 + $0x1050] sm:$0xff]
    %v580 = vld [vmem:[%s1 + $0x1058] sm:$0xff]
    %v581 = vld [vmem:[%s1 + $0x1060] sm:$0xff]
    %v582 = vld [vmem:[%s1 + $0x1068] sm:$0xff]
    %v583 = vld [vmem:[%s1 + $0x1070] sm:$0xff]
    %v584 = vld [vmem:[%s1 + $0x1078] sm:$0xff]
    %v585 = vld [vmem:[%s1 + $0x1080] sm:$0xff]
    %v586 = vld [vmem:[%s1 + $0x1088] sm:$0xff]
    %v587 = vld [vmem:[%s1 + $0x1090] sm:$0xff]
    %v588 = vld [vmem:[%s1 + $0x1098] sm:$0xff]
    %v589 = vld [vmem:[%s1 + $0x10a0] sm:$0xff]
    %v590 = vld [vmem:[%s1 + $0x10a8] sm:$0xff]
    %v591 = vld [vmem:[%s1 + $0x10b0] sm:$0xff]
    %v592 = vld [vmem:[%s1 + $0x10b8] sm:$0xff]
    %v593 = vld [vmem:[%s1 + $0x10c0] sm:$0xff]
    %v594 = vld [vmem:[%s1 + $0x10c8] sm:$0xff]
    %v595 = vld [vmem:[%s1 + $0x10d0] sm:$0xff]
    %v596 = vld [vmem:[%s1 + $0x10d8] sm:$0xff]
    %v597 = vld [vmem:[%s1 + $0x10e0] sm:$0xff]
    %v598 = vld [vmem:[%s1 + $0x10e8] sm:$0xff]
    %v599 = vld [vmem:[%s1 + $0x10f0] sm:$0xff]
    %v600 = vld [vmem:[%s1 + $0x10f8] sm:$0xff]
    %v601 = vld [vmem:[%s1 + $0x1100] sm:$0xff]
    %v602 = vld [vmem:[%s1 + $0x1108] sm:$0xff]
    %v603 = vld [vmem:[%s1 + $0x1110] sm:$0xff]
    %v604 = vld [vmem:[%s1 + $0x1118] sm:$0xff]
    %v605 = vld [vmem:[%s1 + $0x1120] sm:$0xff]
    %v606 = vld [vmem:[%s1 + $0x1128] sm:$0xff]
    %v607 = vld [vmem:[%s1 + $0x1130] sm:$0xff]
    %v608 = vld [vmem:[%s1 + $0x1138] sm:$0xff]
    %v609 = vld [vmem:[%s1 + $0x1140] sm:$0xff]
    %v610 = vld [vmem:[%s1 + $0x1148] sm:$0xff]
    %v611 = vld [vmem:[%s1 + $0x1150] sm:$0xff]
    %v612 = vld [vmem:[%s1 + $0x1158] sm:$0xff]
    %v613 = vld [vmem:[%s1 + $0x1160] sm:$0xff]
    %v614 = vld [vmem:[%s1 + $0x1168] sm:$0xff]
    %v615 = vld [vmem:[%s1 + $0x1170] sm:$0xff]
    %v616 = vld [vmem:[%s1 + $0x1178] sm:$0xff]
    %v617 = vld [vmem:[%s1 + $0x1180] sm:$0xff]
    %v618 = vld [vmem:[%s1 + $0x1188] sm:$0xff]
    %v619 = vld [vmem:[%s1 + $0x1190] sm:$0xff]
    %v620 = vld [vmem:[%s1 + $0x1198] sm:$0xff]
    %v621 = vld [vmem:[%s1 + $0x11a0] sm:$0xff]
    %v622 = vld [vmem:[%s1 + $0x11a8] sm:$0xff]
    %v623 = vld [vmem:[%s1 + $0x11b0] sm:$0xff]
    %v624 = vld [vmem:[%s1 + $0x11b8] sm:$0xff]
    %v625 = vld [vmem:[%s1 + $0x11c0] sm:$0xff]
    %v626 = vld [vmem:[%s1 + $0x11c8] sm:$0xff]
    %v627 = vld [vmem:[%s1 + $0x11d0] sm:$0xff]
    %v628 = vld [vmem:[%s1 + $0x11d8] sm:$0xff]
    %v629 = vld [vmem:[%s1 + $0x11e0] sm:$0xff]
    %v630 = vld [vmem:[%s1 + $0x11e8] sm:$0xff]
    %v631 = vld [vmem:[%s1 + $0x11f0] sm:$0xff]
    %v632 = vld [vmem:[%s1 + $0x11f8] sm:$0xff]
    %v633 = vld [vmem:[%s1 + $0x1200] sm:$0xff]
    %v634 = vld [vmem:[%s1 + $0x1208] sm:$0xff]
    %v635 = vld [vmem:[%s1 + $0x1210] sm:$0xff]
    %v636 = vld [vmem:[%s1 + $0x1218] sm:$0xff]
    %v637 = vld [vmem:[%s1 + $0x1220] sm:$0xff]
    %v638 = vld [vmem:[%s1 + $0x1228] sm:$0xff]
    %v639 = vld [vmem:[%s1 + $0x1230] sm:$0xff]
    %v640 = vld [vmem:[%s1 + $0x1238] sm:$0xff]
    %v641 = vld [vmem:[%s1 + $0x1240] sm:$0xff]
    %v642 = vld [vmem:[%s1 + $0x1248] sm:$0xff]
    %v643 = vld [vmem:[%s1 + $0x1250] sm:$0xff]
    %v644 = vld [vmem:[%s1 + $0x1258] sm:$0xff]
    %v645 = vld [vmem:[%s1 + $0x1260] sm:$0xff]
    %v646 = vld [vmem:[%s1 + $0x1268] sm:$0xff]
    %v647 = vld [vmem:[%s1 + $0x1270] sm:$0xff]
    %v648 = vld [vmem:[%s1 + $0x1278] sm:$0xff]
    %v649 = vld [vmem:[%s1 + $0x1280] sm:$0xff]
    %v650 = vld [vmem:[%s1 + $0x1288] sm:$0xff]
    %v651 = vld [vmem:[%s1 + $0x1290] sm:$0xff]
    %v652 = vld [vmem:[%s1 + $0x1298] sm:$0xff]
    %v653 = vld [vmem:[%s1 + $0x12a0] sm:$0xff]
    %v654 = vld [vmem:[%s1 + $0x12a8] sm:$0xff]
    %v655 = vld [vmem:[%s1 + $0x12b0] sm:$0xff]
    %v656 = vld [vmem:[%s1 + $0x12b8] sm:$0xff]
    %v657 = vld [vmem:[%s1 + $0x12c0] sm:$0xff]
    %v658 = vld [vmem:[%s1 + $0x12c8] sm:$0xff]
    %v659 = vld [vmem:[%s1 + $0x12d0] sm:$0xff]
    %v660 = vld [vmem:[%s1 + $0x12d8] sm:$0xff]
    %v661 = vld [vmem:[%s1 + $0x12e0] sm:$0xff]
    %v662 = vld [vmem:[%s1 + $0x12e8] sm:$0xff]
    %v663 = vld [vmem:[%s1 + $0x12f0] sm:$0xff]
    %v664 = vld [vmem:[%s1 + $0x12f8] sm:$0xff]
    %v665 = vld [vmem:[%s1 + $0x1300] sm:$0xff]
    %v666 = vld [vmem:[%s1 + $0x1308] sm:$0xff]
    %v667 = vld [vmem:[%s1 + $0x1310] sm:$0xff]
    %v668 = vld [vmem:[%s1 + $0x1318] sm:$0xff]
    %v669 = vld [vmem:[%s1 + $0x1320] sm:$0xff]
    %v670 = vld [vmem:[%s1 + $0x1328] sm:$0xff]
    %v671 = vld [vmem:[%s1 + $0x1330] sm:$0xff]
    %v672 = vld [vmem:[%s1 + $0x1338] sm:$0xff]
    %v673 = vld [vmem:[%s1 + $0x1340] sm:$0xff]
    %v674 = vld [vmem:[%s1 + $0x1348] sm:$0xff]
    %v675 = vld [vmem:[%s1 + $0x1350] sm:$0xff]
    %v676 = vld [vmem:[%s1 + $0x1358] sm:$0xff]
    %v677 = vld [vmem:[%s1 + $0x1360] sm:$0xff]
    %v678 = vld [vmem:[%s1 + $0x1368] sm:$0xff]
    %v679 = vld [vmem:[%s1 + $0x1370] sm:$0xff]
    %v680 = vld [vmem:[%s1 + $0x1378] sm:$0xff]
    %v681 = vld [vmem:[%s1 + $0x1380] sm:$0xff]
    %v682 = vld [vmem:[%s1 + $0x1388] sm:$0xff]
    %v683 = vld [vmem:[%s1 + $0x1390] sm:$0xff]
    %v684 = vld [vmem:[%s1 + $0x1398] sm:$0xff]
    %v685 = vld [vmem:[%s1 + $0x13a0] sm:$0xff]
    %v686 = vld [vmem:[%s1 + $0x13a8] sm:$0xff]
    %v687 = vld [vmem:[%s1 + $0x13b0] sm:$0xff]
    %v688 = vld [vmem:[%s1 + $0x13b8] sm:$0xff]
    %v689 = vld [vmem:[%s1 + $0x13c0] sm:$0xff]
    %v690 = vld [vmem:[%s1 + $0x13c8] sm:$0xff]
    %v691 = vld [vmem:[%s1 + $0x13d0] sm:$0xff]
    %v692 = vld [vmem:[%s1 + $0x13d8] sm:$0xff]
    %v693 = vld [vmem:[%s1 + $0x13e0] sm:$0xff]
    %v694 = vld [vmem:[%s1 + $0x13e8] sm:$0xff]
    %v695 = vld [vmem:[%s1 + $0x13f0] sm:$0xff]
    %v696 = vld [vmem:[%s1 + $0x13f8] sm:$0xff]
    %v697 = vld [vmem:[%s1 + $0x1400] sm:$0xff]
    %v698 = vld [vmem:[%s1 + $0x1408] sm:$0xff]
    %v699 = vld [vmem:[%s1 + $0x1410] sm:$0xff]
    %v700 = vld [vmem:[%s1 + $0x1418] sm:$0xff]
    %v701 = vld [vmem:[%s1 + $0x1420] sm:$0xff]
    %v702 = vld [vmem:[%s1 + $0x1428] sm:$0xff]
    %v703 = vld [vmem:[%s1 + $0x1430] sm:$0xff]
    %v704 = vld [vmem:[%s1 + $0x1438] sm:$0xff]
    %v705 = vld [vmem:[%s1 + $0x1440] sm:$0xff]
    %v706 = vld [vmem:[%s1 + $0x1448] sm:$0xff]
    %v707 = vld [vmem:[%s1 + $0x1450] sm:$0xff]
    %v708 = vld [vmem:[%s1 + $0x1458] sm:$0xff]
    %v709 = vld [vmem:[%s1 + $0x1460] sm:$0xff]
    %v710 = vld [vmem:[%s1 + $0x1468] sm:$0xff]
    %v711 = vld [vmem:[%s1 + $0x1470] sm:$0xff]
    %v712 = vld [vmem:[%s1 + $0x1478] sm:$0xff]
    %v713 = vld [vmem:[%s1 + $0x1480] sm:$0xff]
    %v714 = vld [vmem:[%s1 + $0x1488] sm:$0xff]
    %v715 = vld [vmem:[%s1 + $0x1490] sm:$0xff]
    %v716 = vld [vmem:[%s1 + $0x1498] sm:$0xff]
    %v717 = vld [vmem:[%s1 + $0x14a0] sm:$0xff]
    %v718 = vld [vmem:[%s1 + $0x14a8] sm:$0xff]
    %v719 = vld [vmem:[%s1 + $0x14b0] sm:$0xff]
    %v720 = vld [vmem:[%s1 + $0x14b8] sm:$0xff]
    %v721 = vld [vmem:[%s1 + $0x14c0] sm:$0xff]
    %v722 = vld [vmem:[%s1 + $0x14c8] sm:$0xff]
    %v723 = vld [vmem:[%s1 + $0x14d0] sm:$0xff]
    %v724 = vld [vmem:[%s1 + $0x14d8] sm:$0xff]
    %v725 = vld [vmem:[%s1 + $0x14e0] sm:$0xff]
    %v726 = vld [vmem:[%s1 + $0x14e8] sm:$0xff]
    %v727 = vld [vmem:[%s1 + $0x14f0] sm:$0xff]
    %v728 = vld [vmem:[%s1 + $0x14f8] sm:$0xff]
    %v729 = vld [vmem:[%s1 + $0x1500] sm:$0xff]
    %v730 = vld [vmem:[%s1 + $0x1508] sm:$0xff]
    %v731 = vld [vmem:[%s1 + $0x1510] sm:$0xff]
    %v732 = vld [vmem:[%s1 + $0x1518] sm:$0xff]
    %v733 = vld [vmem:[%s1 + $0x1520] sm:$0xff]
    %v734 = vld [vmem:[%s1 + $0x1528] sm:$0xff]
    %v735 = vld [vmem:[%s1 + $0x1530] sm:$0xff]
    %v736 = vld [vmem:[%s1 + $0x1538] sm:$0xff]
    %v737 = vld [vmem:[%s1 + $0x1540] sm:$0xff]
    %v738 = vld [vmem:[%s1 + $0x1548] sm:$0xff]
    %v739 = vld [vmem:[%s1 + $0x1550] sm:$0xff]
    %v740 = vld [vmem:[%s1 + $0x1558] sm:$0xff]
    %v741 = vld [vmem:[%s1 + $0x1560] sm:$0xff]
    %v742 = vld [vmem:[%s1 + $0x1568] sm:$0xff]
    %v743 = vld [vmem:[%s1 + $0x1570] sm:$0xff]
    %v744 = vld [vmem:[%s1 + $0x1578] sm:$0xff]
    %v745 = vld [vmem:[%s1 + $0x1580] sm:$0xff]
    %v746 = vld [vmem:[%s1 + $0x1588] sm:$0xff]
    %v747 = vld [vmem:[%s1 + $0x1590] sm:$0xff]
    %v748 = vld [vmem:[%s1 + $0x1598] sm:$0xff]
    %v749 = vld [vmem:[%s1 + $0x15a0] sm:$0xff]
    %v750 = vld [vmem:[%s1 + $0x15a8] sm:$0xff]
    %v751 = vld [vmem:[%s1 + $0x15b0] sm:$0xff]
    %v752 = vld [vmem:[%s1 + $0x15b8] sm:$0xff]
    %v753 = vld [vmem:[%s1 + $0x15c0] sm:$0xff]
    %v754 = vld [vmem:[%s1 + $0x15c8] sm:$0xff]
    %v755 = vld [vmem:[%s1 + $0x15d0] sm:$0xff]
    %v756 = vld [vmem:[%s1 + $0x15d8] sm:$0xff]
    %v757 = vld [vmem:[%s1 + $0x15e0] sm:$0xff]
    %v758 = vld [vmem:[%s1 + $0x15e8] sm:$0xff]
    %v759 = vld [vmem:[%s1 + $0x15f0] sm:$0xff]
    %v760 = vld [vmem:[%s1 + $0x15f8] sm:$0xff]
    %v761 = vld [vmem:[%s1 + $0x1600] sm:$0xff]
    %v762 = vld [vmem:[%s1 + $0x1608] sm:$0xff]
    %v763 = vld [vmem:[%s1 + $0x1610] sm:$0xff]
    %v764 = vld [vmem:[%s1 + $0x1618] sm:$0xff]
    %v765 = vld [vmem:[%s1 + $0x1620] sm:$0xff]
    %v766 = vld [vmem:[%s1 + $0x1628] sm:$0xff]
    %v767 = vld [vmem:[%s1 + $0x1630] sm:$0xff]
    %v768 = vld [vmem:[%s1 + $0x1638] sm:$0xff]
    %v769 = vld [vmem:[%s1 + $0x1640] sm:$0xff]
    %v770 = vld [vmem:[%s1 + $0x1648] sm:$0xff]
    %v771 = vld [vmem:[%s1 + $0x1650] sm:$0xff]
    %v772 = vld [vmem:[%s1 + $0x1658] sm:$0xff]
    %v773 = vld [vmem:[%s1 + $0x1660] sm:$0xff]
    %v774 = vld [vmem:[%s1 + $0x1668] sm:$0xff]
    %v775 = vld [vmem:[%s1 + $0x1670] sm:$0xff]
    %v776 = vld [vmem:[%s1 + $0x1678] sm:$0xff]
    %v777 = vld [vmem:[%s1 + $0x1680] sm:$0xff]
    %v778 = vld [vmem:[%s1 + $0x1688] sm:$0xff]
    %v779 = vld [vmem:[%s1 + $0x1690] sm:$0xff]
    %v780 = vld [vmem:[%s1 + $0x1698] sm:$0xff]
    %v781 = vld [vmem:[%s1 + $0x16a0] sm:$0xff]
    %v782 = vld [vmem:[%s1 + $0x16a8] sm:$0xff]
    %v783 = vld [vmem:[%s1 + $0x16b0] sm:$0xff]
    %v784 = vld [vmem:[%s1 + $0x16b8] sm:$0xff]
    %v785 = vld [vmem:[%s1 + $0x16c0] sm:$0xff]
    %v786 = vld [vmem:[%s1 + $0x16c8] sm:$0xff]
    %v787 = vld [vmem:[%s1 + $0x16d0] sm:$0xff]
    %v788 = vld [vmem:[%s1 + $0x16d8] sm:$0xff]
    %v789 = vld [vmem:[%s1 + $0x16e0] sm:$0xff]
    %v790 = vld [vmem:[%s1 + $0x16e8] sm:$0xff]
    %v791 = vld [vmem:[%s1 + $0x16f0] sm:$0xff]
    %v792 = vld [vmem:[%s1 + $0x16f8] sm:$0xff]
    %v793 = vld [vmem:[%s1 + $0x1700] sm:$0xff]
    %v794 = vld [vmem:[%s1 + $0x1708] sm:$0xff]
    %v795 = vld [vmem:[%s1 + $0x1710] sm:$0xff]
    %v796 = vld [vmem:[%s1 + $0x1718] sm:$0xff]
    %v797 = vld [vmem:[%s1 + $0x1720] sm:$0xff]
    %v798 = vld [vmem:[%s1 + $0x1728] sm:$0xff]
    %v799 = vld [vmem:[%s1 + $0x1730] sm:$0xff]
    %v800 = vld [vmem:[%s1 + $0x1738] sm:$0xff]
    %v801 = vld [vmem:[%s1 + $0x1740] sm:$0xff]
    %v802 = vld [vmem:[%s1 + $0x1748] sm:$0xff]
    %v803 = vld [vmem:[%s1 + $0x1750] sm:$0xff]
    %v804 = vld [vmem:[%s1 + $0x1758] sm:$0xff]
    %v805 = vld [vmem:[%s1 + $0x1760] sm:$0xff]
    %v806 = vld [vmem:[%s1 + $0x1768] sm:$0xff]
    %v807 = vld [vmem:[%s1 + $0x1770] sm:$0xff]
    %v808 = vld [vmem:[%s1 + $0x1778] sm:$0xff]
    %v809 = vld [vmem:[%s1 + $0x1780] sm:$0xff]
    %v810 = vld [vmem:[%s1 + $0x1788] sm:$0xff]
    %v811 = vld [vmem:[%s1 + $0x1790] sm:$0xff]
    %v812 = vld [vmem:[%s1 + $0x1798] sm:$0xff]
    %v813 = vld [vmem:[%s1 + $0x17a0] sm:$0xff]
    %v814 = vld [vmem:[%s1 + $0x17a8] sm:$0xff]
    %v815 = vld [vmem:[%s1 + $0x17b0] sm:$0xff]
    %v816 = vld [vmem:[%s1 + $0x17b8] sm:$0xff]
    %v817 = vld [vmem:[%s1 + $0x17c0] sm:$0xff]
    %v818 = vld [vmem:[%s1 + $0x17c8] sm:$0xff]
    %v819 = vld [vmem:[%s1 + $0x17d0] sm:$0xff]
    %v820 = vld [vmem:[%s1 + $0x17d8] sm:$0xff]
    %v821 = vld [vmem:[%s1 + $0x17e0] sm:$0xff]
    %v822 = vld [vmem:[%s1 + $0x17e8] sm:$0xff]
    %v823 = vld [vmem:[%s1 + $0x17f0] sm:$0xff]
    %v824 = vld [vmem:[%s1 + $0x17f8] sm:$0xff]
    %v825 = vld [vmem:[%s1 + $0x1800] sm:$0xff]
    %v826 = vld [vmem:[%s1 + $0x1808] sm:$0xff]
    %v827 = vld [vmem:[%s1 + $0x1810] sm:$0xff]
    %v828 = vld [vmem:[%s1 + $0x1818] sm:$0xff]
    %v829 = vld [vmem:[%s1 + $0x1820] sm:$0xff]
    %v830 = vld [vmem:[%s1 + $0x1828] sm:$0xff]
    %v831 = vld [vmem:[%s1 + $0x1830] sm:$0xff]
    %v832 = vld [vmem:[%s1 + $0x1838] sm:$0xff]
    %v833 = vld [vmem:[%s1 + $0x1840] sm:$0xff]
    %v834 = vld [vmem:[%s1 + $0x1848] sm:$0xff]
    %v835 = vld [vmem:[%s1 + $0x1850] sm:$0xff]
    %v836 = vld [vmem:[%s1 + $0x1858] sm:$0xff]
    %v837 = vld [vmem:[%s1 + $0x1860] sm:$0xff]
    %v838 = vld [vmem:[%s1 + $0x1868] sm:$0xff]
    %v839 = vld [vmem:[%s1 + $0x1870] sm:$0xff]
    %v840 = vld [vmem:[%s1 + $0x1878] sm:$0xff]
    %v841 = vld [vmem:[%s1 + $0x1880] sm:$0xff]
    %v842 = vld [vmem:[%s1 + $0x1888] sm:$0xff]
    %v843 = vld [vmem:[%s1 + $0x1890] sm:$0xff]
    %v844 = vld [vmem:[%s1 + $0x1898] sm:$0xff]
    %v845 = vld [vmem:[%s1 + $0x18a0] sm:$0xff]
    %v846 = vld [vmem:[%s1 + $0x18a8] sm:$0xff]
    %v847 = vld [vmem:[%s1 + $0x18b0] sm:$0xff]
    %v848 = vld [vmem:[%s1 + $0x18b8] sm:$0xff]
    %v849 = vld [vmem:[%s1 + $0x18c0] sm:$0xff]
    %v850 = vld [vmem:[%s1 + $0x18c8] sm:$0xff]
    %v851 = vld [vmem:[%s1 + $0x18d0] sm:$0xff]
    %v852 = vld [vmem:[%s1 + $0x18d8] sm:$0xff]
    %v853 = vld [vmem:[%s1 + $0x18e0] sm:$0xff]
    %v854 = vld [vmem:[%s1 + $0x18e8] sm:$0xff]
    %v855 = vld [vmem:[%s1 + $0x18f0] sm:$0xff]
    %v856 = vld [vmem:[%s1 + $0x18f8] sm:$0xff]
    %v857 = vld [vmem:[%s1 + $0x1900] sm:$0xff]
    %v858 = vld [vmem:[%s1 + $0x1908] sm:$0xff]
    %v859 = vld [vmem:[%s1 + $0x1910] sm:$0xff]
    %v860 = vld [vmem:[%s1 + $0x1918] sm:$0xff]
    %v861 = vld [vmem:[%s1 + $0x1920] sm:$0xff]
    %v862 = vld [vmem:[%s1 + $0x1928] sm:$0xff]
    %v863 = vld [vmem:[%s1 + $0x1930] sm:$0xff]
    %v864 = vld [vmem:[%s1 + $0x1938] sm:$0xff]
    %v865 = vld [vmem:[%s1 + $0x1940] sm:$0xff]
    %v866 = vld [vmem:[%s1 + $0x1948] sm:$0xff]
    %v867 = vld [vmem:[%s1 + $0x1950] sm:$0xff]
    %v868 = vld [vmem:[%s1 + $0x1958] sm:$0xff]
    %v869 = vld [vmem:[%s1 + $0x1960] sm:$0xff]
    %v870 = vld [vmem:[%s1 + $0x1968] sm:$0xff]
    %v871 = vld [vmem:[%s1 + $0x1970] sm:$0xff]
    %v872 = vld [vmem:[%s1 + $0x1978] sm:$0xff]
    %v873 = vld [vmem:[%s1 + $0x1980] sm:$0xff]
    %v874 = vld [vmem:[%s1 + $0x1988] sm:$0xff]
    %v875 = vld [vmem:[%s1 + $0x1990] sm:$0xff]
    %v876 = vld [vmem:[%s1 + $0x1998] sm:$0xff]
    %v877 = vld [vmem:[%s1 + $0x19a0] sm:$0xff]
    %v878 = vld [vmem:[%s1 + $0x19a8] sm:$0xff]
    %v879 = vld [vmem:[%s1 + $0x19b0] sm:$0xff]
    %v880 = vld [vmem:[%s1 + $0x19b8] sm:$0xff]
    %v881 = vld [vmem:[%s1 + $0x19c0] sm:$0xff]
    %v882 = vld [vmem:[%s1 + $0x19c8] sm:$0xff]
    %v883 = vld [vmem:[%s1 + $0x19d0] sm:$0xff]
    %v884 = vld [vmem:[%s1 + $0x19d8] sm:$0xff]
    %v885 = vld [vmem:[%s1 + $0x19e0] sm:$0xff]
    %v886 = vld [vmem:[%s1 + $0x19e8] sm:$0xff]
    %v887 = vld [vmem:[%s1 + $0x19f0] sm:$0xff]
    %v888 = vld [vmem:[%s1 + $0x19f8] sm:$0xff]
    %v889 = vld [vmem:[%s1 + $0x1a00] sm:$0xff]
    %v890 = vld [vmem:[%s1 + $0x1a08] sm:$0xff]
    %v891 = vld [vmem:[%s1 + $0x1a10] sm:$0xff]
    %v892 = vld [vmem:[%s1 + $0x1a18] sm:$0xff]
    %v893 = vld [vmem:[%s1 + $0x1a20] sm:$0xff]
    %v894 = vld [vmem:[%s1 + $0x1a28] sm:$0xff]
    %v895 = vld [vmem:[%s1 + $0x1a30] sm:$0xff]
    %v896 = vld [vmem:[%s1 + $0x1a38] sm:$0xff]
    %v897 = vld [vmem:[%s1 + $0x1a40] sm:$0xff]
    %v898 = vld [vmem:[%s1 + $0x1a48] sm:$0xff]
    %v899 = vld [vmem:[%s1 + $0x1a50] sm:$0xff]
    %v900 = vld [vmem:[%s1 + $0x1a58] sm:$0xff]
    %v901 = vld [vmem:[%s1 + $0x1a60] sm:$0xff]
    %v902 = vld [vmem:[%s1 + $0x1a68] sm:$0xff]
    %v903 = vld [vmem:[%s1 + $0x1a70] sm:$0xff]
    %v904 = vld [vmem:[%s1 + $0x1a78] sm:$0xff]
    %v905 = vld [vmem:[%s1 + $0x1a80] sm:$0xff]
    %v906 = vld [vmem:[%s1 + $0x1a88] sm:$0xff]
    %v907 = vld [vmem:[%s1 + $0x1a90] sm:$0xff]
    %v908 = vld [vmem:[%s1 + $0x1a98] sm:$0xff]
    %v909 = vld [vmem:[%s1 + $0x1aa0] sm:$0xff]
    %v910 = vld [vmem:[%s1 + $0x1aa8] sm:$0xff]
    %v911 = vld [vmem:[%s1 + $0x1ab0] sm:$0xff]
    %v912 = vld [vmem:[%s1 + $0x1ab8] sm:$0xff]
    %v913 = vld [vmem:[%s1 + $0x1ac0] sm:$0xff]
    %v914 = vld [vmem:[%s1 + $0x1ac8] sm:$0xff]
    %v915 = vld [vmem:[%s1 + $0x1ad0] sm:$0xff]
    %v916 = vld [vmem:[%s1 + $0x1ad8] sm:$0xff]
    %v917 = vld [vmem:[%s1 + $0x1ae0] sm:$0xff]
    %v918 = vld [vmem:[%s1 + $0x1ae8] sm:$0xff]
    %v919 = vld [vmem:[%s1 + $0x1af0] sm:$0xff]
    %v920 = vld [vmem:[%s1 + $0x1af8] sm:$0xff]
    %v921 = vld [vmem:[%s1 + $0x1b00] sm:$0xff]
    %v922 = vld [vmem:[%s1 + $0x1b08] sm:$0xff]
    %v923 = vld [vmem:[%s1 + $0x1b10] sm:$0xff]
    %v924 = vld [vmem:[%s1 + $0x1b18] sm:$0xff]
    %v925 = vld [vmem:[%s1 + $0x1b20] sm:$0xff]
    %v926 = vld [vmem:[%s1 + $0x1b28] sm:$0xff]
    %v927 = vld [vmem:[%s1 + $0x1b30] sm:$0xff]
    %v928 = vld [vmem:[%s1 + $0x1b38] sm:$0xff]
    %v929 = vld [vmem:[%s1 + $0x1b40] sm:$0xff]
    %v930 = vld [vmem:[%s1 + $0x1b48] sm:$0xff]
    %v931 = vld [vmem:[%s1 + $0x1b50] sm:$0xff]
    %v932 = vld [vmem:[%s1 + $0x1b58] sm:$0xff]
    %v933 = vld [vmem:[%s1 + $0x1b60] sm:$0xff]
    %v934 = vld [vmem:[%s1 + $0x1b68] sm:$0xff]
    %v935 = vld [vmem:[%s1 + $0x1b70] sm:$0xff]
    %v936 = vld [vmem:[%s1 + $0x1b78] sm:$0xff]
    %v937 = vld [vmem:[%s1 + $0x1b80] sm:$0xff]
    %v938 = vld [vmem:[%s1 + $0x1b88] sm:$0xff]
    %v939 = vld [vmem:[%s1 + $0x1b90] sm:$0xff]
    %v940 = vld [vmem:[%s1 + $0x1b98] sm:$0xff]
    %v941 = vld [vmem:[%s1 + $0x1ba0] sm:$0xff]
    %v942 = vld [vmem:[%s1 + $0x1ba8] sm:$0xff]
    %v943 = vld [vmem:[%s1 + $0x1bb0] sm:$0xff]
    %v944 = vld [vmem:[%s1 + $0x1bb8] sm:$0xff]
    %v945 = vld [vmem:[%s1 + $0x1bc0] sm:$0xff]
    %v946 = vld [vmem:[%s1 + $0x1bc8] sm:$0xff]
    %v947 = vld [vmem:[%s1 + $0x1bd0] sm:$0xff]
    %v948 = vld [vmem:[%s1 + $0x1bd8] sm:$0xff]
    %v949 = vld [vmem:[%s1 + $0x1be0] sm:$0xff]
    %v950 = vld [vmem:[%s1 + $0x1be8] sm:$0xff]
    %v951 = vld [vmem:[%s1 + $0x1bf0] sm:$0xff]
    %v952 = vld [vmem:[%s1 + $0x1bf8] sm:$0xff]
    %v953 = vld [vmem:[%s1 + $0x1c00] sm:$0xff]
    %v954 = vld [vmem:[%s1 + $0x1c08] sm:$0xff]
    %v955 = vld [vmem:[%s1 + $0x1c10] sm:$0xff]
    %v956 = vld [vmem:[%s1 + $0x1c18] sm:$0xff]
    %v957 = vld [vmem:[%s1 + $0x1c20] sm:$0xff]
    %v958 = vld [vmem:[%s1 + $0x1c28] sm:$0xff]
    %v959 = vld [vmem:[%s1 + $0x1c30] sm:$0xff]
    %v960 = vld [vmem:[%s1 + $0x1c38] sm:$0xff]
    %v961 = vld [vmem:[%s1 + $0x1c40] sm:$0xff]
    %v962 = vld [vmem:[%s1 + $0x1c48] sm:$0xff]
    %v963 = vld [vmem:[%s1 + $0x1c50] sm:$0xff]
    %v964 = vld [vmem:[%s1 + $0x1c58] sm:$0xff]
    %v965 = vld [vmem:[%s1 + $0x1c60] sm:$0xff]
    %v966 = vld [vmem:[%s1 + $0x1c68] sm:$0xff]
    %v967 = vld [vmem:[%s1 + $0x1c70] sm:$0xff]
    %v968 = vld [vmem:[%s1 + $0x1c78] sm:$0xff]
    %v969 = vld [vmem:[%s1 + $0x1c80] sm:$0xff]
    %v970 = vld [vmem:[%s1 + $0x1c88] sm:$0xff]
    %v971 = vld [vmem:[%s1 + $0x1c90] sm:$0xff]
    %v972 = vld [vmem:[%s1 + $0x1c98] sm:$0xff]
    %v973 = vld [vmem:[%s1 + $0x1ca0] sm:$0xff]
    %v974 = vld [vmem:[%s1 + $0x1ca8] sm:$0xff]
    %v975 = vld [vmem:[%s1 + $0x1cb0] sm:$0xff]
    %v976 = vld [vmem:[%s1 + $0x1cb8] sm:$0xff]
    %v977 = vld [vmem:[%s1 + $0x1cc0] sm:$0xff]
    %v978 = vld [vmem:[%s1 + $0x1cc8] sm:$0xff]
    %v979 = vld [vmem:[%s1 + $0x1cd0] sm:$0xff]
    %v980 = vld [vmem:[%s1 + $0x1cd8] sm:$0xff]
    %v981 = vld [vmem:[%s1 + $0x1ce0] sm:$0xff]
    %v982 = vld [vmem:[%s1 + $0x1ce8] sm:$0xff]
    %v983 = vld [vmem:[%s1 + $0x1cf0] sm:$0xff]
    %v984 = vld [vmem:[%s1 + $0x1cf8] sm:$0xff]
    %v985 = vld [vmem:[%s1 + $0x1d00] sm:$0xff]
    %v986 = vld [vmem:[%s1 + $0x1d08] sm:$0xff]
    %v987 = vld [vmem:[%s1 + $0x1d10] sm:$0xff]
    %v988 = vld [vmem:[%s1 + $0x1d18] sm:$0xff]
    %v989 = vld [vmem:[%s1 + $0x1d20] sm:$0xff]
    %v990 = vld [vmem:[%s1 + $0x1d28] sm:$0xff]
    %v991 = vld [vmem:[%s1 + $0x1d30] sm:$0xff]
    %v992 = vld [vmem:[%s1 + $0x1d38] sm:$0xff]
    %v993 = vld [vmem:[%s1 + $0x1d40] sm:$0xff]
    %v994 = vld [vmem:[%s1 + $0x1d48] sm:$0xff]
    %v995 = vld [vmem:[%s1 + $0x1d50] sm:$0xff]
    %v996 = vld [vmem:[%s1 + $0x1d58] sm:$0xff]
    %v997 = vld [vmem:[%s1 + $0x1d60] sm:$0xff]
    %v998 = vld [vmem:[%s1 + $0x1d68] sm:$0xff]
    %v999 = vld [vmem:[%s1 + $0x1d70] sm:$0xff]
    %v1000 = vld [vmem:[%s1 + $0x1d78] sm:$0xff]
    %v1001 = vld [vmem:[%s1 + $0x1d80] sm:$0xff]
    %v1002 = vld [vmem:[%s1 + $0x1d88] sm:$0xff]
    %v1003 = vld [vmem:[%s1 + $0x1d90] sm:$0xff]
    %v1004 = vld [vmem:[%s1 + $0x1d98] sm:$0xff]
    %v1005 = vld [vmem:[%s1 + $0x1da0] sm:$0xff]
    %v1006 = vld [vmem:[%s1 + $0x1da8] sm:$0xff]
    %v1007 = vld [vmem:[%s1 + $0x1db0] sm:$0xff]
    %v1008 = vld [vmem:[%s1 + $0x1db8] sm:$0xff]
    %v1009 = vld [vmem:[%s1 + $0x1dc0] sm:$0xff]
    %v1010 = vld [vmem:[%s1 + $0x1dc8] sm:$0xff]
    %v1011 = vld [vmem:[%s1 + $0x1dd0] sm:$0xff]
    %v1012 = vld [vmem:[%s1 + $0x1dd8] sm:$0xff]
    %v1013 = vld [vmem:[%s1 + $0x1de0] sm:$0xff]
    %v1014 = vld [vmem:[%s1 + $0x1de8] sm:$0xff]
    %v1015 = vld [vmem:[%s1 + $0x1df0] sm:$0xff]
    %v1016 = vld [vmem:[%s1 + $0x1df8] sm:$0xff]
    %v1017 = vld [vmem:[%s1 + $0x1e00] sm:$0xff]
    %v1018 = vld [vmem:[%s1 + $0x1e08] sm:$0xff]
    %v1019 = vld [vmem:[%s1 + $0x1e10] sm:$0xff]
    %v1020 = vld [vmem:[%s1 + $0x1e18] sm:$0xff]
    %v1021 = vld [vmem:[%s1 + $0x1e20] sm:$0xff]
    %v1022 = vld [vmem:[%s1 + $0x1e28] sm:$0xff]
    %v1023 = vld [vmem:[%s1 + $0x1e30] sm:$0xff]
    %v1024 = vld [vmem:[%s1 + $0x1e38] sm:$0xff]
    %v1025 = vld [vmem:[%s1 + $0x1e40] sm:$0xff]
    %v1026 = vld [vmem:[%s1 + $0x1e48] sm:$0xff]
    %v1027 = vld [vmem:[%s1 + $0x1e50] sm:$0xff]
    %v1028 = vld [vmem:[%s1 + $0x1e58] sm:$0xff]
    %v1029 = vld [vmem:[%s1 + $0x1e60] sm:$0xff]
    %v1030 = vld [vmem:[%s1 + $0x1e68] sm:$0xff]
    %v1031 = vld [vmem:[%s1 + $0x1e70] sm:$0xff]
    %v1032 = vld [vmem:[%s1 + $0x1e78] sm:$0xff]
    %v1033 = vld [vmem:[%s1 + $0x1e80] sm:$0xff]
    %v1034 = vld [vmem:[%s1 + $0x1e88] sm:$0xff]
    %v1035 = vld [vmem:[%s1 + $0x1e90] sm:$0xff]
    %v1036 = vld [vmem:[%s1 + $0x1e98] sm:$0xff]
    %v1037 = vld [vmem:[%s1 + $0x1ea0] sm:$0xff]
    %v1038 = vld [vmem:[%s1 + $0x1ea8] sm:$0xff]
    %v1039 = vld [vmem:[%s1 + $0x1eb0] sm:$0xff]
    %v1040 = vld [vmem:[%s1 + $0x1eb8] sm:$0xff]
    %v1041 = vld [vmem:[%s1 + $0x1ec0] sm:$0xff]
    %v1042 = vld [vmem:[%s1 + $0x1ec8] sm:$0xff]
    %v1043 = vld [vmem:[%s1 + $0x1ed0] sm:$0xff]
    %v1044 = vld [vmem:[%s1 + $0x1ed8] sm:$0xff]
    %v1045 = vld [vmem:[%s1 + $0x1ee0] sm:$0xff]
    %v1046 = vld [vmem:[%s1 + $0x1ee8] sm:$0xff]
    %v1047 = vld [vmem:[%s1 + $0x1ef0] sm:$0xff]
    %v1048 = vld [vmem:[%s1 + $0x1ef8] sm:$0xff]
    %v1049 = vld [vmem:[%s1 + $0x1f00] sm:$0xff]
    %v1050 = vld [vmem:[%s1 + $0x1f08] sm:$0xff]
    %v1051 = vld [vmem:[%s1 + $0x1f10] sm:$0xff]
    %v1052 = vld [vmem:[%s1 + $0x1f18] sm:$0xff]
    %v1053 = vld [vmem:[%s1 + $0x1f20] sm:$0xff]
    %v1054 = vld [vmem:[%s1 + $0x1f28] sm:$0xff]
    %v1055 = vld [vmem:[%s1 + $0x1f30] sm:$0xff]
    %v1056 = vld [vmem:[%s1 + $0x1f38] sm:$0xff]
    %v1057 = vld [vmem:[%s1 + $0x1f40] sm:$0xff]
    %v1058 = vld [vmem:[%s1 + $0x1f48] sm:$0xff]
    %v1059 = vld [vmem:[%s1 + $0x1f50] sm:$0xff]
    %v1060 = vld [vmem:[%s1 + $0x1f58] sm:$0xff]
    %v1061 = vld [vmem:[%s1 + $0x1f60] sm:$0xff]
    %v1062 = vld [vmem:[%s1 + $0x1f68] sm:$0xff]
    %v1063 = vld [vmem:[%s1 + $0x1f70] sm:$0xff]
    %v1064 = vld [vmem:[%s1 + $0x1f78] sm:$0xff]
    %v1065 = vld [vmem:[%s1 + $0x1f80] sm:$0xff]
    %v1066 = vld [vmem:[%s1 + $0x1f88] sm:$0xff]
    %v1067 = vld [vmem:[%s1 + $0x1f90] sm:$0xff]
    %v1068 = vld [vmem:[%s1 + $0x1f98] sm:$0xff]
    %v1069 = vld [vmem:[%s1 + $0x1fa0] sm:$0xff]
    %v1070 = vld [vmem:[%s1 + $0x1fa8] sm:$0xff]
    %v1071 = vld [vmem:[%s1 + $0x1fb0] sm:$0xff]
    %v1072 = vld [vmem:[%s1 + $0x1fb8] sm:$0xff]
    %v1073 = vld [vmem:[%s1 + $0x1fc0] sm:$0xff]
    %v1074 = vld [vmem:[%s1 + $0x1fc8] sm:$0xff]
    %v1075 = vld [vmem:[%s1 + $0x1fd0] sm:$0xff]
    %v1076 = vld [vmem:[%s1 + $0x1fd8] sm:$0xff]
    %v1077 = vld [vmem:[%s1 + $0x1fe0] sm:$0xff]
    %v1078 = vld [vmem:[%s1 + $0x1fe8] sm:$0xff]
    %v1079 = vld [vmem:[%s1 + $0x1ff0] sm:$0xff]
    %v1080 = vld [vmem:[%s1 + $0x1ff8] sm:$0xff]
    %v1081 = vld [vmem:[%s2] sm:$0x3]
    %v1083 = vlaneseq
    %v1084 = vshrl.u32 %v1083, 7
    %v1085 = vsub.s32 0, %v1084
    %v1086 = vrot.slane %v1081, %v1085
    %v1087 = vlaneseq
    %v1088 = vshrl.u32 %v1087, 7
    %v1089 = vsub.s32 1, %v1088
    %v1090 = vrot.slane %v1081, %v1089
    %v1101 = vcombine.high %v49, %v49
    %v1103 = vunpack.c.l.s4 1966171168
    %v1104 = vunpack.c.0.s8 %v1103
    %v1105 = vlaneseq
    %v1106 = vshrl.u32 %v1105, 7
    %v1107 = vsub.s32 %v1104, %v1106
    %v1108 = vrot.slane %v49, %v1107
    %v1110 = vunpack.c.l.s4 1966171168
    %v1111 = vunpack.c.0.s8 %v1110
    %v1112 = vlaneseq
    %v1113 = vshrl.u32 %v1112, 7
    %v1114 = vsub.s32 %v1111, %v1113
    %v1115 = vrot.slane %v1101, %v1114
    %v1116 = vcombine.high %v1108, %v1108
    %v1117 = vcombine.high %v1115, %v1115
    %v1119 = vunpack.c.l.s4 1966171168
    %v1120 = vunpack.c.0.s8 %v1119
    %v1121 = vlaneseq
    %v1122 = vshrl.u32 %v1121, 7
    %v1123 = vsub.s32 %v1120, %v1122
    %v1124 = vrot.slane %v1108, %v1123
    %v1126 = vunpack.c.l.s4 1966171168
    %v1127 = vunpack.c.0.s8 %v1126
    %v1128 = vlaneseq
    %v1129 = vshrl.u32 %v1128, 7
    %v1130 = vsub.s32 %v1127, %v1129
    %v1131 = vrot.slane %v1115, %v1130
    %v1133 = vunpack.c.l.s4 1966171168
    %v1134 = vunpack.c.0.s8 %v1133
    %v1135 = vlaneseq
    %v1136 = vshrl.u32 %v1135, 7
    %v1137 = vsub.s32 %v1134, %v1136
    %v1138 = vrot.slane %v1116, %v1137
    %v1140 = vunpack.c.l.s4 1966171168
    %v1141 = vunpack.c.0.s8 %v1140
    %v1142 = vlaneseq
    %v1143 = vshrl.u32 %v1142, 7
    %v1144 = vsub.s32 %v1141, %v1143
    %v1145 = vrot.slane %v1117, %v1144
    %v1146 = vcombine.high %v1124, %v1124
    %v1147 = vcombine.high %v1131, %v1131
    %v1148 = vcombine.high %v1138, %v1138
    %v1149 = vcombine.high %v1145, %v1145
    %v1150 = vcombine.high %v50, %v50
    %v1152 = vunpack.c.l.s4 1966171168
    %v1153 = vunpack.c.0.s8 %v1152
    %v1154 = vlaneseq
    %v1155 = vshrl.u32 %v1154, 7
    %v1156 = vsub.s32 %v1153, %v1155
    %v1157 = vrot.slane %v50, %v1156
    %v1159 = vunpack.c.l.s4 1966171168
    %v1160 = vunpack.c.0.s8 %v1159
    %v1161 = vlaneseq
    %v1162 = vshrl.u32 %v1161, 7
    %v1163 = vsub.s32 %v1160, %v1162
    %v1164 = vrot.slane %v1150, %v1163
    %v1165 = vcombine.high %v1157, %v1157
    %v1166 = vcombine.high %v1164, %v1164
    %v1168 = vunpack.c.l.s4 1966171168
    %v1169 = vunpack.c.0.s8 %v1168
    %v1170 = vlaneseq
    %v1171 = vshrl.u32 %v1170, 7
    %v1172 = vsub.s32 %v1169, %v1171
    %v1173 = vrot.slane %v1157, %v1172
    %v1175 = vunpack.c.l.s4 1966171168
    %v1176 = vunpack.c.0.s8 %v1175
    %v1177 = vlaneseq
    %v1178 = vshrl.u32 %v1177, 7
    %v1179 = vsub.s32 %v1176, %v1178
    %v1180 = vrot.slane %v1164, %v1179
    %v1182 = vunpack.c.l.s4 1966171168
    %v1183 = vunpack.c.0.s8 %v1182
    %v1184 = vlaneseq
    %v1185 = vshrl.u32 %v1184, 7
    %v1186 = vsub.s32 %v1183, %v1185
    %v1187 = vrot.slane %v1165, %v1186
    %v1189 = vunpack.c.l.s4 1966171168
    %v1190 = vunpack.c.0.s8 %v1189
    %v1191 = vlaneseq
    %v1192 = vshrl.u32 %v1191, 7
    %v1193 = vsub.s32 %v1190, %v1192
    %v1194 = vrot.slane %v1166, %v1193
    %v1195 = vcombine.high %v1173, %v1173
    %v1196 = vcombine.high %v1180, %v1180
    %v1197 = vcombine.high %v1187, %v1187
    %v1198 = vcombine.high %v1194, %v1194
    %v1199 = vcombine.high %v51, %v51
    %v1201 = vunpack.c.l.s4 1966171168
    %v1202 = vunpack.c.0.s8 %v1201
    %v1203 = vlaneseq
    %v1204 = vshrl.u32 %v1203, 7
    %v1205 = vsub.s32 %v1202, %v1204
    %v1206 = vrot.slane %v51, %v1205
    %v1208 = vunpack.c.l.s4 1966171168
    %v1209 = vunpack.c.0.s8 %v1208
    %v1210 = vlaneseq
    %v1211 = vshrl.u32 %v1210, 7
    %v1212 = vsub.s32 %v1209, %v1211
    %v1213 = vrot.slane %v1199, %v1212
    %v1214 = vcombine.high %v1206, %v1206
    %v1215 = vcombine.high %v1213, %v1213
    %v1217 = vunpack.c.l.s4 1966171168
    %v1218 = vunpack.c.0.s8 %v1217
    %v1219 = vlaneseq
    %v1220 = vshrl.u32 %v1219, 7
    %v1221 = vsub.s32 %v1218, %v1220
    %v1222 = vrot.slane %v1206, %v1221
    %v1224 = vunpack.c.l.s4 1966171168
    %v1225 = vunpack.c.0.s8 %v1224
    %v1226 = vlaneseq
    %v1227 = vshrl.u32 %v1226, 7
    %v1228 = vsub.s32 %v1225, %v1227
    %v1229 = vrot.slane %v1213, %v1228
    %v1231 = vunpack.c.l.s4 1966171168
    %v1232 = vunpack.c.0.s8 %v1231
    %v1233 = vlaneseq
    %v1234 = vshrl.u32 %v1233, 7
    %v1235 = vsub.s32 %v1232, %v1234
    %v1236 = vrot.slane %v1214, %v1235
    %v1238 = vunpack.c.l.s4 1966171168
    %v1239 = vunpack.c.0.s8 %v1238
    %v1240 = vlaneseq
    %v1241 = vshrl.u32 %v1240, 7
    %v1242 = vsub.s32 %v1239, %v1241
    %v1243 = vrot.slane %v1215, %v1242
    %v1244 = vcombine.high %v1222, %v1222
    %v1245 = vcombine.high %v1229, %v1229
    %v1246 = vcombine.high %v1236, %v1236
    %v1247 = vcombine.high %v1243, %v1243
    %v1248 = vcombine.high %v52, %v52
    %v1250 = vunpack.c.l.s4 1966171168
    %v1251 = vunpack.c.0.s8 %v1250
    %v1252 = vlaneseq
    %v1253 = vshrl.u32 %v1252, 7
    %v1254 = vsub.s32 %v1251, %v1253
    %v1255 = vrot.slane %v52, %v1254
    %v1257 = vunpack.c.l.s4 1966171168
    %v1258 = vunpack.c.0.s8 %v1257
    %v1259 = vlaneseq
    %v1260 = vshrl.u32 %v1259, 7
    %v1261 = vsub.s32 %v1258, %v1260
    %v1262 = vrot.slane %v1248, %v1261
    %v1263 = vcombine.high %v1255, %v1255
    %v1264 = vcombine.high %v1262, %v1262
    %v1266 = vunpack.c.l.s4 1966171168
    %v1267 = vunpack.c.0.s8 %v1266
    %v1268 = vlaneseq
    %v1269 = vshrl.u32 %v1268, 7
    %v1270 = vsub.s32 %v1267, %v1269
    %v1271 = vrot.slane %v1255, %v1270
    %v1273 = vunpack.c.l.s4 1966171168
    %v1274 = vunpack.c.0.s8 %v1273
    %v1275 = vlaneseq
    %v1276 = vshrl.u32 %v1275, 7
    %v1277 = vsub.s32 %v1274, %v1276
    %v1278 = vrot.slane %v1262, %v1277
    %v1280 = vunpack.c.l.s4 1966171168
    %v1281 = vunpack.c.0.s8 %v1280
    %v1282 = vlaneseq
    %v1283 = vshrl.u32 %v1282, 7
    %v1284 = vsub.s32 %v1281, %v1283
    %v1285 = vrot.slane %v1263, %v1284
    %v1287 = vunpack.c.l.s4 1966171168
    %v1288 = vunpack.c.0.s8 %v1287
    %v1289 = vlaneseq
    %v1290 = vshrl.u32 %v1289, 7
    %v1291 = vsub.s32 %v1288, %v1290
    %v1292 = vrot.slane %v1264, %v1291
    %v1293 = vcombine.high %v1271, %v1271
    %v1294 = vcombine.high %v1278, %v1278
    %v1295 = vcombine.high %v1285, %v1285
    %v1296 = vcombine.high %v1292, %v1292
    %v1297 = vcombine.high %v53, %v53
    %v1299 = vunpack.c.l.s4 1966171168
    %v1300 = vunpack.c.0.s8 %v1299
    %v1301 = vlaneseq
    %v1302 = vshrl.u32 %v1301, 7
    %v1303 = vsub.s32 %v1300, %v1302
    %v1304 = vrot.slane %v53, %v1303
    %v1306 = vunpack.c.l.s4 1966171168
    %v1307 = vunpack.c.0.s8 %v1306
    %v1308 = vlaneseq
    %v1309 = vshrl.u32 %v1308, 7
    %v1310 = vsub.s32 %v1307, %v1309
    %v1311 = vrot.slane %v1297, %v1310
    %v1312 = vcombine.high %v1304, %v1304
    %v1313 = vcombine.high %v1311, %v1311
    %v1315 = vunpack.c.l.s4 1966171168
    %v1316 = vunpack.c.0.s8 %v1315
    %v1317 = vlaneseq
    %v1318 = vshrl.u32 %v1317, 7
    %v1319 = vsub.s32 %v1316, %v1318
    %v1320 = vrot.slane %v1304, %v1319
    %v1322 = vunpack.c.l.s4 1966171168
    %v1323 = vunpack.c.0.s8 %v1322
    %v1324 = vlaneseq
    %v1325 = vshrl.u32 %v1324, 7
    %v1326 = vsub.s32 %v1323, %v1325
    %v1327 = vrot.slane %v1311, %v1326
    %v1329 = vunpack.c.l.s4 1966171168
    %v1330 = vunpack.c.0.s8 %v1329
    %v1331 = vlaneseq
    %v1332 = vshrl.u32 %v1331, 7
    %v1333 = vsub.s32 %v1330, %v1332
    %v1334 = vrot.slane %v1312, %v1333
    %v1336 = vunpack.c.l.s4 1966171168
    %v1337 = vunpack.c.0.s8 %v1336
    %v1338 = vlaneseq
    %v1339 = vshrl.u32 %v1338, 7
    %v1340 = vsub.s32 %v1337, %v1339
    %v1341 = vrot.slane %v1313, %v1340
    %v1342 = vcombine.high %v1320, %v1320
    %v1343 = vcombine.high %v1327, %v1327
    %v1344 = vcombine.high %v1334, %v1334
    %v1345 = vcombine.high %v1341, %v1341
    %v1346 = vcombine.high %v54, %v54
    %v1348 = vunpack.c.l.s4 1966171168
    %v1349 = vunpack.c.0.s8 %v1348
    %v1350 = vlaneseq
    %v1351 = vshrl.u32 %v1350, 7
    %v1352 = vsub.s32 %v1349, %v1351
    %v1353 = vrot.slane %v54, %v1352
    %v1355 = vunpack.c.l.s4 1966171168
    %v1356 = vunpack.c.0.s8 %v1355
    %v1357 = vlaneseq
    %v1358 = vshrl.u32 %v1357, 7
    %v1359 = vsub.s32 %v1356, %v1358
    %v1360 = vrot.slane %v1346, %v1359
    %v1361 = vcombine.high %v1353, %v1353
    %v1362 = vcombine.high %v1360, %v1360
    %v1364 = vunpack.c.l.s4 1966171168
    %v1365 = vunpack.c.0.s8 %v1364
    %v1366 = vlaneseq
    %v1367 = vshrl.u32 %v1366, 7
    %v1368 = vsub.s32 %v1365, %v1367
    %v1369 = vrot.slane %v1353, %v1368
    %v1371 = vunpack.c.l.s4 1966171168
    %v1372 = vunpack.c.0.s8 %v1371
    %v1373 = vlaneseq
    %v1374 = vshrl.u32 %v1373, 7
    %v1375 = vsub.s32 %v1372, %v1374
    %v1376 = vrot.slane %v1360, %v1375
    %v1378 = vunpack.c.l.s4 1966171168
    %v1379 = vunpack.c.0.s8 %v1378
    %v1380 = vlaneseq
    %v1381 = vshrl.u32 %v1380, 7
    %v1382 = vsub.s32 %v1379, %v1381
    %v1383 = vrot.slane %v1361, %v1382
    %v1385 = vunpack.c.l.s4 1966171168
    %v1386 = vunpack.c.0.s8 %v1385
    %v1387 = vlaneseq
    %v1388 = vshrl.u32 %v1387, 7
    %v1389 = vsub.s32 %v1386, %v1388
    %v1390 = vrot.slane %v1362, %v1389
    %v1391 = vcombine.high %v1369, %v1369
    %v1392 = vcombine.high %v1376, %v1376
    %v1393 = vcombine.high %v1383, %v1383
    %v1394 = vcombine.high %v1390, %v1390
    %v1395 = vcombine.high %v55, %v55
    %v1397 = vunpack.c.l.s4 1966171168
    %v1398 = vunpack.c.0.s8 %v1397
    %v1399 = vlaneseq
    %v1400 = vshrl.u32 %v1399, 7
    %v1401 = vsub.s32 %v1398, %v1400
    %v1402 = vrot.slane %v55, %v1401
    %v1404 = vunpack.c.l.s4 1966171168
    %v1405 = vunpack.c.0.s8 %v1404
    %v1406 = vlaneseq
    %v1407 = vshrl.u32 %v1406, 7
    %v1408 = vsub.s32 %v1405, %v1407
    %v1409 = vrot.slane %v1395, %v1408
    %v1410 = vcombine.high %v1402, %v1402
    %v1411 = vcombine.high %v1409, %v1409
    %v1413 = vunpack.c.l.s4 1966171168
    %v1414 = vunpack.c.0.s8 %v1413
    %v1415 = vlaneseq
    %v1416 = vshrl.u32 %v1415, 7
    %v1417 = vsub.s32 %v1414, %v1416
    %v1418 = vrot.slane %v1402, %v1417
    %v1420 = vunpack.c.l.s4 1966171168
    %v1421 = vunpack.c.0.s8 %v1420
    %v1422 = vlaneseq
    %v1423 = vshrl.u32 %v1422, 7
    %v1424 = vsub.s32 %v1421, %v1423
    %v1425 = vrot.slane %v1409, %v1424
    %v1427 = vunpack.c.l.s4 1966171168
    %v1428 = vunpack.c.0.s8 %v1427
    %v1429 = vlaneseq
    %v1430 = vshrl.u32 %v1429, 7
    %v1431 = vsub.s32 %v1428, %v1430
    %v1432 = vrot.slane %v1410, %v1431
    %v1434 = vunpack.c.l.s4 1966171168
    %v1435 = vunpack.c.0.s8 %v1434
    %v1436 = vlaneseq
    %v1437 = vshrl.u32 %v1436, 7
    %v1438 = vsub.s32 %v1435, %v1437
    %v1439 = vrot.slane %v1411, %v1438
    %v1440 = vcombine.high %v1418, %v1418
    %v1441 = vcombine.high %v1425, %v1425
    %v1442 = vcombine.high %v1432, %v1432
    %v1443 = vcombine.high %v1439, %v1439
    %v1444 = vcombine.high %v56, %v56
    %v1446 = vunpack.c.l.s4 1966171168
    %v1447 = vunpack.c.0.s8 %v1446
    %v1448 = vlaneseq
    %v1449 = vshrl.u32 %v1448, 7
    %v1450 = vsub.s32 %v1447, %v1449
    %v1451 = vrot.slane %v56, %v1450
    %v1453 = vunpack.c.l.s4 1966171168
    %v1454 = vunpack.c.0.s8 %v1453
    %v1455 = vlaneseq
    %v1456 = vshrl.u32 %v1455, 7
    %v1457 = vsub.s32 %v1454, %v1456
    %v1458 = vrot.slane %v1444, %v1457
    %v1459 = vcombine.high %v1451, %v1451
    %v1460 = vcombine.high %v1458, %v1458
    %v1462 = vunpack.c.l.s4 1966171168
    %v1463 = vunpack.c.0.s8 %v1462
    %v1464 = vlaneseq
    %v1465 = vshrl.u32 %v1464, 7
    %v1466 = vsub.s32 %v1463, %v1465
    %v1467 = vrot.slane %v1451, %v1466
    %v1469 = vunpack.c.l.s4 1966171168
    %v1470 = vunpack.c.0.s8 %v1469
    %v1471 = vlaneseq
    %v1472 = vshrl.u32 %v1471, 7
    %v1473 = vsub.s32 %v1470, %v1472
    %v1474 = vrot.slane %v1458, %v1473
    %v1476 = vunpack.c.l.s4 1966171168
    %v1477 = vunpack.c.0.s8 %v1476
    %v1478 = vlaneseq
    %v1479 = vshrl.u32 %v1478, 7
    %v1480 = vsub.s32 %v1477, %v1479
    %v1481 = vrot.slane %v1459, %v1480
    %v1483 = vunpack.c.l.s4 1966171168
    %v1484 = vunpack.c.0.s8 %v1483
    %v1485 = vlaneseq
    %v1486 = vshrl.u32 %v1485, 7
    %v1487 = vsub.s32 %v1484, %v1486
    %v1488 = vrot.slane %v1460, %v1487
    %v1489 = vcombine.high %v1467, %v1467
    %v1490 = vcombine.high %v1474, %v1474
    %v1491 = vcombine.high %v1481, %v1481
    %v1492 = vcombine.high %v1488, %v1488
    %v2581 = vunpack.c.l.b16 %v57
    %v2582 = vunpack.c.h.b16 %v57
    %v2583 = vunpack.c.l.b16 %v58
    %v2584 = vunpack.c.h.b16 %v58
    %v2585 = vunpack.c.l.b16 %v59
    %v2586 = vunpack.c.h.b16 %v59
    %v2587 = vunpack.c.l.b16 %v60
    %v2588 = vunpack.c.h.b16 %v60
    %v2589 = vunpack.c.l.b16 %v61
    %v2590 = vunpack.c.h.b16 %v61
    %v2591 = vunpack.c.l.b16 %v62
    %v2592 = vunpack.c.h.b16 %v62
    %v2593 = vunpack.c.l.b16 %v63
    %v2594 = vunpack.c.h.b16 %v63
    %v2595 = vunpack.c.l.b16 %v64
    %v2596 = vunpack.c.h.b16 %v64
    %v2597 = vunpack.c.l.b16 %v65
    %v2598 = vunpack.c.h.b16 %v65
    %v2599 = vunpack.c.l.b16 %v66
    %v2600 = vunpack.c.h.b16 %v66
    %v2601 = vunpack.c.l.b16 %v67
    %v2602 = vunpack.c.h.b16 %v67
    %v2603 = vunpack.c.l.b16 %v68
    %v2604 = vunpack.c.h.b16 %v68
    %v2605 = vunpack.c.l.b16 %v69
    %v2606 = vunpack.c.h.b16 %v69
    %v2607 = vunpack.c.l.b16 %v70
    %v2608 = vunpack.c.h.b16 %v70
    %v2609 = vunpack.c.l.b16 %v71
    %v2610 = vunpack.c.h.b16 %v71
    %v2611 = vunpack.c.l.b16 %v72
    %v2612 = vunpack.c.h.b16 %v72
    %v2613 = vunpack.c.l.b16 %v73
    %v2614 = vunpack.c.h.b16 %v73
    %v2615 = vunpack.c.l.b16 %v74
    %v2616 = vunpack.c.h.b16 %v74
    %v2617 = vunpack.c.l.b16 %v75
    %v2618 = vunpack.c.h.b16 %v75
    %v2619 = vunpack.c.l.b16 %v76
    %v2620 = vunpack.c.h.b16 %v76
    %v2621 = vunpack.c.l.b16 %v77
    %v2622 = vunpack.c.h.b16 %v77
    %v2623 = vunpack.c.l.b16 %v78
    %v2624 = vunpack.c.h.b16 %v78
    %v2625 = vunpack.c.l.b16 %v79
    %v2626 = vunpack.c.h.b16 %v79
    %v2627 = vunpack.c.l.b16 %v80
    %v2628 = vunpack.c.h.b16 %v80
    %v2629 = vunpack.c.l.b16 %v81
    %v2630 = vunpack.c.h.b16 %v81
    %v2631 = vunpack.c.l.b16 %v82
    %v2632 = vunpack.c.h.b16 %v82
    %v2633 = vunpack.c.l.b16 %v83
    %v2634 = vunpack.c.h.b16 %v83
    %v2635 = vunpack.c.l.b16 %v84
    %v2636 = vunpack.c.h.b16 %v84
    %v2637 = vunpack.c.l.b16 %v85
    %v2638 = vunpack.c.h.b16 %v85
    %v2639 = vunpack.c.l.b16 %v86
    %v2640 = vunpack.c.h.b16 %v86
    %v2641 = vunpack.c.l.b16 %v87
    %v2642 = vunpack.c.h.b16 %v87
    %v2643 = vunpack.c.l.b16 %v88
    %v2644 = vunpack.c.h.b16 %v88
    %v2645 = vunpack.c.l.b16 %v89
    %v2646 = vunpack.c.h.b16 %v89
    %v2647 = vunpack.c.l.b16 %v90
    %v2648 = vunpack.c.h.b16 %v90
    %v2649 = vunpack.c.l.b16 %v91
    %v2650 = vunpack.c.h.b16 %v91
    %v2651 = vunpack.c.l.b16 %v92
    %v2652 = vunpack.c.h.b16 %v92
    %v2653 = vunpack.c.l.b16 %v93
    %v2654 = vunpack.c.h.b16 %v93
    %v2655 = vunpack.c.l.b16 %v94
    %v2656 = vunpack.c.h.b16 %v94
    %v2657 = vunpack.c.l.b16 %v95
    %v2658 = vunpack.c.h.b16 %v95
    %v2659 = vunpack.c.l.b16 %v96
    %v2660 = vunpack.c.h.b16 %v96
    %v2661 = vunpack.c.l.b16 %v97
    %v2662 = vunpack.c.h.b16 %v97
    %v2663 = vunpack.c.l.b16 %v98
    %v2664 = vunpack.c.h.b16 %v98
    %v2665 = vunpack.c.l.b16 %v99
    %v2666 = vunpack.c.h.b16 %v99
    %v2667 = vunpack.c.l.b16 %v100
    %v2668 = vunpack.c.h.b16 %v100
    %v2669 = vunpack.c.l.b16 %v101
    %v2670 = vunpack.c.h.b16 %v101
    %v2671 = vunpack.c.l.b16 %v102
    %v2672 = vunpack.c.h.b16 %v102
    %v2673 = vunpack.c.l.b16 %v103
    %v2674 = vunpack.c.h.b16 %v103
    %v2675 = vunpack.c.l.b16 %v104
    %v2676 = vunpack.c.h.b16 %v104
    %v2677 = vunpack.c.l.b16 %v105
    %v2678 = vunpack.c.h.b16 %v105
    %v2679 = vunpack.c.l.b16 %v106
    %v2680 = vunpack.c.h.b16 %v106
    %v2681 = vunpack.c.l.b16 %v107
    %v2682 = vunpack.c.h.b16 %v107
    %v2683 = vunpack.c.l.b16 %v108
    %v2684 = vunpack.c.h.b16 %v108
    %v2685 = vunpack.c.l.b16 %v109
    %v2686 = vunpack.c.h.b16 %v109
    %v2687 = vunpack.c.l.b16 %v110
    %v2688 = vunpack.c.h.b16 %v110
    %v2689 = vunpack.c.l.b16 %v111
    %v2690 = vunpack.c.h.b16 %v111
    %v2691 = vunpack.c.l.b16 %v112
    %v2692 = vunpack.c.h.b16 %v112
    %v2693 = vunpack.c.l.b16 %v113
    %v2694 = vunpack.c.h.b16 %v113
    %v2695 = vunpack.c.l.b16 %v114
    %v2696 = vunpack.c.h.b16 %v114
    %v2697 = vunpack.c.l.b16 %v115
    %v2698 = vunpack.c.h.b16 %v115
    %v2699 = vunpack.c.l.b16 %v116
    %v2700 = vunpack.c.h.b16 %v116
    %v2701 = vunpack.c.l.b16 %v117
    %v2702 = vunpack.c.h.b16 %v117
    %v2703 = vunpack.c.l.b16 %v118
    %v2704 = vunpack.c.h.b16 %v118
    %v2705 = vunpack.c.l.b16 %v119
    %v2706 = vunpack.c.h.b16 %v119
    %v2707 = vunpack.c.l.b16 %v120
    %v2708 = vunpack.c.h.b16 %v120
    %v2709 = vunpack.c.l.b16 %v121
    %v2710 = vunpack.c.h.b16 %v121
    %v2711 = vunpack.c.l.b16 %v122
    %v2712 = vunpack.c.h.b16 %v122
    %v2713 = vunpack.c.l.b16 %v123
    %v2714 = vunpack.c.h.b16 %v123
    %v2715 = vunpack.c.l.b16 %v124
    %v2716 = vunpack.c.h.b16 %v124
    %v2717 = vunpack.c.l.b16 %v125
    %v2718 = vunpack.c.h.b16 %v125
    %v2719 = vunpack.c.l.b16 %v126
    %v2720 = vunpack.c.h.b16 %v126
    %v2721 = vunpack.c.l.b16 %v127
    %v2722 = vunpack.c.h.b16 %v127
    %v2723 = vunpack.c.l.b16 %v128
    %v2724 = vunpack.c.h.b16 %v128
    %v2725 = vunpack.c.l.b16 %v129
    %v2726 = vunpack.c.h.b16 %v129
    %v2727 = vunpack.c.l.b16 %v130
    %v2728 = vunpack.c.h.b16 %v130
    %v2729 = vunpack.c.l.b16 %v131
    %v2730 = vunpack.c.h.b16 %v131
    %v2731 = vunpack.c.l.b16 %v132
    %v2732 = vunpack.c.h.b16 %v132
    %v2733 = vunpack.c.l.b16 %v133
    %v2734 = vunpack.c.h.b16 %v133
    %v2735 = vunpack.c.l.b16 %v134
    %v2736 = vunpack.c.h.b16 %v134
    %v2737 = vunpack.c.l.b16 %v135
    %v2738 = vunpack.c.h.b16 %v135
    %v2739 = vunpack.c.l.b16 %v136
    %v2740 = vunpack.c.h.b16 %v136
    %v2741 = vunpack.c.l.b16 %v137
    %v2742 = vunpack.c.h.b16 %v137
    %v2743 = vunpack.c.l.b16 %v138
    %v2744 = vunpack.c.h.b16 %v138
    %v2745 = vunpack.c.l.b16 %v139
    %v2746 = vunpack.c.h.b16 %v139
    %v2747 = vunpack.c.l.b16 %v140
    %v2748 = vunpack.c.h.b16 %v140
    %v2749 = vunpack.c.l.b16 %v141
    %v2750 = vunpack.c.h.b16 %v141
    %v2751 = vunpack.c.l.b16 %v142
    %v2752 = vunpack.c.h.b16 %v142
    %v2753 = vunpack.c.l.b16 %v143
    %v2754 = vunpack.c.h.b16 %v143
    %v2755 = vunpack.c.l.b16 %v144
    %v2756 = vunpack.c.h.b16 %v144
    %v2757 = vunpack.c.l.b16 %v145
    %v2758 = vunpack.c.h.b16 %v145
    %v2759 = vunpack.c.l.b16 %v146
    %v2760 = vunpack.c.h.b16 %v146
    %v2761 = vunpack.c.l.b16 %v147
    %v2762 = vunpack.c.h.b16 %v147
    %v2763 = vunpack.c.l.b16 %v148
    %v2764 = vunpack.c.h.b16 %v148
    %v2765 = vunpack.c.l.b16 %v149
    %v2766 = vunpack.c.h.b16 %v149
    %v2767 = vunpack.c.l.b16 %v150
    %v2768 = vunpack.c.h.b16 %v150
    %v2769 = vunpack.c.l.b16 %v151
    %v2770 = vunpack.c.h.b16 %v151
    %v2771 = vunpack.c.l.b16 %v152
    %v2772 = vunpack.c.h.b16 %v152
    %v2773 = vunpack.c.l.b16 %v153
    %v2774 = vunpack.c.h.b16 %v153
    %v2775 = vunpack.c.l.b16 %v154
    %v2776 = vunpack.c.h.b16 %v154
    %v2777 = vunpack.c.l.b16 %v155
    %v2778 = vunpack.c.h.b16 %v155
    %v2779 = vunpack.c.l.b16 %v156
    %v2780 = vunpack.c.h.b16 %v156
    %v2781 = vunpack.c.l.b16 %v157
    %v2782 = vunpack.c.h.b16 %v157
    %v2783 = vunpack.c.l.b16 %v158
    %v2784 = vunpack.c.h.b16 %v158
    %v2785 = vunpack.c.l.b16 %v159
    %v2786 = vunpack.c.h.b16 %v159
    %v2787 = vunpack.c.l.b16 %v160
    %v2788 = vunpack.c.h.b16 %v160
    %v2789 = vunpack.c.l.b16 %v161
    %v2790 = vunpack.c.h.b16 %v161
    %v2791 = vunpack.c.l.b16 %v162
    %v2792 = vunpack.c.h.b16 %v162
    %v2793 = vunpack.c.l.b16 %v163
    %v2794 = vunpack.c.h.b16 %v163
    %v2795 = vunpack.c.l.b16 %v164
    %v2796 = vunpack.c.h.b16 %v164
    %v2797 = vunpack.c.l.b16 %v165
    %v2798 = vunpack.c.h.b16 %v165
    %v2799 = vunpack.c.l.b16 %v166
    %v2800 = vunpack.c.h.b16 %v166
    %v2801 = vunpack.c.l.b16 %v167
    %v2802 = vunpack.c.h.b16 %v167
    %v2803 = vunpack.c.l.b16 %v168
    %v2804 = vunpack.c.h.b16 %v168
    %v2805 = vunpack.c.l.b16 %v169
    %v2806 = vunpack.c.h.b16 %v169
    %v2807 = vunpack.c.l.b16 %v170
    %v2808 = vunpack.c.h.b16 %v170
    %v2809 = vunpack.c.l.b16 %v171
    %v2810 = vunpack.c.h.b16 %v171
    %v2811 = vunpack.c.l.b16 %v172
    %v2812 = vunpack.c.h.b16 %v172
    %v2813 = vunpack.c.l.b16 %v173
    %v2814 = vunpack.c.h.b16 %v173
    %v2815 = vunpack.c.l.b16 %v174
    %v2816 = vunpack.c.h.b16 %v174
    %v2817 = vunpack.c.l.b16 %v175
    %v2818 = vunpack.c.h.b16 %v175
    %v2819 = vunpack.c.l.b16 %v176
    %v2820 = vunpack.c.h.b16 %v176
    %v2821 = vunpack.c.l.b16 %v177
    %v2822 = vunpack.c.h.b16 %v177
    %v2823 = vunpack.c.l.b16 %v178
    %v2824 = vunpack.c.h.b16 %v178
    %v2825 = vunpack.c.l.b16 %v179
    %v2826 = vunpack.c.h.b16 %v179
    %v2827 = vunpack.c.l.b16 %v180
    %v2828 = vunpack.c.h.b16 %v180
    %v2829 = vunpack.c.l.b16 %v181
    %v2830 = vunpack.c.h.b16 %v181
    %v2831 = vunpack.c.l.b16 %v182
    %v2832 = vunpack.c.h.b16 %v182
    %v2833 = vunpack.c.l.b16 %v183
    %v2834 = vunpack.c.h.b16 %v183
    %v2835 = vunpack.c.l.b16 %v184
    %v2836 = vunpack.c.h.b16 %v184
    %v2837 = vunpack.c.l.b16 %v185
    %v2838 = vunpack.c.h.b16 %v185
    %v2839 = vunpack.c.l.b16 %v186
    %v2840 = vunpack.c.h.b16 %v186
    %v2841 = vunpack.c.l.b16 %v187
    %v2842 = vunpack.c.h.b16 %v187
    %v2843 = vunpack.c.l.b16 %v188
    %v2844 = vunpack.c.h.b16 %v188
    %v2845 = vunpack.c.l.b16 %v189
    %v2846 = vunpack.c.h.b16 %v189
    %v2847 = vunpack.c.l.b16 %v190
    %v2848 = vunpack.c.h.b16 %v190
    %v2849 = vunpack.c.l.b16 %v191
    %v2850 = vunpack.c.h.b16 %v191
    %v2851 = vunpack.c.l.b16 %v192
    %v2852 = vunpack.c.h.b16 %v192
    %v2853 = vunpack.c.l.b16 %v193
    %v2854 = vunpack.c.h.b16 %v193
    %v2855 = vunpack.c.l.b16 %v194
    %v2856 = vunpack.c.h.b16 %v194
    %v2857 = vunpack.c.l.b16 %v195
    %v2858 = vunpack.c.h.b16 %v195
    %v2859 = vunpack.c.l.b16 %v196
    %v2860 = vunpack.c.h.b16 %v196
    %v2861 = vunpack.c.l.b16 %v197
    %v2862 = vunpack.c.h.b16 %v197
    %v2863 = vunpack.c.l.b16 %v198
    %v2864 = vunpack.c.h.b16 %v198
    %v2865 = vunpack.c.l.b16 %v199
    %v2866 = vunpack.c.h.b16 %v199
    %v2867 = vunpack.c.l.b16 %v200
    %v2868 = vunpack.c.h.b16 %v200
    %v2869 = vunpack.c.l.b16 %v201
    %v2870 = vunpack.c.h.b16 %v201
    %v2871 = vunpack.c.l.b16 %v202
    %v2872 = vunpack.c.h.b16 %v202
    %v2873 = vunpack.c.l.b16 %v203
    %v2874 = vunpack.c.h.b16 %v203
    %v2875 = vunpack.c.l.b16 %v204
    %v2876 = vunpack.c.h.b16 %v204
    %v2877 = vunpack.c.l.b16 %v205
    %v2878 = vunpack.c.h.b16 %v205
    %v2879 = vunpack.c.l.b16 %v206
    %v2880 = vunpack.c.h.b16 %v206
    %v2881 = vunpack.c.l.b16 %v207
    %v2882 = vunpack.c.h.b16 %v207
    %v2883 = vunpack.c.l.b16 %v208
    %v2884 = vunpack.c.h.b16 %v208
    %v2885 = vunpack.c.l.b16 %v209
    %v2886 = vunpack.c.h.b16 %v209
    %v2887 = vunpack.c.l.b16 %v210
    %v2888 = vunpack.c.h.b16 %v210
    %v2889 = vunpack.c.l.b16 %v211
    %v2890 = vunpack.c.h.b16 %v211
    %v2891 = vunpack.c.l.b16 %v212
    %v2892 = vunpack.c.h.b16 %v212
    %v2893 = vunpack.c.l.b16 %v213
    %v2894 = vunpack.c.h.b16 %v213
    %v2895 = vunpack.c.l.b16 %v214
    %v2896 = vunpack.c.h.b16 %v214
    %v2897 = vunpack.c.l.b16 %v215
    %v2898 = vunpack.c.h.b16 %v215
    %v2899 = vunpack.c.l.b16 %v216
    %v2900 = vunpack.c.h.b16 %v216
    %v2901 = vunpack.c.l.b16 %v217
    %v2902 = vunpack.c.h.b16 %v217
    %v2903 = vunpack.c.l.b16 %v218
    %v2904 = vunpack.c.h.b16 %v218
    %v2905 = vunpack.c.l.b16 %v219
    %v2906 = vunpack.c.h.b16 %v219
    %v2907 = vunpack.c.l.b16 %v220
    %v2908 = vunpack.c.h.b16 %v220
    %v2909 = vunpack.c.l.b16 %v221
    %v2910 = vunpack.c.h.b16 %v221
    %v2911 = vunpack.c.l.b16 %v222
    %v2912 = vunpack.c.h.b16 %v222
    %v2913 = vunpack.c.l.b16 %v223
    %v2914 = vunpack.c.h.b16 %v223
    %v2915 = vunpack.c.l.b16 %v224
    %v2916 = vunpack.c.h.b16 %v224
    %v2917 = vunpack.c.l.b16 %v225
    %v2918 = vunpack.c.h.b16 %v225
    %v2919 = vunpack.c.l.b16 %v226
    %v2920 = vunpack.c.h.b16 %v226
    %v2921 = vunpack.c.l.b16 %v227
    %v2922 = vunpack.c.h.b16 %v227
    %v2923 = vunpack.c.l.b16 %v228
    %v2924 = vunpack.c.h.b16 %v228
    %v2925 = vunpack.c.l.b16 %v229
    %v2926 = vunpack.c.h.b16 %v229
    %v2927 = vunpack.c.l.b16 %v230
    %v2928 = vunpack.c.h.b16 %v230
    %v2929 = vunpack.c.l.b16 %v231
    %v2930 = vunpack.c.h.b16 %v231
    %v2931 = vunpack.c.l.b16 %v232
    %v2932 = vunpack.c.h.b16 %v232
    %v2933 = vunpack.c.l.b16 %v233
    %v2934 = vunpack.c.h.b16 %v233
    %v2935 = vunpack.c.l.b16 %v234
    %v2936 = vunpack.c.h.b16 %v234
    %v2937 = vunpack.c.l.b16 %v235
    %v2938 = vunpack.c.h.b16 %v235
    %v2939 = vunpack.c.l.b16 %v236
    %v2940 = vunpack.c.h.b16 %v236
    %v2941 = vunpack.c.l.b16 %v237
    %v2942 = vunpack.c.h.b16 %v237
    %v2943 = vunpack.c.l.b16 %v238
    %v2944 = vunpack.c.h.b16 %v238
    %v2945 = vunpack.c.l.b16 %v239
    %v2946 = vunpack.c.h.b16 %v239
    %v2947 = vunpack.c.l.b16 %v240
    %v2948 = vunpack.c.h.b16 %v240
    %v2949 = vunpack.c.l.b16 %v241
    %v2950 = vunpack.c.h.b16 %v241
    %v2951 = vunpack.c.l.b16 %v242
    %v2952 = vunpack.c.h.b16 %v242
    %v2953 = vunpack.c.l.b16 %v243
    %v2954 = vunpack.c.h.b16 %v243
    %v2955 = vunpack.c.l.b16 %v244
    %v2956 = vunpack.c.h.b16 %v244
    %v2957 = vunpack.c.l.b16 %v245
    %v2958 = vunpack.c.h.b16 %v245
    %v2959 = vunpack.c.l.b16 %v246
    %v2960 = vunpack.c.h.b16 %v246
    %v2961 = vunpack.c.l.b16 %v247
    %v2962 = vunpack.c.h.b16 %v247
    %v2963 = vunpack.c.l.b16 %v248
    %v2964 = vunpack.c.h.b16 %v248
    %v2965 = vunpack.c.l.b16 %v249
    %v2966 = vunpack.c.h.b16 %v249
    %v2967 = vunpack.c.l.b16 %v250
    %v2968 = vunpack.c.h.b16 %v250
    %v2969 = vunpack.c.l.b16 %v251
    %v2970 = vunpack.c.h.b16 %v251
    %v2971 = vunpack.c.l.b16 %v252
    %v2972 = vunpack.c.h.b16 %v252
    %v2973 = vunpack.c.l.b16 %v253
    %v2974 = vunpack.c.h.b16 %v253
    %v2975 = vunpack.c.l.b16 %v254
    %v2976 = vunpack.c.h.b16 %v254
    %v2977 = vunpack.c.l.b16 %v255
    %v2978 = vunpack.c.h.b16 %v255
    %v2979 = vunpack.c.l.b16 %v256
    %v2980 = vunpack.c.h.b16 %v256
    %v2981 = vunpack.c.l.b16 %v257
    %v2982 = vunpack.c.h.b16 %v257
    %v2983 = vunpack.c.l.b16 %v258
    %v2984 = vunpack.c.h.b16 %v258
    %v2985 = vunpack.c.l.b16 %v259
    %v2986 = vunpack.c.h.b16 %v259
    %v2987 = vunpack.c.l.b16 %v260
    %v2988 = vunpack.c.h.b16 %v260
    %v2989 = vunpack.c.l.b16 %v261
    %v2990 = vunpack.c.h.b16 %v261
    %v2991 = vunpack.c.l.b16 %v262
    %v2992 = vunpack.c.h.b16 %v262
    %v2993 = vunpack.c.l.b16 %v263
    %v2994 = vunpack.c.h.b16 %v263
    %v2995 = vunpack.c.l.b16 %v264
    %v2996 = vunpack.c.h.b16 %v264
    %v2997 = vunpack.c.l.b16 %v265
    %v2998 = vunpack.c.h.b16 %v265
    %v2999 = vunpack.c.l.b16 %v266
    %v3000 = vunpack.c.h.b16 %v266
    %v3001 = vunpack.c.l.b16 %v267
    %v3002 = vunpack.c.h.b16 %v267
    %v3003 = vunpack.c.l.b16 %v268
    %v3004 = vunpack.c.h.b16 %v268
    %v3005 = vunpack.c.l.b16 %v269
    %v3006 = vunpack.c.h.b16 %v269
    %v3007 = vunpack.c.l.b16 %v270
    %v3008 = vunpack.c.h.b16 %v270
    %v3009 = vunpack.c.l.b16 %v271
    %v3010 = vunpack.c.h.b16 %v271
    %v3011 = vunpack.c.l.b16 %v272
    %v3012 = vunpack.c.h.b16 %v272
    %v3013 = vunpack.c.l.b16 %v273
    %v3014 = vunpack.c.h.b16 %v273
    %v3015 = vunpack.c.l.b16 %v274
    %v3016 = vunpack.c.h.b16 %v274
    %v3017 = vunpack.c.l.b16 %v275
    %v3018 = vunpack.c.h.b16 %v275
    %v3019 = vunpack.c.l.b16 %v276
    %v3020 = vunpack.c.h.b16 %v276
    %v3021 = vunpack.c.l.b16 %v277
    %v3022 = vunpack.c.h.b16 %v277
    %v3023 = vunpack.c.l.b16 %v278
    %v3024 = vunpack.c.h.b16 %v278
    %v3025 = vunpack.c.l.b16 %v279
    %v3026 = vunpack.c.h.b16 %v279
    %v3027 = vunpack.c.l.b16 %v280
    %v3028 = vunpack.c.h.b16 %v280
    %v3029 = vunpack.c.l.b16 %v281
    %v3030 = vunpack.c.h.b16 %v281
    %v3031 = vunpack.c.l.b16 %v282
    %v3032 = vunpack.c.h.b16 %v282
    %v3033 = vunpack.c.l.b16 %v283
    %v3034 = vunpack.c.h.b16 %v283
    %v3035 = vunpack.c.l.b16 %v284
    %v3036 = vunpack.c.h.b16 %v284
    %v3037 = vunpack.c.l.b16 %v285
    %v3038 = vunpack.c.h.b16 %v285
    %v3039 = vunpack.c.l.b16 %v286
    %v3040 = vunpack.c.h.b16 %v286
    %v3041 = vunpack.c.l.b16 %v287
    %v3042 = vunpack.c.h.b16 %v287
    %v3043 = vunpack.c.l.b16 %v288
    %v3044 = vunpack.c.h.b16 %v288
    %v3045 = vunpack.c.l.b16 %v289
    %v3046 = vunpack.c.h.b16 %v289
    %v3047 = vunpack.c.l.b16 %v290
    %v3048 = vunpack.c.h.b16 %v290
    %v3049 = vunpack.c.l.b16 %v291
    %v3050 = vunpack.c.h.b16 %v291
    %v3051 = vunpack.c.l.b16 %v292
    %v3052 = vunpack.c.h.b16 %v292
    %v3053 = vunpack.c.l.b16 %v293
    %v3054 = vunpack.c.h.b16 %v293
    %v3055 = vunpack.c.l.b16 %v294
    %v3056 = vunpack.c.h.b16 %v294
    %v3057 = vunpack.c.l.b16 %v295
    %v3058 = vunpack.c.h.b16 %v295
    %v3059 = vunpack.c.l.b16 %v296
    %v3060 = vunpack.c.h.b16 %v296
    %v3061 = vunpack.c.l.b16 %v297
    %v3062 = vunpack.c.h.b16 %v297
    %v3063 = vunpack.c.l.b16 %v298
    %v3064 = vunpack.c.h.b16 %v298
    %v3065 = vunpack.c.l.b16 %v299
    %v3066 = vunpack.c.h.b16 %v299
    %v3067 = vunpack.c.l.b16 %v300
    %v3068 = vunpack.c.h.b16 %v300
    %v3069 = vunpack.c.l.b16 %v301
    %v3070 = vunpack.c.h.b16 %v301
    %v3071 = vunpack.c.l.b16 %v302
    %v3072 = vunpack.c.h.b16 %v302
    %v3073 = vunpack.c.l.b16 %v303
    %v3074 = vunpack.c.h.b16 %v303
    %v3075 = vunpack.c.l.b16 %v304
    %v3076 = vunpack.c.h.b16 %v304
    %v3077 = vunpack.c.l.b16 %v305
    %v3078 = vunpack.c.h.b16 %v305
    %v3079 = vunpack.c.l.b16 %v306
    %v3080 = vunpack.c.h.b16 %v306
    %v3081 = vunpack.c.l.b16 %v307
    %v3082 = vunpack.c.h.b16 %v307
    %v3083 = vunpack.c.l.b16 %v308
    %v3084 = vunpack.c.h.b16 %v308
    %v3085 = vunpack.c.l.b16 %v309
    %v3086 = vunpack.c.h.b16 %v309
    %v3087 = vunpack.c.l.b16 %v310
    %v3088 = vunpack.c.h.b16 %v310
    %v3089 = vunpack.c.l.b16 %v311
    %v3090 = vunpack.c.h.b16 %v311
    %v3091 = vunpack.c.l.b16 %v312
    %v3092 = vunpack.c.h.b16 %v312
    %v3093 = vunpack.c.l.b16 %v313
    %v3094 = vunpack.c.h.b16 %v313
    %v3095 = vunpack.c.l.b16 %v314
    %v3096 = vunpack.c.h.b16 %v314
    %v3097 = vunpack.c.l.b16 %v315
    %v3098 = vunpack.c.h.b16 %v315
    %v3099 = vunpack.c.l.b16 %v316
    %v3100 = vunpack.c.h.b16 %v316
    %v3101 = vunpack.c.l.b16 %v317
    %v3102 = vunpack.c.h.b16 %v317
    %v3103 = vunpack.c.l.b16 %v318
    %v3104 = vunpack.c.h.b16 %v318
    %v3105 = vunpack.c.l.b16 %v319
    %v3106 = vunpack.c.h.b16 %v319
    %v3107 = vunpack.c.l.b16 %v320
    %v3108 = vunpack.c.h.b16 %v320
    %v3109 = vunpack.c.l.b16 %v321
    %v3110 = vunpack.c.h.b16 %v321
    %v3111 = vunpack.c.l.b16 %v322
    %v3112 = vunpack.c.h.b16 %v322
    %v3113 = vunpack.c.l.b16 %v323
    %v3114 = vunpack.c.h.b16 %v323
    %v3115 = vunpack.c.l.b16 %v324
    %v3116 = vunpack.c.h.b16 %v324
    %v3117 = vunpack.c.l.b16 %v325
    %v3118 = vunpack.c.h.b16 %v325
    %v3119 = vunpack.c.l.b16 %v326
    %v3120 = vunpack.c.h.b16 %v326
    %v3121 = vunpack.c.l.b16 %v327
    %v3122 = vunpack.c.h.b16 %v327
    %v3123 = vunpack.c.l.b16 %v328
    %v3124 = vunpack.c.h.b16 %v328
    %v3125 = vunpack.c.l.b16 %v329
    %v3126 = vunpack.c.h.b16 %v329
    %v3127 = vunpack.c.l.b16 %v330
    %v3128 = vunpack.c.h.b16 %v330
    %v3129 = vunpack.c.l.b16 %v331
    %v3130 = vunpack.c.h.b16 %v331
    %v3131 = vunpack.c.l.b16 %v332
    %v3132 = vunpack.c.h.b16 %v332
    %v3133 = vunpack.c.l.b16 %v333
    %v3134 = vunpack.c.h.b16 %v333
    %v3135 = vunpack.c.l.b16 %v334
    %v3136 = vunpack.c.h.b16 %v334
    %v3137 = vunpack.c.l.b16 %v335
    %v3138 = vunpack.c.h.b16 %v335
    %v3139 = vunpack.c.l.b16 %v336
    %v3140 = vunpack.c.h.b16 %v336
    %v3141 = vunpack.c.l.b16 %v337
    %v3142 = vunpack.c.h.b16 %v337
    %v3143 = vunpack.c.l.b16 %v338
    %v3144 = vunpack.c.h.b16 %v338
    %v3145 = vunpack.c.l.b16 %v339
    %v3146 = vunpack.c.h.b16 %v339
    %v3147 = vunpack.c.l.b16 %v340
    %v3148 = vunpack.c.h.b16 %v340
    %v3149 = vunpack.c.l.b16 %v341
    %v3150 = vunpack.c.h.b16 %v341
    %v3151 = vunpack.c.l.b16 %v342
    %v3152 = vunpack.c.h.b16 %v342
    %v3153 = vunpack.c.l.b16 %v343
    %v3154 = vunpack.c.h.b16 %v343
    %v3155 = vunpack.c.l.b16 %v344
    %v3156 = vunpack.c.h.b16 %v344
    %v3157 = vunpack.c.l.b16 %v345
    %v3158 = vunpack.c.h.b16 %v345
    %v3159 = vunpack.c.l.b16 %v346
    %v3160 = vunpack.c.h.b16 %v346
    %v3161 = vunpack.c.l.b16 %v347
    %v3162 = vunpack.c.h.b16 %v347
    %v3163 = vunpack.c.l.b16 %v348
    %v3164 = vunpack.c.h.b16 %v348
    %v3165 = vunpack.c.l.b16 %v349
    %v3166 = vunpack.c.h.b16 %v349
    %v3167 = vunpack.c.l.b16 %v350
    %v3168 = vunpack.c.h.b16 %v350
    %v3169 = vunpack.c.l.b16 %v351
    %v3170 = vunpack.c.h.b16 %v351
    %v3171 = vunpack.c.l.b16 %v352
    %v3172 = vunpack.c.h.b16 %v352
    %v3173 = vunpack.c.l.b16 %v353
    %v3174 = vunpack.c.h.b16 %v353
    %v3175 = vunpack.c.l.b16 %v354
    %v3176 = vunpack.c.h.b16 %v354
    %v3177 = vunpack.c.l.b16 %v355
    %v3178 = vunpack.c.h.b16 %v355
    %v3179 = vunpack.c.l.b16 %v356
    %v3180 = vunpack.c.h.b16 %v356
    %v3181 = vunpack.c.l.b16 %v357
    %v3182 = vunpack.c.h.b16 %v357
    %v3183 = vunpack.c.l.b16 %v358
    %v3184 = vunpack.c.h.b16 %v358
    %v3185 = vunpack.c.l.b16 %v359
    %v3186 = vunpack.c.h.b16 %v359
    %v3187 = vunpack.c.l.b16 %v360
    %v3188 = vunpack.c.h.b16 %v360
    %v3189 = vunpack.c.l.b16 %v361
    %v3190 = vunpack.c.h.b16 %v361
    %v3191 = vunpack.c.l.b16 %v362
    %v3192 = vunpack.c.h.b16 %v362
    %v3193 = vunpack.c.l.b16 %v363
    %v3194 = vunpack.c.h.b16 %v363
    %v3195 = vunpack.c.l.b16 %v364
    %v3196 = vunpack.c.h.b16 %v364
    %v3197 = vunpack.c.l.b16 %v365
    %v3198 = vunpack.c.h.b16 %v365
    %v3199 = vunpack.c.l.b16 %v366
    %v3200 = vunpack.c.h.b16 %v366
    %v3201 = vunpack.c.l.b16 %v367
    %v3202 = vunpack.c.h.b16 %v367
    %v3203 = vunpack.c.l.b16 %v368
    %v3204 = vunpack.c.h.b16 %v368
    %v3205 = vunpack.c.l.b16 %v369
    %v3206 = vunpack.c.h.b16 %v369
    %v3207 = vunpack.c.l.b16 %v370
    %v3208 = vunpack.c.h.b16 %v370
    %v3209 = vunpack.c.l.b16 %v371
    %v3210 = vunpack.c.h.b16 %v371
    %v3211 = vunpack.c.l.b16 %v372
    %v3212 = vunpack.c.h.b16 %v372
    %v3213 = vunpack.c.l.b16 %v373
    %v3214 = vunpack.c.h.b16 %v373
    %v3215 = vunpack.c.l.b16 %v374
    %v3216 = vunpack.c.h.b16 %v374
    %v3217 = vunpack.c.l.b16 %v375
    %v3218 = vunpack.c.h.b16 %v375
    %v3219 = vunpack.c.l.b16 %v376
    %v3220 = vunpack.c.h.b16 %v376
    %v3221 = vunpack.c.l.b16 %v377
    %v3222 = vunpack.c.h.b16 %v377
    %v3223 = vunpack.c.l.b16 %v378
    %v3224 = vunpack.c.h.b16 %v378
    %v3225 = vunpack.c.l.b16 %v379
    %v3226 = vunpack.c.h.b16 %v379
    %v3227 = vunpack.c.l.b16 %v380
    %v3228 = vunpack.c.h.b16 %v380
    %v3229 = vunpack.c.l.b16 %v381
    %v3230 = vunpack.c.h.b16 %v381
    %v3231 = vunpack.c.l.b16 %v382
    %v3232 = vunpack.c.h.b16 %v382
    %v3233 = vunpack.c.l.b16 %v383
    %v3234 = vunpack.c.h.b16 %v383
    %v3235 = vunpack.c.l.b16 %v384
    %v3236 = vunpack.c.h.b16 %v384
    %v3237 = vunpack.c.l.b16 %v385
    %v3238 = vunpack.c.h.b16 %v385
    %v3239 = vunpack.c.l.b16 %v386
    %v3240 = vunpack.c.h.b16 %v386
    %v3241 = vunpack.c.l.b16 %v387
    %v3242 = vunpack.c.h.b16 %v387
    %v3243 = vunpack.c.l.b16 %v388
    %v3244 = vunpack.c.h.b16 %v388
    %v3245 = vunpack.c.l.b16 %v389
    %v3246 = vunpack.c.h.b16 %v389
    %v3247 = vunpack.c.l.b16 %v390
    %v3248 = vunpack.c.h.b16 %v390
    %v3249 = vunpack.c.l.b16 %v391
    %v3250 = vunpack.c.h.b16 %v391
    %v3251 = vunpack.c.l.b16 %v392
    %v3252 = vunpack.c.h.b16 %v392
    %v3253 = vunpack.c.l.b16 %v393
    %v3254 = vunpack.c.h.b16 %v393
    %v3255 = vunpack.c.l.b16 %v394
    %v3256 = vunpack.c.h.b16 %v394
    %v3257 = vunpack.c.l.b16 %v395
    %v3258 = vunpack.c.h.b16 %v395
    %v3259 = vunpack.c.l.b16 %v396
    %v3260 = vunpack.c.h.b16 %v396
    %v3261 = vunpack.c.l.b16 %v397
    %v3262 = vunpack.c.h.b16 %v397
    %v3263 = vunpack.c.l.b16 %v398
    %v3264 = vunpack.c.h.b16 %v398
    %v3265 = vunpack.c.l.b16 %v399
    %v3266 = vunpack.c.h.b16 %v399
    %v3267 = vunpack.c.l.b16 %v400
    %v3268 = vunpack.c.h.b16 %v400
    %v3269 = vunpack.c.l.b16 %v401
    %v3270 = vunpack.c.h.b16 %v401
    %v3271 = vunpack.c.l.b16 %v402
    %v3272 = vunpack.c.h.b16 %v402
    %v3273 = vunpack.c.l.b16 %v403
    %v3274 = vunpack.c.h.b16 %v403
    %v3275 = vunpack.c.l.b16 %v404
    %v3276 = vunpack.c.h.b16 %v404
    %v3277 = vunpack.c.l.b16 %v405
    %v3278 = vunpack.c.h.b16 %v405
    %v3279 = vunpack.c.l.b16 %v406
    %v3280 = vunpack.c.h.b16 %v406
    %v3281 = vunpack.c.l.b16 %v407
    %v3282 = vunpack.c.h.b16 %v407
    %v3283 = vunpack.c.l.b16 %v408
    %v3284 = vunpack.c.h.b16 %v408
    %v3285 = vunpack.c.l.b16 %v409
    %v3286 = vunpack.c.h.b16 %v409
    %v3287 = vunpack.c.l.b16 %v410
    %v3288 = vunpack.c.h.b16 %v410
    %v3289 = vunpack.c.l.b16 %v411
    %v3290 = vunpack.c.h.b16 %v411
    %v3291 = vunpack.c.l.b16 %v412
    %v3292 = vunpack.c.h.b16 %v412
    %v3293 = vunpack.c.l.b16 %v413
    %v3294 = vunpack.c.h.b16 %v413
    %v3295 = vunpack.c.l.b16 %v414
    %v3296 = vunpack.c.h.b16 %v414
    %v3297 = vunpack.c.l.b16 %v415
    %v3298 = vunpack.c.h.b16 %v415
    %v3299 = vunpack.c.l.b16 %v416
    %v3300 = vunpack.c.h.b16 %v416
    %v3301 = vunpack.c.l.b16 %v417
    %v3302 = vunpack.c.h.b16 %v417
    %v3303 = vunpack.c.l.b16 %v418
    %v3304 = vunpack.c.h.b16 %v418
    %v3305 = vunpack.c.l.b16 %v419
    %v3306 = vunpack.c.h.b16 %v419
    %v3307 = vunpack.c.l.b16 %v420
    %v3308 = vunpack.c.h.b16 %v420
    %v3309 = vunpack.c.l.b16 %v421
    %v3310 = vunpack.c.h.b16 %v421
    %v3311 = vunpack.c.l.b16 %v422
    %v3312 = vunpack.c.h.b16 %v422
    %v3313 = vunpack.c.l.b16 %v423
    %v3314 = vunpack.c.h.b16 %v423
    %v3315 = vunpack.c.l.b16 %v424
    %v3316 = vunpack.c.h.b16 %v424
    %v3317 = vunpack.c.l.b16 %v425
    %v3318 = vunpack.c.h.b16 %v425
    %v3319 = vunpack.c.l.b16 %v426
    %v3320 = vunpack.c.h.b16 %v426
    %v3321 = vunpack.c.l.b16 %v427
    %v3322 = vunpack.c.h.b16 %v427
    %v3323 = vunpack.c.l.b16 %v428
    %v3324 = vunpack.c.h.b16 %v428
    %v3325 = vunpack.c.l.b16 %v429
    %v3326 = vunpack.c.h.b16 %v429
    %v3327 = vunpack.c.l.b16 %v430
    %v3328 = vunpack.c.h.b16 %v430
    %v3329 = vunpack.c.l.b16 %v431
    %v3330 = vunpack.c.h.b16 %v431
    %v3331 = vunpack.c.l.b16 %v432
    %v3332 = vunpack.c.h.b16 %v432
    %v3333 = vunpack.c.l.b16 %v433
    %v3334 = vunpack.c.h.b16 %v433
    %v3335 = vunpack.c.l.b16 %v434
    %v3336 = vunpack.c.h.b16 %v434
    %v3337 = vunpack.c.l.b16 %v435
    %v3338 = vunpack.c.h.b16 %v435
    %v3339 = vunpack.c.l.b16 %v436
    %v3340 = vunpack.c.h.b16 %v436
    %v3341 = vunpack.c.l.b16 %v437
    %v3342 = vunpack.c.h.b16 %v437
    %v3343 = vunpack.c.l.b16 %v438
    %v3344 = vunpack.c.h.b16 %v438
    %v3345 = vunpack.c.l.b16 %v439
    %v3346 = vunpack.c.h.b16 %v439
    %v3347 = vunpack.c.l.b16 %v440
    %v3348 = vunpack.c.h.b16 %v440
    %v3349 = vunpack.c.l.b16 %v441
    %v3350 = vunpack.c.h.b16 %v441
    %v3351 = vunpack.c.l.b16 %v442
    %v3352 = vunpack.c.h.b16 %v442
    %v3353 = vunpack.c.l.b16 %v443
    %v3354 = vunpack.c.h.b16 %v443
    %v3355 = vunpack.c.l.b16 %v444
    %v3356 = vunpack.c.h.b16 %v444
    %v3357 = vunpack.c.l.b16 %v445
    %v3358 = vunpack.c.h.b16 %v445
    %v3359 = vunpack.c.l.b16 %v446
    %v3360 = vunpack.c.h.b16 %v446
    %v3361 = vunpack.c.l.b16 %v447
    %v3362 = vunpack.c.h.b16 %v447
    %v3363 = vunpack.c.l.b16 %v448
    %v3364 = vunpack.c.h.b16 %v448
    %v3365 = vunpack.c.l.b16 %v449
    %v3366 = vunpack.c.h.b16 %v449
    %v3367 = vunpack.c.l.b16 %v450
    %v3368 = vunpack.c.h.b16 %v450
    %v3369 = vunpack.c.l.b16 %v451
    %v3370 = vunpack.c.h.b16 %v451
    %v3371 = vunpack.c.l.b16 %v452
    %v3372 = vunpack.c.h.b16 %v452
    %v3373 = vunpack.c.l.b16 %v453
    %v3374 = vunpack.c.h.b16 %v453
    %v3375 = vunpack.c.l.b16 %v454
    %v3376 = vunpack.c.h.b16 %v454
    %v3377 = vunpack.c.l.b16 %v455
    %v3378 = vunpack.c.h.b16 %v455
    %v3379 = vunpack.c.l.b16 %v456
    %v3380 = vunpack.c.h.b16 %v456
    %v3381 = vunpack.c.l.b16 %v457
    %v3382 = vunpack.c.h.b16 %v457
    %v3383 = vunpack.c.l.b16 %v458
    %v3384 = vunpack.c.h.b16 %v458
    %v3385 = vunpack.c.l.b16 %v459
    %v3386 = vunpack.c.h.b16 %v459
    %v3387 = vunpack.c.l.b16 %v460
    %v3388 = vunpack.c.h.b16 %v460
    %v3389 = vunpack.c.l.b16 %v461
    %v3390 = vunpack.c.h.b16 %v461
    %v3391 = vunpack.c.l.b16 %v462
    %v3392 = vunpack.c.h.b16 %v462
    %v3393 = vunpack.c.l.b16 %v463
    %v3394 = vunpack.c.h.b16 %v463
    %v3395 = vunpack.c.l.b16 %v464
    %v3396 = vunpack.c.h.b16 %v464
    %v3397 = vunpack.c.l.b16 %v465
    %v3398 = vunpack.c.h.b16 %v465
    %v3399 = vunpack.c.l.b16 %v466
    %v3400 = vunpack.c.h.b16 %v466
    %v3401 = vunpack.c.l.b16 %v467
    %v3402 = vunpack.c.h.b16 %v467
    %v3403 = vunpack.c.l.b16 %v468
    %v3404 = vunpack.c.h.b16 %v468
    %v3405 = vunpack.c.l.b16 %v469
    %v3406 = vunpack.c.h.b16 %v469
    %v3407 = vunpack.c.l.b16 %v470
    %v3408 = vunpack.c.h.b16 %v470
    %v3409 = vunpack.c.l.b16 %v471
    %v3410 = vunpack.c.h.b16 %v471
    %v3411 = vunpack.c.l.b16 %v472
    %v3412 = vunpack.c.h.b16 %v472
    %v3413 = vunpack.c.l.b16 %v473
    %v3414 = vunpack.c.h.b16 %v473
    %v3415 = vunpack.c.l.b16 %v474
    %v3416 = vunpack.c.h.b16 %v474
    %v3417 = vunpack.c.l.b16 %v475
    %v3418 = vunpack.c.h.b16 %v475
    %v3419 = vunpack.c.l.b16 %v476
    %v3420 = vunpack.c.h.b16 %v476
    %v3421 = vunpack.c.l.b16 %v477
    %v3422 = vunpack.c.h.b16 %v477
    %v3423 = vunpack.c.l.b16 %v478
    %v3424 = vunpack.c.h.b16 %v478
    %v3425 = vunpack.c.l.b16 %v479
    %v3426 = vunpack.c.h.b16 %v479
    %v3427 = vunpack.c.l.b16 %v480
    %v3428 = vunpack.c.h.b16 %v480
    %v3429 = vunpack.c.l.b16 %v481
    %v3430 = vunpack.c.h.b16 %v481
    %v3431 = vunpack.c.l.b16 %v482
    %v3432 = vunpack.c.h.b16 %v482
    %v3433 = vunpack.c.l.b16 %v483
    %v3434 = vunpack.c.h.b16 %v483
    %v3435 = vunpack.c.l.b16 %v484
    %v3436 = vunpack.c.h.b16 %v484
    %v3437 = vunpack.c.l.b16 %v485
    %v3438 = vunpack.c.h.b16 %v485
    %v3439 = vunpack.c.l.b16 %v486
    %v3440 = vunpack.c.h.b16 %v486
    %v3441 = vunpack.c.l.b16 %v487
    %v3442 = vunpack.c.h.b16 %v487
    %v3443 = vunpack.c.l.b16 %v488
    %v3444 = vunpack.c.h.b16 %v488
    %v3445 = vunpack.c.l.b16 %v489
    %v3446 = vunpack.c.h.b16 %v489
    %v3447 = vunpack.c.l.b16 %v490
    %v3448 = vunpack.c.h.b16 %v490
    %v3449 = vunpack.c.l.b16 %v491
    %v3450 = vunpack.c.h.b16 %v491
    %v3451 = vunpack.c.l.b16 %v492
    %v3452 = vunpack.c.h.b16 %v492
    %v3453 = vunpack.c.l.b16 %v493
    %v3454 = vunpack.c.h.b16 %v493
    %v3455 = vunpack.c.l.b16 %v494
    %v3456 = vunpack.c.h.b16 %v494
    %v3457 = vunpack.c.l.b16 %v495
    %v3458 = vunpack.c.h.b16 %v495
    %v3459 = vunpack.c.l.b16 %v496
    %v3460 = vunpack.c.h.b16 %v496
    %v3461 = vunpack.c.l.b16 %v497
    %v3462 = vunpack.c.h.b16 %v497
    %v3463 = vunpack.c.l.b16 %v498
    %v3464 = vunpack.c.h.b16 %v498
    %v3465 = vunpack.c.l.b16 %v499
    %v3466 = vunpack.c.h.b16 %v499
    %v3467 = vunpack.c.l.b16 %v500
    %v3468 = vunpack.c.h.b16 %v500
    %v3469 = vunpack.c.l.b16 %v501
    %v3470 = vunpack.c.h.b16 %v501
    %v3471 = vunpack.c.l.b16 %v502
    %v3472 = vunpack.c.h.b16 %v502
    %v3473 = vunpack.c.l.b16 %v503
    %v3474 = vunpack.c.h.b16 %v503
    %v3475 = vunpack.c.l.b16 %v504
    %v3476 = vunpack.c.h.b16 %v504
    %v3477 = vunpack.c.l.b16 %v505
    %v3478 = vunpack.c.h.b16 %v505
    %v3479 = vunpack.c.l.b16 %v506
    %v3480 = vunpack.c.h.b16 %v506
    %v3481 = vunpack.c.l.b16 %v507
    %v3482 = vunpack.c.h.b16 %v507
    %v3483 = vunpack.c.l.b16 %v508
    %v3484 = vunpack.c.h.b16 %v508
    %v3485 = vunpack.c.l.b16 %v509
    %v3486 = vunpack.c.h.b16 %v509
    %v3487 = vunpack.c.l.b16 %v510
    %v3488 = vunpack.c.h.b16 %v510
    %v3489 = vunpack.c.l.b16 %v511
    %v3490 = vunpack.c.h.b16 %v511
    %v3491 = vunpack.c.l.b16 %v512
    %v3492 = vunpack.c.h.b16 %v512
    %v3493 = vunpack.c.l.b16 %v513
    %v3494 = vunpack.c.h.b16 %v513
    %v3495 = vunpack.c.l.b16 %v514
    %v3496 = vunpack.c.h.b16 %v514
    %v3497 = vunpack.c.l.b16 %v515
    %v3498 = vunpack.c.h.b16 %v515
    %v3499 = vunpack.c.l.b16 %v516
    %v3500 = vunpack.c.h.b16 %v516
    %v3501 = vunpack.c.l.b16 %v517
    %v3502 = vunpack.c.h.b16 %v517
    %v3503 = vunpack.c.l.b16 %v518
    %v3504 = vunpack.c.h.b16 %v518
    %v3505 = vunpack.c.l.b16 %v519
    %v3506 = vunpack.c.h.b16 %v519
    %v3507 = vunpack.c.l.b16 %v520
    %v3508 = vunpack.c.h.b16 %v520
    %v3509 = vunpack.c.l.b16 %v521
    %v3510 = vunpack.c.h.b16 %v521
    %v3511 = vunpack.c.l.b16 %v522
    %v3512 = vunpack.c.h.b16 %v522
    %v3513 = vunpack.c.l.b16 %v523
    %v3514 = vunpack.c.h.b16 %v523
    %v3515 = vunpack.c.l.b16 %v524
    %v3516 = vunpack.c.h.b16 %v524
    %v3517 = vunpack.c.l.b16 %v525
    %v3518 = vunpack.c.h.b16 %v525
    %v3519 = vunpack.c.l.b16 %v526
    %v3520 = vunpack.c.h.b16 %v526
    %v3521 = vunpack.c.l.b16 %v527
    %v3522 = vunpack.c.h.b16 %v527
    %v3523 = vunpack.c.l.b16 %v528
    %v3524 = vunpack.c.h.b16 %v528
    %v3525 = vunpack.c.l.b16 %v529
    %v3526 = vunpack.c.h.b16 %v529
    %v3527 = vunpack.c.l.b16 %v530
    %v3528 = vunpack.c.h.b16 %v530
    %v3529 = vunpack.c.l.b16 %v531
    %v3530 = vunpack.c.h.b16 %v531
    %v3531 = vunpack.c.l.b16 %v532
    %v3532 = vunpack.c.h.b16 %v532
    %v3533 = vunpack.c.l.b16 %v533
    %v3534 = vunpack.c.h.b16 %v533
    %v3535 = vunpack.c.l.b16 %v534
    %v3536 = vunpack.c.h.b16 %v534
    %v3537 = vunpack.c.l.b16 %v535
    %v3538 = vunpack.c.h.b16 %v535
    %v3539 = vunpack.c.l.b16 %v536
    %v3540 = vunpack.c.h.b16 %v536
    %v3541 = vunpack.c.l.b16 %v537
    %v3542 = vunpack.c.h.b16 %v537
    %v3543 = vunpack.c.l.b16 %v538
    %v3544 = vunpack.c.h.b16 %v538
    %v3545 = vunpack.c.l.b16 %v539
    %v3546 = vunpack.c.h.b16 %v539
    %v3547 = vunpack.c.l.b16 %v540
    %v3548 = vunpack.c.h.b16 %v540
    %v3549 = vunpack.c.l.b16 %v541
    %v3550 = vunpack.c.h.b16 %v541
    %v3551 = vunpack.c.l.b16 %v542
    %v3552 = vunpack.c.h.b16 %v542
    %v3553 = vunpack.c.l.b16 %v543
    %v3554 = vunpack.c.h.b16 %v543
    %v3555 = vunpack.c.l.b16 %v544
    %v3556 = vunpack.c.h.b16 %v544
    %v3557 = vunpack.c.l.b16 %v545
    %v3558 = vunpack.c.h.b16 %v545
    %v3559 = vunpack.c.l.b16 %v546
    %v3560 = vunpack.c.h.b16 %v546
    %v3561 = vunpack.c.l.b16 %v547
    %v3562 = vunpack.c.h.b16 %v547
    %v3563 = vunpack.c.l.b16 %v548
    %v3564 = vunpack.c.h.b16 %v548
    %v3565 = vunpack.c.l.b16 %v549
    %v3566 = vunpack.c.h.b16 %v549
    %v3567 = vunpack.c.l.b16 %v550
    %v3568 = vunpack.c.h.b16 %v550
    %v3569 = vunpack.c.l.b16 %v551
    %v3570 = vunpack.c.h.b16 %v551
    %v3571 = vunpack.c.l.b16 %v552
    %v3572 = vunpack.c.h.b16 %v552
    %v3573 = vunpack.c.l.b16 %v553
    %v3574 = vunpack.c.h.b16 %v553
    %v3575 = vunpack.c.l.b16 %v554
    %v3576 = vunpack.c.h.b16 %v554
    %v3577 = vunpack.c.l.b16 %v555
    %v3578 = vunpack.c.h.b16 %v555
    %v3579 = vunpack.c.l.b16 %v556
    %v3580 = vunpack.c.h.b16 %v556
    %v3581 = vunpack.c.l.b16 %v557
    %v3582 = vunpack.c.h.b16 %v557
    %v3583 = vunpack.c.l.b16 %v558
    %v3584 = vunpack.c.h.b16 %v558
    %v3585 = vunpack.c.l.b16 %v559
    %v3586 = vunpack.c.h.b16 %v559
    %v3587 = vunpack.c.l.b16 %v560
    %v3588 = vunpack.c.h.b16 %v560
    %v3589 = vunpack.c.l.b16 %v561
    %v3590 = vunpack.c.h.b16 %v561
    %v3591 = vunpack.c.l.b16 %v562
    %v3592 = vunpack.c.h.b16 %v562
    %v3593 = vunpack.c.l.b16 %v563
    %v3594 = vunpack.c.h.b16 %v563
    %v3595 = vunpack.c.l.b16 %v564
    %v3596 = vunpack.c.h.b16 %v564
    %v3597 = vunpack.c.l.b16 %v565
    %v3598 = vunpack.c.h.b16 %v565
    %v3599 = vunpack.c.l.b16 %v566
    %v3600 = vunpack.c.h.b16 %v566
    %v3601 = vunpack.c.l.b16 %v567
    %v3602 = vunpack.c.h.b16 %v567
    %v3603 = vunpack.c.l.b16 %v568
    %v3604 = vunpack.c.h.b16 %v568
    %v3605 = vunpack.c.l.b16 %v569
    %v3606 = vunpack.c.h.b16 %v569
    %v3607 = vunpack.c.l.b16 %v570
    %v3608 = vunpack.c.h.b16 %v570
    %v3609 = vunpack.c.l.b16 %v571
    %v3610 = vunpack.c.h.b16 %v571
    %v3611 = vunpack.c.l.b16 %v572
    %v3612 = vunpack.c.h.b16 %v572
    %v3613 = vunpack.c.l.b16 %v573
    %v3614 = vunpack.c.h.b16 %v573
    %v3615 = vunpack.c.l.b16 %v574
    %v3616 = vunpack.c.h.b16 %v574
    %v3617 = vunpack.c.l.b16 %v575
    %v3618 = vunpack.c.h.b16 %v575
    %v3619 = vunpack.c.l.b16 %v576
    %v3620 = vunpack.c.h.b16 %v576
    %v3621 = vunpack.c.l.b16 %v577
    %v3622 = vunpack.c.h.b16 %v577
    %v3623 = vunpack.c.l.b16 %v578
    %v3624 = vunpack.c.h.b16 %v578
    %v3625 = vunpack.c.l.b16 %v579
    %v3626 = vunpack.c.h.b16 %v579
    %v3627 = vunpack.c.l.b16 %v580
    %v3628 = vunpack.c.h.b16 %v580
    %v3629 = vunpack.c.l.b16 %v581
    %v3630 = vunpack.c.h.b16 %v581
    %v3631 = vunpack.c.l.b16 %v582
    %v3632 = vunpack.c.h.b16 %v582
    %v3633 = vunpack.c.l.b16 %v583
    %v3634 = vunpack.c.h.b16 %v583
    %v3635 = vunpack.c.l.b16 %v584
    %v3636 = vunpack.c.h.b16 %v584
    %v3637 = vunpack.c.l.b16 %v585
    %v3638 = vunpack.c.h.b16 %v585
    %v3639 = vunpack.c.l.b16 %v586
    %v3640 = vunpack.c.h.b16 %v586
    %v3641 = vunpack.c.l.b16 %v587
    %v3642 = vunpack.c.h.b16 %v587
    %v3643 = vunpack.c.l.b16 %v588
    %v3644 = vunpack.c.h.b16 %v588
    %v3645 = vunpack.c.l.b16 %v589
    %v3646 = vunpack.c.h.b16 %v589
    %v3647 = vunpack.c.l.b16 %v590
    %v3648 = vunpack.c.h.b16 %v590
    %v3649 = vunpack.c.l.b16 %v591
    %v3650 = vunpack.c.h.b16 %v591
    %v3651 = vunpack.c.l.b16 %v592
    %v3652 = vunpack.c.h.b16 %v592
    %v3653 = vunpack.c.l.b16 %v593
    %v3654 = vunpack.c.h.b16 %v593
    %v3655 = vunpack.c.l.b16 %v594
    %v3656 = vunpack.c.h.b16 %v594
    %v3657 = vunpack.c.l.b16 %v595
    %v3658 = vunpack.c.h.b16 %v595
    %v3659 = vunpack.c.l.b16 %v596
    %v3660 = vunpack.c.h.b16 %v596
    %v3661 = vunpack.c.l.b16 %v597
    %v3662 = vunpack.c.h.b16 %v597
    %v3663 = vunpack.c.l.b16 %v598
    %v3664 = vunpack.c.h.b16 %v598
    %v3665 = vunpack.c.l.b16 %v599
    %v3666 = vunpack.c.h.b16 %v599
    %v3667 = vunpack.c.l.b16 %v600
    %v3668 = vunpack.c.h.b16 %v600
    %v3669 = vunpack.c.l.b16 %v601
    %v3670 = vunpack.c.h.b16 %v601
    %v3671 = vunpack.c.l.b16 %v602
    %v3672 = vunpack.c.h.b16 %v602
    %v3673 = vunpack.c.l.b16 %v603
    %v3674 = vunpack.c.h.b16 %v603
    %v3675 = vunpack.c.l.b16 %v604
    %v3676 = vunpack.c.h.b16 %v604
    %v3677 = vunpack.c.l.b16 %v605
    %v3678 = vunpack.c.h.b16 %v605
    %v3679 = vunpack.c.l.b16 %v606
    %v3680 = vunpack.c.h.b16 %v606
    %v3681 = vunpack.c.l.b16 %v607
    %v3682 = vunpack.c.h.b16 %v607
    %v3683 = vunpack.c.l.b16 %v608
    %v3684 = vunpack.c.h.b16 %v608
    %v3685 = vunpack.c.l.b16 %v609
    %v3686 = vunpack.c.h.b16 %v609
    %v3687 = vunpack.c.l.b16 %v610
    %v3688 = vunpack.c.h.b16 %v610
    %v3689 = vunpack.c.l.b16 %v611
    %v3690 = vunpack.c.h.b16 %v611
    %v3691 = vunpack.c.l.b16 %v612
    %v3692 = vunpack.c.h.b16 %v612
    %v3693 = vunpack.c.l.b16 %v613
    %v3694 = vunpack.c.h.b16 %v613
    %v3695 = vunpack.c.l.b16 %v614
    %v3696 = vunpack.c.h.b16 %v614
    %v3697 = vunpack.c.l.b16 %v615
    %v3698 = vunpack.c.h.b16 %v615
    %v3699 = vunpack.c.l.b16 %v616
    %v3700 = vunpack.c.h.b16 %v616
    %v3701 = vunpack.c.l.b16 %v617
    %v3702 = vunpack.c.h.b16 %v617
    %v3703 = vunpack.c.l.b16 %v618
    %v3704 = vunpack.c.h.b16 %v618
    %v3705 = vunpack.c.l.b16 %v619
    %v3706 = vunpack.c.h.b16 %v619
    %v3707 = vunpack.c.l.b16 %v620
    %v3708 = vunpack.c.h.b16 %v620
    %v3709 = vunpack.c.l.b16 %v621
    %v3710 = vunpack.c.h.b16 %v621
    %v3711 = vunpack.c.l.b16 %v622
    %v3712 = vunpack.c.h.b16 %v622
    %v3713 = vunpack.c.l.b16 %v623
    %v3714 = vunpack.c.h.b16 %v623
    %v3715 = vunpack.c.l.b16 %v624
    %v3716 = vunpack.c.h.b16 %v624
    %v3717 = vunpack.c.l.b16 %v625
    %v3718 = vunpack.c.h.b16 %v625
    %v3719 = vunpack.c.l.b16 %v626
    %v3720 = vunpack.c.h.b16 %v626
    %v3721 = vunpack.c.l.b16 %v627
    %v3722 = vunpack.c.h.b16 %v627
    %v3723 = vunpack.c.l.b16 %v628
    %v3724 = vunpack.c.h.b16 %v628
    %v3725 = vunpack.c.l.b16 %v629
    %v3726 = vunpack.c.h.b16 %v629
    %v3727 = vunpack.c.l.b16 %v630
    %v3728 = vunpack.c.h.b16 %v630
    %v3729 = vunpack.c.l.b16 %v631
    %v3730 = vunpack.c.h.b16 %v631
    %v3731 = vunpack.c.l.b16 %v632
    %v3732 = vunpack.c.h.b16 %v632
    %v3733 = vunpack.c.l.b16 %v633
    %v3734 = vunpack.c.h.b16 %v633
    %v3735 = vunpack.c.l.b16 %v634
    %v3736 = vunpack.c.h.b16 %v634
    %v3737 = vunpack.c.l.b16 %v635
    %v3738 = vunpack.c.h.b16 %v635
    %v3739 = vunpack.c.l.b16 %v636
    %v3740 = vunpack.c.h.b16 %v636
    %v3741 = vunpack.c.l.b16 %v637
    %v3742 = vunpack.c.h.b16 %v637
    %v3743 = vunpack.c.l.b16 %v638
    %v3744 = vunpack.c.h.b16 %v638
    %v3745 = vunpack.c.l.b16 %v639
    %v3746 = vunpack.c.h.b16 %v639
    %v3747 = vunpack.c.l.b16 %v640
    %v3748 = vunpack.c.h.b16 %v640
    %v3749 = vunpack.c.l.b16 %v641
    %v3750 = vunpack.c.h.b16 %v641
    %v3751 = vunpack.c.l.b16 %v642
    %v3752 = vunpack.c.h.b16 %v642
    %v3753 = vunpack.c.l.b16 %v643
    %v3754 = vunpack.c.h.b16 %v643
    %v3755 = vunpack.c.l.b16 %v644
    %v3756 = vunpack.c.h.b16 %v644
    %v3757 = vunpack.c.l.b16 %v645
    %v3758 = vunpack.c.h.b16 %v645
    %v3759 = vunpack.c.l.b16 %v646
    %v3760 = vunpack.c.h.b16 %v646
    %v3761 = vunpack.c.l.b16 %v647
    %v3762 = vunpack.c.h.b16 %v647
    %v3763 = vunpack.c.l.b16 %v648
    %v3764 = vunpack.c.h.b16 %v648
    %v3765 = vunpack.c.l.b16 %v649
    %v3766 = vunpack.c.h.b16 %v649
    %v3767 = vunpack.c.l.b16 %v650
    %v3768 = vunpack.c.h.b16 %v650
    %v3769 = vunpack.c.l.b16 %v651
    %v3770 = vunpack.c.h.b16 %v651
    %v3771 = vunpack.c.l.b16 %v652
    %v3772 = vunpack.c.h.b16 %v652
    %v3773 = vunpack.c.l.b16 %v653
    %v3774 = vunpack.c.h.b16 %v653
    %v3775 = vunpack.c.l.b16 %v654
    %v3776 = vunpack.c.h.b16 %v654
    %v3777 = vunpack.c.l.b16 %v655
    %v3778 = vunpack.c.h.b16 %v655
    %v3779 = vunpack.c.l.b16 %v656
    %v3780 = vunpack.c.h.b16 %v656
    %v3781 = vunpack.c.l.b16 %v657
    %v3782 = vunpack.c.h.b16 %v657
    %v3783 = vunpack.c.l.b16 %v658
    %v3784 = vunpack.c.h.b16 %v658
    %v3785 = vunpack.c.l.b16 %v659
    %v3786 = vunpack.c.h.b16 %v659
    %v3787 = vunpack.c.l.b16 %v660
    %v3788 = vunpack.c.h.b16 %v660
    %v3789 = vunpack.c.l.b16 %v661
    %v3790 = vunpack.c.h.b16 %v661
    %v3791 = vunpack.c.l.b16 %v662
    %v3792 = vunpack.c.h.b16 %v662
    %v3793 = vunpack.c.l.b16 %v663
    %v3794 = vunpack.c.h.b16 %v663
    %v3795 = vunpack.c.l.b16 %v664
    %v3796 = vunpack.c.h.b16 %v664
    %v3797 = vunpack.c.l.b16 %v665
    %v3798 = vunpack.c.h.b16 %v665
    %v3799 = vunpack.c.l.b16 %v666
    %v3800 = vunpack.c.h.b16 %v666
    %v3801 = vunpack.c.l.b16 %v667
    %v3802 = vunpack.c.h.b16 %v667
    %v3803 = vunpack.c.l.b16 %v668
    %v3804 = vunpack.c.h.b16 %v668
    %v3805 = vunpack.c.l.b16 %v669
    %v3806 = vunpack.c.h.b16 %v669
    %v3807 = vunpack.c.l.b16 %v670
    %v3808 = vunpack.c.h.b16 %v670
    %v3809 = vunpack.c.l.b16 %v671
    %v3810 = vunpack.c.h.b16 %v671
    %v3811 = vunpack.c.l.b16 %v672
    %v3812 = vunpack.c.h.b16 %v672
    %v3813 = vunpack.c.l.b16 %v673
    %v3814 = vunpack.c.h.b16 %v673
    %v3815 = vunpack.c.l.b16 %v674
    %v3816 = vunpack.c.h.b16 %v674
    %v3817 = vunpack.c.l.b16 %v675
    %v3818 = vunpack.c.h.b16 %v675
    %v3819 = vunpack.c.l.b16 %v676
    %v3820 = vunpack.c.h.b16 %v676
    %v3821 = vunpack.c.l.b16 %v677
    %v3822 = vunpack.c.h.b16 %v677
    %v3823 = vunpack.c.l.b16 %v678
    %v3824 = vunpack.c.h.b16 %v678
    %v3825 = vunpack.c.l.b16 %v679
    %v3826 = vunpack.c.h.b16 %v679
    %v3827 = vunpack.c.l.b16 %v680
    %v3828 = vunpack.c.h.b16 %v680
    %v3829 = vunpack.c.l.b16 %v681
    %v3830 = vunpack.c.h.b16 %v681
    %v3831 = vunpack.c.l.b16 %v682
    %v3832 = vunpack.c.h.b16 %v682
    %v3833 = vunpack.c.l.b16 %v683
    %v3834 = vunpack.c.h.b16 %v683
    %v3835 = vunpack.c.l.b16 %v684
    %v3836 = vunpack.c.h.b16 %v684
    %v3837 = vunpack.c.l.b16 %v685
    %v3838 = vunpack.c.h.b16 %v685
    %v3839 = vunpack.c.l.b16 %v686
    %v3840 = vunpack.c.h.b16 %v686
    %v3841 = vunpack.c.l.b16 %v687
    %v3842 = vunpack.c.h.b16 %v687
    %v3843 = vunpack.c.l.b16 %v688
    %v3844 = vunpack.c.h.b16 %v688
    %v3845 = vunpack.c.l.b16 %v689
    %v3846 = vunpack.c.h.b16 %v689
    %v3847 = vunpack.c.l.b16 %v690
    %v3848 = vunpack.c.h.b16 %v690
    %v3849 = vunpack.c.l.b16 %v691
    %v3850 = vunpack.c.h.b16 %v691
    %v3851 = vunpack.c.l.b16 %v692
    %v3852 = vunpack.c.h.b16 %v692
    %v3853 = vunpack.c.l.b16 %v693
    %v3854 = vunpack.c.h.b16 %v693
    %v3855 = vunpack.c.l.b16 %v694
    %v3856 = vunpack.c.h.b16 %v694
    %v3857 = vunpack.c.l.b16 %v695
    %v3858 = vunpack.c.h.b16 %v695
    %v3859 = vunpack.c.l.b16 %v696
    %v3860 = vunpack.c.h.b16 %v696
    %v3861 = vunpack.c.l.b16 %v697
    %v3862 = vunpack.c.h.b16 %v697
    %v3863 = vunpack.c.l.b16 %v698
    %v3864 = vunpack.c.h.b16 %v698
    %v3865 = vunpack.c.l.b16 %v699
    %v3866 = vunpack.c.h.b16 %v699
    %v3867 = vunpack.c.l.b16 %v700
    %v3868 = vunpack.c.h.b16 %v700
    %v3869 = vunpack.c.l.b16 %v701
    %v3870 = vunpack.c.h.b16 %v701
    %v3871 = vunpack.c.l.b16 %v702
    %v3872 = vunpack.c.h.b16 %v702
    %v3873 = vunpack.c.l.b16 %v703
    %v3874 = vunpack.c.h.b16 %v703
    %v3875 = vunpack.c.l.b16 %v704
    %v3876 = vunpack.c.h.b16 %v704
    %v3877 = vunpack.c.l.b16 %v705
    %v3878 = vunpack.c.h.b16 %v705
    %v3879 = vunpack.c.l.b16 %v706
    %v3880 = vunpack.c.h.b16 %v706
    %v3881 = vunpack.c.l.b16 %v707
    %v3882 = vunpack.c.h.b16 %v707
    %v3883 = vunpack.c.l.b16 %v708
    %v3884 = vunpack.c.h.b16 %v708
    %v3885 = vunpack.c.l.b16 %v709
    %v3886 = vunpack.c.h.b16 %v709
    %v3887 = vunpack.c.l.b16 %v710
    %v3888 = vunpack.c.h.b16 %v710
    %v3889 = vunpack.c.l.b16 %v711
    %v3890 = vunpack.c.h.b16 %v711
    %v3891 = vunpack.c.l.b16 %v712
    %v3892 = vunpack.c.h.b16 %v712
    %v3893 = vunpack.c.l.b16 %v713
    %v3894 = vunpack.c.h.b16 %v713
    %v3895 = vunpack.c.l.b16 %v714
    %v3896 = vunpack.c.h.b16 %v714
    %v3897 = vunpack.c.l.b16 %v715
    %v3898 = vunpack.c.h.b16 %v715
    %v3899 = vunpack.c.l.b16 %v716
    %v3900 = vunpack.c.h.b16 %v716
    %v3901 = vunpack.c.l.b16 %v717
    %v3902 = vunpack.c.h.b16 %v717
    %v3903 = vunpack.c.l.b16 %v718
    %v3904 = vunpack.c.h.b16 %v718
    %v3905 = vunpack.c.l.b16 %v719
    %v3906 = vunpack.c.h.b16 %v719
    %v3907 = vunpack.c.l.b16 %v720
    %v3908 = vunpack.c.h.b16 %v720
    %v3909 = vunpack.c.l.b16 %v721
    %v3910 = vunpack.c.h.b16 %v721
    %v3911 = vunpack.c.l.b16 %v722
    %v3912 = vunpack.c.h.b16 %v722
    %v3913 = vunpack.c.l.b16 %v723
    %v3914 = vunpack.c.h.b16 %v723
    %v3915 = vunpack.c.l.b16 %v724
    %v3916 = vunpack.c.h.b16 %v724
    %v3917 = vunpack.c.l.b16 %v725
    %v3918 = vunpack.c.h.b16 %v725
    %v3919 = vunpack.c.l.b16 %v726
    %v3920 = vunpack.c.h.b16 %v726
    %v3921 = vunpack.c.l.b16 %v727
    %v3922 = vunpack.c.h.b16 %v727
    %v3923 = vunpack.c.l.b16 %v728
    %v3924 = vunpack.c.h.b16 %v728
    %v3925 = vunpack.c.l.b16 %v729
    %v3926 = vunpack.c.h.b16 %v729
    %v3927 = vunpack.c.l.b16 %v730
    %v3928 = vunpack.c.h.b16 %v730
    %v3929 = vunpack.c.l.b16 %v731
    %v3930 = vunpack.c.h.b16 %v731
    %v3931 = vunpack.c.l.b16 %v732
    %v3932 = vunpack.c.h.b16 %v732
    %v3933 = vunpack.c.l.b16 %v733
    %v3934 = vunpack.c.h.b16 %v733
    %v3935 = vunpack.c.l.b16 %v734
    %v3936 = vunpack.c.h.b16 %v734
    %v3937 = vunpack.c.l.b16 %v735
    %v3938 = vunpack.c.h.b16 %v735
    %v3939 = vunpack.c.l.b16 %v736
    %v3940 = vunpack.c.h.b16 %v736
    %v3941 = vunpack.c.l.b16 %v737
    %v3942 = vunpack.c.h.b16 %v737
    %v3943 = vunpack.c.l.b16 %v738
    %v3944 = vunpack.c.h.b16 %v738
    %v3945 = vunpack.c.l.b16 %v739
    %v3946 = vunpack.c.h.b16 %v739
    %v3947 = vunpack.c.l.b16 %v740
    %v3948 = vunpack.c.h.b16 %v740
    %v3949 = vunpack.c.l.b16 %v741
    %v3950 = vunpack.c.h.b16 %v741
    %v3951 = vunpack.c.l.b16 %v742
    %v3952 = vunpack.c.h.b16 %v742
    %v3953 = vunpack.c.l.b16 %v743
    %v3954 = vunpack.c.h.b16 %v743
    %v3955 = vunpack.c.l.b16 %v744
    %v3956 = vunpack.c.h.b16 %v744
    %v3957 = vunpack.c.l.b16 %v745
    %v3958 = vunpack.c.h.b16 %v745
    %v3959 = vunpack.c.l.b16 %v746
    %v3960 = vunpack.c.h.b16 %v746
    %v3961 = vunpack.c.l.b16 %v747
    %v3962 = vunpack.c.h.b16 %v747
    %v3963 = vunpack.c.l.b16 %v748
    %v3964 = vunpack.c.h.b16 %v748
    %v3965 = vunpack.c.l.b16 %v749
    %v3966 = vunpack.c.h.b16 %v749
    %v3967 = vunpack.c.l.b16 %v750
    %v3968 = vunpack.c.h.b16 %v750
    %v3969 = vunpack.c.l.b16 %v751
    %v3970 = vunpack.c.h.b16 %v751
    %v3971 = vunpack.c.l.b16 %v752
    %v3972 = vunpack.c.h.b16 %v752
    %v3973 = vunpack.c.l.b16 %v753
    %v3974 = vunpack.c.h.b16 %v753
    %v3975 = vunpack.c.l.b16 %v754
    %v3976 = vunpack.c.h.b16 %v754
    %v3977 = vunpack.c.l.b16 %v755
    %v3978 = vunpack.c.h.b16 %v755
    %v3979 = vunpack.c.l.b16 %v756
    %v3980 = vunpack.c.h.b16 %v756
    %v3981 = vunpack.c.l.b16 %v757
    %v3982 = vunpack.c.h.b16 %v757
    %v3983 = vunpack.c.l.b16 %v758
    %v3984 = vunpack.c.h.b16 %v758
    %v3985 = vunpack.c.l.b16 %v759
    %v3986 = vunpack.c.h.b16 %v759
    %v3987 = vunpack.c.l.b16 %v760
    %v3988 = vunpack.c.h.b16 %v760
    %v3989 = vunpack.c.l.b16 %v761
    %v3990 = vunpack.c.h.b16 %v761
    %v3991 = vunpack.c.l.b16 %v762
    %v3992 = vunpack.c.h.b16 %v762
    %v3993 = vunpack.c.l.b16 %v763
    %v3994 = vunpack.c.h.b16 %v763
    %v3995 = vunpack.c.l.b16 %v764
    %v3996 = vunpack.c.h.b16 %v764
    %v3997 = vunpack.c.l.b16 %v765
    %v3998 = vunpack.c.h.b16 %v765
    %v3999 = vunpack.c.l.b16 %v766
    %v4000 = vunpack.c.h.b16 %v766
    %v4001 = vunpack.c.l.b16 %v767
    %v4002 = vunpack.c.h.b16 %v767
    %v4003 = vunpack.c.l.b16 %v768
    %v4004 = vunpack.c.h.b16 %v768
    %v4005 = vunpack.c.l.b16 %v769
    %v4006 = vunpack.c.h.b16 %v769
    %v4007 = vunpack.c.l.b16 %v770
    %v4008 = vunpack.c.h.b16 %v770
    %v4009 = vunpack.c.l.b16 %v771
    %v4010 = vunpack.c.h.b16 %v771
    %v4011 = vunpack.c.l.b16 %v772
    %v4012 = vunpack.c.h.b16 %v772
    %v4013 = vunpack.c.l.b16 %v773
    %v4014 = vunpack.c.h.b16 %v773
    %v4015 = vunpack.c.l.b16 %v774
    %v4016 = vunpack.c.h.b16 %v774
    %v4017 = vunpack.c.l.b16 %v775
    %v4018 = vunpack.c.h.b16 %v775
    %v4019 = vunpack.c.l.b16 %v776
    %v4020 = vunpack.c.h.b16 %v776
    %v4021 = vunpack.c.l.b16 %v777
    %v4022 = vunpack.c.h.b16 %v777
    %v4023 = vunpack.c.l.b16 %v778
    %v4024 = vunpack.c.h.b16 %v778
    %v4025 = vunpack.c.l.b16 %v779
    %v4026 = vunpack.c.h.b16 %v779
    %v4027 = vunpack.c.l.b16 %v780
    %v4028 = vunpack.c.h.b16 %v780
    %v4029 = vunpack.c.l.b16 %v781
    %v4030 = vunpack.c.h.b16 %v781
    %v4031 = vunpack.c.l.b16 %v782
    %v4032 = vunpack.c.h.b16 %v782
    %v4033 = vunpack.c.l.b16 %v783
    %v4034 = vunpack.c.h.b16 %v783
    %v4035 = vunpack.c.l.b16 %v784
    %v4036 = vunpack.c.h.b16 %v784
    %v4037 = vunpack.c.l.b16 %v785
    %v4038 = vunpack.c.h.b16 %v785
    %v4039 = vunpack.c.l.b16 %v786
    %v4040 = vunpack.c.h.b16 %v786
    %v4041 = vunpack.c.l.b16 %v787
    %v4042 = vunpack.c.h.b16 %v787
    %v4043 = vunpack.c.l.b16 %v788
    %v4044 = vunpack.c.h.b16 %v788
    %v4045 = vunpack.c.l.b16 %v789
    %v4046 = vunpack.c.h.b16 %v789
    %v4047 = vunpack.c.l.b16 %v790
    %v4048 = vunpack.c.h.b16 %v790
    %v4049 = vunpack.c.l.b16 %v791
    %v4050 = vunpack.c.h.b16 %v791
    %v4051 = vunpack.c.l.b16 %v792
    %v4052 = vunpack.c.h.b16 %v792
    %v4053 = vunpack.c.l.b16 %v793
    %v4054 = vunpack.c.h.b16 %v793
    %v4055 = vunpack.c.l.b16 %v794
    %v4056 = vunpack.c.h.b16 %v794
    %v4057 = vunpack.c.l.b16 %v795
    %v4058 = vunpack.c.h.b16 %v795
    %v4059 = vunpack.c.l.b16 %v796
    %v4060 = vunpack.c.h.b16 %v796
    %v4061 = vunpack.c.l.b16 %v797
    %v4062 = vunpack.c.h.b16 %v797
    %v4063 = vunpack.c.l.b16 %v798
    %v4064 = vunpack.c.h.b16 %v798
    %v4065 = vunpack.c.l.b16 %v799
    %v4066 = vunpack.c.h.b16 %v799
    %v4067 = vunpack.c.l.b16 %v800
    %v4068 = vunpack.c.h.b16 %v800
    %v4069 = vunpack.c.l.b16 %v801
    %v4070 = vunpack.c.h.b16 %v801
    %v4071 = vunpack.c.l.b16 %v802
    %v4072 = vunpack.c.h.b16 %v802
    %v4073 = vunpack.c.l.b16 %v803
    %v4074 = vunpack.c.h.b16 %v803
    %v4075 = vunpack.c.l.b16 %v804
    %v4076 = vunpack.c.h.b16 %v804
    %v4077 = vunpack.c.l.b16 %v805
    %v4078 = vunpack.c.h.b16 %v805
    %v4079 = vunpack.c.l.b16 %v806
    %v4080 = vunpack.c.h.b16 %v806
    %v4081 = vunpack.c.l.b16 %v807
    %v4082 = vunpack.c.h.b16 %v807
    %v4083 = vunpack.c.l.b16 %v808
    %v4084 = vunpack.c.h.b16 %v808
    %v4085 = vunpack.c.l.b16 %v809
    %v4086 = vunpack.c.h.b16 %v809
    %v4087 = vunpack.c.l.b16 %v810
    %v4088 = vunpack.c.h.b16 %v810
    %v4089 = vunpack.c.l.b16 %v811
    %v4090 = vunpack.c.h.b16 %v811
    %v4091 = vunpack.c.l.b16 %v812
    %v4092 = vunpack.c.h.b16 %v812
    %v4093 = vunpack.c.l.b16 %v813
    %v4094 = vunpack.c.h.b16 %v813
    %v4095 = vunpack.c.l.b16 %v814
    %v4096 = vunpack.c.h.b16 %v814
    %v4097 = vunpack.c.l.b16 %v815
    %v4098 = vunpack.c.h.b16 %v815
    %v4099 = vunpack.c.l.b16 %v816
    %v4100 = vunpack.c.h.b16 %v816
    %v4101 = vunpack.c.l.b16 %v817
    %v4102 = vunpack.c.h.b16 %v817
    %v4103 = vunpack.c.l.b16 %v818
    %v4104 = vunpack.c.h.b16 %v818
    %v4105 = vunpack.c.l.b16 %v819
    %v4106 = vunpack.c.h.b16 %v819
    %v4107 = vunpack.c.l.b16 %v820
    %v4108 = vunpack.c.h.b16 %v820
    %v4109 = vunpack.c.l.b16 %v821
    %v4110 = vunpack.c.h.b16 %v821
    %v4111 = vunpack.c.l.b16 %v822
    %v4112 = vunpack.c.h.b16 %v822
    %v4113 = vunpack.c.l.b16 %v823
    %v4114 = vunpack.c.h.b16 %v823
    %v4115 = vunpack.c.l.b16 %v824
    %v4116 = vunpack.c.h.b16 %v824
    %v4117 = vunpack.c.l.b16 %v825
    %v4118 = vunpack.c.h.b16 %v825
    %v4119 = vunpack.c.l.b16 %v826
    %v4120 = vunpack.c.h.b16 %v826
    %v4121 = vunpack.c.l.b16 %v827
    %v4122 = vunpack.c.h.b16 %v827
    %v4123 = vunpack.c.l.b16 %v828
    %v4124 = vunpack.c.h.b16 %v828
    %v4125 = vunpack.c.l.b16 %v829
    %v4126 = vunpack.c.h.b16 %v829
    %v4127 = vunpack.c.l.b16 %v830
    %v4128 = vunpack.c.h.b16 %v830
    %v4129 = vunpack.c.l.b16 %v831
    %v4130 = vunpack.c.h.b16 %v831
    %v4131 = vunpack.c.l.b16 %v832
    %v4132 = vunpack.c.h.b16 %v832
    %v4133 = vunpack.c.l.b16 %v833
    %v4134 = vunpack.c.h.b16 %v833
    %v4135 = vunpack.c.l.b16 %v834
    %v4136 = vunpack.c.h.b16 %v834
    %v4137 = vunpack.c.l.b16 %v835
    %v4138 = vunpack.c.h.b16 %v835
    %v4139 = vunpack.c.l.b16 %v836
    %v4140 = vunpack.c.h.b16 %v836
    %v4141 = vunpack.c.l.b16 %v837
    %v4142 = vunpack.c.h.b16 %v837
    %v4143 = vunpack.c.l.b16 %v838
    %v4144 = vunpack.c.h.b16 %v838
    %v4145 = vunpack.c.l.b16 %v839
    %v4146 = vunpack.c.h.b16 %v839
    %v4147 = vunpack.c.l.b16 %v840
    %v4148 = vunpack.c.h.b16 %v840
    %v4149 = vunpack.c.l.b16 %v841
    %v4150 = vunpack.c.h.b16 %v841
    %v4151 = vunpack.c.l.b16 %v842
    %v4152 = vunpack.c.h.b16 %v842
    %v4153 = vunpack.c.l.b16 %v843
    %v4154 = vunpack.c.h.b16 %v843
    %v4155 = vunpack.c.l.b16 %v844
    %v4156 = vunpack.c.h.b16 %v844
    %v4157 = vunpack.c.l.b16 %v845
    %v4158 = vunpack.c.h.b16 %v845
    %v4159 = vunpack.c.l.b16 %v846
    %v4160 = vunpack.c.h.b16 %v846
    %v4161 = vunpack.c.l.b16 %v847
    %v4162 = vunpack.c.h.b16 %v847
    %v4163 = vunpack.c.l.b16 %v848
    %v4164 = vunpack.c.h.b16 %v848
    %v4165 = vunpack.c.l.b16 %v849
    %v4166 = vunpack.c.h.b16 %v849
    %v4167 = vunpack.c.l.b16 %v850
    %v4168 = vunpack.c.h.b16 %v850
    %v4169 = vunpack.c.l.b16 %v851
    %v4170 = vunpack.c.h.b16 %v851
    %v4171 = vunpack.c.l.b16 %v852
    %v4172 = vunpack.c.h.b16 %v852
    %v4173 = vunpack.c.l.b16 %v853
    %v4174 = vunpack.c.h.b16 %v853
    %v4175 = vunpack.c.l.b16 %v854
    %v4176 = vunpack.c.h.b16 %v854
    %v4177 = vunpack.c.l.b16 %v855
    %v4178 = vunpack.c.h.b16 %v855
    %v4179 = vunpack.c.l.b16 %v856
    %v4180 = vunpack.c.h.b16 %v856
    %v4181 = vunpack.c.l.b16 %v857
    %v4182 = vunpack.c.h.b16 %v857
    %v4183 = vunpack.c.l.b16 %v858
    %v4184 = vunpack.c.h.b16 %v858
    %v4185 = vunpack.c.l.b16 %v859
    %v4186 = vunpack.c.h.b16 %v859
    %v4187 = vunpack.c.l.b16 %v860
    %v4188 = vunpack.c.h.b16 %v860
    %v4189 = vunpack.c.l.b16 %v861
    %v4190 = vunpack.c.h.b16 %v861
    %v4191 = vunpack.c.l.b16 %v862
    %v4192 = vunpack.c.h.b16 %v862
    %v4193 = vunpack.c.l.b16 %v863
    %v4194 = vunpack.c.h.b16 %v863
    %v4195 = vunpack.c.l.b16 %v864
    %v4196 = vunpack.c.h.b16 %v864
    %v4197 = vunpack.c.l.b16 %v865
    %v4198 = vunpack.c.h.b16 %v865
    %v4199 = vunpack.c.l.b16 %v866
    %v4200 = vunpack.c.h.b16 %v866
    %v4201 = vunpack.c.l.b16 %v867
    %v4202 = vunpack.c.h.b16 %v867
    %v4203 = vunpack.c.l.b16 %v868
    %v4204 = vunpack.c.h.b16 %v868
    %v4205 = vunpack.c.l.b16 %v869
    %v4206 = vunpack.c.h.b16 %v869
    %v4207 = vunpack.c.l.b16 %v870
    %v4208 = vunpack.c.h.b16 %v870
    %v4209 = vunpack.c.l.b16 %v871
    %v4210 = vunpack.c.h.b16 %v871
    %v4211 = vunpack.c.l.b16 %v872
    %v4212 = vunpack.c.h.b16 %v872
    %v4213 = vunpack.c.l.b16 %v873
    %v4214 = vunpack.c.h.b16 %v873
    %v4215 = vunpack.c.l.b16 %v874
    %v4216 = vunpack.c.h.b16 %v874
    %v4217 = vunpack.c.l.b16 %v875
    %v4218 = vunpack.c.h.b16 %v875
    %v4219 = vunpack.c.l.b16 %v876
    %v4220 = vunpack.c.h.b16 %v876
    %v4221 = vunpack.c.l.b16 %v877
    %v4222 = vunpack.c.h.b16 %v877
    %v4223 = vunpack.c.l.b16 %v878
    %v4224 = vunpack.c.h.b16 %v878
    %v4225 = vunpack.c.l.b16 %v879
    %v4226 = vunpack.c.h.b16 %v879
    %v4227 = vunpack.c.l.b16 %v880
    %v4228 = vunpack.c.h.b16 %v880
    %v4229 = vunpack.c.l.b16 %v881
    %v4230 = vunpack.c.h.b16 %v881
    %v4231 = vunpack.c.l.b16 %v882
    %v4232 = vunpack.c.h.b16 %v882
    %v4233 = vunpack.c.l.b16 %v883
    %v4234 = vunpack.c.h.b16 %v883
    %v4235 = vunpack.c.l.b16 %v884
    %v4236 = vunpack.c.h.b16 %v884
    %v4237 = vunpack.c.l.b16 %v885
    %v4238 = vunpack.c.h.b16 %v885
    %v4239 = vunpack.c.l.b16 %v886
    %v4240 = vunpack.c.h.b16 %v886
    %v4241 = vunpack.c.l.b16 %v887
    %v4242 = vunpack.c.h.b16 %v887
    %v4243 = vunpack.c.l.b16 %v888
    %v4244 = vunpack.c.h.b16 %v888
    %v4245 = vunpack.c.l.b16 %v889
    %v4246 = vunpack.c.h.b16 %v889
    %v4247 = vunpack.c.l.b16 %v890
    %v4248 = vunpack.c.h.b16 %v890
    %v4249 = vunpack.c.l.b16 %v891
    %v4250 = vunpack.c.h.b16 %v891
    %v4251 = vunpack.c.l.b16 %v892
    %v4252 = vunpack.c.h.b16 %v892
    %v4253 = vunpack.c.l.b16 %v893
    %v4254 = vunpack.c.h.b16 %v893
    %v4255 = vunpack.c.l.b16 %v894
    %v4256 = vunpack.c.h.b16 %v894
    %v4257 = vunpack.c.l.b16 %v895
    %v4258 = vunpack.c.h.b16 %v895
    %v4259 = vunpack.c.l.b16 %v896
    %v4260 = vunpack.c.h.b16 %v896
    %v4261 = vunpack.c.l.b16 %v897
    %v4262 = vunpack.c.h.b16 %v897
    %v4263 = vunpack.c.l.b16 %v898
    %v4264 = vunpack.c.h.b16 %v898
    %v4265 = vunpack.c.l.b16 %v899
    %v4266 = vunpack.c.h.b16 %v899
    %v4267 = vunpack.c.l.b16 %v900
    %v4268 = vunpack.c.h.b16 %v900
    %v4269 = vunpack.c.l.b16 %v901
    %v4270 = vunpack.c.h.b16 %v901
    %v4271 = vunpack.c.l.b16 %v902
    %v4272 = vunpack.c.h.b16 %v902
    %v4273 = vunpack.c.l.b16 %v903
    %v4274 = vunpack.c.h.b16 %v903
    %v4275 = vunpack.c.l.b16 %v904
    %v4276 = vunpack.c.h.b16 %v904
    %v4277 = vunpack.c.l.b16 %v905
    %v4278 = vunpack.c.h.b16 %v905
    %v4279 = vunpack.c.l.b16 %v906
    %v4280 = vunpack.c.h.b16 %v906
    %v4281 = vunpack.c.l.b16 %v907
    %v4282 = vunpack.c.h.b16 %v907
    %v4283 = vunpack.c.l.b16 %v908
    %v4284 = vunpack.c.h.b16 %v908
    %v4285 = vunpack.c.l.b16 %v909
    %v4286 = vunpack.c.h.b16 %v909
    %v4287 = vunpack.c.l.b16 %v910
    %v4288 = vunpack.c.h.b16 %v910
    %v4289 = vunpack.c.l.b16 %v911
    %v4290 = vunpack.c.h.b16 %v911
    %v4291 = vunpack.c.l.b16 %v912
    %v4292 = vunpack.c.h.b16 %v912
    %v4293 = vunpack.c.l.b16 %v913
    %v4294 = vunpack.c.h.b16 %v913
    %v4295 = vunpack.c.l.b16 %v914
    %v4296 = vunpack.c.h.b16 %v914
    %v4297 = vunpack.c.l.b16 %v915
    %v4298 = vunpack.c.h.b16 %v915
    %v4299 = vunpack.c.l.b16 %v916
    %v4300 = vunpack.c.h.b16 %v916
    %v4301 = vunpack.c.l.b16 %v917
    %v4302 = vunpack.c.h.b16 %v917
    %v4303 = vunpack.c.l.b16 %v918
    %v4304 = vunpack.c.h.b16 %v918
    %v4305 = vunpack.c.l.b16 %v919
    %v4306 = vunpack.c.h.b16 %v919
    %v4307 = vunpack.c.l.b16 %v920
    %v4308 = vunpack.c.h.b16 %v920
    %v4309 = vunpack.c.l.b16 %v921
    %v4310 = vunpack.c.h.b16 %v921
    %v4311 = vunpack.c.l.b16 %v922
    %v4312 = vunpack.c.h.b16 %v922
    %v4313 = vunpack.c.l.b16 %v923
    %v4314 = vunpack.c.h.b16 %v923
    %v4315 = vunpack.c.l.b16 %v924
    %v4316 = vunpack.c.h.b16 %v924
    %v4317 = vunpack.c.l.b16 %v925
    %v4318 = vunpack.c.h.b16 %v925
    %v4319 = vunpack.c.l.b16 %v926
    %v4320 = vunpack.c.h.b16 %v926
    %v4321 = vunpack.c.l.b16 %v927
    %v4322 = vunpack.c.h.b16 %v927
    %v4323 = vunpack.c.l.b16 %v928
    %v4324 = vunpack.c.h.b16 %v928
    %v4325 = vunpack.c.l.b16 %v929
    %v4326 = vunpack.c.h.b16 %v929
    %v4327 = vunpack.c.l.b16 %v930
    %v4328 = vunpack.c.h.b16 %v930
    %v4329 = vunpack.c.l.b16 %v931
    %v4330 = vunpack.c.h.b16 %v931
    %v4331 = vunpack.c.l.b16 %v932
    %v4332 = vunpack.c.h.b16 %v932
    %v4333 = vunpack.c.l.b16 %v933
    %v4334 = vunpack.c.h.b16 %v933
    %v4335 = vunpack.c.l.b16 %v934
    %v4336 = vunpack.c.h.b16 %v934
    %v4337 = vunpack.c.l.b16 %v935
    %v4338 = vunpack.c.h.b16 %v935
    %v4339 = vunpack.c.l.b16 %v936
    %v4340 = vunpack.c.h.b16 %v936
    %v4341 = vunpack.c.l.b16 %v937
    %v4342 = vunpack.c.h.b16 %v937
    %v4343 = vunpack.c.l.b16 %v938
    %v4344 = vunpack.c.h.b16 %v938
    %v4345 = vunpack.c.l.b16 %v939
    %v4346 = vunpack.c.h.b16 %v939
    %v4347 = vunpack.c.l.b16 %v940
    %v4348 = vunpack.c.h.b16 %v940
    %v4349 = vunpack.c.l.b16 %v941
    %v4350 = vunpack.c.h.b16 %v941
    %v4351 = vunpack.c.l.b16 %v942
    %v4352 = vunpack.c.h.b16 %v942
    %v4353 = vunpack.c.l.b16 %v943
    %v4354 = vunpack.c.h.b16 %v943
    %v4355 = vunpack.c.l.b16 %v944
    %v4356 = vunpack.c.h.b16 %v944
    %v4357 = vunpack.c.l.b16 %v945
    %v4358 = vunpack.c.h.b16 %v945
    %v4359 = vunpack.c.l.b16 %v946
    %v4360 = vunpack.c.h.b16 %v946
    %v4361 = vunpack.c.l.b16 %v947
    %v4362 = vunpack.c.h.b16 %v947
    %v4363 = vunpack.c.l.b16 %v948
    %v4364 = vunpack.c.h.b16 %v948
    %v4365 = vunpack.c.l.b16 %v949
    %v4366 = vunpack.c.h.b16 %v949
    %v4367 = vunpack.c.l.b16 %v950
    %v4368 = vunpack.c.h.b16 %v950
    %v4369 = vunpack.c.l.b16 %v951
    %v4370 = vunpack.c.h.b16 %v951
    %v4371 = vunpack.c.l.b16 %v952
    %v4372 = vunpack.c.h.b16 %v952
    %v4373 = vunpack.c.l.b16 %v953
    %v4374 = vunpack.c.h.b16 %v953
    %v4375 = vunpack.c.l.b16 %v954
    %v4376 = vunpack.c.h.b16 %v954
    %v4377 = vunpack.c.l.b16 %v955
    %v4378 = vunpack.c.h.b16 %v955
    %v4379 = vunpack.c.l.b16 %v956
    %v4380 = vunpack.c.h.b16 %v956
    %v4381 = vunpack.c.l.b16 %v957
    %v4382 = vunpack.c.h.b16 %v957
    %v4383 = vunpack.c.l.b16 %v958
    %v4384 = vunpack.c.h.b16 %v958
    %v4385 = vunpack.c.l.b16 %v959
    %v4386 = vunpack.c.h.b16 %v959
    %v4387 = vunpack.c.l.b16 %v960
    %v4388 = vunpack.c.h.b16 %v960
    %v4389 = vunpack.c.l.b16 %v961
    %v4390 = vunpack.c.h.b16 %v961
    %v4391 = vunpack.c.l.b16 %v962
    %v4392 = vunpack.c.h.b16 %v962
    %v4393 = vunpack.c.l.b16 %v963
    %v4394 = vunpack.c.h.b16 %v963
    %v4395 = vunpack.c.l.b16 %v964
    %v4396 = vunpack.c.h.b16 %v964
    %v4397 = vunpack.c.l.b16 %v965
    %v4398 = vunpack.c.h.b16 %v965
    %v4399 = vunpack.c.l.b16 %v966
    %v4400 = vunpack.c.h.b16 %v966
    %v4401 = vunpack.c.l.b16 %v967
    %v4402 = vunpack.c.h.b16 %v967
    %v4403 = vunpack.c.l.b16 %v968
    %v4404 = vunpack.c.h.b16 %v968
    %v4405 = vunpack.c.l.b16 %v969
    %v4406 = vunpack.c.h.b16 %v969
    %v4407 = vunpack.c.l.b16 %v970
    %v4408 = vunpack.c.h.b16 %v970
    %v4409 = vunpack.c.l.b16 %v971
    %v4410 = vunpack.c.h.b16 %v971
    %v4411 = vunpack.c.l.b16 %v972
    %v4412 = vunpack.c.h.b16 %v972
    %v4413 = vunpack.c.l.b16 %v973
    %v4414 = vunpack.c.h.b16 %v973
    %v4415 = vunpack.c.l.b16 %v974
    %v4416 = vunpack.c.h.b16 %v974
    %v4417 = vunpack.c.l.b16 %v975
    %v4418 = vunpack.c.h.b16 %v975
    %v4419 = vunpack.c.l.b16 %v976
    %v4420 = vunpack.c.h.b16 %v976
    %v4421 = vunpack.c.l.b16 %v977
    %v4422 = vunpack.c.h.b16 %v977
    %v4423 = vunpack.c.l.b16 %v978
    %v4424 = vunpack.c.h.b16 %v978
    %v4425 = vunpack.c.l.b16 %v979
    %v4426 = vunpack.c.h.b16 %v979
    %v4427 = vunpack.c.l.b16 %v980
    %v4428 = vunpack.c.h.b16 %v980
    %v4429 = vunpack.c.l.b16 %v981
    %v4430 = vunpack.c.h.b16 %v981
    %v4431 = vunpack.c.l.b16 %v982
    %v4432 = vunpack.c.h.b16 %v982
    %v4433 = vunpack.c.l.b16 %v983
    %v4434 = vunpack.c.h.b16 %v983
    %v4435 = vunpack.c.l.b16 %v984
    %v4436 = vunpack.c.h.b16 %v984
    %v4437 = vunpack.c.l.b16 %v985
    %v4438 = vunpack.c.h.b16 %v985
    %v4439 = vunpack.c.l.b16 %v986
    %v4440 = vunpack.c.h.b16 %v986
    %v4441 = vunpack.c.l.b16 %v987
    %v4442 = vunpack.c.h.b16 %v987
    %v4443 = vunpack.c.l.b16 %v988
    %v4444 = vunpack.c.h.b16 %v988
    %v4445 = vunpack.c.l.b16 %v989
    %v4446 = vunpack.c.h.b16 %v989
    %v4447 = vunpack.c.l.b16 %v990
    %v4448 = vunpack.c.h.b16 %v990
    %v4449 = vunpack.c.l.b16 %v991
    %v4450 = vunpack.c.h.b16 %v991
    %v4451 = vunpack.c.l.b16 %v992
    %v4452 = vunpack.c.h.b16 %v992
    %v4453 = vunpack.c.l.b16 %v993
    %v4454 = vunpack.c.h.b16 %v993
    %v4455 = vunpack.c.l.b16 %v994
    %v4456 = vunpack.c.h.b16 %v994
    %v4457 = vunpack.c.l.b16 %v995
    %v4458 = vunpack.c.h.b16 %v995
    %v4459 = vunpack.c.l.b16 %v996
    %v4460 = vunpack.c.h.b16 %v996
    %v4461 = vunpack.c.l.b16 %v997
    %v4462 = vunpack.c.h.b16 %v997
    %v4463 = vunpack.c.l.b16 %v998
    %v4464 = vunpack.c.h.b16 %v998
    %v4465 = vunpack.c.l.b16 %v999
    %v4466 = vunpack.c.h.b16 %v999
    %v4467 = vunpack.c.l.b16 %v1000
    %v4468 = vunpack.c.h.b16 %v1000
    %v4469 = vunpack.c.l.b16 %v1001
    %v4470 = vunpack.c.h.b16 %v1001
    %v4471 = vunpack.c.l.b16 %v1002
    %v4472 = vunpack.c.h.b16 %v1002
    %v4473 = vunpack.c.l.b16 %v1003
    %v4474 = vunpack.c.h.b16 %v1003
    %v4475 = vunpack.c.l.b16 %v1004
    %v4476 = vunpack.c.h.b16 %v1004
    %v4477 = vunpack.c.l.b16 %v1005
    %v4478 = vunpack.c.h.b16 %v1005
    %v4479 = vunpack.c.l.b16 %v1006
    %v4480 = vunpack.c.h.b16 %v1006
    %v4481 = vunpack.c.l.b16 %v1007
    %v4482 = vunpack.c.h.b16 %v1007
    %v4483 = vunpack.c.l.b16 %v1008
    %v4484 = vunpack.c.h.b16 %v1008
    %v4485 = vunpack.c.l.b16 %v1009
    %v4486 = vunpack.c.h.b16 %v1009
    %v4487 = vunpack.c.l.b16 %v1010
    %v4488 = vunpack.c.h.b16 %v1010
    %v4489 = vunpack.c.l.b16 %v1011
    %v4490 = vunpack.c.h.b16 %v1011
    %v4491 = vunpack.c.l.b16 %v1012
    %v4492 = vunpack.c.h.b16 %v1012
    %v4493 = vunpack.c.l.b16 %v1013
    %v4494 = vunpack.c.h.b16 %v1013
    %v4495 = vunpack.c.l.b16 %v1014
    %v4496 = vunpack.c.h.b16 %v1014
    %v4497 = vunpack.c.l.b16 %v1015
    %v4498 = vunpack.c.h.b16 %v1015
    %v4499 = vunpack.c.l.b16 %v1016
    %v4500 = vunpack.c.h.b16 %v1016
    %v4501 = vunpack.c.l.b16 %v1017
    %v4502 = vunpack.c.h.b16 %v1017
    %v4503 = vunpack.c.l.b16 %v1018
    %v4504 = vunpack.c.h.b16 %v1018
    %v4505 = vunpack.c.l.b16 %v1019
    %v4506 = vunpack.c.h.b16 %v1019
    %v4507 = vunpack.c.l.b16 %v1020
    %v4508 = vunpack.c.h.b16 %v1020
    %v4509 = vunpack.c.l.b16 %v1021
    %v4510 = vunpack.c.h.b16 %v1021
    %v4511 = vunpack.c.l.b16 %v1022
    %v4512 = vunpack.c.h.b16 %v1022
    %v4513 = vunpack.c.l.b16 %v1023
    %v4514 = vunpack.c.h.b16 %v1023
    %v4515 = vunpack.c.l.b16 %v1024
    %v4516 = vunpack.c.h.b16 %v1024
    %v4517 = vunpack.c.l.b16 %v1025
    %v4518 = vunpack.c.h.b16 %v1025
    %v4519 = vunpack.c.l.b16 %v1026
    %v4520 = vunpack.c.h.b16 %v1026
    %v4521 = vunpack.c.l.b16 %v1027
    %v4522 = vunpack.c.h.b16 %v1027
    %v4523 = vunpack.c.l.b16 %v1028
    %v4524 = vunpack.c.h.b16 %v1028
    %v4525 = vunpack.c.l.b16 %v1029
    %v4526 = vunpack.c.h.b16 %v1029
    %v4527 = vunpack.c.l.b16 %v1030
    %v4528 = vunpack.c.h.b16 %v1030
    %v4529 = vunpack.c.l.b16 %v1031
    %v4530 = vunpack.c.h.b16 %v1031
    %v4531 = vunpack.c.l.b16 %v1032
    %v4532 = vunpack.c.h.b16 %v1032
    %v4533 = vunpack.c.l.b16 %v1033
    %v4534 = vunpack.c.h.b16 %v1033
    %v4535 = vunpack.c.l.b16 %v1034
    %v4536 = vunpack.c.h.b16 %v1034
    %v4537 = vunpack.c.l.b16 %v1035
    %v4538 = vunpack.c.h.b16 %v1035
    %v4539 = vunpack.c.l.b16 %v1036
    %v4540 = vunpack.c.h.b16 %v1036
    %v4541 = vunpack.c.l.b16 %v1037
    %v4542 = vunpack.c.h.b16 %v1037
    %v4543 = vunpack.c.l.b16 %v1038
    %v4544 = vunpack.c.h.b16 %v1038
    %v4545 = vunpack.c.l.b16 %v1039
    %v4546 = vunpack.c.h.b16 %v1039
    %v4547 = vunpack.c.l.b16 %v1040
    %v4548 = vunpack.c.h.b16 %v1040
    %v4549 = vunpack.c.l.b16 %v1041
    %v4550 = vunpack.c.h.b16 %v1041
    %v4551 = vunpack.c.l.b16 %v1042
    %v4552 = vunpack.c.h.b16 %v1042
    %v4553 = vunpack.c.l.b16 %v1043
    %v4554 = vunpack.c.h.b16 %v1043
    %v4555 = vunpack.c.l.b16 %v1044
    %v4556 = vunpack.c.h.b16 %v1044
    %v4557 = vunpack.c.l.b16 %v1045
    %v4558 = vunpack.c.h.b16 %v1045
    %v4559 = vunpack.c.l.b16 %v1046
    %v4560 = vunpack.c.h.b16 %v1046
    %v4561 = vunpack.c.l.b16 %v1047
    %v4562 = vunpack.c.h.b16 %v1047
    %v4563 = vunpack.c.l.b16 %v1048
    %v4564 = vunpack.c.h.b16 %v1048
    %v4565 = vunpack.c.l.b16 %v1049
    %v4566 = vunpack.c.h.b16 %v1049
    %v4567 = vunpack.c.l.b16 %v1050
    %v4568 = vunpack.c.h.b16 %v1050
    %v4569 = vunpack.c.l.b16 %v1051
    %v4570 = vunpack.c.h.b16 %v1051
    %v4571 = vunpack.c.l.b16 %v1052
    %v4572 = vunpack.c.h.b16 %v1052
    %v4573 = vunpack.c.l.b16 %v1053
    %v4574 = vunpack.c.h.b16 %v1053
    %v4575 = vunpack.c.l.b16 %v1054
    %v4576 = vunpack.c.h.b16 %v1054
    %v4577 = vunpack.c.l.b16 %v1055
    %v4578 = vunpack.c.h.b16 %v1055
    %v4579 = vunpack.c.l.b16 %v1056
    %v4580 = vunpack.c.h.b16 %v1056
    %v4581 = vunpack.c.l.b16 %v1057
    %v4582 = vunpack.c.h.b16 %v1057
    %v4583 = vunpack.c.l.b16 %v1058
    %v4584 = vunpack.c.h.b16 %v1058
    %v4585 = vunpack.c.l.b16 %v1059
    %v4586 = vunpack.c.h.b16 %v1059
    %v4587 = vunpack.c.l.b16 %v1060
    %v4588 = vunpack.c.h.b16 %v1060
    %v4589 = vunpack.c.l.b16 %v1061
    %v4590 = vunpack.c.h.b16 %v1061
    %v4591 = vunpack.c.l.b16 %v1062
    %v4592 = vunpack.c.h.b16 %v1062
    %v4593 = vunpack.c.l.b16 %v1063
    %v4594 = vunpack.c.h.b16 %v1063
    %v4595 = vunpack.c.l.b16 %v1064
    %v4596 = vunpack.c.h.b16 %v1064
    %v4597 = vunpack.c.l.b16 %v1065
    %v4598 = vunpack.c.h.b16 %v1065
    %v4599 = vunpack.c.l.b16 %v1066
    %v4600 = vunpack.c.h.b16 %v1066
    %v4601 = vunpack.c.l.b16 %v1067
    %v4602 = vunpack.c.h.b16 %v1067
    %v4603 = vunpack.c.l.b16 %v1068
    %v4604 = vunpack.c.h.b16 %v1068
    %v4605 = vunpack.c.l.b16 %v1069
    %v4606 = vunpack.c.h.b16 %v1069
    %v4607 = vunpack.c.l.b16 %v1070
    %v4608 = vunpack.c.h.b16 %v1070
    %v4609 = vunpack.c.l.b16 %v1071
    %v4610 = vunpack.c.h.b16 %v1071
    %v4611 = vunpack.c.l.b16 %v1072
    %v4612 = vunpack.c.h.b16 %v1072
    %v4613 = vunpack.c.l.b16 %v1073
    %v4614 = vunpack.c.h.b16 %v1073
    %v4615 = vunpack.c.l.b16 %v1074
    %v4616 = vunpack.c.h.b16 %v1074
    %v4617 = vunpack.c.l.b16 %v1075
    %v4618 = vunpack.c.h.b16 %v1075
    %v4619 = vunpack.c.l.b16 %v1076
    %v4620 = vunpack.c.h.b16 %v1076
    %v4621 = vunpack.c.l.b16 %v1077
    %v4622 = vunpack.c.h.b16 %v1077
    %v4623 = vunpack.c.l.b16 %v1078
    %v4624 = vunpack.c.h.b16 %v1078
    %v4625 = vunpack.c.l.b16 %v1079
    %v4626 = vunpack.c.h.b16 %v1079
    %v4627 = vunpack.c.l.b16 %v1080
    %v4628 = vunpack.c.h.b16 %v1080
    %v4629 = vpack.c.b16 %v2583, %v2581
    %v4630 = vpack.c.b16 %v2584, %v2582
    %v4631 = vpack.c.b16 %v2587, %v2585
    %v4632 = vpack.c.b16 %v2588, %v2586
    %v4633 = vpack.c.b16 %v2591, %v2589
    %v4634 = vpack.c.b16 %v2592, %v2590
    %v4635 = vpack.c.b16 %v2595, %v2593
    %v4636 = vpack.c.b16 %v2596, %v2594
    %v4637 = vpack.c.b16 %v2599, %v2597
    %v4638 = vpack.c.b16 %v2600, %v2598
    %v4639 = vpack.c.b16 %v2603, %v2601
    %v4640 = vpack.c.b16 %v2604, %v2602
    %v4641 = vpack.c.b16 %v2607, %v2605
    %v4642 = vpack.c.b16 %v2608, %v2606
    %v4643 = vpack.c.b16 %v2611, %v2609
    %v4644 = vpack.c.b16 %v2612, %v2610
    %v4645 = vpack.c.b16 %v2615, %v2613
    %v4646 = vpack.c.b16 %v2616, %v2614
    %v4647 = vpack.c.b16 %v2619, %v2617
    %v4648 = vpack.c.b16 %v2620, %v2618
    %v4649 = vpack.c.b16 %v2623, %v2621
    %v4650 = vpack.c.b16 %v2624, %v2622
    %v4651 = vpack.c.b16 %v2627, %v2625
    %v4652 = vpack.c.b16 %v2628, %v2626
    %v4653 = vpack.c.b16 %v2631, %v2629
    %v4654 = vpack.c.b16 %v2632, %v2630
    %v4655 = vpack.c.b16 %v2635, %v2633
    %v4656 = vpack.c.b16 %v2636, %v2634
    %v4657 = vpack.c.b16 %v2639, %v2637
    %v4658 = vpack.c.b16 %v2640, %v2638
    %v4659 = vpack.c.b16 %v2643, %v2641
    %v4660 = vpack.c.b16 %v2644, %v2642
    %v4661 = vpack.c.b16 %v2647, %v2645
    %v4662 = vpack.c.b16 %v2648, %v2646
    %v4663 = vpack.c.b16 %v2651, %v2649
    %v4664 = vpack.c.b16 %v2652, %v2650
    %v4665 = vpack.c.b16 %v2655, %v2653
    %v4666 = vpack.c.b16 %v2656, %v2654
    %v4667 = vpack.c.b16 %v2659, %v2657
    %v4668 = vpack.c.b16 %v2660, %v2658
    %v4669 = vpack.c.b16 %v2663, %v2661
    %v4670 = vpack.c.b16 %v2664, %v2662
    %v4671 = vpack.c.b16 %v2667, %v2665
    %v4672 = vpack.c.b16 %v2668, %v2666
    %v4673 = vpack.c.b16 %v2671, %v2669
    %v4674 = vpack.c.b16 %v2672, %v2670
    %v4675 = vpack.c.b16 %v2675, %v2673
    %v4676 = vpack.c.b16 %v2676, %v2674
    %v4677 = vpack.c.b16 %v2679, %v2677
    %v4678 = vpack.c.b16 %v2680, %v2678
    %v4679 = vpack.c.b16 %v2683, %v2681
    %v4680 = vpack.c.b16 %v2684, %v2682
    %v4681 = vpack.c.b16 %v2687, %v2685
    %v4682 = vpack.c.b16 %v2688, %v2686
    %v4683 = vpack.c.b16 %v2691, %v2689
    %v4684 = vpack.c.b16 %v2692, %v2690
    %v4685 = vpack.c.b16 %v2695, %v2693
    %v4686 = vpack.c.b16 %v2696, %v2694
    %v4687 = vpack.c.b16 %v2699, %v2697
    %v4688 = vpack.c.b16 %v2700, %v2698
    %v4689 = vpack.c.b16 %v2703, %v2701
    %v4690 = vpack.c.b16 %v2704, %v2702
    %v4691 = vpack.c.b16 %v2707, %v2705
    %v4692 = vpack.c.b16 %v2708, %v2706
    %v4693 = vpack.c.b16 %v2711, %v2709
    %v4694 = vpack.c.b16 %v2712, %v2710
    %v4695 = vpack.c.b16 %v2715, %v2713
    %v4696 = vpack.c.b16 %v2716, %v2714
    %v4697 = vpack.c.b16 %v2719, %v2717
    %v4698 = vpack.c.b16 %v2720, %v2718
    %v4699 = vpack.c.b16 %v2723, %v2721
    %v4700 = vpack.c.b16 %v2724, %v2722
    %v4701 = vpack.c.b16 %v2727, %v2725
    %v4702 = vpack.c.b16 %v2728, %v2726
    %v4703 = vpack.c.b16 %v2731, %v2729
    %v4704 = vpack.c.b16 %v2732, %v2730
    %v4705 = vpack.c.b16 %v2735, %v2733
    %v4706 = vpack.c.b16 %v2736, %v2734
    %v4707 = vpack.c.b16 %v2739, %v2737
    %v4708 = vpack.c.b16 %v2740, %v2738
    %v4709 = vpack.c.b16 %v2743, %v2741
    %v4710 = vpack.c.b16 %v2744, %v2742
    %v4711 = vpack.c.b16 %v2747, %v2745
    %v4712 = vpack.c.b16 %v2748, %v2746
    %v4713 = vpack.c.b16 %v2751, %v2749
    %v4714 = vpack.c.b16 %v2752, %v2750
    %v4715 = vpack.c.b16 %v2755, %v2753
    %v4716 = vpack.c.b16 %v2756, %v2754
    %v4717 = vpack.c.b16 %v2759, %v2757
    %v4718 = vpack.c.b16 %v2760, %v2758
    %v4719 = vpack.c.b16 %v2763, %v2761
    %v4720 = vpack.c.b16 %v2764, %v2762
    %v4721 = vpack.c.b16 %v2767, %v2765
    %v4722 = vpack.c.b16 %v2768, %v2766
    %v4723 = vpack.c.b16 %v2771, %v2769
    %v4724 = vpack.c.b16 %v2772, %v2770
    %v4725 = vpack.c.b16 %v2775, %v2773
    %v4726 = vpack.c.b16 %v2776, %v2774
    %v4727 = vpack.c.b16 %v2779, %v2777
    %v4728 = vpack.c.b16 %v2780, %v2778
    %v4729 = vpack.c.b16 %v2783, %v2781
    %v4730 = vpack.c.b16 %v2784, %v2782
    %v4731 = vpack.c.b16 %v2787, %v2785
    %v4732 = vpack.c.b16 %v2788, %v2786
    %v4733 = vpack.c.b16 %v2791, %v2789
    %v4734 = vpack.c.b16 %v2792, %v2790
    %v4735 = vpack.c.b16 %v2795, %v2793
    %v4736 = vpack.c.b16 %v2796, %v2794
    %v4737 = vpack.c.b16 %v2799, %v2797
    %v4738 = vpack.c.b16 %v2800, %v2798
    %v4739 = vpack.c.b16 %v2803, %v2801
    %v4740 = vpack.c.b16 %v2804, %v2802
    %v4741 = vpack.c.b16 %v2807, %v2805
    %v4742 = vpack.c.b16 %v2808, %v2806
    %v4743 = vpack.c.b16 %v2811, %v2809
    %v4744 = vpack.c.b16 %v2812, %v2810
    %v4745 = vpack.c.b16 %v2815, %v2813
    %v4746 = vpack.c.b16 %v2816, %v2814
    %v4747 = vpack.c.b16 %v2819, %v2817
    %v4748 = vpack.c.b16 %v2820, %v2818
    %v4749 = vpack.c.b16 %v2823, %v2821
    %v4750 = vpack.c.b16 %v2824, %v2822
    %v4751 = vpack.c.b16 %v2827, %v2825
    %v4752 = vpack.c.b16 %v2828, %v2826
    %v4753 = vpack.c.b16 %v2831, %v2829
    %v4754 = vpack.c.b16 %v2832, %v2830
    %v4755 = vpack.c.b16 %v2835, %v2833
    %v4756 = vpack.c.b16 %v2836, %v2834
    %v4757 = vpack.c.b16 %v2839, %v2837
    %v4758 = vpack.c.b16 %v2840, %v2838
    %v4759 = vpack.c.b16 %v2843, %v2841
    %v4760 = vpack.c.b16 %v2844, %v2842
    %v4761 = vpack.c.b16 %v2847, %v2845
    %v4762 = vpack.c.b16 %v2848, %v2846
    %v4763 = vpack.c.b16 %v2851, %v2849
    %v4764 = vpack.c.b16 %v2852, %v2850
    %v4765 = vpack.c.b16 %v2855, %v2853
    %v4766 = vpack.c.b16 %v2856, %v2854
    %v4767 = vpack.c.b16 %v2859, %v2857
    %v4768 = vpack.c.b16 %v2860, %v2858
    %v4769 = vpack.c.b16 %v2863, %v2861
    %v4770 = vpack.c.b16 %v2864, %v2862
    %v4771 = vpack.c.b16 %v2867, %v2865
    %v4772 = vpack.c.b16 %v2868, %v2866
    %v4773 = vpack.c.b16 %v2871, %v2869
    %v4774 = vpack.c.b16 %v2872, %v2870
    %v4775 = vpack.c.b16 %v2875, %v2873
    %v4776 = vpack.c.b16 %v2876, %v2874
    %v4777 = vpack.c.b16 %v2879, %v2877
    %v4778 = vpack.c.b16 %v2880, %v2878
    %v4779 = vpack.c.b16 %v2883, %v2881
    %v4780 = vpack.c.b16 %v2884, %v2882
    %v4781 = vpack.c.b16 %v2887, %v2885
    %v4782 = vpack.c.b16 %v2888, %v2886
    %v4783 = vpack.c.b16 %v2891, %v2889
    %v4784 = vpack.c.b16 %v2892, %v2890
    %v4785 = vpack.c.b16 %v2895, %v2893
    %v4786 = vpack.c.b16 %v2896, %v2894
    %v4787 = vpack.c.b16 %v2899, %v2897
    %v4788 = vpack.c.b16 %v2900, %v2898
    %v4789 = vpack.c.b16 %v2903, %v2901
    %v4790 = vpack.c.b16 %v2904, %v2902
    %v4791 = vpack.c.b16 %v2907, %v2905
    %v4792 = vpack.c.b16 %v2908, %v2906
    %v4793 = vpack.c.b16 %v2911, %v2909
    %v4794 = vpack.c.b16 %v2912, %v2910
    %v4795 = vpack.c.b16 %v2915, %v2913
    %v4796 = vpack.c.b16 %v2916, %v2914
    %v4797 = vpack.c.b16 %v2919, %v2917
    %v4798 = vpack.c.b16 %v2920, %v2918
    %v4799 = vpack.c.b16 %v2923, %v2921
    %v4800 = vpack.c.b16 %v2924, %v2922
    %v4801 = vpack.c.b16 %v2927, %v2925
    %v4802 = vpack.c.b16 %v2928, %v2926
    %v4803 = vpack.c.b16 %v2931, %v2929
    %v4804 = vpack.c.b16 %v2932, %v2930
    %v4805 = vpack.c.b16 %v2935, %v2933
    %v4806 = vpack.c.b16 %v2936, %v2934
    %v4807 = vpack.c.b16 %v2939, %v2937
    %v4808 = vpack.c.b16 %v2940, %v2938
    %v4809 = vpack.c.b16 %v2943, %v2941
    %v4810 = vpack.c.b16 %v2944, %v2942
    %v4811 = vpack.c.b16 %v2947, %v2945
    %v4812 = vpack.c.b16 %v2948, %v2946
    %v4813 = vpack.c.b16 %v2951, %v2949
    %v4814 = vpack.c.b16 %v2952, %v2950
    %v4815 = vpack.c.b16 %v2955, %v2953
    %v4816 = vpack.c.b16 %v2956, %v2954
    %v4817 = vpack.c.b16 %v2959, %v2957
    %v4818 = vpack.c.b16 %v2960, %v2958
    %v4819 = vpack.c.b16 %v2963, %v2961
    %v4820 = vpack.c.b16 %v2964, %v2962
    %v4821 = vpack.c.b16 %v2967, %v2965
    %v4822 = vpack.c.b16 %v2968, %v2966
    %v4823 = vpack.c.b16 %v2971, %v2969
    %v4824 = vpack.c.b16 %v2972, %v2970
    %v4825 = vpack.c.b16 %v2975, %v2973
    %v4826 = vpack.c.b16 %v2976, %v2974
    %v4827 = vpack.c.b16 %v2979, %v2977
    %v4828 = vpack.c.b16 %v2980, %v2978
    %v4829 = vpack.c.b16 %v2983, %v2981
    %v4830 = vpack.c.b16 %v2984, %v2982
    %v4831 = vpack.c.b16 %v2987, %v2985
    %v4832 = vpack.c.b16 %v2988, %v2986
    %v4833 = vpack.c.b16 %v2991, %v2989
    %v4834 = vpack.c.b16 %v2992, %v2990
    %v4835 = vpack.c.b16 %v2995, %v2993
    %v4836 = vpack.c.b16 %v2996, %v2994
    %v4837 = vpack.c.b16 %v2999, %v2997
    %v4838 = vpack.c.b16 %v3000, %v2998
    %v4839 = vpack.c.b16 %v3003, %v3001
    %v4840 = vpack.c.b16 %v3004, %v3002
    %v4841 = vpack.c.b16 %v3007, %v3005
    %v4842 = vpack.c.b16 %v3008, %v3006
    %v4843 = vpack.c.b16 %v3011, %v3009
    %v4844 = vpack.c.b16 %v3012, %v3010
    %v4845 = vpack.c.b16 %v3015, %v3013
    %v4846 = vpack.c.b16 %v3016, %v3014
    %v4847 = vpack.c.b16 %v3019, %v3017
    %v4848 = vpack.c.b16 %v3020, %v3018
    %v4849 = vpack.c.b16 %v3023, %v3021
    %v4850 = vpack.c.b16 %v3024, %v3022
    %v4851 = vpack.c.b16 %v3027, %v3025
    %v4852 = vpack.c.b16 %v3028, %v3026
    %v4853 = vpack.c.b16 %v3031, %v3029
    %v4854 = vpack.c.b16 %v3032, %v3030
    %v4855 = vpack.c.b16 %v3035, %v3033
    %v4856 = vpack.c.b16 %v3036, %v3034
    %v4857 = vpack.c.b16 %v3039, %v3037
    %v4858 = vpack.c.b16 %v3040, %v3038
    %v4859 = vpack.c.b16 %v3043, %v3041
    %v4860 = vpack.c.b16 %v3044, %v3042
    %v4861 = vpack.c.b16 %v3047, %v3045
    %v4862 = vpack.c.b16 %v3048, %v3046
    %v4863 = vpack.c.b16 %v3051, %v3049
    %v4864 = vpack.c.b16 %v3052, %v3050
    %v4865 = vpack.c.b16 %v3055, %v3053
    %v4866 = vpack.c.b16 %v3056, %v3054
    %v4867 = vpack.c.b16 %v3059, %v3057
    %v4868 = vpack.c.b16 %v3060, %v3058
    %v4869 = vpack.c.b16 %v3063, %v3061
    %v4870 = vpack.c.b16 %v3064, %v3062
    %v4871 = vpack.c.b16 %v3067, %v3065
    %v4872 = vpack.c.b16 %v3068, %v3066
    %v4873 = vpack.c.b16 %v3071, %v3069
    %v4874 = vpack.c.b16 %v3072, %v3070
    %v4875 = vpack.c.b16 %v3075, %v3073
    %v4876 = vpack.c.b16 %v3076, %v3074
    %v4877 = vpack.c.b16 %v3079, %v3077
    %v4878 = vpack.c.b16 %v3080, %v3078
    %v4879 = vpack.c.b16 %v3083, %v3081
    %v4880 = vpack.c.b16 %v3084, %v3082
    %v4881 = vpack.c.b16 %v3087, %v3085
    %v4882 = vpack.c.b16 %v3088, %v3086
    %v4883 = vpack.c.b16 %v3091, %v3089
    %v4884 = vpack.c.b16 %v3092, %v3090
    %v4885 = vpack.c.b16 %v3095, %v3093
    %v4886 = vpack.c.b16 %v3096, %v3094
    %v4887 = vpack.c.b16 %v3099, %v3097
    %v4888 = vpack.c.b16 %v3100, %v3098
    %v4889 = vpack.c.b16 %v3103, %v3101
    %v4890 = vpack.c.b16 %v3104, %v3102
    %v4891 = vpack.c.b16 %v3107, %v3105
    %v4892 = vpack.c.b16 %v3108, %v3106
    %v4893 = vpack.c.b16 %v3111, %v3109
    %v4894 = vpack.c.b16 %v3112, %v3110
    %v4895 = vpack.c.b16 %v3115, %v3113
    %v4896 = vpack.c.b16 %v3116, %v3114
    %v4897 = vpack.c.b16 %v3119, %v3117
    %v4898 = vpack.c.b16 %v3120, %v3118
    %v4899 = vpack.c.b16 %v3123, %v3121
    %v4900 = vpack.c.b16 %v3124, %v3122
    %v4901 = vpack.c.b16 %v3127, %v3125
    %v4902 = vpack.c.b16 %v3128, %v3126
    %v4903 = vpack.c.b16 %v3131, %v3129
    %v4904 = vpack.c.b16 %v3132, %v3130
    %v4905 = vpack.c.b16 %v3135, %v3133
    %v4906 = vpack.c.b16 %v3136, %v3134
    %v4907 = vpack.c.b16 %v3139, %v3137
    %v4908 = vpack.c.b16 %v3140, %v3138
    %v4909 = vpack.c.b16 %v3143, %v3141
    %v4910 = vpack.c.b16 %v3144, %v3142
    %v4911 = vpack.c.b16 %v3147, %v3145
    %v4912 = vpack.c.b16 %v3148, %v3146
    %v4913 = vpack.c.b16 %v3151, %v3149
    %v4914 = vpack.c.b16 %v3152, %v3150
    %v4915 = vpack.c.b16 %v3155, %v3153
    %v4916 = vpack.c.b16 %v3156, %v3154
    %v4917 = vpack.c.b16 %v3159, %v3157
    %v4918 = vpack.c.b16 %v3160, %v3158
    %v4919 = vpack.c.b16 %v3163, %v3161
    %v4920 = vpack.c.b16 %v3164, %v3162
    %v4921 = vpack.c.b16 %v3167, %v3165
    %v4922 = vpack.c.b16 %v3168, %v3166
    %v4923 = vpack.c.b16 %v3171, %v3169
    %v4924 = vpack.c.b16 %v3172, %v3170
    %v4925 = vpack.c.b16 %v3175, %v3173
    %v4926 = vpack.c.b16 %v3176, %v3174
    %v4927 = vpack.c.b16 %v3179, %v3177
    %v4928 = vpack.c.b16 %v3180, %v3178
    %v4929 = vpack.c.b16 %v3183, %v3181
    %v4930 = vpack.c.b16 %v3184, %v3182
    %v4931 = vpack.c.b16 %v3187, %v3185
    %v4932 = vpack.c.b16 %v3188, %v3186
    %v4933 = vpack.c.b16 %v3191, %v3189
    %v4934 = vpack.c.b16 %v3192, %v3190
    %v4935 = vpack.c.b16 %v3195, %v3193
    %v4936 = vpack.c.b16 %v3196, %v3194
    %v4937 = vpack.c.b16 %v3199, %v3197
    %v4938 = vpack.c.b16 %v3200, %v3198
    %v4939 = vpack.c.b16 %v3203, %v3201
    %v4940 = vpack.c.b16 %v3204, %v3202
    %v4941 = vpack.c.b16 %v3207, %v3205
    %v4942 = vpack.c.b16 %v3208, %v3206
    %v4943 = vpack.c.b16 %v3211, %v3209
    %v4944 = vpack.c.b16 %v3212, %v3210
    %v4945 = vpack.c.b16 %v3215, %v3213
    %v4946 = vpack.c.b16 %v3216, %v3214
    %v4947 = vpack.c.b16 %v3219, %v3217
    %v4948 = vpack.c.b16 %v3220, %v3218
    %v4949 = vpack.c.b16 %v3223, %v3221
    %v4950 = vpack.c.b16 %v3224, %v3222
    %v4951 = vpack.c.b16 %v3227, %v3225
    %v4952 = vpack.c.b16 %v3228, %v3226
    %v4953 = vpack.c.b16 %v3231, %v3229
    %v4954 = vpack.c.b16 %v3232, %v3230
    %v4955 = vpack.c.b16 %v3235, %v3233
    %v4956 = vpack.c.b16 %v3236, %v3234
    %v4957 = vpack.c.b16 %v3239, %v3237
    %v4958 = vpack.c.b16 %v3240, %v3238
    %v4959 = vpack.c.b16 %v3243, %v3241
    %v4960 = vpack.c.b16 %v3244, %v3242
    %v4961 = vpack.c.b16 %v3247, %v3245
    %v4962 = vpack.c.b16 %v3248, %v3246
    %v4963 = vpack.c.b16 %v3251, %v3249
    %v4964 = vpack.c.b16 %v3252, %v3250
    %v4965 = vpack.c.b16 %v3255, %v3253
    %v4966 = vpack.c.b16 %v3256, %v3254
    %v4967 = vpack.c.b16 %v3259, %v3257
    %v4968 = vpack.c.b16 %v3260, %v3258
    %v4969 = vpack.c.b16 %v3263, %v3261
    %v4970 = vpack.c.b16 %v3264, %v3262
    %v4971 = vpack.c.b16 %v3267, %v3265
    %v4972 = vpack.c.b16 %v3268, %v3266
    %v4973 = vpack.c.b16 %v3271, %v3269
    %v4974 = vpack.c.b16 %v3272, %v3270
    %v4975 = vpack.c.b16 %v3275, %v3273
    %v4976 = vpack.c.b16 %v3276, %v3274
    %v4977 = vpack.c.b16 %v3279, %v3277
    %v4978 = vpack.c.b16 %v3280, %v3278
    %v4979 = vpack.c.b16 %v3283, %v3281
    %v4980 = vpack.c.b16 %v3284, %v3282
    %v4981 = vpack.c.b16 %v3287, %v3285
    %v4982 = vpack.c.b16 %v3288, %v3286
    %v4983 = vpack.c.b16 %v3291, %v3289
    %v4984 = vpack.c.b16 %v3292, %v3290
    %v4985 = vpack.c.b16 %v3295, %v3293
    %v4986 = vpack.c.b16 %v3296, %v3294
    %v4987 = vpack.c.b16 %v3299, %v3297
    %v4988 = vpack.c.b16 %v3300, %v3298
    %v4989 = vpack.c.b16 %v3303, %v3301
    %v4990 = vpack.c.b16 %v3304, %v3302
    %v4991 = vpack.c.b16 %v3307, %v3305
    %v4992 = vpack.c.b16 %v3308, %v3306
    %v4993 = vpack.c.b16 %v3311, %v3309
    %v4994 = vpack.c.b16 %v3312, %v3310
    %v4995 = vpack.c.b16 %v3315, %v3313
    %v4996 = vpack.c.b16 %v3316, %v3314
    %v4997 = vpack.c.b16 %v3319, %v3317
    %v4998 = vpack.c.b16 %v3320, %v3318
    %v4999 = vpack.c.b16 %v3323, %v3321
    %v5000 = vpack.c.b16 %v3324, %v3322
    %v5001 = vpack.c.b16 %v3327, %v3325
    %v5002 = vpack.c.b16 %v3328, %v3326
    %v5003 = vpack.c.b16 %v3331, %v3329
    %v5004 = vpack.c.b16 %v3332, %v3330
    %v5005 = vpack.c.b16 %v3335, %v3333
    %v5006 = vpack.c.b16 %v3336, %v3334
    %v5007 = vpack.c.b16 %v3339, %v3337
    %v5008 = vpack.c.b16 %v3340, %v3338
    %v5009 = vpack.c.b16 %v3343, %v3341
    %v5010 = vpack.c.b16 %v3344, %v3342
    %v5011 = vpack.c.b16 %v3347, %v3345
    %v5012 = vpack.c.b16 %v3348, %v3346
    %v5013 = vpack.c.b16 %v3351, %v3349
    %v5014 = vpack.c.b16 %v3352, %v3350
    %v5015 = vpack.c.b16 %v3355, %v3353
    %v5016 = vpack.c.b16 %v3356, %v3354
    %v5017 = vpack.c.b16 %v3359, %v3357
    %v5018 = vpack.c.b16 %v3360, %v3358
    %v5019 = vpack.c.b16 %v3363, %v3361
    %v5020 = vpack.c.b16 %v3364, %v3362
    %v5021 = vpack.c.b16 %v3367, %v3365
    %v5022 = vpack.c.b16 %v3368, %v3366
    %v5023 = vpack.c.b16 %v3371, %v3369
    %v5024 = vpack.c.b16 %v3372, %v3370
    %v5025 = vpack.c.b16 %v3375, %v3373
    %v5026 = vpack.c.b16 %v3376, %v3374
    %v5027 = vpack.c.b16 %v3379, %v3377
    %v5028 = vpack.c.b16 %v3380, %v3378
    %v5029 = vpack.c.b16 %v3383, %v3381
    %v5030 = vpack.c.b16 %v3384, %v3382
    %v5031 = vpack.c.b16 %v3387, %v3385
    %v5032 = vpack.c.b16 %v3388, %v3386
    %v5033 = vpack.c.b16 %v3391, %v3389
    %v5034 = vpack.c.b16 %v3392, %v3390
    %v5035 = vpack.c.b16 %v3395, %v3393
    %v5036 = vpack.c.b16 %v3396, %v3394
    %v5037 = vpack.c.b16 %v3399, %v3397
    %v5038 = vpack.c.b16 %v3400, %v3398
    %v5039 = vpack.c.b16 %v3403, %v3401
    %v5040 = vpack.c.b16 %v3404, %v3402
    %v5041 = vpack.c.b16 %v3407, %v3405
    %v5042 = vpack.c.b16 %v3408, %v3406
    %v5043 = vpack.c.b16 %v3411, %v3409
    %v5044 = vpack.c.b16 %v3412, %v3410
    %v5045 = vpack.c.b16 %v3415, %v3413
    %v5046 = vpack.c.b16 %v3416, %v3414
    %v5047 = vpack.c.b16 %v3419, %v3417
    %v5048 = vpack.c.b16 %v3420, %v3418
    %v5049 = vpack.c.b16 %v3423, %v3421
    %v5050 = vpack.c.b16 %v3424, %v3422
    %v5051 = vpack.c.b16 %v3427, %v3425
    %v5052 = vpack.c.b16 %v3428, %v3426
    %v5053 = vpack.c.b16 %v3431, %v3429
    %v5054 = vpack.c.b16 %v3432, %v3430
    %v5055 = vpack.c.b16 %v3435, %v3433
    %v5056 = vpack.c.b16 %v3436, %v3434
    %v5057 = vpack.c.b16 %v3439, %v3437
    %v5058 = vpack.c.b16 %v3440, %v3438
    %v5059 = vpack.c.b16 %v3443, %v3441
    %v5060 = vpack.c.b16 %v3444, %v3442
    %v5061 = vpack.c.b16 %v3447, %v3445
    %v5062 = vpack.c.b16 %v3448, %v3446
    %v5063 = vpack.c.b16 %v3451, %v3449
    %v5064 = vpack.c.b16 %v3452, %v3450
    %v5065 = vpack.c.b16 %v3455, %v3453
    %v5066 = vpack.c.b16 %v3456, %v3454
    %v5067 = vpack.c.b16 %v3459, %v3457
    %v5068 = vpack.c.b16 %v3460, %v3458
    %v5069 = vpack.c.b16 %v3463, %v3461
    %v5070 = vpack.c.b16 %v3464, %v3462
    %v5071 = vpack.c.b16 %v3467, %v3465
    %v5072 = vpack.c.b16 %v3468, %v3466
    %v5073 = vpack.c.b16 %v3471, %v3469
    %v5074 = vpack.c.b16 %v3472, %v3470
    %v5075 = vpack.c.b16 %v3475, %v3473
    %v5076 = vpack.c.b16 %v3476, %v3474
    %v5077 = vpack.c.b16 %v3479, %v3477
    %v5078 = vpack.c.b16 %v3480, %v3478
    %v5079 = vpack.c.b16 %v3483, %v3481
    %v5080 = vpack.c.b16 %v3484, %v3482
    %v5081 = vpack.c.b16 %v3487, %v3485
    %v5082 = vpack.c.b16 %v3488, %v3486
    %v5083 = vpack.c.b16 %v3491, %v3489
    %v5084 = vpack.c.b16 %v3492, %v3490
    %v5085 = vpack.c.b16 %v3495, %v3493
    %v5086 = vpack.c.b16 %v3496, %v3494
    %v5087 = vpack.c.b16 %v3499, %v3497
    %v5088 = vpack.c.b16 %v3500, %v3498
    %v5089 = vpack.c.b16 %v3503, %v3501
    %v5090 = vpack.c.b16 %v3504, %v3502
    %v5091 = vpack.c.b16 %v3507, %v3505
    %v5092 = vpack.c.b16 %v3508, %v3506
    %v5093 = vpack.c.b16 %v3511, %v3509
    %v5094 = vpack.c.b16 %v3512, %v3510
    %v5095 = vpack.c.b16 %v3515, %v3513
    %v5096 = vpack.c.b16 %v3516, %v3514
    %v5097 = vpack.c.b16 %v3519, %v3517
    %v5098 = vpack.c.b16 %v3520, %v3518
    %v5099 = vpack.c.b16 %v3523, %v3521
    %v5100 = vpack.c.b16 %v3524, %v3522
    %v5101 = vpack.c.b16 %v3527, %v3525
    %v5102 = vpack.c.b16 %v3528, %v3526
    %v5103 = vpack.c.b16 %v3531, %v3529
    %v5104 = vpack.c.b16 %v3532, %v3530
    %v5105 = vpack.c.b16 %v3535, %v3533
    %v5106 = vpack.c.b16 %v3536, %v3534
    %v5107 = vpack.c.b16 %v3539, %v3537
    %v5108 = vpack.c.b16 %v3540, %v3538
    %v5109 = vpack.c.b16 %v3543, %v3541
    %v5110 = vpack.c.b16 %v3544, %v3542
    %v5111 = vpack.c.b16 %v3547, %v3545
    %v5112 = vpack.c.b16 %v3548, %v3546
    %v5113 = vpack.c.b16 %v3551, %v3549
    %v5114 = vpack.c.b16 %v3552, %v3550
    %v5115 = vpack.c.b16 %v3555, %v3553
    %v5116 = vpack.c.b16 %v3556, %v3554
    %v5117 = vpack.c.b16 %v3559, %v3557
    %v5118 = vpack.c.b16 %v3560, %v3558
    %v5119 = vpack.c.b16 %v3563, %v3561
    %v5120 = vpack.c.b16 %v3564, %v3562
    %v5121 = vpack.c.b16 %v3567, %v3565
    %v5122 = vpack.c.b16 %v3568, %v3566
    %v5123 = vpack.c.b16 %v3571, %v3569
    %v5124 = vpack.c.b16 %v3572, %v3570
    %v5125 = vpack.c.b16 %v3575, %v3573
    %v5126 = vpack.c.b16 %v3576, %v3574
    %v5127 = vpack.c.b16 %v3579, %v3577
    %v5128 = vpack.c.b16 %v3580, %v3578
    %v5129 = vpack.c.b16 %v3583, %v3581
    %v5130 = vpack.c.b16 %v3584, %v3582
    %v5131 = vpack.c.b16 %v3587, %v3585
    %v5132 = vpack.c.b16 %v3588, %v3586
    %v5133 = vpack.c.b16 %v3591, %v3589
    %v5134 = vpack.c.b16 %v3592, %v3590
    %v5135 = vpack.c.b16 %v3595, %v3593
    %v5136 = vpack.c.b16 %v3596, %v3594
    %v5137 = vpack.c.b16 %v3599, %v3597
    %v5138 = vpack.c.b16 %v3600, %v3598
    %v5139 = vpack.c.b16 %v3603, %v3601
    %v5140 = vpack.c.b16 %v3604, %v3602
    %v5141 = vpack.c.b16 %v3607, %v3605
    %v5142 = vpack.c.b16 %v3608, %v3606
    %v5143 = vpack.c.b16 %v3611, %v3609
    %v5144 = vpack.c.b16 %v3612, %v3610
    %v5145 = vpack.c.b16 %v3615, %v3613
    %v5146 = vpack.c.b16 %v3616, %v3614
    %v5147 = vpack.c.b16 %v3619, %v3617
    %v5148 = vpack.c.b16 %v3620, %v3618
    %v5149 = vpack.c.b16 %v3623, %v3621
    %v5150 = vpack.c.b16 %v3624, %v3622
    %v5151 = vpack.c.b16 %v3627, %v3625
    %v5152 = vpack.c.b16 %v3628, %v3626
    %v5153 = vpack.c.b16 %v3631, %v3629
    %v5154 = vpack.c.b16 %v3632, %v3630
    %v5155 = vpack.c.b16 %v3635, %v3633
    %v5156 = vpack.c.b16 %v3636, %v3634
    %v5157 = vpack.c.b16 %v3639, %v3637
    %v5158 = vpack.c.b16 %v3640, %v3638
    %v5159 = vpack.c.b16 %v3643, %v3641
    %v5160 = vpack.c.b16 %v3644, %v3642
    %v5161 = vpack.c.b16 %v3647, %v3645
    %v5162 = vpack.c.b16 %v3648, %v3646
    %v5163 = vpack.c.b16 %v3651, %v3649
    %v5164 = vpack.c.b16 %v3652, %v3650
    %v5165 = vpack.c.b16 %v3655, %v3653
    %v5166 = vpack.c.b16 %v3656, %v3654
    %v5167 = vpack.c.b16 %v3659, %v3657
    %v5168 = vpack.c.b16 %v3660, %v3658
    %v5169 = vpack.c.b16 %v3663, %v3661
    %v5170 = vpack.c.b16 %v3664, %v3662
    %v5171 = vpack.c.b16 %v3667, %v3665
    %v5172 = vpack.c.b16 %v3668, %v3666
    %v5173 = vpack.c.b16 %v3671, %v3669
    %v5174 = vpack.c.b16 %v3672, %v3670
    %v5175 = vpack.c.b16 %v3675, %v3673
    %v5176 = vpack.c.b16 %v3676, %v3674
    %v5177 = vpack.c.b16 %v3679, %v3677
    %v5178 = vpack.c.b16 %v3680, %v3678
    %v5179 = vpack.c.b16 %v3683, %v3681
    %v5180 = vpack.c.b16 %v3684, %v3682
    %v5181 = vpack.c.b16 %v3687, %v3685
    %v5182 = vpack.c.b16 %v3688, %v3686
    %v5183 = vpack.c.b16 %v3691, %v3689
    %v5184 = vpack.c.b16 %v3692, %v3690
    %v5185 = vpack.c.b16 %v3695, %v3693
    %v5186 = vpack.c.b16 %v3696, %v3694
    %v5187 = vpack.c.b16 %v3699, %v3697
    %v5188 = vpack.c.b16 %v3700, %v3698
    %v5189 = vpack.c.b16 %v3703, %v3701
    %v5190 = vpack.c.b16 %v3704, %v3702
    %v5191 = vpack.c.b16 %v3707, %v3705
    %v5192 = vpack.c.b16 %v3708, %v3706
    %v5193 = vpack.c.b16 %v3711, %v3709
    %v5194 = vpack.c.b16 %v3712, %v3710
    %v5195 = vpack.c.b16 %v3715, %v3713
    %v5196 = vpack.c.b16 %v3716, %v3714
    %v5197 = vpack.c.b16 %v3719, %v3717
    %v5198 = vpack.c.b16 %v3720, %v3718
    %v5199 = vpack.c.b16 %v3723, %v3721
    %v5200 = vpack.c.b16 %v3724, %v3722
    %v5201 = vpack.c.b16 %v3727, %v3725
    %v5202 = vpack.c.b16 %v3728, %v3726
    %v5203 = vpack.c.b16 %v3731, %v3729
    %v5204 = vpack.c.b16 %v3732, %v3730
    %v5205 = vpack.c.b16 %v3735, %v3733
    %v5206 = vpack.c.b16 %v3736, %v3734
    %v5207 = vpack.c.b16 %v3739, %v3737
    %v5208 = vpack.c.b16 %v3740, %v3738
    %v5209 = vpack.c.b16 %v3743, %v3741
    %v5210 = vpack.c.b16 %v3744, %v3742
    %v5211 = vpack.c.b16 %v3747, %v3745
    %v5212 = vpack.c.b16 %v3748, %v3746
    %v5213 = vpack.c.b16 %v3751, %v3749
    %v5214 = vpack.c.b16 %v3752, %v3750
    %v5215 = vpack.c.b16 %v3755, %v3753
    %v5216 = vpack.c.b16 %v3756, %v3754
    %v5217 = vpack.c.b16 %v3759, %v3757
    %v5218 = vpack.c.b16 %v3760, %v3758
    %v5219 = vpack.c.b16 %v3763, %v3761
    %v5220 = vpack.c.b16 %v3764, %v3762
    %v5221 = vpack.c.b16 %v3767, %v3765
    %v5222 = vpack.c.b16 %v3768, %v3766
    %v5223 = vpack.c.b16 %v3771, %v3769
    %v5224 = vpack.c.b16 %v3772, %v3770
    %v5225 = vpack.c.b16 %v3775, %v3773
    %v5226 = vpack.c.b16 %v3776, %v3774
    %v5227 = vpack.c.b16 %v3779, %v3777
    %v5228 = vpack.c.b16 %v3780, %v3778
    %v5229 = vpack.c.b16 %v3783, %v3781
    %v5230 = vpack.c.b16 %v3784, %v3782
    %v5231 = vpack.c.b16 %v3787, %v3785
    %v5232 = vpack.c.b16 %v3788, %v3786
    %v5233 = vpack.c.b16 %v3791, %v3789
    %v5234 = vpack.c.b16 %v3792, %v3790
    %v5235 = vpack.c.b16 %v3795, %v3793
    %v5236 = vpack.c.b16 %v3796, %v3794
    %v5237 = vpack.c.b16 %v3799, %v3797
    %v5238 = vpack.c.b16 %v3800, %v3798
    %v5239 = vpack.c.b16 %v3803, %v3801
    %v5240 = vpack.c.b16 %v3804, %v3802
    %v5241 = vpack.c.b16 %v3807, %v3805
    %v5242 = vpack.c.b16 %v3808, %v3806
    %v5243 = vpack.c.b16 %v3811, %v3809
    %v5244 = vpack.c.b16 %v3812, %v3810
    %v5245 = vpack.c.b16 %v3815, %v3813
    %v5246 = vpack.c.b16 %v3816, %v3814
    %v5247 = vpack.c.b16 %v3819, %v3817
    %v5248 = vpack.c.b16 %v3820, %v3818
    %v5249 = vpack.c.b16 %v3823, %v3821
    %v5250 = vpack.c.b16 %v3824, %v3822
    %v5251 = vpack.c.b16 %v3827, %v3825
    %v5252 = vpack.c.b16 %v3828, %v3826
    %v5253 = vpack.c.b16 %v3831, %v3829
    %v5254 = vpack.c.b16 %v3832, %v3830
    %v5255 = vpack.c.b16 %v3835, %v3833
    %v5256 = vpack.c.b16 %v3836, %v3834
    %v5257 = vpack.c.b16 %v3839, %v3837
    %v5258 = vpack.c.b16 %v3840, %v3838
    %v5259 = vpack.c.b16 %v3843, %v3841
    %v5260 = vpack.c.b16 %v3844, %v3842
    %v5261 = vpack.c.b16 %v3847, %v3845
    %v5262 = vpack.c.b16 %v3848, %v3846
    %v5263 = vpack.c.b16 %v3851, %v3849
    %v5264 = vpack.c.b16 %v3852, %v3850
    %v5265 = vpack.c.b16 %v3855, %v3853
    %v5266 = vpack.c.b16 %v3856, %v3854
    %v5267 = vpack.c.b16 %v3859, %v3857
    %v5268 = vpack.c.b16 %v3860, %v3858
    %v5269 = vpack.c.b16 %v3863, %v3861
    %v5270 = vpack.c.b16 %v3864, %v3862
    %v5271 = vpack.c.b16 %v3867, %v3865
    %v5272 = vpack.c.b16 %v3868, %v3866
    %v5273 = vpack.c.b16 %v3871, %v3869
    %v5274 = vpack.c.b16 %v3872, %v3870
    %v5275 = vpack.c.b16 %v3875, %v3873
    %v5276 = vpack.c.b16 %v3876, %v3874
    %v5277 = vpack.c.b16 %v3879, %v3877
    %v5278 = vpack.c.b16 %v3880, %v3878
    %v5279 = vpack.c.b16 %v3883, %v3881
    %v5280 = vpack.c.b16 %v3884, %v3882
    %v5281 = vpack.c.b16 %v3887, %v3885
    %v5282 = vpack.c.b16 %v3888, %v3886
    %v5283 = vpack.c.b16 %v3891, %v3889
    %v5284 = vpack.c.b16 %v3892, %v3890
    %v5285 = vpack.c.b16 %v3895, %v3893
    %v5286 = vpack.c.b16 %v3896, %v3894
    %v5287 = vpack.c.b16 %v3899, %v3897
    %v5288 = vpack.c.b16 %v3900, %v3898
    %v5289 = vpack.c.b16 %v3903, %v3901
    %v5290 = vpack.c.b16 %v3904, %v3902
    %v5291 = vpack.c.b16 %v3907, %v3905
    %v5292 = vpack.c.b16 %v3908, %v3906
    %v5293 = vpack.c.b16 %v3911, %v3909
    %v5294 = vpack.c.b16 %v3912, %v3910
    %v5295 = vpack.c.b16 %v3915, %v3913
    %v5296 = vpack.c.b16 %v3916, %v3914
    %v5297 = vpack.c.b16 %v3919, %v3917
    %v5298 = vpack.c.b16 %v3920, %v3918
    %v5299 = vpack.c.b16 %v3923, %v3921
    %v5300 = vpack.c.b16 %v3924, %v3922
    %v5301 = vpack.c.b16 %v3927, %v3925
    %v5302 = vpack.c.b16 %v3928, %v3926
    %v5303 = vpack.c.b16 %v3931, %v3929
    %v5304 = vpack.c.b16 %v3932, %v3930
    %v5305 = vpack.c.b16 %v3935, %v3933
    %v5306 = vpack.c.b16 %v3936, %v3934
    %v5307 = vpack.c.b16 %v3939, %v3937
    %v5308 = vpack.c.b16 %v3940, %v3938
    %v5309 = vpack.c.b16 %v3943, %v3941
    %v5310 = vpack.c.b16 %v3944, %v3942
    %v5311 = vpack.c.b16 %v3947, %v3945
    %v5312 = vpack.c.b16 %v3948, %v3946
    %v5313 = vpack.c.b16 %v3951, %v3949
    %v5314 = vpack.c.b16 %v3952, %v3950
    %v5315 = vpack.c.b16 %v3955, %v3953
    %v5316 = vpack.c.b16 %v3956, %v3954
    %v5317 = vpack.c.b16 %v3959, %v3957
    %v5318 = vpack.c.b16 %v3960, %v3958
    %v5319 = vpack.c.b16 %v3963, %v3961
    %v5320 = vpack.c.b16 %v3964, %v3962
    %v5321 = vpack.c.b16 %v3967, %v3965
    %v5322 = vpack.c.b16 %v3968, %v3966
    %v5323 = vpack.c.b16 %v3971, %v3969
    %v5324 = vpack.c.b16 %v3972, %v3970
    %v5325 = vpack.c.b16 %v3975, %v3973
    %v5326 = vpack.c.b16 %v3976, %v3974
    %v5327 = vpack.c.b16 %v3979, %v3977
    %v5328 = vpack.c.b16 %v3980, %v3978
    %v5329 = vpack.c.b16 %v3983, %v3981
    %v5330 = vpack.c.b16 %v3984, %v3982
    %v5331 = vpack.c.b16 %v3987, %v3985
    %v5332 = vpack.c.b16 %v3988, %v3986
    %v5333 = vpack.c.b16 %v3991, %v3989
    %v5334 = vpack.c.b16 %v3992, %v3990
    %v5335 = vpack.c.b16 %v3995, %v3993
    %v5336 = vpack.c.b16 %v3996, %v3994
    %v5337 = vpack.c.b16 %v3999, %v3997
    %v5338 = vpack.c.b16 %v4000, %v3998
    %v5339 = vpack.c.b16 %v4003, %v4001
    %v5340 = vpack.c.b16 %v4004, %v4002
    %v5341 = vpack.c.b16 %v4007, %v4005
    %v5342 = vpack.c.b16 %v4008, %v4006
    %v5343 = vpack.c.b16 %v4011, %v4009
    %v5344 = vpack.c.b16 %v4012, %v4010
    %v5345 = vpack.c.b16 %v4015, %v4013
    %v5346 = vpack.c.b16 %v4016, %v4014
    %v5347 = vpack.c.b16 %v4019, %v4017
    %v5348 = vpack.c.b16 %v4020, %v4018
    %v5349 = vpack.c.b16 %v4023, %v4021
    %v5350 = vpack.c.b16 %v4024, %v4022
    %v5351 = vpack.c.b16 %v4027, %v4025
    %v5352 = vpack.c.b16 %v4028, %v4026
    %v5353 = vpack.c.b16 %v4031, %v4029
    %v5354 = vpack.c.b16 %v4032, %v4030
    %v5355 = vpack.c.b16 %v4035, %v4033
    %v5356 = vpack.c.b16 %v4036, %v4034
    %v5357 = vpack.c.b16 %v4039, %v4037
    %v5358 = vpack.c.b16 %v4040, %v4038
    %v5359 = vpack.c.b16 %v4043, %v4041
    %v5360 = vpack.c.b16 %v4044, %v4042
    %v5361 = vpack.c.b16 %v4047, %v4045
    %v5362 = vpack.c.b16 %v4048, %v4046
    %v5363 = vpack.c.b16 %v4051, %v4049
    %v5364 = vpack.c.b16 %v4052, %v4050
    %v5365 = vpack.c.b16 %v4055, %v4053
    %v5366 = vpack.c.b16 %v4056, %v4054
    %v5367 = vpack.c.b16 %v4059, %v4057
    %v5368 = vpack.c.b16 %v4060, %v4058
    %v5369 = vpack.c.b16 %v4063, %v4061
    %v5370 = vpack.c.b16 %v4064, %v4062
    %v5371 = vpack.c.b16 %v4067, %v4065
    %v5372 = vpack.c.b16 %v4068, %v4066
    %v5373 = vpack.c.b16 %v4071, %v4069
    %v5374 = vpack.c.b16 %v4072, %v4070
    %v5375 = vpack.c.b16 %v4075, %v4073
    %v5376 = vpack.c.b16 %v4076, %v4074
    %v5377 = vpack.c.b16 %v4079, %v4077
    %v5378 = vpack.c.b16 %v4080, %v4078
    %v5379 = vpack.c.b16 %v4083, %v4081
    %v5380 = vpack.c.b16 %v4084, %v4082
    %v5381 = vpack.c.b16 %v4087, %v4085
    %v5382 = vpack.c.b16 %v4088, %v4086
    %v5383 = vpack.c.b16 %v4091, %v4089
    %v5384 = vpack.c.b16 %v4092, %v4090
    %v5385 = vpack.c.b16 %v4095, %v4093
    %v5386 = vpack.c.b16 %v4096, %v4094
    %v5387 = vpack.c.b16 %v4099, %v4097
    %v5388 = vpack.c.b16 %v4100, %v4098
    %v5389 = vpack.c.b16 %v4103, %v4101
    %v5390 = vpack.c.b16 %v4104, %v4102
    %v5391 = vpack.c.b16 %v4107, %v4105
    %v5392 = vpack.c.b16 %v4108, %v4106
    %v5393 = vpack.c.b16 %v4111, %v4109
    %v5394 = vpack.c.b16 %v4112, %v4110
    %v5395 = vpack.c.b16 %v4115, %v4113
    %v5396 = vpack.c.b16 %v4116, %v4114
    %v5397 = vpack.c.b16 %v4119, %v4117
    %v5398 = vpack.c.b16 %v4120, %v4118
    %v5399 = vpack.c.b16 %v4123, %v4121
    %v5400 = vpack.c.b16 %v4124, %v4122
    %v5401 = vpack.c.b16 %v4127, %v4125
    %v5402 = vpack.c.b16 %v4128, %v4126
    %v5403 = vpack.c.b16 %v4131, %v4129
    %v5404 = vpack.c.b16 %v4132, %v4130
    %v5405 = vpack.c.b16 %v4135, %v4133
    %v5406 = vpack.c.b16 %v4136, %v4134
    %v5407 = vpack.c.b16 %v4139, %v4137
    %v5408 = vpack.c.b16 %v4140, %v4138
    %v5409 = vpack.c.b16 %v4143, %v4141
    %v5410 = vpack.c.b16 %v4144, %v4142
    %v5411 = vpack.c.b16 %v4147, %v4145
    %v5412 = vpack.c.b16 %v4148, %v4146
    %v5413 = vpack.c.b16 %v4151, %v4149
    %v5414 = vpack.c.b16 %v4152, %v4150
    %v5415 = vpack.c.b16 %v4155, %v4153
    %v5416 = vpack.c.b16 %v4156, %v4154
    %v5417 = vpack.c.b16 %v4159, %v4157
    %v5418 = vpack.c.b16 %v4160, %v4158
    %v5419 = vpack.c.b16 %v4163, %v4161
    %v5420 = vpack.c.b16 %v4164, %v4162
    %v5421 = vpack.c.b16 %v4167, %v4165
    %v5422 = vpack.c.b16 %v4168, %v4166
    %v5423 = vpack.c.b16 %v4171, %v4169
    %v5424 = vpack.c.b16 %v4172, %v4170
    %v5425 = vpack.c.b16 %v4175, %v4173
    %v5426 = vpack.c.b16 %v4176, %v4174
    %v5427 = vpack.c.b16 %v4179, %v4177
    %v5428 = vpack.c.b16 %v4180, %v4178
    %v5429 = vpack.c.b16 %v4183, %v4181
    %v5430 = vpack.c.b16 %v4184, %v4182
    %v5431 = vpack.c.b16 %v4187, %v4185
    %v5432 = vpack.c.b16 %v4188, %v4186
    %v5433 = vpack.c.b16 %v4191, %v4189
    %v5434 = vpack.c.b16 %v4192, %v4190
    %v5435 = vpack.c.b16 %v4195, %v4193
    %v5436 = vpack.c.b16 %v4196, %v4194
    %v5437 = vpack.c.b16 %v4199, %v4197
    %v5438 = vpack.c.b16 %v4200, %v4198
    %v5439 = vpack.c.b16 %v4203, %v4201
    %v5440 = vpack.c.b16 %v4204, %v4202
    %v5441 = vpack.c.b16 %v4207, %v4205
    %v5442 = vpack.c.b16 %v4208, %v4206
    %v5443 = vpack.c.b16 %v4211, %v4209
    %v5444 = vpack.c.b16 %v4212, %v4210
    %v5445 = vpack.c.b16 %v4215, %v4213
    %v5446 = vpack.c.b16 %v4216, %v4214
    %v5447 = vpack.c.b16 %v4219, %v4217
    %v5448 = vpack.c.b16 %v4220, %v4218
    %v5449 = vpack.c.b16 %v4223, %v4221
    %v5450 = vpack.c.b16 %v4224, %v4222
    %v5451 = vpack.c.b16 %v4227, %v4225
    %v5452 = vpack.c.b16 %v4228, %v4226
    %v5453 = vpack.c.b16 %v4231, %v4229
    %v5454 = vpack.c.b16 %v4232, %v4230
    %v5455 = vpack.c.b16 %v4235, %v4233
    %v5456 = vpack.c.b16 %v4236, %v4234
    %v5457 = vpack.c.b16 %v4239, %v4237
    %v5458 = vpack.c.b16 %v4240, %v4238
    %v5459 = vpack.c.b16 %v4243, %v4241
    %v5460 = vpack.c.b16 %v4244, %v4242
    %v5461 = vpack.c.b16 %v4247, %v4245
    %v5462 = vpack.c.b16 %v4248, %v4246
    %v5463 = vpack.c.b16 %v4251, %v4249
    %v5464 = vpack.c.b16 %v4252, %v4250
    %v5465 = vpack.c.b16 %v4255, %v4253
    %v5466 = vpack.c.b16 %v4256, %v4254
    %v5467 = vpack.c.b16 %v4259, %v4257
    %v5468 = vpack.c.b16 %v4260, %v4258
    %v5469 = vpack.c.b16 %v4263, %v4261
    %v5470 = vpack.c.b16 %v4264, %v4262
    %v5471 = vpack.c.b16 %v4267, %v4265
    %v5472 = vpack.c.b16 %v4268, %v4266
    %v5473 = vpack.c.b16 %v4271, %v4269
    %v5474 = vpack.c.b16 %v4272, %v4270
    %v5475 = vpack.c.b16 %v4275, %v4273
    %v5476 = vpack.c.b16 %v4276, %v4274
    %v5477 = vpack.c.b16 %v4279, %v4277
    %v5478 = vpack.c.b16 %v4280, %v4278
    %v5479 = vpack.c.b16 %v4283, %v4281
    %v5480 = vpack.c.b16 %v4284, %v4282
    %v5481 = vpack.c.b16 %v4287, %v4285
    %v5482 = vpack.c.b16 %v4288, %v4286
    %v5483 = vpack.c.b16 %v4291, %v4289
    %v5484 = vpack.c.b16 %v4292, %v4290
    %v5485 = vpack.c.b16 %v4295, %v4293
    %v5486 = vpack.c.b16 %v4296, %v4294
    %v5487 = vpack.c.b16 %v4299, %v4297
    %v5488 = vpack.c.b16 %v4300, %v4298
    %v5489 = vpack.c.b16 %v4303, %v4301
    %v5490 = vpack.c.b16 %v4304, %v4302
    %v5491 = vpack.c.b16 %v4307, %v4305
    %v5492 = vpack.c.b16 %v4308, %v4306
    %v5493 = vpack.c.b16 %v4311, %v4309
    %v5494 = vpack.c.b16 %v4312, %v4310
    %v5495 = vpack.c.b16 %v4315, %v4313
    %v5496 = vpack.c.b16 %v4316, %v4314
    %v5497 = vpack.c.b16 %v4319, %v4317
    %v5498 = vpack.c.b16 %v4320, %v4318
    %v5499 = vpack.c.b16 %v4323, %v4321
    %v5500 = vpack.c.b16 %v4324, %v4322
    %v5501 = vpack.c.b16 %v4327, %v4325
    %v5502 = vpack.c.b16 %v4328, %v4326
    %v5503 = vpack.c.b16 %v4331, %v4329
    %v5504 = vpack.c.b16 %v4332, %v4330
    %v5505 = vpack.c.b16 %v4335, %v4333
    %v5506 = vpack.c.b16 %v4336, %v4334
    %v5507 = vpack.c.b16 %v4339, %v4337
    %v5508 = vpack.c.b16 %v4340, %v4338
    %v5509 = vpack.c.b16 %v4343, %v4341
    %v5510 = vpack.c.b16 %v4344, %v4342
    %v5511 = vpack.c.b16 %v4347, %v4345
    %v5512 = vpack.c.b16 %v4348, %v4346
    %v5513 = vpack.c.b16 %v4351, %v4349
    %v5514 = vpack.c.b16 %v4352, %v4350
    %v5515 = vpack.c.b16 %v4355, %v4353
    %v5516 = vpack.c.b16 %v4356, %v4354
    %v5517 = vpack.c.b16 %v4359, %v4357
    %v5518 = vpack.c.b16 %v4360, %v4358
    %v5519 = vpack.c.b16 %v4363, %v4361
    %v5520 = vpack.c.b16 %v4364, %v4362
    %v5521 = vpack.c.b16 %v4367, %v4365
    %v5522 = vpack.c.b16 %v4368, %v4366
    %v5523 = vpack.c.b16 %v4371, %v4369
    %v5524 = vpack.c.b16 %v4372, %v4370
    %v5525 = vpack.c.b16 %v4375, %v4373
    %v5526 = vpack.c.b16 %v4376, %v4374
    %v5527 = vpack.c.b16 %v4379, %v4377
    %v5528 = vpack.c.b16 %v4380, %v4378
    %v5529 = vpack.c.b16 %v4383, %v4381
    %v5530 = vpack.c.b16 %v4384, %v4382
    %v5531 = vpack.c.b16 %v4387, %v4385
    %v5532 = vpack.c.b16 %v4388, %v4386
    %v5533 = vpack.c.b16 %v4391, %v4389
    %v5534 = vpack.c.b16 %v4392, %v4390
    %v5535 = vpack.c.b16 %v4395, %v4393
    %v5536 = vpack.c.b16 %v4396, %v4394
    %v5537 = vpack.c.b16 %v4399, %v4397
    %v5538 = vpack.c.b16 %v4400, %v4398
    %v5539 = vpack.c.b16 %v4403, %v4401
    %v5540 = vpack.c.b16 %v4404, %v4402
    %v5541 = vpack.c.b16 %v4407, %v4405
    %v5542 = vpack.c.b16 %v4408, %v4406
    %v5543 = vpack.c.b16 %v4411, %v4409
    %v5544 = vpack.c.b16 %v4412, %v4410
    %v5545 = vpack.c.b16 %v4415, %v4413
    %v5546 = vpack.c.b16 %v4416, %v4414
    %v5547 = vpack.c.b16 %v4419, %v4417
    %v5548 = vpack.c.b16 %v4420, %v4418
    %v5549 = vpack.c.b16 %v4423, %v4421
    %v5550 = vpack.c.b16 %v4424, %v4422
    %v5551 = vpack.c.b16 %v4427, %v4425
    %v5552 = vpack.c.b16 %v4428, %v4426
    %v5553 = vpack.c.b16 %v4431, %v4429
    %v5554 = vpack.c.b16 %v4432, %v4430
    %v5555 = vpack.c.b16 %v4435, %v4433
    %v5556 = vpack.c.b16 %v4436, %v4434
    %v5557 = vpack.c.b16 %v4439, %v4437
    %v5558 = vpack.c.b16 %v4440, %v4438
    %v5559 = vpack.c.b16 %v4443, %v4441
    %v5560 = vpack.c.b16 %v4444, %v4442
    %v5561 = vpack.c.b16 %v4447, %v4445
    %v5562 = vpack.c.b16 %v4448, %v4446
    %v5563 = vpack.c.b16 %v4451, %v4449
    %v5564 = vpack.c.b16 %v4452, %v4450
    %v5565 = vpack.c.b16 %v4455, %v4453
    %v5566 = vpack.c.b16 %v4456, %v4454
    %v5567 = vpack.c.b16 %v4459, %v4457
    %v5568 = vpack.c.b16 %v4460, %v4458
    %v5569 = vpack.c.b16 %v4463, %v4461
    %v5570 = vpack.c.b16 %v4464, %v4462
    %v5571 = vpack.c.b16 %v4467, %v4465
    %v5572 = vpack.c.b16 %v4468, %v4466
    %v5573 = vpack.c.b16 %v4471, %v4469
    %v5574 = vpack.c.b16 %v4472, %v4470
    %v5575 = vpack.c.b16 %v4475, %v4473
    %v5576 = vpack.c.b16 %v4476, %v4474
    %v5577 = vpack.c.b16 %v4479, %v4477
    %v5578 = vpack.c.b16 %v4480, %v4478
    %v5579 = vpack.c.b16 %v4483, %v4481
    %v5580 = vpack.c.b16 %v4484, %v4482
    %v5581 = vpack.c.b16 %v4487, %v4485
    %v5582 = vpack.c.b16 %v4488, %v4486
    %v5583 = vpack.c.b16 %v4491, %v4489
    %v5584 = vpack.c.b16 %v4492, %v4490
    %v5585 = vpack.c.b16 %v4495, %v4493
    %v5586 = vpack.c.b16 %v4496, %v4494
    %v5587 = vpack.c.b16 %v4499, %v4497
    %v5588 = vpack.c.b16 %v4500, %v4498
    %v5589 = vpack.c.b16 %v4503, %v4501
    %v5590 = vpack.c.b16 %v4504, %v4502
    %v5591 = vpack.c.b16 %v4507, %v4505
    %v5592 = vpack.c.b16 %v4508, %v4506
    %v5593 = vpack.c.b16 %v4511, %v4509
    %v5594 = vpack.c.b16 %v4512, %v4510
    %v5595 = vpack.c.b16 %v4515, %v4513
    %v5596 = vpack.c.b16 %v4516, %v4514
    %v5597 = vpack.c.b16 %v4519, %v4517
    %v5598 = vpack.c.b16 %v4520, %v4518
    %v5599 = vpack.c.b16 %v4523, %v4521
    %v5600 = vpack.c.b16 %v4524, %v4522
    %v5601 = vpack.c.b16 %v4527, %v4525
    %v5602 = vpack.c.b16 %v4528, %v4526
    %v5603 = vpack.c.b16 %v4531, %v4529
    %v5604 = vpack.c.b16 %v4532, %v4530
    %v5605 = vpack.c.b16 %v4535, %v4533
    %v5606 = vpack.c.b16 %v4536, %v4534
    %v5607 = vpack.c.b16 %v4539, %v4537
    %v5608 = vpack.c.b16 %v4540, %v4538
    %v5609 = vpack.c.b16 %v4543, %v4541
    %v5610 = vpack.c.b16 %v4544, %v4542
    %v5611 = vpack.c.b16 %v4547, %v4545
    %v5612 = vpack.c.b16 %v4548, %v4546
    %v5613 = vpack.c.b16 %v4551, %v4549
    %v5614 = vpack.c.b16 %v4552, %v4550
    %v5615 = vpack.c.b16 %v4555, %v4553
    %v5616 = vpack.c.b16 %v4556, %v4554
    %v5617 = vpack.c.b16 %v4559, %v4557
    %v5618 = vpack.c.b16 %v4560, %v4558
    %v5619 = vpack.c.b16 %v4563, %v4561
    %v5620 = vpack.c.b16 %v4564, %v4562
    %v5621 = vpack.c.b16 %v4567, %v4565
    %v5622 = vpack.c.b16 %v4568, %v4566
    %v5623 = vpack.c.b16 %v4571, %v4569
    %v5624 = vpack.c.b16 %v4572, %v4570
    %v5625 = vpack.c.b16 %v4575, %v4573
    %v5626 = vpack.c.b16 %v4576, %v4574
    %v5627 = vpack.c.b16 %v4579, %v4577
    %v5628 = vpack.c.b16 %v4580, %v4578
    %v5629 = vpack.c.b16 %v4583, %v4581
    %v5630 = vpack.c.b16 %v4584, %v4582
    %v5631 = vpack.c.b16 %v4587, %v4585
    %v5632 = vpack.c.b16 %v4588, %v4586
    %v5633 = vpack.c.b16 %v4591, %v4589
    %v5634 = vpack.c.b16 %v4592, %v4590
    %v5635 = vpack.c.b16 %v4595, %v4593
    %v5636 = vpack.c.b16 %v4596, %v4594
    %v5637 = vpack.c.b16 %v4599, %v4597
    %v5638 = vpack.c.b16 %v4600, %v4598
    %v5639 = vpack.c.b16 %v4603, %v4601
    %v5640 = vpack.c.b16 %v4604, %v4602
    %v5641 = vpack.c.b16 %v4607, %v4605
    %v5642 = vpack.c.b16 %v4608, %v4606
    %v5643 = vpack.c.b16 %v4611, %v4609
    %v5644 = vpack.c.b16 %v4612, %v4610
    %v5645 = vpack.c.b16 %v4615, %v4613
    %v5646 = vpack.c.b16 %v4616, %v4614
    %v5647 = vpack.c.b16 %v4619, %v4617
    %v5648 = vpack.c.b16 %v4620, %v4618
    %v5649 = vpack.c.b16 %v4623, %v4621
    %v5650 = vpack.c.b16 %v4624, %v4622
    %v5651 = vpack.c.b16 %v4627, %v4625
    %v5652 = vpack.c.b16 %v4628, %v4626
    %6677 = vmatprep.subr.bf16.mxu0 %v4630
    %6678 = vmatpush1.bf16.msra.mxu0 %v4629
    %6679 = vmatprep.subr.bf16.mxu0 %v4632
    %6680 = vmatpush1.bf16.msra.mxu0 %v4631
    %6681 = vmatprep.subr.bf16.mxu0 %v4634
    %6682 = vmatpush1.bf16.msra.mxu0 %v4633
    %6683 = vmatprep.subr.bf16.mxu0 %v4636
    %6684 = vmatpush1.bf16.msra.mxu0 %v4635
    %6685 = vmatprep.subr.bf16.mxu0 %v4638
    %6686 = vmatpush1.bf16.msra.mxu0 %v4637
    %6687 = vmatprep.subr.bf16.mxu0 %v4640
    %6688 = vmatpush1.bf16.msra.mxu0 %v4639
    %6689 = vmatprep.subr.bf16.mxu0 %v4642
    %6690 = vmatpush1.bf16.msra.mxu0 %v4641
    %6691 = vmatprep.subr.bf16.mxu0 %v4644
    %6692 = vmatpush1.bf16.msra.mxu0 %v4643
    %6693 = vmatprep.subr.bf16.mxu0 %v4646
    %6694 = vmatpush1.bf16.msra.mxu0 %v4645
    %6695 = vmatprep.subr.bf16.mxu0 %v4648
    %6696 = vmatpush1.bf16.msra.mxu0 %v4647
    %6697 = vmatprep.subr.bf16.mxu0 %v4650
    %6698 = vmatpush1.bf16.msra.mxu0 %v4649
    %6699 = vmatprep.subr.bf16.mxu0 %v4652
    %6700 = vmatpush1.bf16.msra.mxu0 %v4651
    %6701 = vmatprep.subr.bf16.mxu0 %v4654
    %6702 = vmatpush1.bf16.msra.mxu0 %v4653
    %6703 = vmatprep.subr.bf16.mxu0 %v4656
    %6704 = vmatpush1.bf16.msra.mxu0 %v4655
    %6705 = vmatprep.subr.bf16.mxu0 %v4658
    %6706 = vmatpush1.bf16.msra.mxu0 %v4657
    %6707 = vmatprep.subr.bf16.mxu0 %v4660
    %6708 = vmatpush1.bf16.msra.mxu0 %v4659
    %6709 = vmatprep.mubr.bf16.mxu0 %v1138
    %6710 = vmatmul.mubr.bf16.gmra.mrb[0].mxu0 %v1124
    %v6711 = vpop.f32.mrb[0].mxu0
    %v6712 = vadd.f32 %v1086, %v6711
    %v6713 = vpop.f32.mrb[0].mxu0
    %v6714 = vadd.f32 %v1090, %v6713
    %v6715 = vpop.f32.mrb[0].mxu0
    %v6716 = vpop.f32.mrb[0].mxu0
    %6717 = vdwg.mxu0
    %6718 = vmatprep.subr.bf16.mxu0 %v4662
    %6719 = vmatpush1.bf16.msra.mxu0 %v4661
    %6720 = vmatprep.subr.bf16.mxu0 %v4664
    %6721 = vmatpush1.bf16.msra.mxu0 %v4663
    %6722 = vmatprep.subr.bf16.mxu0 %v4666
    %6723 = vmatpush1.bf16.msra.mxu0 %v4665
    %6724 = vmatprep.subr.bf16.mxu0 %v4668
    %6725 = vmatpush1.bf16.msra.mxu0 %v4667
    %6726 = vmatprep.subr.bf16.mxu0 %v4670
    %6727 = vmatpush1.bf16.msra.mxu0 %v4669
    %6728 = vmatprep.subr.bf16.mxu0 %v4672
    %6729 = vmatpush1.bf16.msra.mxu0 %v4671
    %6730 = vmatprep.subr.bf16.mxu0 %v4674
    %6731 = vmatpush1.bf16.msra.mxu0 %v4673
    %6732 = vmatprep.subr.bf16.mxu0 %v4676
    %6733 = vmatpush1.bf16.msra.mxu0 %v4675
    %6734 = vmatprep.subr.bf16.mxu0 %v4678
    %6735 = vmatpush1.bf16.msra.mxu0 %v4677
    %6736 = vmatprep.subr.bf16.mxu0 %v4680
    %6737 = vmatpush1.bf16.msra.mxu0 %v4679
    %6738 = vmatprep.subr.bf16.mxu0 %v4682
    %6739 = vmatpush1.bf16.msra.mxu0 %v4681
    %6740 = vmatprep.subr.bf16.mxu0 %v4684
    %6741 = vmatpush1.bf16.msra.mxu0 %v4683
    %6742 = vmatprep.subr.bf16.mxu0 %v4686
    %6743 = vmatpush1.bf16.msra.mxu0 %v4685
    %6744 = vmatprep.subr.bf16.mxu0 %v4688
    %6745 = vmatpush1.bf16.msra.mxu0 %v4687
    %6746 = vmatprep.subr.bf16.mxu0 %v4690
    %6747 = vmatpush1.bf16.msra.mxu0 %v4689
    %6748 = vmatprep.subr.bf16.mxu0 %v4692
    %6749 = vmatpush1.bf16.msra.mxu0 %v4691
    %6750 = vmatprep.mubr.bf16.mxu0 %v1148
    %6751 = vmatmul.mubr.bf16.gmra.mrb[0].mxu0 %v1146
    %v6752 = vpop.f32.mrb[0].mxu0
    %v6753 = vadd.f32 %v6712, %v6752
    %v6754 = vpop.f32.mrb[0].mxu0
    %v6755 = vadd.f32 %v6714, %v6754
    %v6756 = vpop.f32.mrb[0].mxu0
    %v6757 = vpop.f32.mrb[0].mxu0
    %6758 = vdwg.mxu0
    %6759 = vmatprep.subr.bf16.mxu0 %v4694
    %6760 = vmatpush1.bf16.msra.mxu0 %v4693
    %6761 = vmatprep.subr.bf16.mxu0 %v4696
    %6762 = vmatpush1.bf16.msra.mxu0 %v4695
    %6763 = vmatprep.subr.bf16.mxu0 %v4698
    %6764 = vmatpush1.bf16.msra.mxu0 %v4697
    %6765 = vmatprep.subr.bf16.mxu0 %v4700
    %6766 = vmatpush1.bf16.msra.mxu0 %v4699
    %6767 = vmatprep.subr.bf16.mxu0 %v4702
    %6768 = vmatpush1.bf16.msra.mxu0 %v4701
    %6769 = vmatprep.subr.bf16.mxu0 %v4704
    %6770 = vmatpush1.bf16.msra.mxu0 %v4703
    %6771 = vmatprep.subr.bf16.mxu0 %v4706
    %6772 = vmatpush1.bf16.msra.mxu0 %v4705
    %6773 = vmatprep.subr.bf16.mxu0 %v4708
    %6774 = vmatpush1.bf16.msra.mxu0 %v4707
    %6775 = vmatprep.subr.bf16.mxu0 %v4710
    %6776 = vmatpush1.bf16.msra.mxu0 %v4709
    %6777 = vmatprep.subr.bf16.mxu0 %v4712
    %6778 = vmatpush1.bf16.msra.mxu0 %v4711
    %6779 = vmatprep.subr.bf16.mxu0 %v4714
    %6780 = vmatpush1.bf16.msra.mxu0 %v4713
    %6781 = vmatprep.subr.bf16.mxu0 %v4716
    %6782 = vmatpush1.bf16.msra.mxu0 %v4715
    %6783 = vmatprep.subr.bf16.mxu0 %v4718
    %6784 = vmatpush1.bf16.msra.mxu0 %v4717
    %6785 = vmatprep.subr.bf16.mxu0 %v4720
    %6786 = vmatpush1.bf16.msra.mxu0 %v4719
    %6787 = vmatprep.subr.bf16.mxu0 %v4722
    %6788 = vmatpush1.bf16.msra.mxu0 %v4721
    %6789 = vmatprep.subr.bf16.mxu0 %v4724
    %6790 = vmatpush1.bf16.msra.mxu0 %v4723
    %6791 = vmatprep.mubr.bf16.mxu0 %v1145
    %6792 = vmatmul.mubr.bf16.gmra.mrb[0].mxu0 %v1131
    %v6793 = vpop.f32.mrb[0].mxu0
    %v6794 = vadd.f32 %v6753, %v6793
    %v6795 = vpop.f32.mrb[0].mxu0
    %v6796 = vadd.f32 %v6755, %v6795
    %v6797 = vpop.f32.mrb[0].mxu0
    %v6798 = vpop.f32.mrb[0].mxu0
    %6799 = vdwg.mxu0
    %6800 = vmatprep.subr.bf16.mxu0 %v4726
    %6801 = vmatpush1.bf16.msra.mxu0 %v4725
    %6802 = vmatprep.subr.bf16.mxu0 %v4728
    %6803 = vmatpush1.bf16.msra.mxu0 %v4727
    %6804 = vmatprep.subr.bf16.mxu0 %v4730
    %6805 = vmatpush1.bf16.msra.mxu0 %v4729
    %6806 = vmatprep.subr.bf16.mxu0 %v4732
    %6807 = vmatpush1.bf16.msra.mxu0 %v4731
    %6808 = vmatprep.subr.bf16.mxu0 %v4734
    %6809 = vmatpush1.bf16.msra.mxu0 %v4733
    %6810 = vmatprep.subr.bf16.mxu0 %v4736
    %6811 = vmatpush1.bf16.msra.mxu0 %v4735
    %6812 = vmatprep.subr.bf16.mxu0 %v4738
    %6813 = vmatpush1.bf16.msra.mxu0 %v4737
    %6814 = vmatprep.subr.bf16.mxu0 %v4740
    %6815 = vmatpush1.bf16.msra.mxu0 %v4739
    %6816 = vmatprep.subr.bf16.mxu0 %v4742
    %6817 = vmatpush1.bf16.msra.mxu0 %v4741
    %6818 = vmatprep.subr.bf16.mxu0 %v4744
    %6819 = vmatpush1.bf16.msra.mxu0 %v4743
    %6820 = vmatprep.subr.bf16.mxu0 %v4746
    %6821 = vmatpush1.bf16.msra.mxu0 %v4745
    %6822 = vmatprep.subr.bf16.mxu0 %v4748
    %6823 = vmatpush1.bf16.msra.mxu0 %v4747
    %6824 = vmatprep.subr.bf16.mxu0 %v4750
    %6825 = vmatpush1.bf16.msra.mxu0 %v4749
    %6826 = vmatprep.subr.bf16.mxu0 %v4752
    %6827 = vmatpush1.bf16.msra.mxu0 %v4751
    %6828 = vmatprep.subr.bf16.mxu0 %v4754
    %6829 = vmatpush1.bf16.msra.mxu0 %v4753
    %6830 = vmatprep.subr.bf16.mxu0 %v4756
    %6831 = vmatpush1.bf16.msra.mxu0 %v4755
    %6832 = vmatprep.mubr.bf16.mxu0 %v1149
    %6833 = vmatmul.mubr.bf16.gmra.mrb[0].mxu0 %v1147
    %v6834 = vpop.f32.mrb[0].mxu0
    %v6835 = vadd.f32 %v6794, %v6834
    %v6836 = vpop.f32.mrb[0].mxu0
    %v6837 = vadd.f32 %v6796, %v6836
    %v6838 = vpop.f32.mrb[0].mxu0
    %v6839 = vpop.f32.mrb[0].mxu0
    %6840 = vdwg.mxu0
    %6841 = vmatprep.subr.bf16.mxu0 %v4758
    %6842 = vmatpush1.bf16.msra.mxu0 %v4757
    %6843 = vmatprep.subr.bf16.mxu0 %v4760
    %6844 = vmatpush1.bf16.msra.mxu0 %v4759
    %6845 = vmatprep.subr.bf16.mxu0 %v4762
    %6846 = vmatpush1.bf16.msra.mxu0 %v4761
    %6847 = vmatprep.subr.bf16.mxu0 %v4764
    %6848 = vmatpush1.bf16.msra.mxu0 %v4763
    %6849 = vmatprep.subr.bf16.mxu0 %v4766
    %6850 = vmatpush1.bf16.msra.mxu0 %v4765
    %6851 = vmatprep.subr.bf16.mxu0 %v4768
    %6852 = vmatpush1.bf16.msra.mxu0 %v4767
    %6853 = vmatprep.subr.bf16.mxu0 %v4770
    %6854 = vmatpush1.bf16.msra.mxu0 %v4769
    %6855 = vmatprep.subr.bf16.mxu0 %v4772
    %6856 = vmatpush1.bf16.msra.mxu0 %v4771
    %6857 = vmatprep.subr.bf16.mxu0 %v4774
    %6858 = vmatpush1.bf16.msra.mxu0 %v4773
    %6859 = vmatprep.subr.bf16.mxu0 %v4776
    %6860 = vmatpush1.bf16.msra.mxu0 %v4775
    %6861 = vmatprep.subr.bf16.mxu0 %v4778
    %6862 = vmatpush1.bf16.msra.mxu0 %v4777
    %6863 = vmatprep.subr.bf16.mxu0 %v4780
    %6864 = vmatpush1.bf16.msra.mxu0 %v4779
    %6865 = vmatprep.subr.bf16.mxu0 %v4782
    %6866 = vmatpush1.bf16.msra.mxu0 %v4781
    %6867 = vmatprep.subr.bf16.mxu0 %v4784
    %6868 = vmatpush1.bf16.msra.mxu0 %v4783
    %6869 = vmatprep.subr.bf16.mxu0 %v4786
    %6870 = vmatpush1.bf16.msra.mxu0 %v4785
    %6871 = vmatprep.subr.bf16.mxu0 %v4788
    %6872 = vmatpush1.bf16.msra.mxu0 %v4787
    %6873 = vmatprep.mubr.bf16.mxu0 %v1187
    %6874 = vmatmul.mubr.bf16.gmra.mrb[0].mxu0 %v1173
    %v6875 = vpop.f32.mrb[0].mxu0
    %v6876 = vadd.f32 %v6835, %v6875
    %v6877 = vpop.f32.mrb[0].mxu0
    %v6878 = vadd.f32 %v6837, %v6877
    %v6879 = vpop.f32.mrb[0].mxu0
    %v6880 = vpop.f32.mrb[0].mxu0
    %6881 = vdwg.mxu0
    %6882 = vmatprep.subr.bf16.mxu0 %v4790
    %6883 = vmatpush1.bf16.msra.mxu0 %v4789
    %6884 = vmatprep.subr.bf16.mxu0 %v4792
    %6885 = vmatpush1.bf16.msra.mxu0 %v4791
    %6886 = vmatprep.subr.bf16.mxu0 %v4794
    %6887 = vmatpush1.bf16.msra.mxu0 %v4793
    %6888 = vmatprep.subr.bf16.mxu0 %v4796
    %6889 = vmatpush1.bf16.msra.mxu0 %v4795
    %6890 = vmatprep.subr.bf16.mxu0 %v4798
    %6891 = vmatpush1.bf16.msra.mxu0 %v4797
    %6892 = vmatprep.subr.bf16.mxu0 %v4800
    %6893 = vmatpush1.bf16.msra.mxu0 %v4799
    %6894 = vmatprep.subr.bf16.mxu0 %v4802
    %6895 = vmatpush1.bf16.msra.mxu0 %v4801
    %6896 = vmatprep.subr.bf16.mxu0 %v4804
    %6897 = vmatpush1.bf16.msra.mxu0 %v4803
    %6898 = vmatprep.subr.bf16.mxu0 %v4806
    %6899 = vmatpush1.bf16.msra.mxu0 %v4805
    %6900 = vmatprep.subr.bf16.mxu0 %v4808
    %6901 = vmatpush1.bf16.msra.mxu0 %v4807
    %6902 = vmatprep.subr.bf16.mxu0 %v4810
    %6903 = vmatpush1.bf16.msra.mxu0 %v4809
    %6904 = vmatprep.subr.bf16.mxu0 %v4812
    %6905 = vmatpush1.bf16.msra.mxu0 %v4811
    %6906 = vmatprep.subr.bf16.mxu0 %v4814
    %6907 = vmatpush1.bf16.msra.mxu0 %v4813
    %6908 = vmatprep.subr.bf16.mxu0 %v4816
    %6909 = vmatpush1.bf16.msra.mxu0 %v4815
    %6910 = vmatprep.subr.bf16.mxu0 %v4818
    %6911 = vmatpush1.bf16.msra.mxu0 %v4817
    %6912 = vmatprep.subr.bf16.mxu0 %v4820
    %6913 = vmatpush1.bf16.msra.mxu0 %v4819
    %6914 = vmatprep.mubr.bf16.mxu0 %v1197
    %6915 = vmatmul.mubr.bf16.gmra.mrb[0].mxu0 %v1195
    %v6916 = vpop.f32.mrb[0].mxu0
    %v6917 = vadd.f32 %v6876, %v6916
    %v6918 = vpop.f32.mrb[0].mxu0
    %v6919 = vadd.f32 %v6878, %v6918
    %v6920 = vpop.f32.mrb[0].mxu0
    %v6921 = vpop.f32.mrb[0].mxu0
    %6922 = vdwg.mxu0
    %6923 = vmatprep.subr.bf16.mxu0 %v4822
    %6924 = vmatpush1.bf16.msra.mxu0 %v4821
    %6925 = vmatprep.subr.bf16.mxu0 %v4824
    %6926 = vmatpush1.bf16.msra.mxu0 %v4823
    %6927 = vmatprep.subr.bf16.mxu0 %v4826
    %6928 = vmatpush1.bf16.msra.mxu0 %v4825
    %6929 = vmatprep.subr.bf16.mxu0 %v4828
    %6930 = vmatpush1.bf16.msra.mxu0 %v4827
    %6931 = vmatprep.subr.bf16.mxu0 %v4830
    %6932 = vmatpush1.bf16.msra.mxu0 %v4829
    %6933 = vmatprep.subr.bf16.mxu0 %v4832
    %6934 = vmatpush1.bf16.msra.mxu0 %v4831
    %6935 = vmatprep.subr.bf16.mxu0 %v4834
    %6936 = vmatpush1.bf16.msra.mxu0 %v4833
    %6937 = vmatprep.subr.bf16.mxu0 %v4836
    %6938 = vmatpush1.bf16.msra.mxu0 %v4835
    %6939 = vmatprep.subr.bf16.mxu0 %v4838
    %6940 = vmatpush1.bf16.msra.mxu0 %v4837
    %6941 = vmatprep.subr.bf16.mxu0 %v4840
    %6942 = vmatpush1.bf16.msra.mxu0 %v4839
    %6943 = vmatprep.subr.bf16.mxu0 %v4842
    %6944 = vmatpush1.bf16.msra.mxu0 %v4841
    %6945 = vmatprep.subr.bf16.mxu0 %v4844
    %6946 = vmatpush1.bf16.msra.mxu0 %v4843
    %6947 = vmatprep.subr.bf16.mxu0 %v4846
    %6948 = vmatpush1.bf16.msra.mxu0 %v4845
    %6949 = vmatprep.subr.bf16.mxu0 %v4848
    %6950 = vmatpush1.bf16.msra.mxu0 %v4847
    %6951 = vmatprep.subr.bf16.mxu0 %v4850
    %6952 = vmatpush1.bf16.msra.mxu0 %v4849
    %6953 = vmatprep.subr.bf16.mxu0 %v4852
    %6954 = vmatpush1.bf16.msra.mxu0 %v4851
    %6955 = vmatprep.mubr.bf16.mxu0 %v1194
    %6956 = vmatmul.mubr.bf16.gmra.mrb[0].mxu0 %v1180
    %v6957 = vpop.f32.mrb[0].mxu0
    %v6958 = vadd.f32 %v6917, %v6957
    %v6959 = vpop.f32.mrb[0].mxu0
    %v6960 = vadd.f32 %v6919, %v6959
    %v6961 = vpop.f32.mrb[0].mxu0
    %v6962 = vpop.f32.mrb[0].mxu0
    %6963 = vdwg.mxu0
    %6964 = vmatprep.subr.bf16.mxu0 %v4854
    %6965 = vmatpush1.bf16.msra.mxu0 %v4853
    %6966 = vmatprep.subr.bf16.mxu0 %v4856
    %6967 = vmatpush1.bf16.msra.mxu0 %v4855
    %6968 = vmatprep.subr.bf16.mxu0 %v4858
    %6969 = vmatpush1.bf16.msra.mxu0 %v4857
    %6970 = vmatprep.subr.bf16.mxu0 %v4860
    %6971 = vmatpush1.bf16.msra.mxu0 %v4859
    %6972 = vmatprep.subr.bf16.mxu0 %v4862
    %6973 = vmatpush1.bf16.msra.mxu0 %v4861
    %6974 = vmatprep.subr.bf16.mxu0 %v4864
    %6975 = vmatpush1.bf16.msra.mxu0 %v4863
    %6976 = vmatprep.subr.bf16.mxu0 %v4866
    %6977 = vmatpush1.bf16.msra.mxu0 %v4865
    %6978 = vmatprep.subr.bf16.mxu0 %v4868
    %6979 = vmatpush1.bf16.msra.mxu0 %v4867
    %6980 = vmatprep.subr.bf16.mxu0 %v4870
    %6981 = vmatpush1.bf16.msra.mxu0 %v4869
    %6982 = vmatprep.subr.bf16.mxu0 %v4872
    %6983 = vmatpush1.bf16.msra.mxu0 %v4871
    %6984 = vmatprep.subr.bf16.mxu0 %v4874
    %6985 = vmatpush1.bf16.msra.mxu0 %v4873
    %6986 = vmatprep.subr.bf16.mxu0 %v4876
    %6987 = vmatpush1.bf16.msra.mxu0 %v4875
    %6988 = vmatprep.subr.bf16.mxu0 %v4878
    %6989 = vmatpush1.bf16.msra.mxu0 %v4877
    %6990 = vmatprep.subr.bf16.mxu0 %v4880
    %6991 = vmatpush1.bf16.msra.mxu0 %v4879
    %6992 = vmatprep.subr.bf16.mxu0 %v4882
    %6993 = vmatpush1.bf16.msra.mxu0 %v4881
    %6994 = vmatprep.subr.bf16.mxu0 %v4884
    %6995 = vmatpush1.bf16.msra.mxu0 %v4883
    %6996 = vmatprep.mubr.bf16.mxu0 %v1198
    %6997 = vmatmul.mubr.bf16.gmra.mrb[0].mxu0 %v1196
    %v6998 = vpop.f32.mrb[0].mxu0
    %v6999 = vadd.f32 %v6958, %v6998
    %v7000 = vpop.f32.mrb[0].mxu0
    %v7001 = vadd.f32 %v6960, %v7000
    %v7002 = vpop.f32.mrb[0].mxu0
    %v7003 = vpop.f32.mrb[0].mxu0
    %7004 = vdwg.mxu0
    %7005 = vmatprep.subr.bf16.mxu0 %v4886
    %7006 = vmatpush1.bf16.msra.mxu0 %v4885
    %7007 = vmatprep.subr.bf16.mxu0 %v4888
    %7008 = vmatpush1.bf16.msra.mxu0 %v4887
    %7009 = vmatprep.subr.bf16.mxu0 %v4890
    %7010 = vmatpush1.bf16.msra.mxu0 %v4889
    %7011 = vmatprep.subr.bf16.mxu0 %v4892
    %7012 = vmatpush1.bf16.msra.mxu0 %v4891
    %7013 = vmatprep.subr.bf16.mxu0 %v4894
    %7014 = vmatpush1.bf16.msra.mxu0 %v4893
    %7015 = vmatprep.subr.bf16.mxu0 %v4896
    %7016 = vmatpush1.bf16.msra.mxu0 %v4895
    %7017 = vmatprep.subr.bf16.mxu0 %v4898
    %7018 = vmatpush1.bf16.msra.mxu0 %v4897
    %7019 = vmatprep.subr.bf16.mxu0 %v4900
    %7020 = vmatpush1.bf16.msra.mxu0 %v4899
    %7021 = vmatprep.subr.bf16.mxu0 %v4902
    %7022 = vmatpush1.bf16.msra.mxu0 %v4901
    %7023 = vmatprep.subr.bf16.mxu0 %v4904
    %7024 = vmatpush1.bf16.msra.mxu0 %v4903
    %7025 = vmatprep.subr.bf16.mxu0 %v4906
    %7026 = vmatpush1.bf16.msra.mxu0 %v4905
    %7027 = vmatprep.subr.bf16.mxu0 %v4908
    %7028 = vmatpush1.bf16.msra.mxu0 %v4907
    %7029 = vmatprep.subr.bf16.mxu0 %v4910
    %7030 = vmatpush1.bf16.msra.mxu0 %v4909
    %7031 = vmatprep.subr.bf16.mxu0 %v4912
    %7032 = vmatpush1.bf16.msra.mxu0 %v4911
    %7033 = vmatprep.subr.bf16.mxu0 %v4914
    %7034 = vmatpush1.bf16.msra.mxu0 %v4913
    %7035 = vmatprep.subr.bf16.mxu0 %v4916
    %7036 = vmatpush1.bf16.msra.mxu0 %v4915
    %7037 = vmatprep.mubr.bf16.mxu0 %v1236
    %7038 = vmatmul.mubr.bf16.gmra.mrb[0].mxu0 %v1222
    %v7039 = vpop.f32.mrb[0].mxu0
    %v7040 = vadd.f32 %v6999, %v7039
    %v7041 = vpop.f32.mrb[0].mxu0
    %v7042 = vadd.f32 %v7001, %v7041
    %v7043 = vpop.f32.mrb[0].mxu0
    %v7044 = vpop.f32.mrb[0].mxu0
    %7045 = vdwg.mxu0
    %7046 = vmatprep.subr.bf16.mxu0 %v4918
    %7047 = vmatpush1.bf16.msra.mxu0 %v4917
    %7048 = vmatprep.subr.bf16.mxu0 %v4920
    %7049 = vmatpush1.bf16.msra.mxu0 %v4919
    %7050 = vmatprep.subr.bf16.mxu0 %v4922
    %7051 = vmatpush1.bf16.msra.mxu0 %v4921
    %7052 = vmatprep.subr.bf16.mxu0 %v4924
    %7053 = vmatpush1.bf16.msra.mxu0 %v4923
    %7054 = vmatprep.subr.bf16.mxu0 %v4926
    %7055 = vmatpush1.bf16.msra.mxu0 %v4925
    %7056 = vmatprep.subr.bf16.mxu0 %v4928
    %7057 = vmatpush1.bf16.msra.mxu0 %v4927
    %7058 = vmatprep.subr.bf16.mxu0 %v4930
    %7059 = vmatpush1.bf16.msra.mxu0 %v4929
    %7060 = vmatprep.subr.bf16.mxu0 %v4932
    %7061 = vmatpush1.bf16.msra.mxu0 %v4931
    %7062 = vmatprep.subr.bf16.mxu0 %v4934
    %7063 = vmatpush1.bf16.msra.mxu0 %v4933
    %7064 = vmatprep.subr.bf16.mxu0 %v4936
    %7065 = vmatpush1.bf16.msra.mxu0 %v4935
    %7066 = vmatprep.subr.bf16.mxu0 %v4938
    %7067 = vmatpush1.bf16.msra.mxu0 %v4937
    %7068 = vmatprep.subr.bf16.mxu0 %v4940
    %7069 = vmatpush1.bf16.msra.mxu0 %v4939
    %7070 = vmatprep.subr.bf16.mxu0 %v4942
    %7071 = vmatpush1.bf16.msra.mxu0 %v4941
    %7072 = vmatprep.subr.bf16.mxu0 %v4944
    %7073 = vmatpush1.bf16.msra.mxu0 %v4943
    %7074 = vmatprep.subr.bf16.mxu0 %v4946
    %7075 = vmatpush1.bf16.msra.mxu0 %v4945
    %7076 = vmatprep.subr.bf16.mxu0 %v4948
    %7077 = vmatpush1.bf16.msra.mxu0 %v4947
    %7078 = vmatprep.mubr.bf16.mxu0 %v1246
    %7079 = vmatmul.mubr.bf16.gmra.mrb[0].mxu0 %v1244
    %v7080 = vpop.f32.mrb[0].mxu0
    %v7081 = vadd.f32 %v7040, %v7080
    %v7082 = vpop.f32.mrb[0].mxu0
    %v7083 = vadd.f32 %v7042, %v7082
    %v7084 = vpop.f32.mrb[0].mxu0
    %v7085 = vpop.f32.mrb[0].mxu0
    %7086 = vdwg.mxu0
    %7087 = vmatprep.subr.bf16.mxu0 %v4950
    %7088 = vmatpush1.bf16.msra.mxu0 %v4949
    %7089 = vmatprep.subr.bf16.mxu0 %v4952
    %7090 = vmatpush1.bf16.msra.mxu0 %v4951
    %7091 = vmatprep.subr.bf16.mxu0 %v4954
    %7092 = vmatpush1.bf16.msra.mxu0 %v4953
    %7093 = vmatprep.subr.bf16.mxu0 %v4956
    %7094 = vmatpush1.bf16.msra.mxu0 %v4955
    %7095 = vmatprep.subr.bf16.mxu0 %v4958
    %7096 = vmatpush1.bf16.msra.mxu0 %v4957
    %7097 = vmatprep.subr.bf16.mxu0 %v4960
    %7098 = vmatpush1.bf16.msra.mxu0 %v4959
    %7099 = vmatprep.subr.bf16.mxu0 %v4962
    %7100 = vmatpush1.bf16.msra.mxu0 %v4961
    %7101 = vmatprep.subr.bf16.mxu0 %v4964
    %7102 = vmatpush1.bf16.msra.mxu0 %v4963
    %7103 = vmatprep.subr.bf16.mxu0 %v4966
    %7104 = vmatpush1.bf16.msra.mxu0 %v4965
    %7105 = vmatprep.subr.bf16.mxu0 %v4968
    %7106 = vmatpush1.bf16.msra.mxu0 %v4967
    %7107 = vmatprep.subr.bf16.mxu0 %v4970
    %7108 = vmatpush1.bf16.msra.mxu0 %v4969
    %7109 = vmatprep.subr.bf16.mxu0 %v4972
    %7110 = vmatpush1.bf16.msra.mxu0 %v4971
    %7111 = vmatprep.subr.bf16.mxu0 %v4974
    %7112 = vmatpush1.bf16.msra.mxu0 %v4973
    %7113 = vmatprep.subr.bf16.mxu0 %v4976
    %7114 = vmatpush1.bf16.msra.mxu0 %v4975
    %7115 = vmatprep.subr.bf16.mxu0 %v4978
    %7116 = vmatpush1.bf16.msra.mxu0 %v4977
    %7117 = vmatprep.subr.bf16.mxu0 %v4980
    %7118 = vmatpush1.bf16.msra.mxu0 %v4979
    %7119 = vmatprep.mubr.bf16.mxu0 %v1243
    %7120 = vmatmul.mubr.bf16.gmra.mrb[0].mxu0 %v1229
    %v7121 = vpop.f32.mrb[0].mxu0
    %v7122 = vadd.f32 %v7081, %v7121
    %v7123 = vpop.f32.mrb[0].mxu0
    %v7124 = vadd.f32 %v7083, %v7123
    %v7125 = vpop.f32.mrb[0].mxu0
    %v7126 = vpop.f32.mrb[0].mxu0
    %7127 = vdwg.mxu0
    %7128 = vmatprep.subr.bf16.mxu0 %v4982
    %7129 = vmatpush1.bf16.msra.mxu0 %v4981
    %7130 = vmatprep.subr.bf16.mxu0 %v4984
    %7131 = vmatpush1.bf16.msra.mxu0 %v4983
    %7132 = vmatprep.subr.bf16.mxu0 %v4986
    %7133 = vmatpush1.bf16.msra.mxu0 %v4985
    %7134 = vmatprep.subr.bf16.mxu0 %v4988
    %7135 = vmatpush1.bf16.msra.mxu0 %v4987
    %7136 = vmatprep.subr.bf16.mxu0 %v4990
    %7137 = vmatpush1.bf16.msra.mxu0 %v4989
    %7138 = vmatprep.subr.bf16.mxu0 %v4992
    %7139 = vmatpush1.bf16.msra.mxu0 %v4991
    %7140 = vmatprep.subr.bf16.mxu0 %v4994
    %7141 = vmatpush1.bf16.msra.mxu0 %v4993
    %7142 = vmatprep.subr.bf16.mxu0 %v4996
    %7143 = vmatpush1.bf16.msra.mxu0 %v4995
    %7144 = vmatprep.subr.bf16.mxu0 %v4998
    %7145 = vmatpush1.bf16.msra.mxu0 %v4997
    %7146 = vmatprep.subr.bf16.mxu0 %v5000
    %7147 = vmatpush1.bf16.msra.mxu0 %v4999
    %7148 = vmatprep.subr.bf16.mxu0 %v5002
    %7149 = vmatpush1.bf16.msra.mxu0 %v5001
    %7150 = vmatprep.subr.bf16.mxu0 %v5004
    %7151 = vmatpush1.bf16.msra.mxu0 %v5003
    %7152 = vmatprep.subr.bf16.mxu0 %v5006
    %7153 = vmatpush1.bf16.msra.mxu0 %v5005
    %7154 = vmatprep.subr.bf16.mxu0 %v5008
    %7155 = vmatpush1.bf16.msra.mxu0 %v5007
    %7156 = vmatprep.subr.bf16.mxu0 %v5010
    %7157 = vmatpush1.bf16.msra.mxu0 %v5009
    %7158 = vmatprep.subr.bf16.mxu0 %v5012
    %7159 = vmatpush1.bf16.msra.mxu0 %v5011
    %7160 = vmatprep.mubr.bf16.mxu0 %v1247
    %7161 = vmatmul.mubr.bf16.gmra.mrb[0].mxu0 %v1245
    %v7162 = vpop.f32.mrb[0].mxu0
    %v7163 = vadd.f32 %v7122, %v7162
    %v7164 = vpop.f32.mrb[0].mxu0
    %v7165 = vadd.f32 %v7124, %v7164
    %v7166 = vpop.f32.mrb[0].mxu0
    %v7167 = vpop.f32.mrb[0].mxu0
    %7168 = vdwg.mxu0
    %7169 = vmatprep.subr.bf16.mxu0 %v5014
    %7170 = vmatpush1.bf16.msra.mxu0 %v5013
    %7171 = vmatprep.subr.bf16.mxu0 %v5016
    %7172 = vmatpush1.bf16.msra.mxu0 %v5015
    %7173 = vmatprep.subr.bf16.mxu0 %v5018
    %7174 = vmatpush1.bf16.msra.mxu0 %v5017
    %7175 = vmatprep.subr.bf16.mxu0 %v5020
    %7176 = vmatpush1.bf16.msra.mxu0 %v5019
    %7177 = vmatprep.subr.bf16.mxu0 %v5022
    %7178 = vmatpush1.bf16.msra.mxu0 %v5021
    %7179 = vmatprep.subr.bf16.mxu0 %v5024
    %7180 = vmatpush1.bf16.msra.mxu0 %v5023
    %7181 = vmatprep.subr.bf16.mxu0 %v5026
    %7182 = vmatpush1.bf16.msra.mxu0 %v5025
    %7183 = vmatprep.subr.bf16.mxu0 %v5028
    %7184 = vmatpush1.bf16.msra.mxu0 %v5027
    %7185 = vmatprep.subr.bf16.mxu0 %v5030
    %7186 = vmatpush1.bf16.msra.mxu0 %v5029
    %7187 = vmatprep.subr.bf16.mxu0 %v5032
    %7188 = vmatpush1.bf16.msra.mxu0 %v5031
    %7189 = vmatprep.subr.bf16.mxu0 %v5034
    %7190 = vmatpush1.bf16.msra.mxu0 %v5033
    %7191 = vmatprep.subr.bf16.mxu0 %v5036
    %7192 = vmatpush1.bf16.msra.mxu0 %v5035
    %7193 = vmatprep.subr.bf16.mxu0 %v5038
    %7194 = vmatpush1.bf16.msra.mxu0 %v5037
    %7195 = vmatprep.subr.bf16.mxu0 %v5040
    %7196 = vmatpush1.bf16.msra.mxu0 %v5039
    %7197 = vmatprep.subr.bf16.mxu0 %v5042
    %7198 = vmatpush1.bf16.msra.mxu0 %v5041
    %7199 = vmatprep.subr.bf16.mxu0 %v5044
    %7200 = vmatpush1.bf16.msra.mxu0 %v5043
    %7201 = vmatprep.mubr.bf16.mxu0 %v1285
    %7202 = vmatmul.mubr.bf16.gmra.mrb[0].mxu0 %v1271
    %v7203 = vpop.f32.mrb[0].mxu0
    %v7204 = vadd.f32 %v7163, %v7203
    %v7205 = vpop.f32.mrb[0].mxu0
    %v7206 = vadd.f32 %v7165, %v7205
    %v7207 = vpop.f32.mrb[0].mxu0
    %v7208 = vpop.f32.mrb[0].mxu0
    %7209 = vdwg.mxu0
    %7210 = vmatprep.subr.bf16.mxu0 %v5046
    %7211 = vmatpush1.bf16.msra.mxu0 %v5045
    %7212 = vmatprep.subr.bf16.mxu0 %v5048
    %7213 = vmatpush1.bf16.msra.mxu0 %v5047
    %7214 = vmatprep.subr.bf16.mxu0 %v5050
    %7215 = vmatpush1.bf16.msra.mxu0 %v5049
    %7216 = vmatprep.subr.bf16.mxu0 %v5052
    %7217 = vmatpush1.bf16.msra.mxu0 %v5051
    %7218 = vmatprep.subr.bf16.mxu0 %v5054
    %7219 = vmatpush1.bf16.msra.mxu0 %v5053
    %7220 = vmatprep.subr.bf16.mxu0 %v5056
    %7221 = vmatpush1.bf16.msra.mxu0 %v5055
    %7222 = vmatprep.subr.bf16.mxu0 %v5058
    %7223 = vmatpush1.bf16.msra.mxu0 %v5057
    %7224 = vmatprep.subr.bf16.mxu0 %v5060
    %7225 = vmatpush1.bf16.msra.mxu0 %v5059
    %7226 = vmatprep.subr.bf16.mxu0 %v5062
    %7227 = vmatpush1.bf16.msra.mxu0 %v5061
    %7228 = vmatprep.subr.bf16.mxu0 %v5064
    %7229 = vmatpush1.bf16.msra.mxu0 %v5063
    %7230 = vmatprep.subr.bf16.mxu0 %v5066
    %7231 = vmatpush1.bf16.msra.mxu0 %v5065
    %7232 = vmatprep.subr.bf16.mxu0 %v5068
    %7233 = vmatpush1.bf16.msra.mxu0 %v5067
    %7234 = vmatprep.subr.bf16.mxu0 %v5070
    %7235 = vmatpush1.bf16.msra.mxu0 %v5069
    %7236 = vmatprep.subr.bf16.mxu0 %v5072
    %7237 = vmatpush1.bf16.msra.mxu0 %v5071
    %7238 = vmatprep.subr.bf16.mxu0 %v5074
    %7239 = vmatpush1.bf16.msra.mxu0 %v5073
    %7240 = vmatprep.subr.bf16.mxu0 %v5076
    %7241 = vmatpush1.bf16.msra.mxu0 %v5075
    %7242 = vmatprep.mubr.bf16.mxu0 %v1295
    %7243 = vmatmul.mubr.bf16.gmra.mrb[0].mxu0 %v1293
    %v7244 = vpop.f32.mrb[0].mxu0
    %v7245 = vadd.f32 %v7204, %v7244
    %v7246 = vpop.f32.mrb[0].mxu0
    %v7247 = vadd.f32 %v7206, %v7246
    %v7248 = vpop.f32.mrb[0].mxu0
    %v7249 = vpop.f32.mrb[0].mxu0
    %7250 = vdwg.mxu0
    %7251 = vmatprep.subr.bf16.mxu0 %v5078
    %7252 = vmatpush1.bf16.msra.mxu0 %v5077
    %7253 = vmatprep.subr.bf16.mxu0 %v5080
    %7254 = vmatpush1.bf16.msra.mxu0 %v5079
    %7255 = vmatprep.subr.bf16.mxu0 %v5082
    %7256 = vmatpush1.bf16.msra.mxu0 %v5081
    %7257 = vmatprep.subr.bf16.mxu0 %v5084
    %7258 = vmatpush1.bf16.msra.mxu0 %v5083
    %7259 = vmatprep.subr.bf16.mxu0 %v5086
    %7260 = vmatpush1.bf16.msra.mxu0 %v5085
    %7261 = vmatprep.subr.bf16.mxu0 %v5088
    %7262 = vmatpush1.bf16.msra.mxu0 %v5087
    %7263 = vmatprep.subr.bf16.mxu0 %v5090
    %7264 = vmatpush1.bf16.msra.mxu0 %v5089
    %7265 = vmatprep.subr.bf16.mxu0 %v5092
    %7266 = vmatpush1.bf16.msra.mxu0 %v5091
    %7267 = vmatprep.subr.bf16.mxu0 %v5094
    %7268 = vmatpush1.bf16.msra.mxu0 %v5093
    %7269 = vmatprep.subr.bf16.mxu0 %v5096
    %7270 = vmatpush1.bf16.msra.mxu0 %v5095
    %7271 = vmatprep.subr.bf16.mxu0 %v5098
    %7272 = vmatpush1.bf16.msra.mxu0 %v5097
    %7273 = vmatprep.subr.bf16.mxu0 %v5100
    %7274 = vmatpush1.bf16.msra.mxu0 %v5099
    %7275 = vmatprep.subr.bf16.mxu0 %v5102
    %7276 = vmatpush1.bf16.msra.mxu0 %v5101
    %7277 = vmatprep.subr.bf16.mxu0 %v5104
    %7278 = vmatpush1.bf16.msra.mxu0 %v5103
    %7279 = vmatprep.subr.bf16.mxu0 %v5106
    %7280 = vmatpush1.bf16.msra.mxu0 %v5105
    %7281 = vmatprep.subr.bf16.mxu0 %v5108
    %7282 = vmatpush1.bf16.msra.mxu0 %v5107
    %7283 = vmatprep.mubr.bf16.mxu0 %v1292
    %7284 = vmatmul.mubr.bf16.gmra.mrb[0].mxu0 %v1278
    %v7285 = vpop.f32.mrb[0].mxu0
    %v7286 = vadd.f32 %v7245, %v7285
    %v7287 = vpop.f32.mrb[0].mxu0
    %v7288 = vadd.f32 %v7247, %v7287
    %v7289 = vpop.f32.mrb[0].mxu0
    %v7290 = vpop.f32.mrb[0].mxu0
    %7291 = vdwg.mxu0
    %7292 = vmatprep.subr.bf16.mxu0 %v5110
    %7293 = vmatpush1.bf16.msra.mxu0 %v5109
    %7294 = vmatprep.subr.bf16.mxu0 %v5112
    %7295 = vmatpush1.bf16.msra.mxu0 %v5111
    %7296 = vmatprep.subr.bf16.mxu0 %v5114
    %7297 = vmatpush1.bf16.msra.mxu0 %v5113
    %7298 = vmatprep.subr.bf16.mxu0 %v5116
    %7299 = vmatpush1.bf16.msra.mxu0 %v5115
    %7300 = vmatprep.subr.bf16.mxu0 %v5118
    %7301 = vmatpush1.bf16.msra.mxu0 %v5117
    %7302 = vmatprep.subr.bf16.mxu0 %v5120
    %7303 = vmatpush1.bf16.msra.mxu0 %v5119
    %7304 = vmatprep.subr.bf16.mxu0 %v5122
    %7305 = vmatpush1.bf16.msra.mxu0 %v5121
    %7306 = vmatprep.subr.bf16.mxu0 %v5124
    %7307 = vmatpush1.bf16.msra.mxu0 %v5123
    %7308 = vmatprep.subr.bf16.mxu0 %v5126
    %7309 = vmatpush1.bf16.msra.mxu0 %v5125
    %7310 = vmatprep.subr.bf16.mxu0 %v5128
    %7311 = vmatpush1.bf16.msra.mxu0 %v5127
    %7312 = vmatprep.subr.bf16.mxu0 %v5130
    %7313 = vmatpush1.bf16.msra.mxu0 %v5129
    %7314 = vmatprep.subr.bf16.mxu0 %v5132
    %7315 = vmatpush1.bf16.msra.mxu0 %v5131
    %7316 = vmatprep.subr.bf16.mxu0 %v5134
    %7317 = vmatpush1.bf16.msra.mxu0 %v5133
    %7318 = vmatprep.subr.bf16.mxu0 %v5136
    %7319 = vmatpush1.bf16.msra.mxu0 %v5135
    %7320 = vmatprep.subr.bf16.mxu0 %v5138
    %7321 = vmatpush1.bf16.msra.mxu0 %v5137
    %7322 = vmatprep.subr.bf16.mxu0 %v5140
    %7323 = vmatpush1.bf16.msra.mxu0 %v5139
    %7324 = vmatprep.mubr.bf16.mxu0 %v1296
    %7325 = vmatmul.mubr.bf16.gmra.mrb[0].mxu0 %v1294
    %v7326 = vpop.f32.mrb[0].mxu0
    %v7327 = vadd.f32 %v7286, %v7326
    %v7328 = vpop.f32.mrb[0].mxu0
    %v7329 = vadd.f32 %v7288, %v7328
    %v7330 = vpop.f32.mrb[0].mxu0
    %v7331 = vpop.f32.mrb[0].mxu0
    %7332 = vdwg.mxu0
    %7333 = vmatprep.subr.bf16.mxu0 %v5142
    %7334 = vmatpush1.bf16.msra.mxu0 %v5141
    %7335 = vmatprep.subr.bf16.mxu0 %v5144
    %7336 = vmatpush1.bf16.msra.mxu0 %v5143
    %7337 = vmatprep.subr.bf16.mxu0 %v5146
    %7338 = vmatpush1.bf16.msra.mxu0 %v5145
    %7339 = vmatprep.subr.bf16.mxu0 %v5148
    %7340 = vmatpush1.bf16.msra.mxu0 %v5147
    %7341 = vmatprep.subr.bf16.mxu0 %v5150
    %7342 = vmatpush1.bf16.msra.mxu0 %v5149
    %7343 = vmatprep.subr.bf16.mxu0 %v5152
    %7344 = vmatpush1.bf16.msra.mxu0 %v5151
    %7345 = vmatprep.subr.bf16.mxu0 %v5154
    %7346 = vmatpush1.bf16.msra.mxu0 %v5153
    %7347 = vmatprep.subr.bf16.mxu0 %v5156
    %7348 = vmatpush1.bf16.msra.mxu0 %v5155
    %7349 = vmatprep.subr.bf16.mxu0 %v5158
    %7350 = vmatpush1.bf16.msra.mxu0 %v5157
    %7351 = vmatprep.subr.bf16.mxu0 %v5160
    %7352 = vmatpush1.bf16.msra.mxu0 %v5159
    %7353 = vmatprep.subr.bf16.mxu0 %v5162
    %7354 = vmatpush1.bf16.msra.mxu0 %v5161
    %7355 = vmatprep.subr.bf16.mxu0 %v5164
    %7356 = vmatpush1.bf16.msra.mxu0 %v5163
    %7357 = vmatprep.subr.bf16.mxu0 %v5166
    %7358 = vmatpush1.bf16.msra.mxu0 %v5165
    %7359 = vmatprep.subr.bf16.mxu0 %v5168
    %7360 = vmatpush1.bf16.msra.mxu0 %v5167
    %7361 = vmatprep.subr.bf16.mxu0 %v5170
    %7362 = vmatpush1.bf16.msra.mxu0 %v5169
    %7363 = vmatprep.subr.bf16.mxu0 %v5172
    %7364 = vmatpush1.bf16.msra.mxu0 %v5171
    %7365 = vmatprep.mubr.bf16.mxu0 %v1334
    %7366 = vmatmul.mubr.bf16.gmra.mrb[0].mxu0 %v1320
    %v7367 = vpop.f32.mrb[0].mxu0
    %v7368 = vadd.f32 %v7327, %v7367
    %v7369 = vpop.f32.mrb[0].mxu0
    %v7370 = vadd.f32 %v7329, %v7369
    %v7371 = vpop.f32.mrb[0].mxu0
    %v7372 = vpop.f32.mrb[0].mxu0
    %7373 = vdwg.mxu0
    %7374 = vmatprep.subr.bf16.mxu0 %v5174
    %7375 = vmatpush1.bf16.msra.mxu0 %v5173
    %7376 = vmatprep.subr.bf16.mxu0 %v5176
    %7377 = vmatpush1.bf16.msra.mxu0 %v5175
    %7378 = vmatprep.subr.bf16.mxu0 %v5178
    %7379 = vmatpush1.bf16.msra.mxu0 %v5177
    %7380 = vmatprep.subr.bf16.mxu0 %v5180
    %7381 = vmatpush1.bf16.msra.mxu0 %v5179
    %7382 = vmatprep.subr.bf16.mxu0 %v5182
    %7383 = vmatpush1.bf16.msra.mxu0 %v5181
    %7384 = vmatprep.subr.bf16.mxu0 %v5184
    %7385 = vmatpush1.bf16.msra.mxu0 %v5183
    %7386 = vmatprep.subr.bf16.mxu0 %v5186
    %7387 = vmatpush1.bf16.msra.mxu0 %v5185
    %7388 = vmatprep.subr.bf16.mxu0 %v5188
    %7389 = vmatpush1.bf16.msra.mxu0 %v5187
    %7390 = vmatprep.subr.bf16.mxu0 %v5190
    %7391 = vmatpush1.bf16.msra.mxu0 %v5189
    %7392 = vmatprep.subr.bf16.mxu0 %v5192
    %7393 = vmatpush1.bf16.msra.mxu0 %v5191
    %7394 = vmatprep.subr.bf16.mxu0 %v5194
    %7395 = vmatpush1.bf16.msra.mxu0 %v5193
    %7396 = vmatprep.subr.bf16.mxu0 %v5196
    %7397 = vmatpush1.bf16.msra.mxu0 %v5195
    %7398 = vmatprep.subr.bf16.mxu0 %v5198
    %7399 = vmatpush1.bf16.msra.mxu0 %v5197
    %7400 = vmatprep.subr.bf16.mxu0 %v5200
    %7401 = vmatpush1.bf16.msra.mxu0 %v5199
    %7402 = vmatprep.subr.bf16.mxu0 %v5202
    %7403 = vmatpush1.bf16.msra.mxu0 %v5201
    %7404 = vmatprep.subr.bf16.mxu0 %v5204
    %7405 = vmatpush1.bf16.msra.mxu0 %v5203
    %7406 = vmatprep.mubr.bf16.mxu0 %v1344
    %7407 = vmatmul.mubr.bf16.gmra.mrb[0].mxu0 %v1342
    %v7408 = vpop.f32.mrb[0].mxu0
    %v7409 = vadd.f32 %v7368, %v7408
    %v7410 = vpop.f32.mrb[0].mxu0
    %v7411 = vadd.f32 %v7370, %v7410
    %v7412 = vpop.f32.mrb[0].mxu0
    %v7413 = vpop.f32.mrb[0].mxu0
    %7414 = vdwg.mxu0
    %7415 = vmatprep.subr.bf16.mxu0 %v5206
    %7416 = vmatpush1.bf16.msra.mxu0 %v5205
    %7417 = vmatprep.subr.bf16.mxu0 %v5208
    %7418 = vmatpush1.bf16.msra.mxu0 %v5207
    %7419 = vmatprep.subr.bf16.mxu0 %v5210
    %7420 = vmatpush1.bf16.msra.mxu0 %v5209
    %7421 = vmatprep.subr.bf16.mxu0 %v5212
    %7422 = vmatpush1.bf16.msra.mxu0 %v5211
    %7423 = vmatprep.subr.bf16.mxu0 %v5214
    %7424 = vmatpush1.bf16.msra.mxu0 %v5213
    %7425 = vmatprep.subr.bf16.mxu0 %v5216
    %7426 = vmatpush1.bf16.msra.mxu0 %v5215
    %7427 = vmatprep.subr.bf16.mxu0 %v5218
    %7428 = vmatpush1.bf16.msra.mxu0 %v5217
    %7429 = vmatprep.subr.bf16.mxu0 %v5220
    %7430 = vmatpush1.bf16.msra.mxu0 %v5219
    %7431 = vmatprep.subr.bf16.mxu0 %v5222
    %7432 = vmatpush1.bf16.msra.mxu0 %v5221
    %7433 = vmatprep.subr.bf16.mxu0 %v5224
    %7434 = vmatpush1.bf16.msra.mxu0 %v5223
    %7435 = vmatprep.subr.bf16.mxu0 %v5226
    %7436 = vmatpush1.bf16.msra.mxu0 %v5225
    %7437 = vmatprep.subr.bf16.mxu0 %v5228
    %7438 = vmatpush1.bf16.msra.mxu0 %v5227
    %7439 = vmatprep.subr.bf16.mxu0 %v5230
    %7440 = vmatpush1.bf16.msra.mxu0 %v5229
    %7441 = vmatprep.subr.bf16.mxu0 %v5232
    %7442 = vmatpush1.bf16.msra.mxu0 %v5231
    %7443 = vmatprep.subr.bf16.mxu0 %v5234
    %7444 = vmatpush1.bf16.msra.mxu0 %v5233
    %7445 = vmatprep.subr.bf16.mxu0 %v5236
    %7446 = vmatpush1.bf16.msra.mxu0 %v5235
    %7447 = vmatprep.mubr.bf16.mxu0 %v1341
    %7448 = vmatmul.mubr.bf16.gmra.mrb[0].mxu0 %v1327
    %v7449 = vpop.f32.mrb[0].mxu0
    %v7450 = vadd.f32 %v7409, %v7449
    %v7451 = vpop.f32.mrb[0].mxu0
    %v7452 = vadd.f32 %v7411, %v7451
    %v7453 = vpop.f32.mrb[0].mxu0
    %v7454 = vpop.f32.mrb[0].mxu0
    %7455 = vdwg.mxu0
    %7456 = vmatprep.subr.bf16.mxu0 %v5238
    %7457 = vmatpush1.bf16.msra.mxu0 %v5237
    %7458 = vmatprep.subr.bf16.mxu0 %v5240
    %7459 = vmatpush1.bf16.msra.mxu0 %v5239
    %7460 = vmatprep.subr.bf16.mxu0 %v5242
    %7461 = vmatpush1.bf16.msra.mxu0 %v5241
    %7462 = vmatprep.subr.bf16.mxu0 %v5244
    %7463 = vmatpush1.bf16.msra.mxu0 %v5243
    %7464 = vmatprep.subr.bf16.mxu0 %v5246
    %7465 = vmatpush1.bf16.msra.mxu0 %v5245
    %7466 = vmatprep.subr.bf16.mxu0 %v5248
    %7467 = vmatpush1.bf16.msra.mxu0 %v5247
    %7468 = vmatprep.subr.bf16.mxu0 %v5250
    %7469 = vmatpush1.bf16.msra.mxu0 %v5249
    %7470 = vmatprep.subr.bf16.mxu0 %v5252
    %7471 = vmatpush1.bf16.msra.mxu0 %v5251
    %7472 = vmatprep.subr.bf16.mxu0 %v5254
    %7473 = vmatpush1.bf16.msra.mxu0 %v5253
    %7474 = vmatprep.subr.bf16.mxu0 %v5256
    %7475 = vmatpush1.bf16.msra.mxu0 %v5255
    %7476 = vmatprep.subr.bf16.mxu0 %v5258
    %7477 = vmatpush1.bf16.msra.mxu0 %v5257
    %7478 = vmatprep.subr.bf16.mxu0 %v5260
    %7479 = vmatpush1.bf16.msra.mxu0 %v5259
    %7480 = vmatprep.subr.bf16.mxu0 %v5262
    %7481 = vmatpush1.bf16.msra.mxu0 %v5261
    %7482 = vmatprep.subr.bf16.mxu0 %v5264
    %7483 = vmatpush1.bf16.msra.mxu0 %v5263
    %7484 = vmatprep.subr.bf16.mxu0 %v5266
    %7485 = vmatpush1.bf16.msra.mxu0 %v5265
    %7486 = vmatprep.subr.bf16.mxu0 %v5268
    %7487 = vmatpush1.bf16.msra.mxu0 %v5267
    %7488 = vmatprep.mubr.bf16.mxu0 %v1345
    %7489 = vmatmul.mubr.bf16.gmra.mrb[0].mxu0 %v1343
    %v7490 = vpop.f32.mrb[0].mxu0
    %v7491 = vadd.f32 %v7450, %v7490
    %v7492 = vpop.f32.mrb[0].mxu0
    %v7493 = vadd.f32 %v7452, %v7492
    %v7494 = vpop.f32.mrb[0].mxu0
    %v7495 = vpop.f32.mrb[0].mxu0
    %7496 = vdwg.mxu0
    %7497 = vmatprep.subr.bf16.mxu0 %v5270
    %7498 = vmatpush1.bf16.msra.mxu0 %v5269
    %7499 = vmatprep.subr.bf16.mxu0 %v5272
    %7500 = vmatpush1.bf16.msra.mxu0 %v5271
    %7501 = vmatprep.subr.bf16.mxu0 %v5274
    %7502 = vmatpush1.bf16.msra.mxu0 %v5273
    %7503 = vmatprep.subr.bf16.mxu0 %v5276
    %7504 = vmatpush1.bf16.msra.mxu0 %v5275
    %7505 = vmatprep.subr.bf16.mxu0 %v5278
    %7506 = vmatpush1.bf16.msra.mxu0 %v5277
    %7507 = vmatprep.subr.bf16.mxu0 %v5280
    %7508 = vmatpush1.bf16.msra.mxu0 %v5279
    %7509 = vmatprep.subr.bf16.mxu0 %v5282
    %7510 = vmatpush1.bf16.msra.mxu0 %v5281
    %7511 = vmatprep.subr.bf16.mxu0 %v5284
    %7512 = vmatpush1.bf16.msra.mxu0 %v5283
    %7513 = vmatprep.subr.bf16.mxu0 %v5286
    %7514 = vmatpush1.bf16.msra.mxu0 %v5285
    %7515 = vmatprep.subr.bf16.mxu0 %v5288
    %7516 = vmatpush1.bf16.msra.mxu0 %v5287
    %7517 = vmatprep.subr.bf16.mxu0 %v5290
    %7518 = vmatpush1.bf16.msra.mxu0 %v5289
    %7519 = vmatprep.subr.bf16.mxu0 %v5292
    %7520 = vmatpush1.bf16.msra.mxu0 %v5291
    %7521 = vmatprep.subr.bf16.mxu0 %v5294
    %7522 = vmatpush1.bf16.msra.mxu0 %v5293
    %7523 = vmatprep.subr.bf16.mxu0 %v5296
    %7524 = vmatpush1.bf16.msra.mxu0 %v5295
    %7525 = vmatprep.subr.bf16.mxu0 %v5298
    %7526 = vmatpush1.bf16.msra.mxu0 %v5297
    %7527 = vmatprep.subr.bf16.mxu0 %v5300
    %7528 = vmatpush1.bf16.msra.mxu0 %v5299
    %7529 = vmatprep.mubr.bf16.mxu0 %v1383
    %7530 = vmatmul.mubr.bf16.gmra.mrb[0].mxu0 %v1369
    %v7531 = vpop.f32.mrb[0].mxu0
    %v7532 = vadd.f32 %v7491, %v7531
    %v7533 = vpop.f32.mrb[0].mxu0
    %v7534 = vadd.f32 %v7493, %v7533
    %v7535 = vpop.f32.mrb[0].mxu0
    %v7536 = vpop.f32.mrb[0].mxu0
    %7537 = vdwg.mxu0
    %7538 = vmatprep.subr.bf16.mxu0 %v5302
    %7539 = vmatpush1.bf16.msra.mxu0 %v5301
    %7540 = vmatprep.subr.bf16.mxu0 %v5304
    %7541 = vmatpush1.bf16.msra.mxu0 %v5303
    %7542 = vmatprep.subr.bf16.mxu0 %v5306
    %7543 = vmatpush1.bf16.msra.mxu0 %v5305
    %7544 = vmatprep.subr.bf16.mxu0 %v5308
    %7545 = vmatpush1.bf16.msra.mxu0 %v5307
    %7546 = vmatprep.subr.bf16.mxu0 %v5310
    %7547 = vmatpush1.bf16.msra.mxu0 %v5309
    %7548 = vmatprep.subr.bf16.mxu0 %v5312
    %7549 = vmatpush1.bf16.msra.mxu0 %v5311
    %7550 = vmatprep.subr.bf16.mxu0 %v5314
    %7551 = vmatpush1.bf16.msra.mxu0 %v5313
    %7552 = vmatprep.subr.bf16.mxu0 %v5316
    %7553 = vmatpush1.bf16.msra.mxu0 %v5315
    %7554 = vmatprep.subr.bf16.mxu0 %v5318
    %7555 = vmatpush1.bf16.msra.mxu0 %v5317
    %7556 = vmatprep.subr.bf16.mxu0 %v5320
    %7557 = vmatpush1.bf16.msra.mxu0 %v5319
    %7558 = vmatprep.subr.bf16.mxu0 %v5322
    %7559 = vmatpush1.bf16.msra.mxu0 %v5321
    %7560 = vmatprep.subr.bf16.mxu0 %v5324
    %7561 = vmatpush1.bf16.msra.mxu0 %v5323
    %7562 = vmatprep.subr.bf16.mxu0 %v5326
    %7563 = vmatpush1.bf16.msra.mxu0 %v5325
    %7564 = vmatprep.subr.bf16.mxu0 %v5328
    %7565 = vmatpush1.bf16.msra.mxu0 %v5327
    %7566 = vmatprep.subr.bf16.mxu0 %v5330
    %7567 = vmatpush1.bf16.msra.mxu0 %v5329
    %7568 = vmatprep.subr.bf16.mxu0 %v5332
    %7569 = vmatpush1.bf16.msra.mxu0 %v5331
    %7570 = vmatprep.mubr.bf16.mxu0 %v1393
    %7571 = vmatmul.mubr.bf16.gmra.mrb[0].mxu0 %v1391
    %v7572 = vpop.f32.mrb[0].mxu0
    %v7573 = vadd.f32 %v7532, %v7572
    %v7574 = vpop.f32.mrb[0].mxu0
    %v7575 = vadd.f32 %v7534, %v7574
    %v7576 = vpop.f32.mrb[0].mxu0
    %v7577 = vpop.f32.mrb[0].mxu0
    %7578 = vdwg.mxu0
    %7579 = vmatprep.subr.bf16.mxu0 %v5334
    %7580 = vmatpush1.bf16.msra.mxu0 %v5333
    %7581 = vmatprep.subr.bf16.mxu0 %v5336
    %7582 = vmatpush1.bf16.msra.mxu0 %v5335
    %7583 = vmatprep.subr.bf16.mxu0 %v5338
    %7584 = vmatpush1.bf16.msra.mxu0 %v5337
    %7585 = vmatprep.subr.bf16.mxu0 %v5340
    %7586 = vmatpush1.bf16.msra.mxu0 %v5339
    %7587 = vmatprep.subr.bf16.mxu0 %v5342
    %7588 = vmatpush1.bf16.msra.mxu0 %v5341
    %7589 = vmatprep.subr.bf16.mxu0 %v5344
    %7590 = vmatpush1.bf16.msra.mxu0 %v5343
    %7591 = vmatprep.subr.bf16.mxu0 %v5346
    %7592 = vmatpush1.bf16.msra.mxu0 %v5345
    %7593 = vmatprep.subr.bf16.mxu0 %v5348
    %7594 = vmatpush1.bf16.msra.mxu0 %v5347
    %7595 = vmatprep.subr.bf16.mxu0 %v5350
    %7596 = vmatpush1.bf16.msra.mxu0 %v5349
    %7597 = vmatprep.subr.bf16.mxu0 %v5352
    %7598 = vmatpush1.bf16.msra.mxu0 %v5351
    %7599 = vmatprep.subr.bf16.mxu0 %v5354
    %7600 = vmatpush1.bf16.msra.mxu0 %v5353
    %7601 = vmatprep.subr.bf16.mxu0 %v5356
    %7602 = vmatpush1.bf16.msra.mxu0 %v5355
    %7603 = vmatprep.subr.bf16.mxu0 %v5358
    %7604 = vmatpush1.bf16.msra.mxu0 %v5357
    %7605 = vmatprep.subr.bf16.mxu0 %v5360
    %7606 = vmatpush1.bf16.msra.mxu0 %v5359
    %7607 = vmatprep.subr.bf16.mxu0 %v5362
    %7608 = vmatpush1.bf16.msra.mxu0 %v5361
    %7609 = vmatprep.subr.bf16.mxu0 %v5364
    %7610 = vmatpush1.bf16.msra.mxu0 %v5363
    %7611 = vmatprep.mubr.bf16.mxu0 %v1390
    %7612 = vmatmul.mubr.bf16.gmra.mrb[0].mxu0 %v1376
    %v7613 = vpop.f32.mrb[0].mxu0
    %v7614 = vadd.f32 %v7573, %v7613
    %v7615 = vpop.f32.mrb[0].mxu0
    %v7616 = vadd.f32 %v7575, %v7615
    %v7617 = vpop.f32.mrb[0].mxu0
    %v7618 = vpop.f32.mrb[0].mxu0
    %7619 = vdwg.mxu0
    %7620 = vmatprep.subr.bf16.mxu0 %v5366
    %7621 = vmatpush1.bf16.msra.mxu0 %v5365
    %7622 = vmatprep.subr.bf16.mxu0 %v5368
    %7623 = vmatpush1.bf16.msra.mxu0 %v5367
    %7624 = vmatprep.subr.bf16.mxu0 %v5370
    %7625 = vmatpush1.bf16.msra.mxu0 %v5369
    %7626 = vmatprep.subr.bf16.mxu0 %v5372
    %7627 = vmatpush1.bf16.msra.mxu0 %v5371
    %7628 = vmatprep.subr.bf16.mxu0 %v5374
    %7629 = vmatpush1.bf16.msra.mxu0 %v5373
    %7630 = vmatprep.subr.bf16.mxu0 %v5376
    %7631 = vmatpush1.bf16.msra.mxu0 %v5375
    %7632 = vmatprep.subr.bf16.mxu0 %v5378
    %7633 = vmatpush1.bf16.msra.mxu0 %v5377
    %7634 = vmatprep.subr.bf16.mxu0 %v5380
    %7635 = vmatpush1.bf16.msra.mxu0 %v5379
    %7636 = vmatprep.subr.bf16.mxu0 %v5382
    %7637 = vmatpush1.bf16.msra.mxu0 %v5381
    %7638 = vmatprep.subr.bf16.mxu0 %v5384
    %7639 = vmatpush1.bf16.msra.mxu0 %v5383
    %7640 = vmatprep.subr.bf16.mxu0 %v5386
    %7641 = vmatpush1.bf16.msra.mxu0 %v5385
    %7642 = vmatprep.subr.bf16.mxu0 %v5388
    %7643 = vmatpush1.bf16.msra.mxu0 %v5387
    %7644 = vmatprep.subr.bf16.mxu0 %v5390
    %7645 = vmatpush1.bf16.msra.mxu0 %v5389
    %7646 = vmatprep.subr.bf16.mxu0 %v5392
    %7647 = vmatpush1.bf16.msra.mxu0 %v5391
    %7648 = vmatprep.subr.bf16.mxu0 %v5394
    %7649 = vmatpush1.bf16.msra.mxu0 %v5393
    %7650 = vmatprep.subr.bf16.mxu0 %v5396
    %7651 = vmatpush1.bf16.msra.mxu0 %v5395
    %7652 = vmatprep.mubr.bf16.mxu0 %v1394
    %7653 = vmatmul.mubr.bf16.gmra.mrb[0].mxu0 %v1392
    %v7654 = vpop.f32.mrb[0].mxu0
    %v7655 = vadd.f32 %v7614, %v7654
    %v7656 = vpop.f32.mrb[0].mxu0
    %v7657 = vadd.f32 %v7616, %v7656
    %v7658 = vpop.f32.mrb[0].mxu0
    %v7659 = vpop.f32.mrb[0].mxu0
    %7660 = vdwg.mxu0
    %7661 = vmatprep.subr.bf16.mxu0 %v5398
    %7662 = vmatpush1.bf16.msra.mxu0 %v5397
    %7663 = vmatprep.subr.bf16.mxu0 %v5400
    %7664 = vmatpush1.bf16.msra.mxu0 %v5399
    %7665 = vmatprep.subr.bf16.mxu0 %v5402
    %7666 = vmatpush1.bf16.msra.mxu0 %v5401
    %7667 = vmatprep.subr.bf16.mxu0 %v5404
    %7668 = vmatpush1.bf16.msra.mxu0 %v5403
    %7669 = vmatprep.subr.bf16.mxu0 %v5406
    %7670 = vmatpush1.bf16.msra.mxu0 %v5405
    %7671 = vmatprep.subr.bf16.mxu0 %v5408
    %7672 = vmatpush1.bf16.msra.mxu0 %v5407
    %7673 = vmatprep.subr.bf16.mxu0 %v5410
    %7674 = vmatpush1.bf16.msra.mxu0 %v5409
    %7675 = vmatprep.subr.bf16.mxu0 %v5412
    %7676 = vmatpush1.bf16.msra.mxu0 %v5411
    %7677 = vmatprep.subr.bf16.mxu0 %v5414
    %7678 = vmatpush1.bf16.msra.mxu0 %v5413
    %7679 = vmatprep.subr.bf16.mxu0 %v5416
    %7680 = vmatpush1.bf16.msra.mxu0 %v5415
    %7681 = vmatprep.subr.bf16.mxu0 %v5418
    %7682 = vmatpush1.bf16.msra.mxu0 %v5417
    %7683 = vmatprep.subr.bf16.mxu0 %v5420
    %7684 = vmatpush1.bf16.msra.mxu0 %v5419
    %7685 = vmatprep.subr.bf16.mxu0 %v5422
    %7686 = vmatpush1.bf16.msra.mxu0 %v5421
    %7687 = vmatprep.subr.bf16.mxu0 %v5424
    %7688 = vmatpush1.bf16.msra.mxu0 %v5423
    %7689 = vmatprep.subr.bf16.mxu0 %v5426
    %7690 = vmatpush1.bf16.msra.mxu0 %v5425
    %7691 = vmatprep.subr.bf16.mxu0 %v5428
    %7692 = vmatpush1.bf16.msra.mxu0 %v5427
    %7693 = vmatprep.mubr.bf16.mxu0 %v1432
    %7694 = vmatmul.mubr.bf16.gmra.mrb[0].mxu0 %v1418
    %v7695 = vpop.f32.mrb[0].mxu0
    %v7696 = vadd.f32 %v7655, %v7695
    %v7697 = vpop.f32.mrb[0].mxu0
    %v7698 = vadd.f32 %v7657, %v7697
    %v7699 = vpop.f32.mrb[0].mxu0
    %v7700 = vpop.f32.mrb[0].mxu0
    %7701 = vdwg.mxu0
    %7702 = vmatprep.subr.bf16.mxu0 %v5430
    %7703 = vmatpush1.bf16.msra.mxu0 %v5429
    %7704 = vmatprep.subr.bf16.mxu0 %v5432
    %7705 = vmatpush1.bf16.msra.mxu0 %v5431
    %7706 = vmatprep.subr.bf16.mxu0 %v5434
    %7707 = vmatpush1.bf16.msra.mxu0 %v5433
    %7708 = vmatprep.subr.bf16.mxu0 %v5436
    %7709 = vmatpush1.bf16.msra.mxu0 %v5435
    %7710 = vmatprep.subr.bf16.mxu0 %v5438
    %7711 = vmatpush1.bf16.msra.mxu0 %v5437
    %7712 = vmatprep.subr.bf16.mxu0 %v5440
    %7713 = vmatpush1.bf16.msra.mxu0 %v5439
    %7714 = vmatprep.subr.bf16.mxu0 %v5442
    %7715 = vmatpush1.bf16.msra.mxu0 %v5441
    %7716 = vmatprep.subr.bf16.mxu0 %v5444
    %7717 = vmatpush1.bf16.msra.mxu0 %v5443
    %7718 = vmatprep.subr.bf16.mxu0 %v5446
    %7719 = vmatpush1.bf16.msra.mxu0 %v5445
    %7720 = vmatprep.subr.bf16.mxu0 %v5448
    %7721 = vmatpush1.bf16.msra.mxu0 %v5447
    %7722 = vmatprep.subr.bf16.mxu0 %v5450
    %7723 = vmatpush1.bf16.msra.mxu0 %v5449
    %7724 = vmatprep.subr.bf16.mxu0 %v5452
    %7725 = vmatpush1.bf16.msra.mxu0 %v5451
    %7726 = vmatprep.subr.bf16.mxu0 %v5454
    %7727 = vmatpush1.bf16.msra.mxu0 %v5453
    %7728 = vmatprep.subr.bf16.mxu0 %v5456
    %7729 = vmatpush1.bf16.msra.mxu0 %v5455
    %7730 = vmatprep.subr.bf16.mxu0 %v5458
    %7731 = vmatpush1.bf16.msra.mxu0 %v5457
    %7732 = vmatprep.subr.bf16.mxu0 %v5460
    %7733 = vmatpush1.bf16.msra.mxu0 %v5459
    %7734 = vmatprep.mubr.bf16.mxu0 %v1442
    %7735 = vmatmul.mubr.bf16.gmra.mrb[0].mxu0 %v1440
    %v7736 = vpop.f32.mrb[0].mxu0
    %v7737 = vadd.f32 %v7696, %v7736
    %v7738 = vpop.f32.mrb[0].mxu0
    %v7739 = vadd.f32 %v7698, %v7738
    %v7740 = vpop.f32.mrb[0].mxu0
    %v7741 = vpop.f32.mrb[0].mxu0
    %7742 = vdwg.mxu0
    %7743 = vmatprep.subr.bf16.mxu0 %v5462
    %7744 = vmatpush1.bf16.msra.mxu0 %v5461
    %7745 = vmatprep.subr.bf16.mxu0 %v5464
    %7746 = vmatpush1.bf16.msra.mxu0 %v5463
    %7747 = vmatprep.subr.bf16.mxu0 %v5466
    %7748 = vmatpush1.bf16.msra.mxu0 %v5465
    %7749 = vmatprep.subr.bf16.mxu0 %v5468
    %7750 = vmatpush1.bf16.msra.mxu0 %v5467
    %7751 = vmatprep.subr.bf16.mxu0 %v5470
    %7752 = vmatpush1.bf16.msra.mxu0 %v5469
    %7753 = vmatprep.subr.bf16.mxu0 %v5472
    %7754 = vmatpush1.bf16.msra.mxu0 %v5471
    %7755 = vmatprep.subr.bf16.mxu0 %v5474
    %7756 = vmatpush1.bf16.msra.mxu0 %v5473
    %7757 = vmatprep.subr.bf16.mxu0 %v5476
    %7758 = vmatpush1.bf16.msra.mxu0 %v5475
    %7759 = vmatprep.subr.bf16.mxu0 %v5478
    %7760 = vmatpush1.bf16.msra.mxu0 %v5477
    %7761 = vmatprep.subr.bf16.mxu0 %v5480
    %7762 = vmatpush1.bf16.msra.mxu0 %v5479
    %7763 = vmatprep.subr.bf16.mxu0 %v5482
    %7764 = vmatpush1.bf16.msra.mxu0 %v5481
    %7765 = vmatprep.subr.bf16.mxu0 %v5484
    %7766 = vmatpush1.bf16.msra.mxu0 %v5483
    %7767 = vmatprep.subr.bf16.mxu0 %v5486
    %7768 = vmatpush1.bf16.msra.mxu0 %v5485
    %7769 = vmatprep.subr.bf16.mxu0 %v5488
    %7770 = vmatpush1.bf16.msra.mxu0 %v5487
    %7771 = vmatprep.subr.bf16.mxu0 %v5490
    %7772 = vmatpush1.bf16.msra.mxu0 %v5489
    %7773 = vmatprep.subr.bf16.mxu0 %v5492
    %7774 = vmatpush1.bf16.msra.mxu0 %v5491
    %7775 = vmatprep.mubr.bf16.mxu0 %v1439
    %7776 = vmatmul.mubr.bf16.gmra.mrb[0].mxu0 %v1425
    %v7777 = vpop.f32.mrb[0].mxu0
    %v7778 = vadd.f32 %v7737, %v7777
    %v7779 = vpop.f32.mrb[0].mxu0
    %v7780 = vadd.f32 %v7739, %v7779
    %v7781 = vpop.f32.mrb[0].mxu0
    %v7782 = vpop.f32.mrb[0].mxu0
    %7783 = vdwg.mxu0
    %7784 = vmatprep.subr.bf16.mxu0 %v5494
    %7785 = vmatpush1.bf16.msra.mxu0 %v5493
    %7786 = vmatprep.subr.bf16.mxu0 %v5496
    %7787 = vmatpush1.bf16.msra.mxu0 %v5495
    %7788 = vmatprep.subr.bf16.mxu0 %v5498
    %7789 = vmatpush1.bf16.msra.mxu0 %v5497
    %7790 = vmatprep.subr.bf16.mxu0 %v5500
    %7791 = vmatpush1.bf16.msra.mxu0 %v5499
    %7792 = vmatprep.subr.bf16.mxu0 %v5502
    %7793 = vmatpush1.bf16.msra.mxu0 %v5501
    %7794 = vmatprep.subr.bf16.mxu0 %v5504
    %7795 = vmatpush1.bf16.msra.mxu0 %v5503
    %7796 = vmatprep.subr.bf16.mxu0 %v5506
    %7797 = vmatpush1.bf16.msra.mxu0 %v5505
    %7798 = vmatprep.subr.bf16.mxu0 %v5508
    %7799 = vmatpush1.bf16.msra.mxu0 %v5507
    %7800 = vmatprep.subr.bf16.mxu0 %v5510
    %7801 = vmatpush1.bf16.msra.mxu0 %v5509
    %7802 = vmatprep.subr.bf16.mxu0 %v5512
    %7803 = vmatpush1.bf16.msra.mxu0 %v5511
    %7804 = vmatprep.subr.bf16.mxu0 %v5514
    %7805 = vmatpush1.bf16.msra.mxu0 %v5513
    %7806 = vmatprep.subr.bf16.mxu0 %v5516
    %7807 = vmatpush1.bf16.msra.mxu0 %v5515
    %7808 = vmatprep.subr.bf16.mxu0 %v5518
    %7809 = vmatpush1.bf16.msra.mxu0 %v5517
    %7810 = vmatprep.subr.bf16.mxu0 %v5520
    %7811 = vmatpush1.bf16.msra.mxu0 %v5519
    %7812 = vmatprep.subr.bf16.mxu0 %v5522
    %7813 = vmatpush1.bf16.msra.mxu0 %v5521
    %7814 = vmatprep.subr.bf16.mxu0 %v5524
    %7815 = vmatpush1.bf16.msra.mxu0 %v5523
    %7816 = vmatprep.mubr.bf16.mxu0 %v1443
    %7817 = vmatmul.mubr.bf16.gmra.mrb[0].mxu0 %v1441
    %v7818 = vpop.f32.mrb[0].mxu0
    %v7819 = vadd.f32 %v7778, %v7818
    %v7820 = vpop.f32.mrb[0].mxu0
    %v7821 = vadd.f32 %v7780, %v7820
    %v7822 = vpop.f32.mrb[0].mxu0
    %v7823 = vpop.f32.mrb[0].mxu0
    %7824 = vdwg.mxu0
    %7825 = vmatprep.subr.bf16.mxu0 %v5526
    %7826 = vmatpush1.bf16.msra.mxu0 %v5525
    %7827 = vmatprep.subr.bf16.mxu0 %v5528
    %7828 = vmatpush1.bf16.msra.mxu0 %v5527
    %7829 = vmatprep.subr.bf16.mxu0 %v5530
    %7830 = vmatpush1.bf16.msra.mxu0 %v5529
    %7831 = vmatprep.subr.bf16.mxu0 %v5532
    %7832 = vmatpush1.bf16.msra.mxu0 %v5531
    %7833 = vmatprep.subr.bf16.mxu0 %v5534
    %7834 = vmatpush1.bf16.msra.mxu0 %v5533
    %7835 = vmatprep.subr.bf16.mxu0 %v5536
    %7836 = vmatpush1.bf16.msra.mxu0 %v5535
    %7837 = vmatprep.subr.bf16.mxu0 %v5538
    %7838 = vmatpush1.bf16.msra.mxu0 %v5537
    %7839 = vmatprep.subr.bf16.mxu0 %v5540
    %7840 = vmatpush1.bf16.msra.mxu0 %v5539
    %7841 = vmatprep.subr.bf16.mxu0 %v5542
    %7842 = vmatpush1.bf16.msra.mxu0 %v5541
    %7843 = vmatprep.subr.bf16.mxu0 %v5544
    %7844 = vmatpush1.bf16.msra.mxu0 %v5543
    %7845 = vmatprep.subr.bf16.mxu0 %v5546
    %7846 = vmatpush1.bf16.msra.mxu0 %v5545
    %7847 = vmatprep.subr.bf16.mxu0 %v5548
    %7848 = vmatpush1.bf16.msra.mxu0 %v5547
    %7849 = vmatprep.subr.bf16.mxu0 %v5550
    %7850 = vmatpush1.bf16.msra.mxu0 %v5549
    %7851 = vmatprep.subr.bf16.mxu0 %v5552
    %7852 = vmatpush1.bf16.msra.mxu0 %v5551
    %7853 = vmatprep.subr.bf16.mxu0 %v5554
    %7854 = vmatpush1.bf16.msra.mxu0 %v5553
    %7855 = vmatprep.subr.bf16.mxu0 %v5556
    %7856 = vmatpush1.bf16.msra.mxu0 %v5555
    %7857 = vmatprep.mubr.bf16.mxu0 %v1481
    %7858 = vmatmul.mubr.bf16.gmra.mrb[0].mxu0 %v1467
    %v7859 = vpop.f32.mrb[0].mxu0
    %v7860 = vadd.f32 %v7819, %v7859
    %v7861 = vpop.f32.mrb[0].mxu0
    %v7862 = vadd.f32 %v7821, %v7861
    %v7863 = vpop.f32.mrb[0].mxu0
    %v7864 = vpop.f32.mrb[0].mxu0
    %7865 = vdwg.mxu0
    %7866 = vmatprep.subr.bf16.mxu0 %v5558
    %7867 = vmatpush1.bf16.msra.mxu0 %v5557
    %7868 = vmatprep.subr.bf16.mxu0 %v5560
    %7869 = vmatpush1.bf16.msra.mxu0 %v5559
    %7870 = vmatprep.subr.bf16.mxu0 %v5562
    %7871 = vmatpush1.bf16.msra.mxu0 %v5561
    %7872 = vmatprep.subr.bf16.mxu0 %v5564
    %7873 = vmatpush1.bf16.msra.mxu0 %v5563
    %7874 = vmatprep.subr.bf16.mxu0 %v5566
    %7875 = vmatpush1.bf16.msra.mxu0 %v5565
    %7876 = vmatprep.subr.bf16.mxu0 %v5568
    %7877 = vmatpush1.bf16.msra.mxu0 %v5567
    %7878 = vmatprep.subr.bf16.mxu0 %v5570
    %7879 = vmatpush1.bf16.msra.mxu0 %v5569
    %7880 = vmatprep.subr.bf16.mxu0 %v5572
    %7881 = vmatpush1.bf16.msra.mxu0 %v5571
    %7882 = vmatprep.subr.bf16.mxu0 %v5574
    %7883 = vmatpush1.bf16.msra.mxu0 %v5573
    %7884 = vmatprep.subr.bf16.mxu0 %v5576
    %7885 = vmatpush1.bf16.msra.mxu0 %v5575
    %7886 = vmatprep.subr.bf16.mxu0 %v5578
    %7887 = vmatpush1.bf16.msra.mxu0 %v5577
    %7888 = vmatprep.subr.bf16.mxu0 %v5580
    %7889 = vmatpush1.bf16.msra.mxu0 %v5579
    %7890 = vmatprep.subr.bf16.mxu0 %v5582
    %7891 = vmatpush1.bf16.msra.mxu0 %v5581
    %7892 = vmatprep.subr.bf16.mxu0 %v5584
    %7893 = vmatpush1.bf16.msra.mxu0 %v5583
    %7894 = vmatprep.subr.bf16.mxu0 %v5586
    %7895 = vmatpush1.bf16.msra.mxu0 %v5585
    %7896 = vmatprep.subr.bf16.mxu0 %v5588
    %7897 = vmatpush1.bf16.msra.mxu0 %v5587
    %7898 = vmatprep.mubr.bf16.mxu0 %v1491
    %7899 = vmatmul.mubr.bf16.gmra.mrb[0].mxu0 %v1489
    %v7900 = vpop.f32.mrb[0].mxu0
    %v7901 = vadd.f32 %v7860, %v7900
    %v7902 = vpop.f32.mrb[0].mxu0
    %v7903 = vadd.f32 %v7862, %v7902
    %v7904 = vpop.f32.mrb[0].mxu0
    %v7905 = vpop.f32.mrb[0].mxu0
    %7906 = vdwg.mxu0
    %7907 = vmatprep.subr.bf16.mxu0 %v5590
    %7908 = vmatpush1.bf16.msra.mxu0 %v5589
    %7909 = vmatprep.subr.bf16.mxu0 %v5592
    %7910 = vmatpush1.bf16.msra.mxu0 %v5591
    %7911 = vmatprep.subr.bf16.mxu0 %v5594
    %7912 = vmatpush1.bf16.msra.mxu0 %v5593
    %7913 = vmatprep.subr.bf16.mxu0 %v5596
    %7914 = vmatpush1.bf16.msra.mxu0 %v5595
    %7915 = vmatprep.subr.bf16.mxu0 %v5598
    %7916 = vmatpush1.bf16.msra.mxu0 %v5597
    %7917 = vmatprep.subr.bf16.mxu0 %v5600
    %7918 = vmatpush1.bf16.msra.mxu0 %v5599
    %7919 = vmatprep.subr.bf16.mxu0 %v5602
    %7920 = vmatpush1.bf16.msra.mxu0 %v5601
    %7921 = vmatprep.subr.bf16.mxu0 %v5604
    %7922 = vmatpush1.bf16.msra.mxu0 %v5603
    %7923 = vmatprep.subr.bf16.mxu0 %v5606
    %7924 = vmatpush1.bf16.msra.mxu0 %v5605
    %7925 = vmatprep.subr.bf16.mxu0 %v5608
    %7926 = vmatpush1.bf16.msra.mxu0 %v5607
    %7927 = vmatprep.subr.bf16.mxu0 %v5610
    %7928 = vmatpush1.bf16.msra.mxu0 %v5609
    %7929 = vmatprep.subr.bf16.mxu0 %v5612
    %7930 = vmatpush1.bf16.msra.mxu0 %v5611
    %7931 = vmatprep.subr.bf16.mxu0 %v5614
    %7932 = vmatpush1.bf16.msra.mxu0 %v5613
    %7933 = vmatprep.subr.bf16.mxu0 %v5616
    %7934 = vmatpush1.bf16.msra.mxu0 %v5615
    %7935 = vmatprep.subr.bf16.mxu0 %v5618
    %7936 = vmatpush1.bf16.msra.mxu0 %v5617
    %7937 = vmatprep.subr.bf16.mxu0 %v5620
    %7938 = vmatpush1.bf16.msra.mxu0 %v5619
    %7939 = vmatprep.mubr.bf16.mxu0 %v1488
    %7940 = vmatmul.mubr.bf16.gmra.mrb[0].mxu0 %v1474
    %v7941 = vpop.f32.mrb[0].mxu0
    %v7942 = vadd.f32 %v7901, %v7941
    %v7943 = vpop.f32.mrb[0].mxu0
    %v7944 = vadd.f32 %v7903, %v7943
    %v7945 = vpop.f32.mrb[0].mxu0
    %v7946 = vpop.f32.mrb[0].mxu0
    %7947 = vdwg.mxu0
    %7948 = vmatprep.subr.bf16.mxu0 %v5622
    %7949 = vmatpush1.bf16.msra.mxu0 %v5621
    %7950 = vmatprep.subr.bf16.mxu0 %v5624
    %7951 = vmatpush1.bf16.msra.mxu0 %v5623
    %7952 = vmatprep.subr.bf16.mxu0 %v5626
    %7953 = vmatpush1.bf16.msra.mxu0 %v5625
    %7954 = vmatprep.subr.bf16.mxu0 %v5628
    %7955 = vmatpush1.bf16.msra.mxu0 %v5627
    %7956 = vmatprep.subr.bf16.mxu0 %v5630
    %7957 = vmatpush1.bf16.msra.mxu0 %v5629
    %7958 = vmatprep.subr.bf16.mxu0 %v5632
    %7959 = vmatpush1.bf16.msra.mxu0 %v5631
    %7960 = vmatprep.subr.bf16.mxu0 %v5634
    %7961 = vmatpush1.bf16.msra.mxu0 %v5633
    %7962 = vmatprep.subr.bf16.mxu0 %v5636
    %7963 = vmatpush1.bf16.msra.mxu0 %v5635
    %7964 = vmatprep.subr.bf16.mxu0 %v5638
    %7965 = vmatpush1.bf16.msra.mxu0 %v5637
    %7966 = vmatprep.subr.bf16.mxu0 %v5640
    %7967 = vmatpush1.bf16.msra.mxu0 %v5639
    %7968 = vmatprep.subr.bf16.mxu0 %v5642
    %7969 = vmatpush1.bf16.msra.mxu0 %v5641
    %7970 = vmatprep.subr.bf16.mxu0 %v5644
    %7971 = vmatpush1.bf16.msra.mxu0 %v5643
    %7972 = vmatprep.subr.bf16.mxu0 %v5646
    %7973 = vmatpush1.bf16.msra.mxu0 %v5645
    %7974 = vmatprep.subr.bf16.mxu0 %v5648
    %7975 = vmatpush1.bf16.msra.mxu0 %v5647
    %7976 = vmatprep.subr.bf16.mxu0 %v5650
    %7977 = vmatpush1.bf16.msra.mxu0 %v5649
    %7978 = vmatprep.subr.bf16.mxu0 %v5652
    %7979 = vmatpush1.bf16.msra.mxu0 %v5651
    %7980 = vmatprep.mubr.bf16.mxu0 %v1492
    %7981 = vmatmul.mubr.bf16.gmra.mrb[0].mxu0 %v1490
    %v7982 = vpop.f32.mrb[0].mxu0
    %v7983 = vadd.f32 %v7942, %v7982
    %v7984 = vpop.f32.mrb[0].mxu0
    %v7985 = vadd.f32 %v7944, %v7984
    %v7986 = vpop.f32.mrb[0].mxu0
    %v7987 = vpop.f32.mrb[0].mxu0
    %7988 = vdwg.mxu0
    %v7989 = vmax.f32 %v7983, 0.0
    %v7990 = vmax.f32 %v7985, 0.0
    %v7991 = vpack.c.bf16 %v7989, %v7989
    %v7992 = vpack.c.bf16 %v7990, %v7990
    %v7993 = vld [vmem:[%s3] sm:$0xf]
    %v7994 = vld [vmem:[%s3 + $0x4] sm:$0xf]
    %v7995 = vld [vmem:[%s3 + $0x8] sm:$0xf]
    %v7996 = vld [vmem:[%s3 + $0xc] sm:$0xf]
    %v7997 = vld [vmem:[%s3 + $0x10] sm:$0xf]
    %v7998 = vld [vmem:[%s3 + $0x14] sm:$0xf]
    %v7999 = vld [vmem:[%s3 + $0x18] sm:$0xf]
    %v8000 = vld [vmem:[%s3 + $0x1c] sm:$0xf]
    %v8001 = vld [vmem:[%s3 + $0x20] sm:$0xf]
    %v8002 = vld [vmem:[%s3 + $0x24] sm:$0xf]
    %v8003 = vld [vmem:[%s3 + $0x28] sm:$0xf]
    %v8004 = vld [vmem:[%s3 + $0x2c] sm:$0xf]
    %v8005 = vld [vmem:[%s3 + $0x30] sm:$0xf]
    %v8006 = vld [vmem:[%s3 + $0x34] sm:$0xf]
    %v8007 = vld [vmem:[%s3 + $0x38] sm:$0xf]
    %v8008 = vld [vmem:[%s3 + $0x3c] sm:$0xf]
    %v8009 = vld [vmem:[%s3 + $0x40] sm:$0xf]
    %v8010 = vld [vmem:[%s3 + $0x44] sm:$0xf]
    %v8011 = vld [vmem:[%s3 + $0x48] sm:$0xf]
    %v8012 = vld [vmem:[%s3 + $0x4c] sm:$0xf]
    %v8013 = vld [vmem:[%s3 + $0x50] sm:$0xf]
    %v8014 = vld [vmem:[%s3 + $0x54] sm:$0xf]
    %v8015 = vld [vmem:[%s3 + $0x58] sm:$0xf]
    %v8016 = vld [vmem:[%s3 + $0x5c] sm:$0xf]
    %v8017 = vld [vmem:[%s3 + $0x60] sm:$0xf]
    %v8018 = vld [vmem:[%s3 + $0x64] sm:$0xf]
    %v8019 = vld [vmem:[%s3 + $0x68] sm:$0xf]
    %v8020 = vld [vmem:[%s3 + $0x6c] sm:$0xf]
    %v8021 = vld [vmem:[%s3 + $0x70] sm:$0xf]
    %v8022 = vld [vmem:[%s3 + $0x74] sm:$0xf]
    %v8023 = vld [vmem:[%s3 + $0x78] sm:$0xf]
    %v8024 = vld [vmem:[%s3 + $0x7c] sm:$0xf]
    %v8025 = vld [vmem:[%s4] sm:$0x1]
    %v8027 = vlaneseq
    %v8028 = vshrl.u32 %v8027, 7
    %v8029 = vsub.s32 0, %v8028
    %v8030 = vrot.slane %v8025, %v8029
    %v8064 = vunpack.c.l.b16 %v7993
    %v8065 = vunpack.c.l.b16 %v7994
    %v8066 = vunpack.c.l.b16 %v7995
    %v8067 = vunpack.c.l.b16 %v7996
    %v8068 = vunpack.c.l.b16 %v7997
    %v8069 = vunpack.c.l.b16 %v7998
    %v8070 = vunpack.c.l.b16 %v7999
    %v8071 = vunpack.c.l.b16 %v8000
    %v8072 = vunpack.c.l.b16 %v8001
    %v8073 = vunpack.c.l.b16 %v8002
    %v8074 = vunpack.c.l.b16 %v8003
    %v8075 = vunpack.c.l.b16 %v8004
    %v8076 = vunpack.c.l.b16 %v8005
    %v8077 = vunpack.c.l.b16 %v8006
    %v8078 = vunpack.c.l.b16 %v8007
    %v8079 = vunpack.c.l.b16 %v8008
    %v8080 = vunpack.c.l.b16 %v8009
    %v8081 = vunpack.c.l.b16 %v8010
    %v8082 = vunpack.c.l.b16 %v8011
    %v8083 = vunpack.c.l.b16 %v8012
    %v8084 = vunpack.c.l.b16 %v8013
    %v8085 = vunpack.c.l.b16 %v8014
    %v8086 = vunpack.c.l.b16 %v8015
    %v8087 = vunpack.c.l.b16 %v8016
    %v8088 = vunpack.c.l.b16 %v8017
    %v8089 = vunpack.c.l.b16 %v8018
    %v8090 = vunpack.c.l.b16 %v8019
    %v8091 = vunpack.c.l.b16 %v8020
    %v8092 = vunpack.c.l.b16 %v8021
    %v8093 = vunpack.c.l.b16 %v8022
    %v8094 = vunpack.c.l.b16 %v8023
    %v8095 = vunpack.c.l.b16 %v8024
    %v8096 = vpack.c.b16 %v8065, %v8064
    %v8097 = vpack.c.b16 %v8067, %v8066
    %v8098 = vpack.c.b16 %v8069, %v8068
    %v8099 = vpack.c.b16 %v8071, %v8070
    %v8100 = vpack.c.b16 %v8073, %v8072
    %v8101 = vpack.c.b16 %v8075, %v8074
    %v8102 = vpack.c.b16 %v8077, %v8076
    %v8103 = vpack.c.b16 %v8079, %v8078
    %v8104 = vpack.c.b16 %v8081, %v8080
    %v8105 = vpack.c.b16 %v8083, %v8082
    %v8106 = vpack.c.b16 %v8085, %v8084
    %v8107 = vpack.c.b16 %v8087, %v8086
    %v8108 = vpack.c.b16 %v8089, %v8088
    %v8109 = vpack.c.b16 %v8091, %v8090
    %v8110 = vpack.c.b16 %v8093, %v8092
    %v8111 = vpack.c.b16 %v8095, %v8094
    %8128 = vmatprep.subr.bf16.mxu0 0
    %8129 = vmatpush1.bf16.msra.mxu0 %v8096
    %8130 = vmatprep.subr.bf16.mxu0 0
    %8131 = vmatpush1.bf16.msra.mxu0 %v8097
    %8132 = vmatprep.subr.bf16.mxu0 0
    %8133 = vmatpush1.bf16.msra.mxu0 %v8098
    %8134 = vmatprep.subr.bf16.mxu0 0
    %8135 = vmatpush1.bf16.msra.mxu0 %v8099
    %8136 = vmatprep.subr.bf16.mxu0 0
    %8137 = vmatpush1.bf16.msra.mxu0 %v8100
    %8138 = vmatprep.subr.bf16.mxu0 0
    %8139 = vmatpush1.bf16.msra.mxu0 %v8101
    %8140 = vmatprep.subr.bf16.mxu0 0
    %8141 = vmatpush1.bf16.msra.mxu0 %v8102
    %8142 = vmatprep.subr.bf16.mxu0 0
    %8143 = vmatpush1.bf16.msra.mxu0 %v8103
    %8144 = vmatprep.subr.bf16.mxu0 0
    %8145 = vmatpush1.bf16.msra.mxu0 %v8104
    %8146 = vmatprep.subr.bf16.mxu0 0
    %8147 = vmatpush1.bf16.msra.mxu0 %v8105
    %8148 = vmatprep.subr.bf16.mxu0 0
    %8149 = vmatpush1.bf16.msra.mxu0 %v8106
    %8150 = vmatprep.subr.bf16.mxu0 0
    %8151 = vmatpush1.bf16.msra.mxu0 %v8107
    %8152 = vmatprep.subr.bf16.mxu0 0
    %8153 = vmatpush1.bf16.msra.mxu0 %v8108
    %8154 = vmatprep.subr.bf16.mxu0 0
    %8155 = vmatpush1.bf16.msra.mxu0 %v8109
    %8156 = vmatprep.subr.bf16.mxu0 0
    %8157 = vmatpush1.bf16.msra.mxu0 %v8110
    %8158 = vmatprep.subr.bf16.mxu0 0
    %8159 = vmatpush1.bf16.msra.mxu0 %v8111
    %8160 = vmatprep.mubr.bf16.mxu0 %v7992
    %8161 = vmatmul.mubr.bf16.gmra.mrb[0].mxu0 %v7991
    %v8162 = vpop.f32.mrb[0].mxu0
    %v8163 = vadd.f32 %v8030, %v8162
    %v8164 = vpop.f32.mrb[0].mxu0
    %v8165 = vpop.f32.mrb[0].mxu0
    %v8166 = vpop.f32.mrb[0].mxu0
    %8167 = vdwg.mxu0
    %v8168 = vmax.f32 %v8163, 0.0
    %v8169 = vpack.c.bf16 %v8168, %v8168
    %v8170 = vld [vmem:[%s5] sm:$0xf]
    %v8171 = vld [vmem:[%s5 + $0x4] sm:$0xf]
    %v8172 = vld [vmem:[%s5 + $0x8] sm:$0xf]
    %v8173 = vld [vmem:[%s5 + $0xc] sm:$0xf]
    %v8174 = vld [vmem:[%s5 + $0x10] sm:$0xf]
    %v8175 = vld [vmem:[%s5 + $0x14] sm:$0xf]
    %v8176 = vld [vmem:[%s5 + $0x18] sm:$0xf]
    %v8177 = vld [vmem:[%s5 + $0x1c] sm:$0xf]
    %v8178 = vld [vmem:[%s5 + $0x20] sm:$0xf]
    %v8179 = vld [vmem:[%s5 + $0x24] sm:$0xf]
    %v8180 = vld [vmem:[%s5 + $0x28] sm:$0xf]
    %v8181 = vld [vmem:[%s5 + $0x2c] sm:$0xf]
    %v8182 = vld [vmem:[%s5 + $0x30] sm:$0xf]
    %v8183 = vld [vmem:[%s5 + $0x34] sm:$0xf]
    %v8184 = vld [vmem:[%s5 + $0x38] sm:$0xf]
    %v8185 = vld [vmem:[%s5 + $0x3c] sm:$0xf]
    %v8186 = vld [vmem:[%s6] sm:$0x1]
    %v8188 = vlaneseq
    %v8189 = vshrl.u32 %v8188, 7
    %v8190 = vsub.s32 0, %v8189
    %v8191 = vrot.slane %v8186, %v8190
    %v8209 = vunpack.c.l.b16 %v8170
    %v8210 = vunpack.c.l.b16 %v8171
    %v8211 = vunpack.c.l.b16 %v8172
    %v8212 = vunpack.c.l.b16 %v8173
    %v8213 = vunpack.c.l.b16 %v8174
    %v8214 = vunpack.c.l.b16 %v8175
    %v8215 = vunpack.c.l.b16 %v8176
    %v8216 = vunpack.c.l.b16 %v8177
    %v8217 = vunpack.c.l.b16 %v8178
    %v8218 = vunpack.c.l.b16 %v8179
    %v8219 = vunpack.c.l.b16 %v8180
    %v8220 = vunpack.c.l.b16 %v8181
    %v8221 = vunpack.c.l.b16 %v8182
    %v8222 = vunpack.c.l.b16 %v8183
    %v8223 = vunpack.c.l.b16 %v8184
    %v8224 = vunpack.c.l.b16 %v8185
    %v8225 = vpack.c.b16 %v8210, %v8209
    %v8226 = vpack.c.b16 %v8212, %v8211
    %v8227 = vpack.c.b16 %v8214, %v8213
    %v8228 = vpack.c.b16 %v8216, %v8215
    %v8229 = vpack.c.b16 %v8218, %v8217
    %v8230 = vpack.c.b16 %v8220, %v8219
    %v8231 = vpack.c.b16 %v8222, %v8221
    %v8232 = vpack.c.b16 %v8224, %v8223
    %8241 = vmatprep.subr.bf16.mxu0 0
    %8242 = vmatpush1.bf16.msra.mxu0 %v8225
    %8243 = vmatprep.subr.bf16.mxu0 0
    %8244 = vmatpush1.bf16.msra.mxu0 %v8226
    %8245 = vmatprep.subr.bf16.mxu0 0
    %8246 = vmatpush1.bf16.msra.mxu0 %v8227
    %8247 = vmatprep.subr.bf16.mxu0 0
    %8248 = vmatpush1.bf16.msra.mxu0 %v8228
    %8249 = vmatprep.subr.bf16.mxu0 0
    %8250 = vmatpush1.bf16.msra.mxu0 %v8229
    %8251 = vmatprep.subr.bf16.mxu0 0
    %8252 = vmatpush1.bf16.msra.mxu0 %v8230
    %8253 = vmatprep.subr.bf16.mxu0 0
    %8254 = vmatpush1.bf16.msra.mxu0 %v8231
    %8255 = vmatprep.subr.bf16.mxu0 0
    %8256 = vmatpush1.bf16.msra.mxu0 %v8232
    %8257 = vmatprep.subr.bf16.mxu0 0
    %8258 = vmatpush1.bf16.msra.mxu0 0
    %8259 = vmatprep.subr.bf16.mxu0 0
    %8260 = vmatpush1.bf16.msra.mxu0 0
    %8261 = vmatprep.subr.bf16.mxu0 0
    %8262 = vmatpush1.bf16.msra.mxu0 0
    %8263 = vmatprep.subr.bf16.mxu0 0
    %8264 = vmatpush1.bf16.msra.mxu0 0
    %8265 = vmatprep.subr.bf16.mxu0 0
    %8266 = vmatpush1.bf16.msra.mxu0 0
    %8267 = vmatprep.subr.bf16.mxu0 0
    %8268 = vmatpush1.bf16.msra.mxu0 0
    %8269 = vmatprep.subr.bf16.mxu0 0
    %8270 = vmatpush1.bf16.msra.mxu0 0
    %8271 = vmatprep.subr.bf16.mxu0 0
    %8272 = vmatpush1.bf16.msra.mxu0 0
    %8273 = vmatprep.mubr.bf16.mxu0 0
    %8274 = vmatmul.mubr.bf16.gmra.mrb[0].mxu0 %v8169
    %v8275 = vpop.f32.mrb[0].mxu0
    %v8276 = vadd.f32 %v8191, %v8275
    %v8277 = vpop.f32.mrb[0].mxu0
    %v8278 = vpop.f32.mrb[0].mxu0
    %v8279 = vpop.f32.mrb[0].mxu0
    %8280 = vdwg.mxu0
    %vm8281 = vcmask 9216
    %8282 = vst.msk [vmem:[#allocation2] sm:$0x3] %vm8281, %v8276
    %v8283 = vld [vmem:[%s7] sm:$0xf]
    %v8284 = vld [vmem:[%s7 + $0x4] sm:$0xf]
    %v8285 = vld [vmem:[%s7 + $0x8] sm:$0xf]
    %v8286 = vld [vmem:[%s7 + $0xc] sm:$0xf]
    %v8287 = vld [vmem:[%s7 + $0x10] sm:$0xf]
    %v8288 = vld [vmem:[%s7 + $0x14] sm:$0xf]
    %v8289 = vld [vmem:[%s7 + $0x18] sm:$0xf]
    %v8290 = vld [vmem:[%s7 + $0x1c] sm:$0xf]
    %v8291 = vld [vmem:[%s7 + $0x20] sm:$0xf]
    %v8292 = vld [vmem:[%s7 + $0x24] sm:$0xf]
    %v8293 = vld [vmem:[%s7 + $0x28] sm:$0xf]
    %v8294 = vld [vmem:[%s7 + $0x2c] sm:$0xf]
    %v8295 = vld [vmem:[%s7 + $0x30] sm:$0xf]
    %v8296 = vld [vmem:[%s7 + $0x34] sm:$0xf]
    %v8297 = vld [vmem:[%s7 + $0x38] sm:$0xf]
    %v8298 = vld [vmem:[%s7 + $0x3c] sm:$0xf]
    %v8299 = vld [vmem:[%s8] sm:$0x1]
    %v8301 = vlaneseq
    %v8302 = vshrl.u32 %v8301, 7
    %v8303 = vsub.s32 0, %v8302
    %v8304 = vrot.slane %v8299, %v8303
    %v8322 = vunpack.c.l.b16 %v8283
    %v8323 = vunpack.c.l.b16 %v8284
    %v8324 = vunpack.c.l.b16 %v8285
    %v8325 = vunpack.c.l.b16 %v8286
    %v8326 = vunpack.c.l.b16 %v8287
    %v8327 = vunpack.c.l.b16 %v8288
    %v8328 = vunpack.c.l.b16 %v8289
    %v8329 = vunpack.c.l.b16 %v8290
    %v8330 = vunpack.c.l.b16 %v8291
    %v8331 = vunpack.c.l.b16 %v8292
    %v8332 = vunpack.c.l.b16 %v8293
    %v8333 = vunpack.c.l.b16 %v8294
    %v8334 = vunpack.c.l.b16 %v8295
    %v8335 = vunpack.c.l.b16 %v8296
    %v8336 = vunpack.c.l.b16 %v8297
    %v8337 = vunpack.c.l.b16 %v8298
    %v8338 = vpack.c.b16 %v8323, %v8322
    %v8339 = vpack.c.b16 %v8325, %v8324
    %v8340 = vpack.c.b16 %v8327, %v8326
    %v8341 = vpack.c.b16 %v8329, %v8328
    %v8342 = vpack.c.b16 %v8331, %v8330
    %v8343 = vpack.c.b16 %v8333, %v8332
    %v8344 = vpack.c.b16 %v8335, %v8334
    %v8345 = vpack.c.b16 %v8337, %v8336
    %8354 = vmatprep.subr.bf16.mxu0 0
    %8355 = vmatpush1.bf16.msra.mxu0 %v8338
    %8356 = vmatprep.subr.bf16.mxu0 0
    %8357 = vmatpush1.bf16.msra.mxu0 %v8339
    %8358 = vmatprep.subr.bf16.mxu0 0
    %8359 = vmatpush1.bf16.msra.mxu0 %v8340
    %8360 = vmatprep.subr.bf16.mxu0 0
    %8361 = vmatpush1.bf16.msra.mxu0 %v8341
    %8362 = vmatprep.subr.bf16.mxu0 0
    %8363 = vmatpush1.bf16.msra.mxu0 %v8342
    %8364 = vmatprep.subr.bf16.mxu0 0
    %8365 = vmatpush1.bf16.msra.mxu0 %v8343
    %8366 = vmatprep.subr.bf16.mxu0 0
    %8367 = vmatpush1.bf16.msra.mxu0 %v8344
    %8368 = vmatprep.subr.bf16.mxu0 0
    %8369 = vmatpush1.bf16.msra.mxu0 %v8345
    %8370 = vmatprep.subr.bf16.mxu0 0
    %8371 = vmatpush1.bf16.msra.mxu0 0
    %8372 = vmatprep.subr.bf16.mxu0 0
    %8373 = vmatpush1.bf16.msra.mxu0 0
    %8374 = vmatprep.subr.bf16.mxu0 0
    %8375 = vmatpush1.bf16.msra.mxu0 0
    %8376 = vmatprep.subr.bf16.mxu0 0
    %8377 = vmatpush1.bf16.msra.mxu0 0
    %8378 = vmatprep.subr.bf16.mxu0 0
    %8379 = vmatpush1.bf16.msra.mxu0 0
    %8380 = vmatprep.subr.bf16.mxu0 0
    %8381 = vmatpush1.bf16.msra.mxu0 0
    %8382 = vmatprep.subr.bf16.mxu0 0
    %8383 = vmatpush1.bf16.msra.mxu0 0
    %8384 = vmatprep.subr.bf16.mxu0 0
    %8385 = vmatpush1.bf16.msra.mxu0 0
    %8386 = vmatprep.mubr.bf16.mxu0 0
    %8387 = vmatmul.mubr.bf16.gmra.mrb[0].mxu0 %v8169
    %v8388 = vpop.f32.mrb[0].mxu0
    %v8389 = vadd.f32 %v8304, %v8388
    %v8390 = vpop.f32.mrb[0].mxu0
    %v8391 = vpop.f32.mrb[0].mxu0
    %v8392 = vpop.f32.mrb[0].mxu0
    %8393 = vdwg.mxu0
    %8394 = vst.msk [vmem:[%s14] sm:$0x3] %vm8281, %v8389
    %v8395 = vld [vmem:[%s9] sm:$0xf]
    %v8396 = vld [vmem:[%s9 + $0x4] sm:$0xf]
    %v8397 = vld [vmem:[%s9 + $0x8] sm:$0xf]
    %v8398 = vld [vmem:[%s9 + $0xc] sm:$0xf]
    %v8399 = vld [vmem:[%s9 + $0x10] sm:$0xf]
    %v8400 = vld [vmem:[%s9 + $0x14] sm:$0xf]
    %v8401 = vld [vmem:[%s9 + $0x18] sm:$0xf]
    %v8402 = vld [vmem:[%s9 + $0x1c] sm:$0xf]
    %v8403 = vld [vmem:[%s9 + $0x20] sm:$0xf]
    %v8404 = vld [vmem:[%s9 + $0x24] sm:$0xf]
    %v8405 = vld [vmem:[%s9 + $0x28] sm:$0xf]
    %v8406 = vld [vmem:[%s9 + $0x2c] sm:$0xf]
    %v8407 = vld [vmem:[%s9 + $0x30] sm:$0xf]
    %v8408 = vld [vmem:[%s9 + $0x34] sm:$0xf]
    %v8409 = vld [vmem:[%s9 + $0x38] sm:$0xf]
    %v8410 = vld [vmem:[%s9 + $0x3c] sm:$0xf]
    %v8411 = vld [vmem:[%s9 + $0x40] sm:$0xf]
    %v8412 = vld [vmem:[%s9 + $0x44] sm:$0xf]
    %v8413 = vld [vmem:[%s9 + $0x48] sm:$0xf]
    %v8414 = vld [vmem:[%s9 + $0x4c] sm:$0xf]
    %v8415 = vld [vmem:[%s9 + $0x50] sm:$0xf]
    %v8416 = vld [vmem:[%s9 + $0x54] sm:$0xf]
    %v8417 = vld [vmem:[%s9 + $0x58] sm:$0xf]
    %v8418 = vld [vmem:[%s9 + $0x5c] sm:$0xf]
    %v8419 = vld [vmem:[%s9 + $0x60] sm:$0xf]
    %v8420 = vld [vmem:[%s9 + $0x64] sm:$0xf]
    %v8421 = vld [vmem:[%s9 + $0x68] sm:$0xf]
    %v8422 = vld [vmem:[%s9 + $0x6c] sm:$0xf]
    %v8423 = vld [vmem:[%s9 + $0x70] sm:$0xf]
    %v8424 = vld [vmem:[%s9 + $0x74] sm:$0xf]
    %v8425 = vld [vmem:[%s9 + $0x78] sm:$0xf]
    %v8426 = vld [vmem:[%s9 + $0x7c] sm:$0xf]
    %v8427 = vld [vmem:[%s10] sm:$0x1]
    %v8429 = vlaneseq
    %v8430 = vshrl.u32 %v8429, 7
    %v8431 = vsub.s32 0, %v8430
    %v8432 = vrot.slane %v8427, %v8431
    %v8466 = vunpack.c.l.b16 %v8395
    %v8467 = vunpack.c.l.b16 %v8396
    %v8468 = vunpack.c.l.b16 %v8397
    %v8469 = vunpack.c.l.b16 %v8398
    %v8470 = vunpack.c.l.b16 %v8399
    %v8471 = vunpack.c.l.b16 %v8400
    %v8472 = vunpack.c.l.b16 %v8401
    %v8473 = vunpack.c.l.b16 %v8402
    %v8474 = vunpack.c.l.b16 %v8403
    %v8475 = vunpack.c.l.b16 %v8404
    %v8476 = vunpack.c.l.b16 %v8405
    %v8477 = vunpack.c.l.b16 %v8406
    %v8478 = vunpack.c.l.b16 %v8407
    %v8479 = vunpack.c.l.b16 %v8408
    %v8480 = vunpack.c.l.b16 %v8409
    %v8481 = vunpack.c.l.b16 %v8410
    %v8482 = vunpack.c.l.b16 %v8411
    %v8483 = vunpack.c.l.b16 %v8412
    %v8484 = vunpack.c.l.b16 %v8413
    %v8485 = vunpack.c.l.b16 %v8414
    %v8486 = vunpack.c.l.b16 %v8415
    %v8487 = vunpack.c.l.b16 %v8416
    %v8488 = vunpack.c.l.b16 %v8417
    %v8489 = vunpack.c.l.b16 %v8418
    %v8490 = vunpack.c.l.b16 %v8419
    %v8491 = vunpack.c.l.b16 %v8420
    %v8492 = vunpack.c.l.b16 %v8421
    %v8493 = vunpack.c.l.b16 %v8422
    %v8494 = vunpack.c.l.b16 %v8423
    %v8495 = vunpack.c.l.b16 %v8424
    %v8496 = vunpack.c.l.b16 %v8425
    %v8497 = vunpack.c.l.b16 %v8426
    %v8498 = vpack.c.b16 %v8467, %v8466
    %v8499 = vpack.c.b16 %v8469, %v8468
    %v8500 = vpack.c.b16 %v8471, %v8470
    %v8501 = vpack.c.b16 %v8473, %v8472
    %v8502 = vpack.c.b16 %v8475, %v8474
    %v8503 = vpack.c.b16 %v8477, %v8476
    %v8504 = vpack.c.b16 %v8479, %v8478
    %v8505 = vpack.c.b16 %v8481, %v8480
    %v8506 = vpack.c.b16 %v8483, %v8482
    %v8507 = vpack.c.b16 %v8485, %v8484
    %v8508 = vpack.c.b16 %v8487, %v8486
    %v8509 = vpack.c.b16 %v8489, %v8488
    %v8510 = vpack.c.b16 %v8491, %v8490
    %v8511 = vpack.c.b16 %v8493, %v8492
    %v8512 = vpack.c.b16 %v8495, %v8494
    %v8513 = vpack.c.b16 %v8497, %v8496
    %8530 = vmatprep.subr.bf16.mxu0 0
    %8531 = vmatpush1.bf16.msra.mxu0 %v8498
    %8532 = vmatprep.subr.bf16.mxu0 0
    %8533 = vmatpush1.bf16.msra.mxu0 %v8499
    %8534 = vmatprep.subr.bf16.mxu0 0
    %8535 = vmatpush1.bf16.msra.mxu0 %v8500
    %8536 = vmatprep.subr.bf16.mxu0 0
    %8537 = vmatpush1.bf16.msra.mxu0 %v8501
    %8538 = vmatprep.subr.bf16.mxu0 0
    %8539 = vmatpush1.bf16.msra.mxu0 %v8502
    %8540 = vmatprep.subr.bf16.mxu0 0
    %8541 = vmatpush1.bf16.msra.mxu0 %v8503
    %8542 = vmatprep.subr.bf16.mxu0 0
    %8543 = vmatpush1.bf16.msra.mxu0 %v8504
    %8544 = vmatprep.subr.bf16.mxu0 0
    %8545 = vmatpush1.bf16.msra.mxu0 %v8505
    %8546 = vmatprep.subr.bf16.mxu0 0
    %8547 = vmatpush1.bf16.msra.mxu0 %v8506
    %8548 = vmatprep.subr.bf16.mxu0 0
    %8549 = vmatpush1.bf16.msra.mxu0 %v8507
    %8550 = vmatprep.subr.bf16.mxu0 0
    %8551 = vmatpush1.bf16.msra.mxu0 %v8508
    %8552 = vmatprep.subr.bf16.mxu0 0
    %8553 = vmatpush1.bf16.msra.mxu0 %v8509
    %8554 = vmatprep.subr.bf16.mxu0 0
    %8555 = vmatpush1.bf16.msra.mxu0 %v8510
    %8556 = vmatprep.subr.bf16.mxu0 0
    %8557 = vmatpush1.bf16.msra.mxu0 %v8511
    %8558 = vmatprep.subr.bf16.mxu0 0
    %8559 = vmatpush1.bf16.msra.mxu0 %v8512
    %8560 = vmatprep.subr.bf16.mxu0 0
    %8561 = vmatpush1.bf16.msra.mxu0 %v8513
    %8562 = vmatprep.mubr.bf16.mxu0 %v7992
    %8563 = vmatmul.mubr.bf16.gmra.mrb[0].mxu0 %v7991
    %v8564 = vpop.f32.mrb[0].mxu0
    %v8565 = vadd.f32 %v8432, %v8564
    %v8566 = vpop.f32.mrb[0].mxu0
    %v8567 = vpop.f32.mrb[0].mxu0
    %v8568 = vpop.f32.mrb[0].mxu0
    %8569 = vdwg.mxu0
    %v8570 = vmax.f32 %v8565, 0.0
    %v8571 = vpack.c.bf16 %v8570, %v8570
    %v8572 = vld [vmem:[%s11] sm:$0xf]
    %v8573 = vld [vmem:[%s11 + $0x4] sm:$0xf]
    %v8574 = vld [vmem:[%s11 + $0x8] sm:$0xf]
    %v8575 = vld [vmem:[%s11 + $0xc] sm:$0xf]
    %v8576 = vld [vmem:[%s11 + $0x10] sm:$0xf]
    %v8577 = vld [vmem:[%s11 + $0x14] sm:$0xf]
    %v8578 = vld [vmem:[%s11 + $0x18] sm:$0xf]
    %v8579 = vld [vmem:[%s11 + $0x1c] sm:$0xf]
    %v8580 = vld [vmem:[%s11 + $0x20] sm:$0xf]
    %v8581 = vld [vmem:[%s11 + $0x24] sm:$0xf]
    %v8582 = vld [vmem:[%s11 + $0x28] sm:$0xf]
    %v8583 = vld [vmem:[%s11 + $0x2c] sm:$0xf]
    %v8584 = vld [vmem:[%s11 + $0x30] sm:$0xf]
    %v8585 = vld [vmem:[%s11 + $0x34] sm:$0xf]
    %v8586 = vld [vmem:[%s11 + $0x38] sm:$0xf]
    %v8587 = vld [vmem:[%s11 + $0x3c] sm:$0xf]
    %v8588 = vld [vmem:[%s12] sm:$0x1]
    %v8590 = vlaneseq
    %v8591 = vshrl.u32 %v8590, 7
    %v8592 = vsub.s32 0, %v8591
    %v8593 = vrot.slane %v8588, %v8592
    %v8611 = vunpack.c.l.b16 %v8572
    %v8612 = vunpack.c.l.b16 %v8573
    %v8613 = vunpack.c.l.b16 %v8574
    %v8614 = vunpack.c.l.b16 %v8575
    %v8615 = vunpack.c.l.b16 %v8576
    %v8616 = vunpack.c.l.b16 %v8577
    %v8617 = vunpack.c.l.b16 %v8578
    %v8618 = vunpack.c.l.b16 %v8579
    %v8619 = vunpack.c.l.b16 %v8580
    %v8620 = vunpack.c.l.b16 %v8581
    %v8621 = vunpack.c.l.b16 %v8582
    %v8622 = vunpack.c.l.b16 %v8583
    %v8623 = vunpack.c.l.b16 %v8584
    %v8624 = vunpack.c.l.b16 %v8585
    %v8625 = vunpack.c.l.b16 %v8586
    %v8626 = vunpack.c.l.b16 %v8587
    %v8627 = vpack.c.b16 %v8612, %v8611
    %v8628 = vpack.c.b16 %v8614, %v8613
    %v8629 = vpack.c.b16 %v8616, %v8615
    %v8630 = vpack.c.b16 %v8618, %v8617
    %v8631 = vpack.c.b16 %v8620, %v8619
    %v8632 = vpack.c.b16 %v8622, %v8621
    %v8633 = vpack.c.b16 %v8624, %v8623
    %v8634 = vpack.c.b16 %v8626, %v8625
    %8643 = vmatprep.subr.bf16.mxu0 0
    %8644 = vmatpush1.bf16.msra.mxu0 %v8627
    %8645 = vmatprep.subr.bf16.mxu0 0
    %8646 = vmatpush1.bf16.msra.mxu0 %v8628
    %8647 = vmatprep.subr.bf16.mxu0 0
    %8648 = vmatpush1.bf16.msra.mxu0 %v8629
    %8649 = vmatprep.subr.bf16.mxu0 0
    %8650 = vmatpush1.bf16.msra.mxu0 %v8630
    %8651 = vmatprep.subr.bf16.mxu0 0
    %8652 = vmatpush1.bf16.msra.mxu0 %v8631
    %8653 = vmatprep.subr.bf16.mxu0 0
    %8654 = vmatpush1.bf16.msra.mxu0 %v8632
    %8655 = vmatprep.subr.bf16.mxu0 0
    %8656 = vmatpush1.bf16.msra.mxu0 %v8633
    %8657 = vmatprep.subr.bf16.mxu0 0
    %8658 = vmatpush1.bf16.msra.mxu0 %v8634
    %8659 = vmatprep.subr.bf16.mxu0 0
    %8660 = vmatpush1.bf16.msra.mxu0 0
    %8661 = vmatprep.subr.bf16.mxu0 0
    %8662 = vmatpush1.bf16.msra.mxu0 0
    %8663 = vmatprep.subr.bf16.mxu0 0
    %8664 = vmatpush1.bf16.msra.mxu0 0
    %8665 = vmatprep.subr.bf16.mxu0 0
    %8666 = vmatpush1.bf16.msra.mxu0 0
    %8667 = vmatprep.subr.bf16.mxu0 0
    %8668 = vmatpush1.bf16.msra.mxu0 0
    %8669 = vmatprep.subr.bf16.mxu0 0
    %8670 = vmatpush1.bf16.msra.mxu0 0
    %8671 = vmatprep.subr.bf16.mxu0 0
    %8672 = vmatpush1.bf16.msra.mxu0 0
    %8673 = vmatprep.subr.bf16.mxu0 0
    %8674 = vmatpush1.bf16.msra.mxu0 0
    %8675 = vmatprep.mubr.bf16.mxu0 0
    %8676 = vmatmul.mubr.bf16.gmra.mrb[0].mxu0 %v8571
    %v8677 = vpop.f32.mrb[0].mxu0
    %v8678 = vadd.f32 %v8593, %v8677
    %v8679 = vpop.f32.mrb[0].mxu0
    %v8680 = vpop.f32.mrb[0].mxu0
    %v8681 = vpop.f32.mrb[0].mxu0
    %8682 = vdwg.mxu0
    %vm8683 = vcmask 74752
    %8684 = vst.msk [vmem:[%s15] sm:$0x3] %vm8683, %v8678
    %s8685 = scalar_lea.vmem %s11, 64
    %v8686 = vld [vmem:[%s8685] sm:$0xf]
    %v8687 = vld [vmem:[%s8685 + $0x4] sm:$0xf]
    %v8688 = vld [vmem:[%s8685 + $0x8] sm:$0xf]
    %v8689 = vld [vmem:[%s8685 + $0xc] sm:$0xf]
    %v8690 = vld [vmem:[%s8685 + $0x10] sm:$0xf]
    %v8691 = vld [vmem:[%s8685 + $0x14] sm:$0xf]
    %v8692 = vld [vmem:[%s8685 + $0x18] sm:$0xf]
    %v8693 = vld [vmem:[%s8685 + $0x1c] sm:$0xf]
    %v8694 = vld [vmem:[%s8685 + $0x20] sm:$0xf]
    %v8695 = vld [vmem:[%s8685 + $0x24] sm:$0xf]
    %v8696 = vld [vmem:[%s8685 + $0x28] sm:$0xf]
    %v8697 = vld [vmem:[%s8685 + $0x2c] sm:$0xf]
    %v8698 = vld [vmem:[%s8685 + $0x30] sm:$0xf]
    %v8699 = vld [vmem:[%s8685 + $0x34] sm:$0xf]
    %v8700 = vld [vmem:[%s8685 + $0x38] sm:$0xf]
    %v8701 = vld [vmem:[%s8685 + $0x3c] sm:$0xf]
    %v8702 = vld [vmem:[%s12] sm:$0x1]
    %v8704 = vlaneseq
    %v8705 = vshrl.u32 %v8704, 7
    %v8706 = vsub.s32 0, %v8705
    %v8707 = vrot.slane %v8702, %v8706
    %v8725 = vunpack.c.l.b16 %v8686
    %v8726 = vunpack.c.l.b16 %v8687
    %v8727 = vunpack.c.l.b16 %v8688
    %v8728 = vunpack.c.l.b16 %v8689
    %v8729 = vunpack.c.l.b16 %v8690
    %v8730 = vunpack.c.l.b16 %v8691
    %v8731 = vunpack.c.l.b16 %v8692
    %v8732 = vunpack.c.l.b16 %v8693
    %v8733 = vunpack.c.l.b16 %v8694
    %v8734 = vunpack.c.l.b16 %v8695
    %v8735 = vunpack.c.l.b16 %v8696
    %v8736 = vunpack.c.l.b16 %v8697
    %v8737 = vunpack.c.l.b16 %v8698
    %v8738 = vunpack.c.l.b16 %v8699
    %v8739 = vunpack.c.l.b16 %v8700
    %v8740 = vunpack.c.l.b16 %v8701
    %v8741 = vpack.c.b16 %v8726, %v8725
    %v8742 = vpack.c.b16 %v8728, %v8727
    %v8743 = vpack.c.b16 %v8730, %v8729
    %v8744 = vpack.c.b16 %v8732, %v8731
    %v8745 = vpack.c.b16 %v8734, %v8733
    %v8746 = vpack.c.b16 %v8736, %v8735
    %v8747 = vpack.c.b16 %v8738, %v8737
    %v8748 = vpack.c.b16 %v8740, %v8739
    %8757 = vmatprep.subr.bf16.mxu0 0
    %8758 = vmatpush1.bf16.msra.mxu0 %v8741
    %8759 = vmatprep.subr.bf16.mxu0 0
    %8760 = vmatpush1.bf16.msra.mxu0 %v8742
    %8761 = vmatprep.subr.bf16.mxu0 0
    %8762 = vmatpush1.bf16.msra.mxu0 %v8743
    %8763 = vmatprep.subr.bf16.mxu0 0
    %8764 = vmatpush1.bf16.msra.mxu0 %v8744
    %8765 = vmatprep.subr.bf16.mxu0 0
    %8766 = vmatpush1.bf16.msra.mxu0 %v8745
    %8767 = vmatprep.subr.bf16.mxu0 0
    %8768 = vmatpush1.bf16.msra.mxu0 %v8746
    %8769 = vmatprep.subr.bf16.mxu0 0
    %8770 = vmatpush1.bf16.msra.mxu0 %v8747
    %8771 = vmatprep.subr.bf16.mxu0 0
    %8772 = vmatpush1.bf16.msra.mxu0 %v8748
    %8773 = vmatprep.subr.bf16.mxu0 0
    %8774 = vmatpush1.bf16.msra.mxu0 0
    %8775 = vmatprep.subr.bf16.mxu0 0
    %8776 = vmatpush1.bf16.msra.mxu0 0
    %8777 = vmatprep.subr.bf16.mxu0 0
    %8778 = vmatpush1.bf16.msra.mxu0 0
    %8779 = vmatprep.subr.bf16.mxu0 0
    %8780 = vmatpush1.bf16.msra.mxu0 0
    %8781 = vmatprep.subr.bf16.mxu0 0
    %8782 = vmatpush1.bf16.msra.mxu0 0
    %8783 = vmatprep.subr.bf16.mxu0 0
    %8784 = vmatpush1.bf16.msra.mxu0 0
    %8785 = vmatprep.subr.bf16.mxu0 0
    %8786 = vmatpush1.bf16.msra.mxu0 0
    %8787 = vmatprep.subr.bf16.mxu0 0
    %8788 = vmatpush1.bf16.msra.mxu0 0
    %8789 = vmatprep.mubr.bf16.mxu0 0
    %8790 = vmatmul.mubr.bf16.gmra.mrb[0].mxu0 %v8571
    %v8791 = vpop.f32.mrb[0].mxu0
    %v8792 = vadd.f32 %v8707, %v8791
    %v8793 = vpop.f32.mrb[0].mxu0
    %v8794 = vpop.f32.mrb[0].mxu0
    %v8795 = vpop.f32.mrb[0].mxu0
    %8796 = vdwg.mxu0
    %s8797 = scalar_lea.vmem %s15, 2
    %8798 = vst.msk [vmem:[%s8797] sm:$0x3] %vm8683, %v8792
    // Predicated region
    $region54: #{prunus_forward.13} parent=1 // pred_check
      _
    $region55: #{prunus_forward.13} parent=1 // pred_check_branch
      %8800 = sbr.rel (0) target = $region57
    $region56: #{prunus_forward.13} parent=1 // pred_region
      %s8802 = ssub.s32 32, 32
      %8803 = vsyncadd [#allocation3], %s8802
      %s8805 = sshll.u32 [#allocation2], 4
      %s8806 = int_to_ptr.vmem [resolvable:$true] %s8805
      %8808 = dma.vmem_to_hbm [thread:$0]  %s8806, 32, %s13, [#allocation3]
    $region57: #{prunus_forward.13} parent=1 // pred_fallthru
      _
    // Predicated region
    $region58: #{prunus_forward.13} parent=1 // pred_check
      _
    $region59: #{prunus_forward.13} parent=1 // pred_check_branch
      %8810 = sbr.rel (0) target = $region61
    $region60: #{prunus_forward.13} parent=1 // pred_region
      _
    $region61: #{prunus_forward.13} parent=1 // pred_fallthru
      _
    // Predicated region
    $region62: #{prunus_forward.13} parent=1 // pred_check
      _
    $region63: #{prunus_forward.13} parent=1 // pred_check_branch
      %8812 = sbr.rel (0) target = $region65
    $region64: #{prunus_forward.13} parent=1 // pred_region
      _
    $region65: #{prunus_forward.13} parent=1 // pred_fallthru
      _
    // Predicated region
    $region66: #{prunus_forward.13} parent=1 // pred_check
      _
    $region67: #{prunus_forward.13} parent=1 // pred_check_branch
      %8814 = sbr.rel (0) target = $region69
    $region68: #{prunus_forward.13} parent=1 // pred_region
      %8815 = dma.done [#allocation3], 32
    $region69: #{prunus_forward.13} parent=1 // pred_fallthru
      _
    // Predicated region
    $region70: #{prunus_forward.13} parent=1 // pred_check
      _
    $region71: #{prunus_forward.13} parent=1 // pred_check_branch
      %8817 = sbr.rel (0) target = $region73
    $region72: #{prunus_forward.13} parent=1 // pred_region
      _
    $region73: #{prunus_forward.13} parent=1 // pred_fallthru
      _
    // Predicated region
    $region74: #{prunus_forward.13} parent=1 // pred_check
      _
    $region75: #{prunus_forward.13} parent=1 // pred_check_branch
      %8819 = sbr.rel (0) target = $region77
    $region76: #{prunus_forward.13} parent=1 // pred_region
      _
    $region77: #{prunus_forward.13} parent=1 // pred_fallthru
      _
    %8820 = vsyncpa [#allocation3], 1

</llo_original>
